<compile_context>
chip_gen: v6e
topology: v6e:2x2x1
jax: 0.10.0
libtpu: 0.0.40
codegen_flags: <defaults>
</compile_context>

<pallas_src>
import functools
import math

import jax
import jax.numpy as jnp
from jax.experimental import pallas as pl
from jax.experimental.pallas import tpu as pltpu

N_HEADS = 8
LN_EPS = 1e-5


def _encoder_layer_kernel(x_ref, wqkv_ref, bqkv_ref, wo_ref, bo_ref,
                          w1_ref, b1_ref, w2_ref, b2_ref,
                          g1_ref, be1_ref, g2_ref, be2_ref, o_ref,
                          *, tile_n, seq_len, d_model):
    T, D = seq_len, d_model
    M = tile_n * T                       # token rows in this block
    H = N_HEADS
    hd = D // H
    scale = 1.0 / math.sqrt(hd)

    # x block: (M, D) = tile_n whole sequences, token-major. Residual stays f32.
    x = x_ref[...].astype(jnp.float32)

    # ---- Multi-head self-attention --------------------------------------
    # QKV projection: bf16 operands (weights pre-cast on host), f32 accumulation.
    qkv = jnp.dot(x.astype(jnp.bfloat16), wqkv_ref[...],
                  preferred_element_type=jnp.float32) + bqkv_ref[...]

    # Head split without per-head slice/concat.  Column order of qkv is
    # (s, h, hd) with s in {q,k,v}, matching PyTorch in_proj_weight stacking.
    qkv_b = qkv.reshape(M, 3 * H, hd)                     # lane -> (head, hd)
    qkv_b = pltpu.einshape("mhd->hmd", qkv_b)             # (3H, M, hd)
    qkv_b = qkv_b.reshape(3, H * tile_n, T, hd)           # batch = h*tile_n + n
    q = qkv_b[0]
    k = qkv_b[1]
    v = qkv_b[2]

    # Batched attention over all (head, sequence) pairs at once; MXU matmuls in
    # bf16 with f32 accumulation, softmax element-wise strictly f32.
    s = jnp.einsum('bqd,bkd->bqk', q.astype(jnp.bfloat16), k.astype(jnp.bfloat16),
                   preferred_element_type=jnp.float32) * scale   # (H*tile_n, T, T)
    s = s - jnp.max(s, axis=-1, keepdims=True)
    p = jnp.exp(s)
    p = p * pl.reciprocal(jnp.sum(p, axis=-1, keepdims=True), approx=True)
    oh = jnp.einsum('bqk,bkd->bqd', p.astype(jnp.bfloat16), v.astype(jnp.bfloat16),
                    preferred_element_type=jnp.float32)          # (H*tile_n, T, hd)

    # Merge heads back to (M, D): inverse einshape, columns in (head, hd) order.
    attn = pltpu.einshape("hmd->mhd", oh.reshape(H, M, hd)).reshape(M, D)

    # Output projection.
    attn = jnp.dot(attn.astype(jnp.bfloat16), wo_ref[...],
                   preferred_element_type=jnp.float32) + bo_ref[...]

    # Residual + LayerNorm1 (post-norm); dropout is identity in eval mode.
    x1 = x + attn
    mu = jnp.mean(x1, axis=-1, keepdims=True)
    var = jnp.mean(jnp.square(x1 - mu), axis=-1, keepdims=True)
    x1 = (x1 - mu) * jax.lax.rsqrt(var + LN_EPS) * g1_ref[...] + be1_ref[...]

    # ---- Feed-forward: linear1 -> exact erf GELU -> linear2 --------------
    h1 = jnp.dot(x1.astype(jnp.bfloat16), w1_ref[...],
                 preferred_element_type=jnp.float32) + b1_ref[...]
    h1 = 0.5 * h1 * (1.0 + jax.lax.erf(h1 * (1.0 / math.sqrt(2.0))))
    ff = jnp.dot(h1.astype(jnp.bfloat16), w2_ref[...],
                 preferred_element_type=jnp.float32) + b2_ref[...]

    # Residual + LayerNorm2.
    x2 = x1 + ff
    mu2 = jnp.mean(x2, axis=-1, keepdims=True)
    var2 = jnp.mean(jnp.square(x2 - mu2), axis=-1, keepdims=True)
    x2 = (x2 - mu2) * jax.lax.rsqrt(var2 + LN_EPS) * g2_ref[...] + be2_ref[...]

    o_ref[...] = x2.astype(o_ref.dtype)


def _generation_config():
    """Per-TPU-generation VMEM budget / grid preferences (conservative if unknown)."""
    kind = ""
    try:
        kind = (getattr(jax.devices()[0], "device_kind", "") or "").lower()
    except Exception:
        pass
    if "v7" in kind:
        # 64 MiB physical VMEM per TC, 2 TensorCores: tight budget, even grid.
        return dict(vmem_limit=48 * 1024 * 1024, budget=40 * 1024 * 1024,
                    row_target=512, prefer_even_grid=True)
    if "v5" in kind or "v6" in kind:
        # 128 MiB physical VMEM, single TensorCore: big blocks, no forced split.
        return dict(vmem_limit=96 * 1024 * 1024, budget=80 * 1024 * 1024,
                    row_target=1024, prefer_even_grid=False)
    # Unknown chip: conservative settings valid on every generation.
    return dict(vmem_limit=48 * 1024 * 1024, budget=40 * 1024 * 1024,
                row_target=512, prefer_even_grid=True)


def _pick_tile_n(n_seq, seq_len, d_model, cfg):
    """Sequences per block under an explicit VMEM budget."""
    # bf16 weights, single-buffered: (3+1+4+4) * D^2 * 2 bytes; biases negligible.
    weight_bytes = 24 * d_model * d_model * 2
    # Per-sequence residency: f32 in/out blocks (input double-buffered) plus
    # ~24*T*D f32 of live intermediates (the (T, 4D) FFN hidden dominates).
    per_seq = 28 * seq_len * d_model * 4
    avail = max(cfg["budget"] - weight_bytes, per_seq)
    vmem_cap = max(1, int(avail // per_seq))
    row_target = max(1, -(-cfg["row_target"] // max(seq_len, 1)))
    target = max(1, min(n_seq, vmem_cap, row_target))

    def valid(t):
        # Block second-minor dim (t*T) must be a multiple of 8 or the full extent.
        return n_seq % t == 0 and ((t * seq_len) % 8 == 0 or t == n_seq)

    divisors = [t for t in range(1, n_seq + 1) if valid(t)]
    candidates = [t for t in divisors if t <= target] or [min(divisors)]
    best = max(candidates)
    if cfg["prefer_even_grid"]:
        even = [t for t in candidates if (n_seq // t) % 2 == 0]
        if even:
            best = max(even)   # keep both v7x TensorCores busy every step
    return best


def trans_conv_forward(x, params):
    """x: (B, C, T, D) float32. params: encoder-layer weights in PyTorch layout."""
    B, C, T, D = x.shape
    assert D % N_HEADS == 0
    N = B * C
    cfg = _generation_config()
    tile_n = _pick_tile_n(N, T, D, cfg)
    tile_m = tile_n * T

    # Flatten to token rows: (N*T, D). Row (n*T + t) is token t of sequence n,
    # so tile_m consecutive rows are exactly tile_n whole sequences.
    x2 = x.reshape(N * T, D)

    # Pre-transpose once (F.linear is x @ W.T + b) and pre-cast matmul weights
    # to bf16 on the host; biases / LayerNorm params stay f32.
    wqkv_t = params["wqkv"].T.astype(jnp.bfloat16)   # (D, 3D)
    wo_t = params["wo"].T.astype(jnp.bfloat16)       # (D, D)
    w1_t = params["w1"].T.astype(jnp.bfloat16)       # (D, 4D)
    w2_t = params["w2"].T.astype(jnp.bfloat16)       # (4D, D)

    kernel = functools.partial(_encoder_layer_kernel,
                               tile_n=tile_n, seq_len=T, d_model=D)

    def resident(a):
        # Grid-invariant operand: fetched once, single-buffered (no double buffer).
        return pl.BlockSpec(a.shape, lambda i: (0, 0),
                            pipeline_mode=pl.Buffered(1))

    out = pl.pallas_call(
        kernel,
        out_shape=jax.ShapeDtypeStruct((N * T, D), x.dtype),
        grid_spec=pl.GridSpec(
            grid=(N // tile_n,),
            in_specs=[
                pl.BlockSpec((tile_m, D), lambda i: (i, 0)),    # x token rows
                resident(wqkv_t), resident(params["bqkv"]),
                resident(wo_t), resident(params["bo"]),
                resident(w1_t), resident(params["b1"]),
                resident(w2_t), resident(params["b2"]),
                resident(params["g1"]), resident(params["be1"]),
                resident(params["g2"]), resident(params["be2"]),
            ],
            out_specs=pl.BlockSpec((tile_m, D), lambda i: (i, 0)),
        ),
        compiler_params=pltpu.CompilerParams(
            dimension_semantics=("parallel",),
            vmem_limit_bytes=cfg["vmem_limit"],
        ),
    )(x2,
      wqkv_t, params["bqkv"],
      wo_t, params["bo"],
      w1_t, params["b1"],
      w2_t, params["b2"],
      params["g1"], params["be1"],
      params["g2"], params["be2"])

    return out.reshape(B, C, T, D)


def init_params(key, d_model):
    """Deterministic synthetic weights with nn.TransformerEncoderLayer shapes."""
    D = d_model
    ks = jax.random.split(key, 8)
    s = 0.05
    return {
        "wqkv": s * jax.random.normal(ks[0], (3 * D, D), jnp.float32),
        "bqkv": s * jax.random.normal(ks[1], (1, 3 * D), jnp.float32),
        "wo":   s * jax.random.normal(ks[2], (D, D), jnp.float32),
        "bo":   s * jax.random.normal(ks[3], (1, D), jnp.float32),
        "w1":   s * jax.random.normal(ks[4], (4 * D, D), jnp.float32),
        "b1":   s * jax.random.normal(ks[5], (1, 4 * D), jnp.float32),
        "w2":   s * jax.random.normal(ks[6], (D, 4 * D), jnp.float32),
        "b2":   s * jax.random.normal(ks[7], (1, D), jnp.float32),
        "g1":   jnp.ones((1, D), jnp.float32),
        "be1":  jnp.zeros((1, D), jnp.float32),
        "g2":   jnp.ones((1, D), jnp.float32),
        "be2":  jnp.zeros((1, D), jnp.float32),
    }


def _ln_ref(z, g, b):
    mu = jnp.mean(z, axis=-1, keepdims=True)
    var = jnp.mean(jnp.square(z - mu), axis=-1, keepdims=True)
    return (z - mu) * jax.lax.rsqrt(var + LN_EPS) * g + b


def _reference_forward(x, params):
    """Pure-JAX f32 reference mirroring PyTorch eval-mode semantics."""
    B, C, T, D = x.shape
    H, hd = N_HEADS, D // N_HEADS
    xf = x.reshape(B * C, T, D)
    qkv = xf @ params["wqkv"].T + params["bqkv"][0]
    q, k, v = qkv[..., :D], qkv[..., D:2 * D], qkv[..., 2 * D:]

    def heads(z):
        return z.reshape(B * C, T, H, hd).transpose(0, 2, 1, 3)

    qh, kh, vh = heads(q), heads(k), heads(v)
    s = (qh @ kh.transpose(0, 1, 3, 2)) / math.sqrt(hd)
    p = jax.nn.softmax(s, axis=-1)
    attn = (p @ vh).transpose(0, 2, 1, 3).reshape(B * C, T, D)
    attn = attn @ params["wo"].T + params["bo"][0]
    x1 = _ln_ref(xf + attn, params["g1"][0], params["be1"][0])
    h1 = x1 @ params["w1"].T + params["b1"][0]
    h1 = 0.5 * h1 * (1.0 + jax.lax.erf(h1 / math.sqrt(2.0)))
    ff = h1 @ params["w2"].T + params["b2"][0]
    x2 = _ln_ref(x1 + ff, params["g2"][0], params["be2"][0])
    return x2.reshape(B, C, T, D)


if __name__ == "__main__":
    # Small shapes consistent with the module: B=2, C=4 (channels), T=8 (seq),
    # D=32 (d_model, divisible by nhead=8).
    B, C, T, D = 2, 4, 8, 32
    key = jax.random.PRNGKey(0)
    kx, kp = jax.random.split(key)
    x = jax.random.normal(kx, (B, C, T, D), jnp.float32)
    params = init_params(kp, D)

    # TODO(synk): dropout layers are identity here (eval-mode semantics).
    y = trans_conv_forward(x, params)
    y = jax.block_until_ready(y)
    assert y.shape == (B, C, T, D) and y.dtype == jnp.float32
    assert bool(jnp.all(jnp.isfinite(y)))

    # Loose f32 reference check (kernel uses bf16 matmul operands + approx recip).
    y_ref = _reference_forward(x, params)
    assert float(jnp.max(jnp.abs(y - y_ref))) < 0.15
    print("KERNEL_OK")
</pallas_src>

<mosaic_0001>
module attributes {stable_mosaic.version = 11 : i64} {
  func.func @_encoder_layer_kernel(%arg0: i32, %arg1: memref<32x32xf32, #tpu.memory_space<vmem>>, %arg2: memref<32x96xbf16, #tpu.memory_space<vmem>>, %arg3: memref<1x96xf32, #tpu.memory_space<vmem>>, %arg4: memref<32x32xbf16, #tpu.memory_space<vmem>>, %arg5: memref<1x32xf32, #tpu.memory_space<vmem>>, %arg6: memref<32x128xbf16, #tpu.memory_space<vmem>>, %arg7: memref<1x128xf32, #tpu.memory_space<vmem>>, %arg8: memref<128x32xbf16, #tpu.memory_space<vmem>>, %arg9: memref<1x32xf32, #tpu.memory_space<vmem>>, %arg10: memref<1x32xf32, #tpu.memory_space<vmem>>, %arg11: memref<1x32xf32, #tpu.memory_space<vmem>>, %arg12: memref<1x32xf32, #tpu.memory_space<vmem>>, %arg13: memref<1x32xf32, #tpu.memory_space<vmem>>, %arg14: memref<32x32xf32, #tpu.memory_space<vmem>>) attributes {dimension_semantics = [#tpu.dimension_semantics<parallel>], iteration_bounds = array<i64: 2>, scalar_prefetch = 0 : i64, scratch_operands = 0 : i64, tpu.core_type = #tpu.core_type<tc>, window_params = [{transform_indices = @transform_0, window_bounds = array<i64: 32, 32>}, {pipeline_mode = #tpu.pipeline_mode<synchronous>, transform_indices = @transform_1, window_bounds = array<i64: 32, 96>}, {pipeline_mode = #tpu.pipeline_mode<synchronous>, transform_indices = @transform_2, window_bounds = array<i64: 1, 96>}, {pipeline_mode = #tpu.pipeline_mode<synchronous>, transform_indices = @transform_3, window_bounds = array<i64: 32, 32>}, {pipeline_mode = #tpu.pipeline_mode<synchronous>, transform_indices = @transform_4, window_bounds = array<i64: 1, 32>}, {pipeline_mode = #tpu.pipeline_mode<synchronous>, transform_indices = @transform_5, window_bounds = array<i64: 32, 128>}, {pipeline_mode = #tpu.pipeline_mode<synchronous>, transform_indices = @transform_6, window_bounds = array<i64: 1, 128>}, {pipeline_mode = #tpu.pipeline_mode<synchronous>, transform_indices = @transform_7, window_bounds = array<i64: 128, 32>}, {pipeline_mode = #tpu.pipeline_mode<synchronous>, transform_indices = @transform_8, window_bounds = array<i64: 1, 32>}, {pipeline_mode = #tpu.pipeline_mode<synchronous>, transform_indices = @transform_9, window_bounds = array<i64: 1, 32>}, {pipeline_mode = #tpu.pipeline_mode<synchronous>, transform_indices = @transform_10, window_bounds = array<i64: 1, 32>}, {pipeline_mode = #tpu.pipeline_mode<synchronous>, transform_indices = @transform_11, window_bounds = array<i64: 1, 32>}, {pipeline_mode = #tpu.pipeline_mode<synchronous>, transform_indices = @transform_12, window_bounds = array<i64: 1, 32>}, {transform_indices = @transform_13, window_bounds = array<i64: 32, 32>}]} {
    %c0 = arith.constant 0 : index
    %c0_0 = arith.constant 0 : index
    %0 = vector.load %arg1[%c0, %c0_0] : memref<32x32xf32, #tpu.memory_space<vmem>>, vector<32x32xf32>
    %1 = arith.truncf %0 : vector<32x32xf32> to vector<32x32xbf16>
    %c0_1 = arith.constant 0 : index
    %c0_2 = arith.constant 0 : index
    %2 = vector.load %arg2[%c0_1, %c0_2] : memref<32x96xbf16, #tpu.memory_space<vmem>>, vector<32x96xbf16>
    %cst = arith.constant dense<0.000000e+00> : vector<32x96xf32>
    %3 = tpu.matmul %1, %2, %cst {dimension_numbers = #tpu.dot_dimension_numbers<[1], [0], [0], [1], [0, 0, 1, 1], [], []>} : vector<32x32xbf16>, vector<32x96xbf16>, vector<32x96xf32> -> vector<32x96xf32>
    %c0_3 = arith.constant 0 : index
    %c0_4 = arith.constant 0 : index
    %4 = vector.load %arg3[%c0_3, %c0_4] : memref<1x96xf32, #tpu.memory_space<vmem>>, vector<1x96xf32>
    %5 = vector.broadcast %4 : vector<1x96xf32> to vector<32x96xf32>
    %6 = arith.addf %3, %5 : vector<32x96xf32>
    %7 = vector.shape_cast %6 : vector<32x96xf32> to vector<32x24x4xf32>
    %8 = tpu.transpose %7, [1, 0, 2] : vector<32x24x4xf32> -> vector<24x32x4xf32>
    %9 = vector.shape_cast %8 : vector<24x32x4xf32> to vector<3x32x8x4xf32>
    %10 = vector.extract_strided_slice %9 {offsets = [0, 0, 0, 0], sizes = [1, 32, 8, 4], strides = [1, 1, 1, 1]} : vector<3x32x8x4xf32> to vector<1x32x8x4xf32>
    %11 = vector.shape_cast %10 : vector<1x32x8x4xf32> to vector<32x8x4xf32>
    %12 = vector.extract_strided_slice %9 {offsets = [1, 0, 0, 0], sizes = [1, 32, 8, 4], strides = [1, 1, 1, 1]} : vector<3x32x8x4xf32> to vector<1x32x8x4xf32>
    %13 = vector.shape_cast %12 : vector<1x32x8x4xf32> to vector<32x8x4xf32>
    %14 = vector.extract_strided_slice %9 {offsets = [2, 0, 0, 0], sizes = [1, 32, 8, 4], strides = [1, 1, 1, 1]} : vector<3x32x8x4xf32> to vector<1x32x8x4xf32>
    %15 = vector.shape_cast %14 : vector<1x32x8x4xf32> to vector<32x8x4xf32>
    %16 = arith.truncf %11 : vector<32x8x4xf32> to vector<32x8x4xbf16>
    %17 = arith.truncf %13 : vector<32x8x4xf32> to vector<32x8x4xbf16>
    "tpu.trace_start"() <{level = 10 : i32, message = "bqd,bkd->bqk"}> : () -> ()
    %cst_5 = arith.constant dense<0.000000e+00> : vector<32x8x8xf32>
    %18 = tpu.matmul %16, %17, %cst_5 {dimension_numbers = #tpu.dot_dimension_numbers<[2], [2], [1], [1], [0, 0, 0, 1, 1, 1], [0], [0]>} : vector<32x8x4xbf16>, vector<32x8x4xbf16>, vector<32x8x8xf32> -> vector<32x8x8xf32>
    "tpu.trace_stop"() : () -> ()
    %cst_6 = arith.constant 5.000000e-01 : f32
    %19 = vector.broadcast %cst_6 : f32 to vector<32x8x8xf32>
    %20 = arith.mulf %18, %19 : vector<32x8x8xf32>
    %cst_7 = arith.constant dense<0xFF800000> : vector<32x8xf32>
    %21 = vector.multi_reduction <maximumf>, %20, %cst_7 [2] : vector<32x8x8xf32> to vector<32x8xf32>
    %22 = vector.shape_cast %21 : vector<32x8xf32> to vector<32x8x1xf32>
    %23 = vector.broadcast %22 : vector<32x8x1xf32> to vector<32x8x8xf32>
    %24 = arith.subf %20, %23 : vector<32x8x8xf32>
    %25 = math.exp %24 : vector<32x8x8xf32>
    %cst_8 = arith.constant dense<0.000000e+00> : vector<32x8xf32>
    %26 = vector.multi_reduction <add>, %25, %cst_8 [2] : vector<32x8x8xf32> to vector<32x8xf32>
    %27 = vector.shape_cast %26 : vector<32x8xf32> to vector<32x8x1xf32>
    %28 = tpu.reciprocal %27 {approx = true} : vector<32x8x1xf32> -> vector<32x8x1xf32>
    %29 = vector.broadcast %28 : vector<32x8x1xf32> to vector<32x8x8xf32>
    %30 = arith.mulf %25, %29 : vector<32x8x8xf32>
    %31 = arith.truncf %30 : vector<32x8x8xf32> to vector<32x8x8xbf16>
    %32 = arith.truncf %15 : vector<32x8x4xf32> to vector<32x8x4xbf16>
    "tpu.trace_start"() <{level = 10 : i32, message = "bqk,bkd->bqd"}> : () -> ()
    %cst_9 = arith.constant dense<0.000000e+00> : vector<32x8x4xf32>
    %33 = tpu.matmul %31, %32, %cst_9 {dimension_numbers = #tpu.dot_dimension_numbers<[2], [1], [1], [2], [0, 0, 0, 1, 1, 2], [0], [0]>} : vector<32x8x8xbf16>, vector<32x8x4xbf16>, vector<32x8x4xf32> -> vector<32x8x4xf32>
    "tpu.trace_stop"() : () -> ()
    %34 = vector.shape_cast %33 : vector<32x8x4xf32> to vector<8x32x4xf32>
    %35 = tpu.transpose %34, [1, 0, 2] : vector<8x32x4xf32> -> vector<32x8x4xf32>
    %36 = vector.shape_cast %35 : vector<32x8x4xf32> to vector<32x32xf32>
    %37 = arith.truncf %36 : vector<32x32xf32> to vector<32x32xbf16>
    %c0_10 = arith.constant 0 : index
    %c0_11 = arith.constant 0 : index
    %38 = vector.load %arg4[%c0_10, %c0_11] : memref<32x32xbf16, #tpu.memory_space<vmem>>, vector<32x32xbf16>
    %cst_12 = arith.constant dense<0.000000e+00> : vector<32x32xf32>
    %39 = tpu.matmul %37, %38, %cst_12 {dimension_numbers = #tpu.dot_dimension_numbers<[1], [0], [0], [1], [0, 0, 1, 1], [], []>} : vector<32x32xbf16>, vector<32x32xbf16>, vector<32x32xf32> -> vector<32x32xf32>
    %c0_13 = arith.constant 0 : index
    %c0_14 = arith.constant 0 : index
    %40 = vector.load %arg5[%c0_13, %c0_14] : memref<1x32xf32, #tpu.memory_space<vmem>>, vector<1x32xf32>
    %41 = vector.broadcast %40 : vector<1x32xf32> to vector<32x32xf32>
    %42 = arith.addf %39, %41 : vector<32x32xf32>
    %43 = arith.addf %0, %42 : vector<32x32xf32>
    %cst_15 = arith.constant dense<0.000000e+00> : vector<32xf32>
    %44 = vector.multi_reduction <add>, %43, %cst_15 [1] : vector<32x32xf32> to vector<32xf32>
    %45 = vector.shape_cast %44 : vector<32xf32> to vector<32x1xf32>
    %cst_16 = arith.constant 3.200000e+01 : f32
    %46 = vector.broadcast %cst_16 : f32 to vector<32x1xf32>
    %47 = arith.divf %45, %46 : vector<32x1xf32>
    %48 = vector.broadcast %47 : vector<32x1xf32> to vector<32x32xf32>
    %49 = arith.subf %43, %48 : vector<32x32xf32>
    %50 = arith.mulf %49, %49 : vector<32x32xf32>
    %cst_17 = arith.constant dense<0.000000e+00> : vector<32xf32>
    %51 = vector.multi_reduction <add>, %50, %cst_17 [1] : vector<32x32xf32> to vector<32xf32>
    %52 = vector.shape_cast %51 : vector<32xf32> to vector<32x1xf32>
    %cst_18 = arith.constant 3.200000e+01 : f32
    %53 = vector.broadcast %cst_18 : f32 to vector<32x1xf32>
    %54 = arith.divf %52, %53 : vector<32x1xf32>
    %55 = vector.broadcast %47 : vector<32x1xf32> to vector<32x32xf32>
    %56 = arith.subf %43, %55 : vector<32x32xf32>
    %cst_19 = arith.constant 9.99999974E-6 : f32
    %57 = vector.broadcast %cst_19 : f32 to vector<32x1xf32>
    %58 = arith.addf %54, %57 : vector<32x1xf32>
    %59 = math.rsqrt %58 : vector<32x1xf32>
    %60 = vector.broadcast %59 : vector<32x1xf32> to vector<32x32xf32>
    %61 = arith.mulf %56, %60 : vector<32x32xf32>
    %c0_20 = arith.constant 0 : index
    %c0_21 = arith.constant 0 : index
    %62 = vector.load %arg10[%c0_20, %c0_21] : memref<1x32xf32, #tpu.memory_space<vmem>>, vector<1x32xf32>
    %63 = vector.broadcast %62 : vector<1x32xf32> to vector<32x32xf32>
    %64 = arith.mulf %61, %63 : vector<32x32xf32>
    %c0_22 = arith.constant 0 : index
    %c0_23 = arith.constant 0 : index
    %65 = vector.load %arg11[%c0_22, %c0_23] : memref<1x32xf32, #tpu.memory_space<vmem>>, vector<1x32xf32>
    %66 = vector.broadcast %65 : vector<1x32xf32> to vector<32x32xf32>
    %67 = arith.addf %64, %66 : vector<32x32xf32>
    %68 = arith.truncf %67 : vector<32x32xf32> to vector<32x32xbf16>
    %c0_24 = arith.constant 0 : index
    %c0_25 = arith.constant 0 : index
    %69 = vector.load %arg6[%c0_24, %c0_25] : memref<32x128xbf16, #tpu.memory_space<vmem>>, vector<32x128xbf16>
    %cst_26 = arith.constant dense<0.000000e+00> : vector<32x128xf32>
    %70 = tpu.matmul %68, %69, %cst_26 {dimension_numbers = #tpu.dot_dimension_numbers<[1], [0], [0], [1], [0, 0, 1, 1], [], []>} : vector<32x32xbf16>, vector<32x128xbf16>, vector<32x128xf32> -> vector<32x128xf32>
    %c0_27 = arith.constant 0 : index
    %c0_28 = arith.constant 0 : index
    %71 = vector.load %arg7[%c0_27, %c0_28] : memref<1x128xf32, #tpu.memory_space<vmem>>, vector<1x128xf32>
    %72 = vector.broadcast %71 : vector<1x128xf32> to vector<32x128xf32>
    %73 = arith.addf %70, %72 : vector<32x128xf32>
    %cst_29 = arith.constant 5.000000e-01 : f32
    %74 = vector.broadcast %cst_29 : f32 to vector<32x128xf32>
    %75 = arith.mulf %74, %73 : vector<32x128xf32>
    %cst_30 = arith.constant 0.707106769 : f32
    %76 = vector.broadcast %cst_30 : f32 to vector<32x128xf32>
    %77 = arith.mulf %73, %76 : vector<32x128xf32>
    %78 = math.erf %77 : vector<32x128xf32>
    %cst_31 = arith.constant 1.000000e+00 : f32
    %79 = vector.broadcast %cst_31 : f32 to vector<32x128xf32>
    %80 = arith.addf %79, %78 : vector<32x128xf32>
    %81 = arith.mulf %75, %80 : vector<32x128xf32>
    %82 = arith.truncf %81 : vector<32x128xf32> to vector<32x128xbf16>
    %c0_32 = arith.constant 0 : index
    %c0_33 = arith.constant 0 : index
    %83 = vector.load %arg8[%c0_32, %c0_33] : memref<128x32xbf16, #tpu.memory_space<vmem>>, vector<128x32xbf16>
    %cst_34 = arith.constant dense<0.000000e+00> : vector<32x32xf32>
    %84 = tpu.matmul %82, %83, %cst_34 {dimension_numbers = #tpu.dot_dimension_numbers<[1], [0], [0], [1], [0, 0, 1, 1], [], []>} : vector<32x128xbf16>, vector<128x32xbf16>, vector<32x32xf32> -> vector<32x32xf32>
    %c0_35 = arith.constant 0 : index
    %c0_36 = arith.constant 0 : index
    %85 = vector.load %arg9[%c0_35, %c0_36] : memref<1x32xf32, #tpu.memory_space<vmem>>, vector<1x32xf32>
    %86 = vector.broadcast %85 : vector<1x32xf32> to vector<32x32xf32>
    %87 = arith.addf %84, %86 : vector<32x32xf32>
    %88 = arith.addf %67, %87 : vector<32x32xf32>
    %cst_37 = arith.constant dense<0.000000e+00> : vector<32xf32>
    %89 = vector.multi_reduction <add>, %88, %cst_37 [1] : vector<32x32xf32> to vector<32xf32>
    %90 = vector.shape_cast %89 : vector<32xf32> to vector<32x1xf32>
    %cst_38 = arith.constant 3.200000e+01 : f32
    %91 = vector.broadcast %cst_38 : f32 to vector<32x1xf32>
    %92 = arith.divf %90, %91 : vector<32x1xf32>
    %93 = vector.broadcast %92 : vector<32x1xf32> to vector<32x32xf32>
    %94 = arith.subf %88, %93 : vector<32x32xf32>
    %95 = arith.mulf %94, %94 : vector<32x32xf32>
    %cst_39 = arith.constant dense<0.000000e+00> : vector<32xf32>
    %96 = vector.multi_reduction <add>, %95, %cst_39 [1] : vector<32x32xf32> to vector<32xf32>
    %97 = vector.shape_cast %96 : vector<32xf32> to vector<32x1xf32>
    %cst_40 = arith.constant 3.200000e+01 : f32
    %98 = vector.broadcast %cst_40 : f32 to vector<32x1xf32>
    %99 = arith.divf %97, %98 : vector<32x1xf32>
    %100 = vector.broadcast %92 : vector<32x1xf32> to vector<32x32xf32>
    %101 = arith.subf %88, %100 : vector<32x32xf32>
    %cst_41 = arith.constant 9.99999974E-6 : f32
    %102 = vector.broadcast %cst_41 : f32 to vector<32x1xf32>
    %103 = arith.addf %99, %102 : vector<32x1xf32>
    %104 = math.rsqrt %103 : vector<32x1xf32>
    %105 = vector.broadcast %104 : vector<32x1xf32> to vector<32x32xf32>
    %106 = arith.mulf %101, %105 : vector<32x32xf32>
    %c0_42 = arith.constant 0 : index
    %c0_43 = arith.constant 0 : index
    %107 = vector.load %arg12[%c0_42, %c0_43] : memref<1x32xf32, #tpu.memory_space<vmem>>, vector<1x32xf32>
    %108 = vector.broadcast %107 : vector<1x32xf32> to vector<32x32xf32>
    %109 = arith.mulf %106, %108 : vector<32x32xf32>
    %c0_44 = arith.constant 0 : index
    %c0_45 = arith.constant 0 : index
    %110 = vector.load %arg13[%c0_44, %c0_45] : memref<1x32xf32, #tpu.memory_space<vmem>>, vector<1x32xf32>
    %111 = vector.broadcast %110 : vector<1x32xf32> to vector<32x32xf32>
    %112 = arith.addf %109, %111 : vector<32x32xf32>
    %c0_46 = arith.constant 0 : index
    %c0_47 = arith.constant 0 : index
    %113 = vector.load %arg14[%c0_46, %c0_47] : memref<32x32xf32, #tpu.memory_space<vmem>>, vector<32x32xf32>
    tpu.vector_store %arg14[%c0_46, %c0_47], %112 {strides = array<i32>} : memref<32x32xf32, #tpu.memory_space<vmem>>, vector<32x32xf32>,
    return
  }
  func.func @transform_0(%arg0: i32) -> (i32, i32) {
    %c0_i32 = arith.constant 0 : i32
    %c0_i32_0 = arith.constant 0 : i32
    return %arg0, %c0_i32 : i32, i32
  }
  func.func @transform_1(%arg0: i32) -> (i32, i32) {
    %c0_i32 = arith.constant 0 : i32
    %c0_i32_0 = arith.constant 0 : i32
    %c0_i32_1 = arith.constant 0 : i32
    return %c0_i32, %c0_i32_0 : i32, i32
  }
  func.func @transform_2(%arg0: i32) -> (i32, i32) {
    %c0_i32 = arith.constant 0 : i32
    %c0_i32_0 = arith.constant 0 : i32
    %c0_i32_1 = arith.constant 0 : i32
    return %c0_i32, %c0_i32_0 : i32, i32
  }
  func.func @transform_3(%arg0: i32) -> (i32, i32) {
    %c0_i32 = arith.constant 0 : i32
    %c0_i32_0 = arith.constant 0 : i32
    %c0_i32_1 = arith.constant 0 : i32
    return %c0_i32, %c0_i32_0 : i32, i32
  }
  func.func @transform_4(%arg0: i32) -> (i32, i32) {
    %c0_i32 = arith.constant 0 : i32
    %c0_i32_0 = arith.constant 0 : i32
    %c0_i32_1 = arith.constant 0 : i32
    return %c0_i32, %c0_i32_0 : i32, i32
  }
  func.func @transform_5(%arg0: i32) -> (i32, i32) {
    %c0_i32 = arith.constant 0 : i32
    %c0_i32_0 = arith.constant 0 : i32
    %c0_i32_1 = arith.constant 0 : i32
    return %c0_i32, %c0_i32_0 : i32, i32
  }
  func.func @transform_6(%arg0: i32) -> (i32, i32) {
    %c0_i32 = arith.constant 0 : i32
    %c0_i32_0 = arith.constant 0 : i32
    %c0_i32_1 = arith.constant 0 : i32
    return %c0_i32, %c0_i32_0 : i32, i32
  }
  func.func @transform_7(%arg0: i32) -> (i32, i32) {
    %c0_i32 = arith.constant 0 : i32
    %c0_i32_0 = arith.constant 0 : i32
    %c0_i32_1 = arith.constant 0 : i32
    return %c0_i32, %c0_i32_0 : i32, i32
  }
  func.func @transform_8(%arg0: i32) -> (i32, i32) {
    %c0_i32 = arith.constant 0 : i32
    %c0_i32_0 = arith.constant 0 : i32
    %c0_i32_1 = arith.constant 0 : i32
    return %c0_i32, %c0_i32_0 : i32, i32
  }
  func.func @transform_9(%arg0: i32) -> (i32, i32) {
    %c0_i32 = arith.constant 0 : i32
    %c0_i32_0 = arith.constant 0 : i32
    %c0_i32_1 = arith.constant 0 : i32
    return %c0_i32, %c0_i32_0 : i32, i32
  }
  func.func @transform_10(%arg0: i32) -> (i32, i32) {
    %c0_i32 = arith.constant 0 : i32
    %c0_i32_0 = arith.constant 0 : i32
    %c0_i32_1 = arith.constant 0 : i32
    return %c0_i32, %c0_i32_0 : i32, i32
  }
  func.func @transform_11(%arg0: i32) -> (i32, i32) {
    %c0_i32 = arith.constant 0 : i32
    %c0_i32_0 = arith.constant 0 : i32
    %c0_i32_1 = arith.constant 0 : i32
    return %c0_i32, %c0_i32_0 : i32, i32
  }
  func.func @transform_12(%arg0: i32) -> (i32, i32) {
    %c0_i32 = arith.constant 0 : i32
    %c0_i32_0 = arith.constant 0 : i32
    %c0_i32_1 = arith.constant 0 : i32
    return %c0_i32, %c0_i32_0 : i32, i32
  }
  func.func @transform_13(%arg0: i32) -> (i32, i32) {
    %c0_i32 = arith.constant 0 : i32
    %c0_i32_0 = arith.constant 0 : i32
    return %arg0, %c0_i32 : i32, i32
  }
}

</mosaic_0001>

<llo_original>
// kernel: tpu_custom_call.1
$region0: #{tpu_custom_call.1}
  #allocation0 [shape = 'u32[]', space=smem, size = 0x4, offset = 0x4, fixed_abs, tag = 'smem constant byte address 0x4 - core index']
  #allocation1 [shape = 'u32[144,128]{1,0:T(1,128)}', space=vmem, size = 0x12000, scoped, tag = 'internal scratch']
  %s0 = inlined_call_operand.vmem [shape: f32[64,32], index: 0, kind: input, shape index: {}]
  %s1 = inlined_call_operand.vmem [shape: bf16[32,96], index: 1, kind: input, shape index: {}]
  %s2 = inlined_call_operand.vmem [shape: f32[1,96], index: 2, kind: input, shape index: {}]
  %s3 = inlined_call_operand.vmem [shape: bf16[32,32], index: 3, kind: input, shape index: {}]
  %s4 = inlined_call_operand.vmem [shape: f32[1,32], index: 4, kind: input, shape index: {}]
  %s5 = inlined_call_operand.vmem [shape: bf16[32,128], index: 5, kind: input, shape index: {}]
  %s6 = inlined_call_operand.vmem [shape: f32[1,128], index: 6, kind: input, shape index: {}]
  %s7 = inlined_call_operand.vmem [shape: bf16[128,32], index: 7, kind: input, shape index: {}]
  %s8 = inlined_call_operand.vmem [shape: f32[1,32], index: 8, kind: input, shape index: {}]
  %s9 = inlined_call_operand.vmem [shape: f32[1,32], index: 9, kind: input, shape index: {}]
  %s10 = inlined_call_operand.vmem [shape: f32[1,32], index: 10, kind: input, shape index: {}]
  %s11 = inlined_call_operand.vmem [shape: f32[1,32], index: 11, kind: input, shape index: {}]
  %s12 = inlined_call_operand.vmem [shape: f32[1,32], index: 12, kind: input, shape index: {}]
  %s13 = inlined_call_operand.vmem [shape: f32[64,32], index: 13, kind: output, shape index: {}]
  %s14 = sld [smem:[#allocation0]]
  $region85: #{tpu_custom_call.1} parent=0
    _
  %s16 = ssub.s32 1, %s14
  %s17 = scalar_select 0, %s16, %s14
  loop: start=0, step=1, limit=4
  $region2: #{tpu_custom_call.1} parent=0 // loop_pre_header
    _
  $region3: #{tpu_custom_call.1} parent=0 // loop_header
    %s19 = sphi 0, %s23
    %p20 = scmp.ge.s32.totalorder %s19, 4
    %s29 = sphi 0, %s31
    %s32 = sphi 0, %s29
    %s33 = sphi 0, %s32
    %s49 = sphi 0, %s33
    %s53 = sphi 0, %s53
    %s55 = sphi 0, %s53
    %s56 = sphi 0, %s55
    %s70 = sphi 0, %s56
    %s74 = sphi 0, %s74
    %s76 = sphi 0, %s74
    %s77 = sphi 0, %s76
    %s91 = sphi 0, %s77
    %s95 = sphi 0, %s95
    %s97 = sphi 0, %s95
    %s98 = sphi 0, %s97
    %s112 = sphi 0, %s98
    %s116 = sphi 0, %s116
    %s118 = sphi 0, %s116
    %s119 = sphi 0, %s118
    %s133 = sphi 0, %s119
    %s137 = sphi 0, %s137
    %s139 = sphi 0, %s137
    %s140 = sphi 0, %s139
    %s154 = sphi 0, %s140
    %s158 = sphi 0, %s158
    %s160 = sphi 0, %s158
    %s161 = sphi 0, %s160
    %s175 = sphi 0, %s161
    %s179 = sphi 0, %s179
    %s181 = sphi 0, %s179
    %s182 = sphi 0, %s181
    %s196 = sphi 0, %s182
    %s200 = sphi 0, %s200
    %s202 = sphi 0, %s200
    %s203 = sphi 0, %s202
    %s217 = sphi 0, %s203
    %s221 = sphi 0, %s221
    %s223 = sphi 0, %s221
    %s224 = sphi 0, %s223
    %s238 = sphi 0, %s224
    %s242 = sphi 0, %s242
    %s244 = sphi 0, %s242
    %s245 = sphi 0, %s244
    %s259 = sphi 0, %s245
    %s263 = sphi 0, %s263
    %s265 = sphi 0, %s263
    %s266 = sphi 0, %s265
    %s280 = sphi 0, %s266
    %s284 = sphi 0, %s284
    %s286 = sphi 0, %s284
    %s287 = sphi 0, %s286
    %s301 = sphi 0, %s287
    %s307 = sphi 0, %s309
    %s310 = sphi 0, %s307
    %s311 = sphi 0, %s310
    %s327 = sphi 0, %s311
  $region4: #{tpu_custom_call.1} parent=0 // loop_header_branch
    %22 = sbr.rel (%p20) target = $region8
  $region5: #{tpu_custom_call.1} parent=0 // loop_body
    %s24 = ssub.s32 %s19, 1
    %s25 = ssub.s32 %s19, 2
    %s26 = sadd.s32 %s19, 1
    %s27 = ssub.s32 %s19, %s26
    %p28 = scmp.eq.s32.totalorder %s27, 0
    %s30 = sadd.s32 %s29, 1
    %s31 = scalar_select %p28, %s29, %s30
    %p34 = pneg %p28
    %p35 = scmp.eq.s32.totalorder %s19, 1
    %p36 = por %p34, %p35
    %p37 = scmp.ne.s32.totalorder %s29, %s32
    %p38 = scmp.eq.s32.totalorder %s19, 0
    %p39 = por %p37, %p38
    %p40 = scmp.ne.s32.totalorder %s29, %s32
    %p41 = scmp.eq.s32.totalorder %s24, 1
    %p42 = por %p40, %p41
    %p43 = scmp.ne.s32.totalorder %s32, %s33
    %p44 = scmp.eq.s32.totalorder %s24, 0
    %p45 = por %p43, %p44
    %p46 = scmp.ne.s32.totalorder %s32, %s33
    %p47 = scmp.eq.s32.totalorder %s25, 1
    %p48 = por %p46, %p47
    %p50 = scmp.ne.s32.totalorder %s33, %s49
    %p51 = scmp.eq.s32.totalorder %s25, 0
    %p52 = por %p50, %p51
    %s54 = sadd.s32 %s53, 1
    %p57 = scmp.eq.s32.totalorder %s19, 1
    %p58 = scmp.ne.s32.totalorder %s53, %s55
    %p59 = scmp.eq.s32.totalorder %s19, 0
    %p60 = por %p58, %p59
    %p61 = scmp.ne.s32.totalorder %s53, %s55
    %p62 = scmp.eq.s32.totalorder %s24, 1
    %p63 = por %p61, %p62
    %p64 = scmp.ne.s32.totalorder %s55, %s56
    %p65 = scmp.eq.s32.totalorder %s24, 0
    %p66 = por %p64, %p65
    %p67 = scmp.ne.s32.totalorder %s55, %s56
    %p68 = scmp.eq.s32.totalorder %s25, 1
    %p69 = por %p67, %p68
    %p71 = scmp.ne.s32.totalorder %s56, %s70
    %p72 = scmp.eq.s32.totalorder %s25, 0
    %p73 = por %p71, %p72
    %s75 = sadd.s32 %s74, 1
    %p78 = scmp.eq.s32.totalorder %s19, 1
    %p79 = scmp.ne.s32.totalorder %s74, %s76
    %p80 = scmp.eq.s32.totalorder %s19, 0
    %p81 = por %p79, %p80
    %p82 = scmp.ne.s32.totalorder %s74, %s76
    %p83 = scmp.eq.s32.totalorder %s24, 1
    %p84 = por %p82, %p83
    %p85 = scmp.ne.s32.totalorder %s76, %s77
    %p86 = scmp.eq.s32.totalorder %s24, 0
    %p87 = por %p85, %p86
    %p88 = scmp.ne.s32.totalorder %s76, %s77
    %p89 = scmp.eq.s32.totalorder %s25, 1
    %p90 = por %p88, %p89
    %p92 = scmp.ne.s32.totalorder %s77, %s91
    %p93 = scmp.eq.s32.totalorder %s25, 0
    %p94 = por %p92, %p93
    %s96 = sadd.s32 %s95, 1
    %p99 = scmp.eq.s32.totalorder %s19, 1
    %p100 = scmp.ne.s32.totalorder %s95, %s97
    %p101 = scmp.eq.s32.totalorder %s19, 0
    %p102 = por %p100, %p101
    %p103 = scmp.ne.s32.totalorder %s95, %s97
    %p104 = scmp.eq.s32.totalorder %s24, 1
    %p105 = por %p103, %p104
    %p106 = scmp.ne.s32.totalorder %s97, %s98
    %p107 = scmp.eq.s32.totalorder %s24, 0
    %p108 = por %p106, %p107
    %p109 = scmp.ne.s32.totalorder %s97, %s98
    %p110 = scmp.eq.s32.totalorder %s25, 1
    %p111 = por %p109, %p110
    %p113 = scmp.ne.s32.totalorder %s98, %s112
    %p114 = scmp.eq.s32.totalorder %s25, 0
    %p115 = por %p113, %p114
    %s117 = sadd.s32 %s116, 1
    %p120 = scmp.eq.s32.totalorder %s19, 1
    %p121 = scmp.ne.s32.totalorder %s116, %s118
    %p122 = scmp.eq.s32.totalorder %s19, 0
    %p123 = por %p121, %p122
    %p124 = scmp.ne.s32.totalorder %s116, %s118
    %p125 = scmp.eq.s32.totalorder %s24, 1
    %p126 = por %p124, %p125
    %p127 = scmp.ne.s32.totalorder %s118, %s119
    %p128 = scmp.eq.s32.totalorder %s24, 0
    %p129 = por %p127, %p128
    %p130 = scmp.ne.s32.totalorder %s118, %s119
    %p131 = scmp.eq.s32.totalorder %s25, 1
    %p132 = por %p130, %p131
    %p134 = scmp.ne.s32.totalorder %s119, %s133
    %p135 = scmp.eq.s32.totalorder %s25, 0
    %p136 = por %p134, %p135
    %s138 = sadd.s32 %s137, 1
    %p141 = scmp.eq.s32.totalorder %s19, 1
    %p142 = scmp.ne.s32.totalorder %s137, %s139
    %p143 = scmp.eq.s32.totalorder %s19, 0
    %p144 = por %p142, %p143
    %p145 = scmp.ne.s32.totalorder %s137, %s139
    %p146 = scmp.eq.s32.totalorder %s24, 1
    %p147 = por %p145, %p146
    %p148 = scmp.ne.s32.totalorder %s139, %s140
    %p149 = scmp.eq.s32.totalorder %s24, 0
    %p150 = por %p148, %p149
    %p151 = scmp.ne.s32.totalorder %s139, %s140
    %p152 = scmp.eq.s32.totalorder %s25, 1
    %p153 = por %p151, %p152
    %p155 = scmp.ne.s32.totalorder %s140, %s154
    %p156 = scmp.eq.s32.totalorder %s25, 0
    %p157 = por %p155, %p156
    %s159 = sadd.s32 %s158, 1
    %p162 = scmp.eq.s32.totalorder %s19, 1
    %p163 = scmp.ne.s32.totalorder %s158, %s160
    %p164 = scmp.eq.s32.totalorder %s19, 0
    %p165 = por %p163, %p164
    %p166 = scmp.ne.s32.totalorder %s158, %s160
    %p167 = scmp.eq.s32.totalorder %s24, 1
    %p168 = por %p166, %p167
    %p169 = scmp.ne.s32.totalorder %s160, %s161
    %p170 = scmp.eq.s32.totalorder %s24, 0
    %p171 = por %p169, %p170
    %p172 = scmp.ne.s32.totalorder %s160, %s161
    %p173 = scmp.eq.s32.totalorder %s25, 1
    %p174 = por %p172, %p173
    %p176 = scmp.ne.s32.totalorder %s161, %s175
    %p177 = scmp.eq.s32.totalorder %s25, 0
    %p178 = por %p176, %p177
    %s180 = sadd.s32 %s179, 1
    %p183 = scmp.eq.s32.totalorder %s19, 1
    %p184 = scmp.ne.s32.totalorder %s179, %s181
    %p185 = scmp.eq.s32.totalorder %s19, 0
    %p186 = por %p184, %p185
    %p187 = scmp.ne.s32.totalorder %s179, %s181
    %p188 = scmp.eq.s32.totalorder %s24, 1
    %p189 = por %p187, %p188
    %p190 = scmp.ne.s32.totalorder %s181, %s182
    %p191 = scmp.eq.s32.totalorder %s24, 0
    %p192 = por %p190, %p191
    %p193 = scmp.ne.s32.totalorder %s181, %s182
    %p194 = scmp.eq.s32.totalorder %s25, 1
    %p195 = por %p193, %p194
    %p197 = scmp.ne.s32.totalorder %s182, %s196
    %p198 = scmp.eq.s32.totalorder %s25, 0
    %p199 = por %p197, %p198
    %s201 = sadd.s32 %s200, 1
    %p204 = scmp.eq.s32.totalorder %s19, 1
    %p205 = scmp.ne.s32.totalorder %s200, %s202
    %p206 = scmp.eq.s32.totalorder %s19, 0
    %p207 = por %p205, %p206
    %p208 = scmp.ne.s32.totalorder %s200, %s202
    %p209 = scmp.eq.s32.totalorder %s24, 1
    %p210 = por %p208, %p209
    %p211 = scmp.ne.s32.totalorder %s202, %s203
    %p212 = scmp.eq.s32.totalorder %s24, 0
    %p213 = por %p211, %p212
    %p214 = scmp.ne.s32.totalorder %s202, %s203
    %p215 = scmp.eq.s32.totalorder %s25, 1
    %p216 = por %p214, %p215
    %p218 = scmp.ne.s32.totalorder %s203, %s217
    %p219 = scmp.eq.s32.totalorder %s25, 0
    %p220 = por %p218, %p219
    %s222 = sadd.s32 %s221, 1
    %p225 = scmp.eq.s32.totalorder %s19, 1
    %p226 = scmp.ne.s32.totalorder %s221, %s223
    %p227 = scmp.eq.s32.totalorder %s19, 0
    %p228 = por %p226, %p227
    %p229 = scmp.ne.s32.totalorder %s221, %s223
    %p230 = scmp.eq.s32.totalorder %s24, 1
    %p231 = por %p229, %p230
    %p232 = scmp.ne.s32.totalorder %s223, %s224
    %p233 = scmp.eq.s32.totalorder %s24, 0
    %p234 = por %p232, %p233
    %p235 = scmp.ne.s32.totalorder %s223, %s224
    %p236 = scmp.eq.s32.totalorder %s25, 1
    %p237 = por %p235, %p236
    %p239 = scmp.ne.s32.totalorder %s224, %s238
    %p240 = scmp.eq.s32.totalorder %s25, 0
    %p241 = por %p239, %p240
    %s243 = sadd.s32 %s242, 1
    %p246 = scmp.eq.s32.totalorder %s19, 1
    %p247 = scmp.ne.s32.totalorder %s242, %s244
    %p248 = scmp.eq.s32.totalorder %s19, 0
    %p249 = por %p247, %p248
    %p250 = scmp.ne.s32.totalorder %s242, %s244
    %p251 = scmp.eq.s32.totalorder %s24, 1
    %p252 = por %p250, %p251
    %p253 = scmp.ne.s32.totalorder %s244, %s245
    %p254 = scmp.eq.s32.totalorder %s24, 0
    %p255 = por %p253, %p254
    %p256 = scmp.ne.s32.totalorder %s244, %s245
    %p257 = scmp.eq.s32.totalorder %s25, 1
    %p258 = por %p256, %p257
    %p260 = scmp.ne.s32.totalorder %s245, %s259
    %p261 = scmp.eq.s32.totalorder %s25, 0
    %p262 = por %p260, %p261
    %s264 = sadd.s32 %s263, 1
    %p267 = scmp.eq.s32.totalorder %s19, 1
    %p268 = scmp.ne.s32.totalorder %s263, %s265
    %p269 = scmp.eq.s32.totalorder %s19, 0
    %p270 = por %p268, %p269
    %p271 = scmp.ne.s32.totalorder %s263, %s265
    %p272 = scmp.eq.s32.totalorder %s24, 1
    %p273 = por %p271, %p272
    %p274 = scmp.ne.s32.totalorder %s265, %s266
    %p275 = scmp.eq.s32.totalorder %s24, 0
    %p276 = por %p274, %p275
    %p277 = scmp.ne.s32.totalorder %s265, %s266
    %p278 = scmp.eq.s32.totalorder %s25, 1
    %p279 = por %p277, %p278
    %p281 = scmp.ne.s32.totalorder %s266, %s280
    %p282 = scmp.eq.s32.totalorder %s25, 0
    %p283 = por %p281, %p282
    %s285 = sadd.s32 %s284, 1
    %p288 = scmp.eq.s32.totalorder %s19, 1
    %p289 = scmp.ne.s32.totalorder %s284, %s286
    %p290 = scmp.eq.s32.totalorder %s19, 0
    %p291 = por %p289, %p290
    %p292 = scmp.ne.s32.totalorder %s284, %s286
    %p293 = scmp.eq.s32.totalorder %s24, 1
    %p294 = por %p292, %p293
    %p295 = scmp.ne.s32.totalorder %s286, %s287
    %p296 = scmp.eq.s32.totalorder %s24, 0
    %p297 = por %p295, %p296
    %p298 = scmp.ne.s32.totalorder %s286, %s287
    %p299 = scmp.eq.s32.totalorder %s25, 1
    %p300 = por %p298, %p299
    %p302 = scmp.ne.s32.totalorder %s287, %s301
    %p303 = scmp.eq.s32.totalorder %s25, 0
    %p304 = por %p302, %p303
    %s305 = ssub.s32 %s19, %s26
    %p306 = scmp.eq.s32.totalorder %s305, 0
    %s308 = sadd.s32 %s307, 1
    %s309 = scalar_select %p306, %s307, %s308
    %p312 = pneg %p306
    %p313 = scmp.eq.s32.totalorder %s19, 1
    %p314 = por %p312, %p313
    %p315 = scmp.ne.s32.totalorder %s307, %s310
    %p316 = scmp.eq.s32.totalorder %s19, 0
    %p317 = por %p315, %p316
    %p318 = scmp.ne.s32.totalorder %s307, %s310
    %p319 = scmp.eq.s32.totalorder %s24, 1
    %p320 = por %p318, %p319
    %p321 = scmp.ne.s32.totalorder %s310, %s311
    %p322 = scmp.eq.s32.totalorder %s24, 0
    %p323 = por %p321, %p322
    %p324 = scmp.ne.s32.totalorder %s310, %s311
    %p325 = scmp.eq.s32.totalorder %s25, 1
    %p326 = por %p324, %p325
    %p328 = scmp.ne.s32.totalorder %s311, %s327
    %p329 = scmp.eq.s32.totalorder %s25, 0
    %p330 = por %p328, %p329
    %p331 = scmp.le.s32.totalorder 1, %s19
    %p332 = scmp.lt.s32.totalorder %s19, 3
    %p333 = pnand %p331, %p332
    %p334 = pneg %p333
    // Predicated region
    $region9: #{tpu_custom_call.1} parent=5 // pred_check
      _
    $region10: #{tpu_custom_call.1} parent=5 // pred_check_branch
      %336 = sbr.rel (%p333) target = $region12
    $region11: #{tpu_custom_call.1} parent=5 // pred_region
      %s337 = ssub.s32 %s19, 1
      // Predicated region
      $region13: #{tpu_custom_call.1} parent=11 // pred_check
        %p338 = pneg %p66
      $region14: #{tpu_custom_call.1} parent=11 // pred_check_branch
        %340 = sbr.rel (%p338) target = $region16
      $region15: #{tpu_custom_call.1} parent=11 // pred_region
        _
      $region16: #{tpu_custom_call.1} parent=11 // pred_fallthru
        _
      // Predicated region
      $region17: #{tpu_custom_call.1} parent=11 // pred_check
        %p341 = pneg %p87
      $region18: #{tpu_custom_call.1} parent=11 // pred_check_branch
        %343 = sbr.rel (%p341) target = $region20
      $region19: #{tpu_custom_call.1} parent=11 // pred_region
        _
      $region20: #{tpu_custom_call.1} parent=11 // pred_fallthru
        _
      // Predicated region
      $region21: #{tpu_custom_call.1} parent=11 // pred_check
        %p344 = pneg %p108
      $region22: #{tpu_custom_call.1} parent=11 // pred_check_branch
        %346 = sbr.rel (%p344) target = $region24
      $region23: #{tpu_custom_call.1} parent=11 // pred_region
        _
      $region24: #{tpu_custom_call.1} parent=11 // pred_fallthru
        _
      // Predicated region
      $region25: #{tpu_custom_call.1} parent=11 // pred_check
        %p347 = pneg %p129
      $region26: #{tpu_custom_call.1} parent=11 // pred_check_branch
        %349 = sbr.rel (%p347) target = $region28
      $region27: #{tpu_custom_call.1} parent=11 // pred_region
        _
      $region28: #{tpu_custom_call.1} parent=11 // pred_fallthru
        _
      // Predicated region
      $region29: #{tpu_custom_call.1} parent=11 // pred_check
        %p350 = pneg %p150
      $region30: #{tpu_custom_call.1} parent=11 // pred_check_branch
        %352 = sbr.rel (%p350) target = $region32
      $region31: #{tpu_custom_call.1} parent=11 // pred_region
        _
      $region32: #{tpu_custom_call.1} parent=11 // pred_fallthru
        _
      // Predicated region
      $region33: #{tpu_custom_call.1} parent=11 // pred_check
        %p353 = pneg %p171
      $region34: #{tpu_custom_call.1} parent=11 // pred_check_branch
        %355 = sbr.rel (%p353) target = $region36
      $region35: #{tpu_custom_call.1} parent=11 // pred_region
        _
      $region36: #{tpu_custom_call.1} parent=11 // pred_fallthru
        _
      // Predicated region
      $region37: #{tpu_custom_call.1} parent=11 // pred_check
        %p356 = pneg %p192
      $region38: #{tpu_custom_call.1} parent=11 // pred_check_branch
        %358 = sbr.rel (%p356) target = $region40
      $region39: #{tpu_custom_call.1} parent=11 // pred_region
        _
      $region40: #{tpu_custom_call.1} parent=11 // pred_fallthru
        _
      // Predicated region
      $region41: #{tpu_custom_call.1} parent=11 // pred_check
        %p359 = pneg %p213
      $region42: #{tpu_custom_call.1} parent=11 // pred_check_branch
        %361 = sbr.rel (%p359) target = $region44
      $region43: #{tpu_custom_call.1} parent=11 // pred_region
        _
      $region44: #{tpu_custom_call.1} parent=11 // pred_fallthru
        _
      // Predicated region
      $region45: #{tpu_custom_call.1} parent=11 // pred_check
        %p362 = pneg %p234
      $region46: #{tpu_custom_call.1} parent=11 // pred_check_branch
        %364 = sbr.rel (%p362) target = $region48
      $region47: #{tpu_custom_call.1} parent=11 // pred_region
        _
      $region48: #{tpu_custom_call.1} parent=11 // pred_fallthru
        _
      // Predicated region
      $region49: #{tpu_custom_call.1} parent=11 // pred_check
        %p365 = pneg %p255
      $region50: #{tpu_custom_call.1} parent=11 // pred_check_branch
        %367 = sbr.rel (%p365) target = $region52
      $region51: #{tpu_custom_call.1} parent=11 // pred_region
        _
      $region52: #{tpu_custom_call.1} parent=11 // pred_fallthru
        _
      // Predicated region
      $region53: #{tpu_custom_call.1} parent=11 // pred_check
        %p368 = pneg %p276
      $region54: #{tpu_custom_call.1} parent=11 // pred_check_branch
        %370 = sbr.rel (%p368) target = $region56
      $region55: #{tpu_custom_call.1} parent=11 // pred_region
        _
      $region56: #{tpu_custom_call.1} parent=11 // pred_fallthru
        _
      // Predicated region
      $region57: #{tpu_custom_call.1} parent=11 // pred_check
        %p371 = pneg %p297
      $region58: #{tpu_custom_call.1} parent=11 // pred_check_branch
        %373 = sbr.rel (%p371) target = $region60
      $region59: #{tpu_custom_call.1} parent=11 // pred_region
        _
      $region60: #{tpu_custom_call.1} parent=11 // pred_fallthru
        _
    $region12: #{tpu_custom_call.1} parent=5 // pred_fallthru
      _
    %p374 = scmp.lt.s32.totalorder %s19, 2
    // Predicated region
    $region61: #{tpu_custom_call.1} parent=5 // pred_check
      %p375 = pneg %p374
    $region62: #{tpu_custom_call.1} parent=5 // pred_check_branch
      %377 = sbr.rel (%p375) target = $region64
    $region63: #{tpu_custom_call.1} parent=5 // pred_region
      // Predicated region
      $region65: #{tpu_custom_call.1} parent=63 // pred_check
        %p378 = pneg %p39
      $region66: #{tpu_custom_call.1} parent=63 // pred_check_branch
        %380 = sbr.rel (%p378) target = $region68
      $region67: #{tpu_custom_call.1} parent=63 // pred_region
        %s381 = smul.u32 4, %s19
        %p382 = scmp.lt.s32.totalorder %s381, 7
        %s383 = scalar_select %p382, %s381, 7
        %s384 = smul.addr %s383, 8
        %s385 = scalar_lea.vmem %s0, %s384
        %s386 = smul.u32 4, %s19
      $region68: #{tpu_custom_call.1} parent=63 // pred_fallthru
        _
    $region64: #{tpu_custom_call.1} parent=5 // pred_fallthru
      _
    %p387 = scmp.le.s32.totalorder 1, %s19
    %p388 = scmp.lt.s32.totalorder %s19, 3
    %p389 = pnand %p387, %p388
    %p390 = pneg %p389
    // Predicated region
    $region69: #{tpu_custom_call.1} parent=5 // pred_check
      _
    $region70: #{tpu_custom_call.1} parent=5 // pred_check_branch
      %392 = sbr.rel (%p389) target = $region72
    $region71: #{tpu_custom_call.1} parent=5 // pred_region
      %s393 = ssub.s32 %s19, 1
      %s394 = smul.u32 4, %s24
      %p395 = scmp.lt.s32.totalorder %s394, 7
      %s396 = scalar_select %p395, %s394, 7
      %s397 = smul.addr %s396, 8
      %s398 = scalar_lea.vmem %s0, %s397
      %p399 = pneg %p45
      %p400 = pneg %p42
      %p401 = pneg %p66
      %p402 = pneg %p63
      %p403 = pneg %p87
      %p404 = pneg %p84
      %p405 = pneg %p108
      %p406 = pneg %p105
      %p407 = pneg %p129
      %p408 = pneg %p126
      %p409 = pneg %p150
      %p410 = pneg %p147
      %p411 = pneg %p171
      %p412 = pneg %p168
      %p413 = pneg %p192
      %p414 = pneg %p189
      %p415 = pneg %p213
      %p416 = pneg %p210
      %p417 = pneg %p234
      %p418 = pneg %p231
      %p419 = pneg %p255
      %p420 = pneg %p252
      %p421 = pneg %p276
      %p422 = pneg %p273
      %p423 = pneg %p297
      %p424 = pneg %p294
      %p425 = pneg %p323
      %p426 = pneg %p320
      %s427 = smul.u32 4, %s24
      %p428 = scmp.lt.s32.totalorder %s427, 7
      %s429 = scalar_select %p428, %s427, 7
      %s430 = smul.addr %s429, 8
      %s431 = scalar_lea.vmem %s13, %s430
      %s432 = smul.u32 4, %s24
      %p433 = scmp.lt.s32.totalorder %s432, 7
      %s434 = scalar_select %p433, %s432, 7
      %s435 = smul.addr %s434, 8
      %s436 = scalar_lea.vmem %s0, %s435
      %s437 = smul.u32 4, %s24
      %s438 = smul.u32 4, %s24
      %p439 = scmp.lt.s32.totalorder %s438, 7
      %s440 = scalar_select %p439, %s438, 7
      %s441 = smul.addr %s440, 8
      %s442 = scalar_lea.vmem %s13, %s441
      %s443 = smul.u32 4, %s24
      %v445 = vld [vmem:[%s436] sm:$0xff]
      %v446 = vld [vmem:[%s436 + $0x8] sm:$0xff]
      %v447 = vld [vmem:[%s436 + $0x10] sm:$0xff]
      %v448 = vld [vmem:[%s436 + $0x18] sm:$0xff]
      %v449 = vpack.c.bf16 %v446, %v445
      %v450 = vpack.c.bf16 %v448, %v447
      %v451 = vld [vmem:[%s1] sm:$0xf]
      %v452 = vld [vmem:[%s1 + $0x4] sm:$0xf]
      %v453 = vld [vmem:[%s1 + $0x8] sm:$0xf]
      %v454 = vld [vmem:[%s1 + $0xc] sm:$0xf]
      %v455 = vld [vmem:[%s2] sm:$0x1]
      %v457 = vlaneseq
      %v458 = vshrl.u32 %v457, 7
      %v459 = vsub.s32 0, %v458
      %v460 = vrot.slane %v455, %v459
      %v466 = vunpack.c.l.b16 %v451
      %v467 = vunpack.c.l.b16 %v452
      %v468 = vunpack.c.l.b16 %v453
      %v469 = vunpack.c.l.b16 %v454
      %v470 = vpack.c.b16 %v467, %v466
      %v471 = vpack.c.b16 %v469, %v468
      %vm474 = vcmask 261120
      %v476 = vsel %vm474, %v449, 0
      %v479 = vsel %vm474, %v450, 0
      %481 = vmatprep.subr.bf16.mxu0 0
      %482 = vmatpush1.bf16.msra.mxu0 0
      %483 = vmatprep.subr.bf16.mxu0 0
      %484 = vmatpush1.bf16.msra.mxu0 0
      %485 = vmatprep.subr.bf16.mxu0 0
      %486 = vmatpush1.bf16.msra.mxu0 0
      %487 = vmatprep.subr.bf16.mxu0 0
      %488 = vmatpush1.bf16.msra.mxu0 0
      %489 = vmatprep.subr.bf16.mxu0 0
      %490 = vmatpush1.bf16.msra.mxu0 0
      %491 = vmatprep.subr.bf16.mxu0 0
      %492 = vmatpush1.bf16.msra.mxu0 0
      %493 = vmatprep.subr.bf16.mxu0 0
      %494 = vmatpush1.bf16.msra.mxu0 %v471
      %495 = vmatprep.subr.bf16.mxu0 0
      %496 = vmatpush1.bf16.msra.mxu0 %v470
      %497 = vmatprep.subr.bf16.mxu0 0
      %498 = vmatpush2.bf16.msra.mxu0 0
      %499 = vmatprep.subr.bf16.mxu0 0
      %500 = vmatpush2.bf16.msra.mxu0 0
      %501 = vmatprep.subr.bf16.mxu0 0
      %502 = vmatpush2.bf16.msra.mxu0 0
      %503 = vmatprep.subr.bf16.mxu0 0
      %504 = vmatpush2.bf16.msra.mxu0 0
      %505 = vmatprep.subr.bf16.mxu0 0
      %506 = vmatpush2.bf16.msra.mxu0 0
      %507 = vmatprep.subr.bf16.mxu0 0
      %508 = vmatpush2.bf16.msra.mxu0 0
      %509 = vmatprep.subr.bf16.mxu0 0
      %510 = vmatpush2.bf16.msra.mxu0 0
      %511 = vmatprep.subr.bf16.mxu0 0
      %512 = vmatpush2.bf16.msra.mxu0 0
      %513 = vmatprep.mubr.bf16.mxu0 0
      %514 = vmatmul.mubr.bf16.gmra.mxu0 %v476
      %v515 = vpop.f32.mrf.mxu0
      %v516 = vadd.f32 %v460, %v515
      %v517 = vpop.f32.mrf.mxu0
      %v518 = vpop.f32.mrf.mxu0
      %v519 = vadd.f32 %v460, %v518
      %v520 = vpop.f32.mrf.mxu0
      %521 = vmatprep.mubr.bf16.mxu0 0
      %522 = vmatmul.mubr.bf16.gmra.mxu0 %v479
      %v523 = vpop.f32.mrf.mxu0
      %v524 = vadd.f32 %v460, %v523
      %v525 = vpop.f32.mrf.mxu0
      %v526 = vpop.f32.mrf.mxu0
      %v527 = vadd.f32 %v460, %v526
      %v528 = vpop.f32.mrf.mxu0
      %529 = vdwg.mxu0
      %534 = vrot.lane.b32.xlu0 %v516, 124
      %v535 = vpop.permute.xlu0 %534
      %536 = vrot.lane.b32.xlu0 %v519, 124
      %v537 = vpop.permute.xlu0 %536
      %538 = vrot.lane.b32.xlu0 %v524, 124
      %v539 = vpop.permute.xlu0 %538
      %540 = vrot.lane.b32.xlu0 %v527, 124
      %v541 = vpop.permute.xlu0 %540
      %546 = vrot.lane.b32.xlu0 %v516, 120
      %v547 = vpop.permute.xlu0 %546
      %548 = vrot.lane.b32.xlu0 %v519, 120
      %v549 = vpop.permute.xlu0 %548
      %550 = vrot.lane.b32.xlu0 %v524, 120
      %v551 = vpop.permute.xlu0 %550
      %552 = vrot.lane.b32.xlu0 %v527, 120
      %v553 = vpop.permute.xlu0 %552
      %558 = vrot.lane.b32.xlu0 %v516, 116
      %v559 = vpop.permute.xlu0 %558
      %560 = vrot.lane.b32.xlu0 %v519, 116
      %v561 = vpop.permute.xlu0 %560
      %562 = vrot.lane.b32.xlu0 %v524, 116
      %v563 = vpop.permute.xlu0 %562
      %564 = vrot.lane.b32.xlu0 %v527, 116
      %v565 = vpop.permute.xlu0 %564
      %570 = vrot.lane.b32.xlu0 %v516, 112
      %v571 = vpop.permute.xlu0 %570
      %572 = vrot.lane.b32.xlu0 %v519, 112
      %v573 = vpop.permute.xlu0 %572
      %574 = vrot.lane.b32.xlu0 %v524, 112
      %v575 = vpop.permute.xlu0 %574
      %576 = vrot.lane.b32.xlu0 %v527, 112
      %v577 = vpop.permute.xlu0 %576
      %582 = vrot.lane.b32.xlu0 %v516, 108
      %v583 = vpop.permute.xlu0 %582
      %584 = vrot.lane.b32.xlu0 %v519, 108
      %v585 = vpop.permute.xlu0 %584
      %586 = vrot.lane.b32.xlu0 %v524, 108
      %v587 = vpop.permute.xlu0 %586
      %588 = vrot.lane.b32.xlu0 %v527, 108
      %v589 = vpop.permute.xlu0 %588
      %594 = vrot.lane.b32.xlu0 %v516, 104
      %v595 = vpop.permute.xlu0 %594
      %596 = vrot.lane.b32.xlu0 %v519, 104
      %v597 = vpop.permute.xlu0 %596
      %598 = vrot.lane.b32.xlu0 %v524, 104
      %v599 = vpop.permute.xlu0 %598
      %600 = vrot.lane.b32.xlu0 %v527, 104
      %v601 = vpop.permute.xlu0 %600
      %606 = vrot.lane.b32.xlu0 %v516, 100
      %v607 = vpop.permute.xlu0 %606
      %608 = vrot.lane.b32.xlu0 %v519, 100
      %v609 = vpop.permute.xlu0 %608
      %610 = vrot.lane.b32.xlu0 %v524, 100
      %v611 = vpop.permute.xlu0 %610
      %612 = vrot.lane.b32.xlu0 %v527, 100
      %v613 = vpop.permute.xlu0 %612
      %618 = vrot.lane.b32.xlu0 %v516, 96
      %v619 = vpop.permute.xlu0 %618
      %620 = vrot.lane.b32.xlu0 %v519, 96
      %v621 = vpop.permute.xlu0 %620
      %622 = vrot.lane.b32.xlu0 %v524, 96
      %v623 = vpop.permute.xlu0 %622
      %624 = vrot.lane.b32.xlu0 %v527, 96
      %v625 = vpop.permute.xlu0 %624
      %630 = vrot.lane.b32.xlu0 %v516, 92
      %v631 = vpop.permute.xlu0 %630
      %632 = vrot.lane.b32.xlu0 %v519, 92
      %v633 = vpop.permute.xlu0 %632
      %634 = vrot.lane.b32.xlu0 %v524, 92
      %v635 = vpop.permute.xlu0 %634
      %636 = vrot.lane.b32.xlu0 %v527, 92
      %v637 = vpop.permute.xlu0 %636
      %642 = vrot.lane.b32.xlu0 %v516, 88
      %v643 = vpop.permute.xlu0 %642
      %644 = vrot.lane.b32.xlu0 %v519, 88
      %v645 = vpop.permute.xlu0 %644
      %646 = vrot.lane.b32.xlu0 %v524, 88
      %v647 = vpop.permute.xlu0 %646
      %648 = vrot.lane.b32.xlu0 %v527, 88
      %v649 = vpop.permute.xlu0 %648
      %654 = vrot.lane.b32.xlu0 %v516, 84
      %v655 = vpop.permute.xlu0 %654
      %656 = vrot.lane.b32.xlu0 %v519, 84
      %v657 = vpop.permute.xlu0 %656
      %658 = vrot.lane.b32.xlu0 %v524, 84
      %v659 = vpop.permute.xlu0 %658
      %660 = vrot.lane.b32.xlu0 %v527, 84
      %v661 = vpop.permute.xlu0 %660
      %666 = vrot.lane.b32.xlu0 %v516, 80
      %v667 = vpop.permute.xlu0 %666
      %668 = vrot.lane.b32.xlu0 %v519, 80
      %v669 = vpop.permute.xlu0 %668
      %670 = vrot.lane.b32.xlu0 %v524, 80
      %v671 = vpop.permute.xlu0 %670
      %672 = vrot.lane.b32.xlu0 %v527, 80
      %v673 = vpop.permute.xlu0 %672
      %678 = vrot.lane.b32.xlu0 %v516, 76
      %v679 = vpop.permute.xlu0 %678
      %680 = vrot.lane.b32.xlu0 %v519, 76
      %v681 = vpop.permute.xlu0 %680
      %682 = vrot.lane.b32.xlu0 %v524, 76
      %v683 = vpop.permute.xlu0 %682
      %684 = vrot.lane.b32.xlu0 %v527, 76
      %v685 = vpop.permute.xlu0 %684
      %690 = vrot.lane.b32.xlu0 %v516, 72
      %v691 = vpop.permute.xlu0 %690
      %692 = vrot.lane.b32.xlu0 %v519, 72
      %v693 = vpop.permute.xlu0 %692
      %694 = vrot.lane.b32.xlu0 %v524, 72
      %v695 = vpop.permute.xlu0 %694
      %696 = vrot.lane.b32.xlu0 %v527, 72
      %v697 = vpop.permute.xlu0 %696
      %702 = vrot.lane.b32.xlu0 %v516, 68
      %v703 = vpop.permute.xlu0 %702
      %704 = vrot.lane.b32.xlu0 %v519, 68
      %v705 = vpop.permute.xlu0 %704
      %706 = vrot.lane.b32.xlu0 %v524, 68
      %v707 = vpop.permute.xlu0 %706
      %708 = vrot.lane.b32.xlu0 %v527, 68
      %v709 = vpop.permute.xlu0 %708
      %714 = vrot.lane.b32.xlu0 %v516, 64
      %v715 = vpop.permute.xlu0 %714
      %716 = vrot.lane.b32.xlu0 %v519, 64
      %v717 = vpop.permute.xlu0 %716
      %718 = vrot.lane.b32.xlu0 %v524, 64
      %v719 = vpop.permute.xlu0 %718
      %720 = vrot.lane.b32.xlu0 %v527, 64
      %v721 = vpop.permute.xlu0 %720
      %726 = vrot.lane.b32.xlu0 %v516, 60
      %v727 = vpop.permute.xlu0 %726
      %728 = vrot.lane.b32.xlu0 %v519, 60
      %v729 = vpop.permute.xlu0 %728
      %730 = vrot.lane.b32.xlu0 %v524, 60
      %v731 = vpop.permute.xlu0 %730
      %732 = vrot.lane.b32.xlu0 %v527, 60
      %v733 = vpop.permute.xlu0 %732
      %738 = vrot.lane.b32.xlu0 %v516, 56
      %v739 = vpop.permute.xlu0 %738
      %740 = vrot.lane.b32.xlu0 %v519, 56
      %v741 = vpop.permute.xlu0 %740
      %742 = vrot.lane.b32.xlu0 %v524, 56
      %v743 = vpop.permute.xlu0 %742
      %744 = vrot.lane.b32.xlu0 %v527, 56
      %v745 = vpop.permute.xlu0 %744
      %750 = vrot.lane.b32.xlu0 %v516, 52
      %v751 = vpop.permute.xlu0 %750
      %752 = vrot.lane.b32.xlu0 %v519, 52
      %v753 = vpop.permute.xlu0 %752
      %754 = vrot.lane.b32.xlu0 %v524, 52
      %v755 = vpop.permute.xlu0 %754
      %756 = vrot.lane.b32.xlu0 %v527, 52
      %v757 = vpop.permute.xlu0 %756
      %762 = vrot.lane.b32.xlu0 %v516, 48
      %v763 = vpop.permute.xlu0 %762
      %764 = vrot.lane.b32.xlu0 %v519, 48
      %v765 = vpop.permute.xlu0 %764
      %766 = vrot.lane.b32.xlu0 %v524, 48
      %v767 = vpop.permute.xlu0 %766
      %768 = vrot.lane.b32.xlu0 %v527, 48
      %v769 = vpop.permute.xlu0 %768
      %774 = vrot.lane.b32.xlu0 %v516, 44
      %v775 = vpop.permute.xlu0 %774
      %776 = vrot.lane.b32.xlu0 %v519, 44
      %v777 = vpop.permute.xlu0 %776
      %778 = vrot.lane.b32.xlu0 %v524, 44
      %v779 = vpop.permute.xlu0 %778
      %780 = vrot.lane.b32.xlu0 %v527, 44
      %v781 = vpop.permute.xlu0 %780
      %786 = vrot.lane.b32.xlu0 %v516, 40
      %v787 = vpop.permute.xlu0 %786
      %788 = vrot.lane.b32.xlu0 %v519, 40
      %v789 = vpop.permute.xlu0 %788
      %790 = vrot.lane.b32.xlu0 %v524, 40
      %v791 = vpop.permute.xlu0 %790
      %792 = vrot.lane.b32.xlu0 %v527, 40
      %v793 = vpop.permute.xlu0 %792
      %798 = vrot.lane.b32.xlu0 %v516, 36
      %v799 = vpop.permute.xlu0 %798
      %800 = vrot.lane.b32.xlu0 %v519, 36
      %v801 = vpop.permute.xlu0 %800
      %802 = vrot.lane.b32.xlu0 %v524, 36
      %v803 = vpop.permute.xlu0 %802
      %804 = vrot.lane.b32.xlu0 %v527, 36
      %v805 = vpop.permute.xlu0 %804
      %v810 = vcombine.low %v516, %v547
      %v811 = vcombine.high %v516, %v547
      %v813 = vunpack.c.l.s4 1983009808
      %v814 = vunpack.c.0.s8 %v813
      %v815 = vlaneseq
      %v816 = vshrl.u32 %v815, 7
      %v817 = vsub.s32 %v814, %v816
      %v818 = vrot.slane %v810, %v817
      %v820 = vunpack.c.l.s4 1983009808
      %v821 = vunpack.c.0.s8 %v820
      %v822 = vlaneseq
      %v823 = vshrl.u32 %v822, 7
      %v824 = vsub.s32 %v821, %v823
      %v825 = vrot.slane %v811, %v824
      %v826 = vcombine.low %v535, %v559
      %v827 = vcombine.high %v535, %v559
      %v829 = vunpack.c.l.s4 1983009808
      %v830 = vunpack.c.0.s8 %v829
      %v831 = vlaneseq
      %v832 = vshrl.u32 %v831, 7
      %v833 = vsub.s32 %v830, %v832
      %v834 = vrot.slane %v826, %v833
      %v836 = vunpack.c.l.s4 1983009808
      %v837 = vunpack.c.0.s8 %v836
      %v838 = vlaneseq
      %v839 = vshrl.u32 %v838, 7
      %v840 = vsub.s32 %v837, %v839
      %v841 = vrot.slane %v827, %v840
      %v842 = vcombine.low %v571, %v595
      %v843 = vcombine.high %v571, %v595
      %v845 = vunpack.c.l.s4 1983009808
      %v846 = vunpack.c.0.s8 %v845
      %v847 = vlaneseq
      %v848 = vshrl.u32 %v847, 7
      %v849 = vsub.s32 %v846, %v848
      %v850 = vrot.slane %v842, %v849
      %v852 = vunpack.c.l.s4 1983009808
      %v853 = vunpack.c.0.s8 %v852
      %v854 = vlaneseq
      %v855 = vshrl.u32 %v854, 7
      %v856 = vsub.s32 %v853, %v855
      %v857 = vrot.slane %v843, %v856
      %v858 = vcombine.low %v583, %v607
      %v859 = vcombine.high %v583, %v607
      %v861 = vunpack.c.l.s4 1983009808
      %v862 = vunpack.c.0.s8 %v861
      %v863 = vlaneseq
      %v864 = vshrl.u32 %v863, 7
      %v865 = vsub.s32 %v862, %v864
      %v866 = vrot.slane %v858, %v865
      %v868 = vunpack.c.l.s4 1983009808
      %v869 = vunpack.c.0.s8 %v868
      %v870 = vlaneseq
      %v871 = vshrl.u32 %v870, 7
      %v872 = vsub.s32 %v869, %v871
      %v873 = vrot.slane %v859, %v872
      %v874 = vcombine.low %v818, %v834
      %v875 = vcombine.high %v818, %v834
      %v877 = vunpack.c.l.s4 1934713408
      %v878 = vunpack.c.0.s8 %v877
      %v879 = vlaneseq
      %v880 = vshrl.u32 %v879, 7
      %v881 = vsub.s32 %v878, %v880
      %v882 = vrot.slane %v874, %v881
      %v884 = vunpack.c.l.s4 1934713408
      %v885 = vunpack.c.0.s8 %v884
      %v886 = vlaneseq
      %v887 = vshrl.u32 %v886, 7
      %v888 = vsub.s32 %v885, %v887
      %v889 = vrot.slane %v875, %v888
      %v890 = vcombine.low %v825, %v841
      %v891 = vcombine.high %v825, %v841
      %v893 = vunpack.c.l.s4 1934713408
      %v894 = vunpack.c.0.s8 %v893
      %v895 = vlaneseq
      %v896 = vshrl.u32 %v895, 7
      %v897 = vsub.s32 %v894, %v896
      %v898 = vrot.slane %v890, %v897
      %v900 = vunpack.c.l.s4 1934713408
      %v901 = vunpack.c.0.s8 %v900
      %v902 = vlaneseq
      %v903 = vshrl.u32 %v902, 7
      %v904 = vsub.s32 %v901, %v903
      %v905 = vrot.slane %v891, %v904
      %v906 = vcombine.low %v850, %v866
      %v907 = vcombine.high %v850, %v866
      %v909 = vunpack.c.l.s4 1934713408
      %v910 = vunpack.c.0.s8 %v909
      %v911 = vlaneseq
      %v912 = vshrl.u32 %v911, 7
      %v913 = vsub.s32 %v910, %v912
      %v914 = vrot.slane %v906, %v913
      %v916 = vunpack.c.l.s4 1934713408
      %v917 = vunpack.c.0.s8 %v916
      %v918 = vlaneseq
      %v919 = vshrl.u32 %v918, 7
      %v920 = vsub.s32 %v917, %v919
      %v921 = vrot.slane %v907, %v920
      %v922 = vcombine.low %v857, %v873
      %v923 = vcombine.high %v857, %v873
      %v925 = vunpack.c.l.s4 1934713408
      %v926 = vunpack.c.0.s8 %v925
      %v927 = vlaneseq
      %v928 = vshrl.u32 %v927, 7
      %v929 = vsub.s32 %v926, %v928
      %v930 = vrot.slane %v922, %v929
      %v932 = vunpack.c.l.s4 1934713408
      %v933 = vunpack.c.0.s8 %v932
      %v934 = vlaneseq
      %v935 = vshrl.u32 %v934, 7
      %v936 = vsub.s32 %v933, %v935
      %v937 = vrot.slane %v923, %v936
      %v938 = vcombine.low %v882, %v914
      %v939 = vcombine.high %v882, %v914
      %v940 = vcombine.low %v889, %v921
      %v941 = vcombine.high %v889, %v921
      %v942 = vcombine.low %v898, %v930
      %v943 = vcombine.high %v898, %v930
      %v944 = vcombine.low %v905, %v937
      %v945 = vcombine.high %v905, %v937
      %v946 = vcombine.low %v619, %v643
      %v947 = vcombine.high %v619, %v643
      %v949 = vunpack.c.l.s4 1983009808
      %v950 = vunpack.c.0.s8 %v949
      %v951 = vlaneseq
      %v952 = vshrl.u32 %v951, 7
      %v953 = vsub.s32 %v950, %v952
      %v954 = vrot.slane %v946, %v953
      %v956 = vunpack.c.l.s4 1983009808
      %v957 = vunpack.c.0.s8 %v956
      %v958 = vlaneseq
      %v959 = vshrl.u32 %v958, 7
      %v960 = vsub.s32 %v957, %v959
      %v961 = vrot.slane %v947, %v960
      %v962 = vcombine.low %v631, %v655
      %v963 = vcombine.high %v631, %v655
      %v965 = vunpack.c.l.s4 1983009808
      %v966 = vunpack.c.0.s8 %v965
      %v967 = vlaneseq
      %v968 = vshrl.u32 %v967, 7
      %v969 = vsub.s32 %v966, %v968
      %v970 = vrot.slane %v962, %v969
      %v972 = vunpack.c.l.s4 1983009808
      %v973 = vunpack.c.0.s8 %v972
      %v974 = vlaneseq
      %v975 = vshrl.u32 %v974, 7
      %v976 = vsub.s32 %v973, %v975
      %v977 = vrot.slane %v963, %v976
      %v978 = vcombine.low %v667, %v691
      %v979 = vcombine.high %v667, %v691
      %v981 = vunpack.c.l.s4 1983009808
      %v982 = vunpack.c.0.s8 %v981
      %v983 = vlaneseq
      %v984 = vshrl.u32 %v983, 7
      %v985 = vsub.s32 %v982, %v984
      %v986 = vrot.slane %v978, %v985
      %v988 = vunpack.c.l.s4 1983009808
      %v989 = vunpack.c.0.s8 %v988
      %v990 = vlaneseq
      %v991 = vshrl.u32 %v990, 7
      %v992 = vsub.s32 %v989, %v991
      %v993 = vrot.slane %v979, %v992
      %v994 = vcombine.low %v679, %v703
      %v995 = vcombine.high %v679, %v703
      %v997 = vunpack.c.l.s4 1983009808
      %v998 = vunpack.c.0.s8 %v997
      %v999 = vlaneseq
      %v1000 = vshrl.u32 %v999, 7
      %v1001 = vsub.s32 %v998, %v1000
      %v1002 = vrot.slane %v994, %v1001
      %v1004 = vunpack.c.l.s4 1983009808
      %v1005 = vunpack.c.0.s8 %v1004
      %v1006 = vlaneseq
      %v1007 = vshrl.u32 %v1006, 7
      %v1008 = vsub.s32 %v1005, %v1007
      %v1009 = vrot.slane %v995, %v1008
      %v1010 = vcombine.low %v954, %v970
      %v1011 = vcombine.high %v954, %v970
      %v1013 = vunpack.c.l.s4 1934713408
      %v1014 = vunpack.c.0.s8 %v1013
      %v1015 = vlaneseq
      %v1016 = vshrl.u32 %v1015, 7
      %v1017 = vsub.s32 %v1014, %v1016
      %v1018 = vrot.slane %v1010, %v1017
      %v1020 = vunpack.c.l.s4 1934713408
      %v1021 = vunpack.c.0.s8 %v1020
      %v1022 = vlaneseq
      %v1023 = vshrl.u32 %v1022, 7
      %v1024 = vsub.s32 %v1021, %v1023
      %v1025 = vrot.slane %v1011, %v1024
      %v1026 = vcombine.low %v961, %v977
      %v1027 = vcombine.high %v961, %v977
      %v1029 = vunpack.c.l.s4 1934713408
      %v1030 = vunpack.c.0.s8 %v1029
      %v1031 = vlaneseq
      %v1032 = vshrl.u32 %v1031, 7
      %v1033 = vsub.s32 %v1030, %v1032
      %v1034 = vrot.slane %v1026, %v1033
      %v1036 = vunpack.c.l.s4 1934713408
      %v1037 = vunpack.c.0.s8 %v1036
      %v1038 = vlaneseq
      %v1039 = vshrl.u32 %v1038, 7
      %v1040 = vsub.s32 %v1037, %v1039
      %v1041 = vrot.slane %v1027, %v1040
      %v1042 = vcombine.low %v986, %v1002
      %v1043 = vcombine.high %v986, %v1002
      %v1045 = vunpack.c.l.s4 1934713408
      %v1046 = vunpack.c.0.s8 %v1045
      %v1047 = vlaneseq
      %v1048 = vshrl.u32 %v1047, 7
      %v1049 = vsub.s32 %v1046, %v1048
      %v1050 = vrot.slane %v1042, %v1049
      %v1052 = vunpack.c.l.s4 1934713408
      %v1053 = vunpack.c.0.s8 %v1052
      %v1054 = vlaneseq
      %v1055 = vshrl.u32 %v1054, 7
      %v1056 = vsub.s32 %v1053, %v1055
      %v1057 = vrot.slane %v1043, %v1056
      %v1058 = vcombine.low %v993, %v1009
      %v1059 = vcombine.high %v993, %v1009
      %v1061 = vunpack.c.l.s4 1934713408
      %v1062 = vunpack.c.0.s8 %v1061
      %v1063 = vlaneseq
      %v1064 = vshrl.u32 %v1063, 7
      %v1065 = vsub.s32 %v1062, %v1064
      %v1066 = vrot.slane %v1058, %v1065
      %v1068 = vunpack.c.l.s4 1934713408
      %v1069 = vunpack.c.0.s8 %v1068
      %v1070 = vlaneseq
      %v1071 = vshrl.u32 %v1070, 7
      %v1072 = vsub.s32 %v1069, %v1071
      %v1073 = vrot.slane %v1059, %v1072
      %v1074 = vcombine.low %v1018, %v1050
      %v1075 = vcombine.high %v1018, %v1050
      %v1076 = vcombine.low %v1025, %v1057
      %v1077 = vcombine.high %v1025, %v1057
      %v1078 = vcombine.low %v1034, %v1066
      %v1079 = vcombine.high %v1034, %v1066
      %v1080 = vcombine.low %v1041, %v1073
      %v1081 = vcombine.high %v1041, %v1073
      %v1082 = vcombine.low %v715, %v739
      %v1083 = vcombine.high %v715, %v739
      %v1085 = vunpack.c.l.s4 1983009808
      %v1086 = vunpack.c.0.s8 %v1085
      %v1087 = vlaneseq
      %v1088 = vshrl.u32 %v1087, 7
      %v1089 = vsub.s32 %v1086, %v1088
      %v1090 = vrot.slane %v1082, %v1089
      %v1092 = vunpack.c.l.s4 1983009808
      %v1093 = vunpack.c.0.s8 %v1092
      %v1094 = vlaneseq
      %v1095 = vshrl.u32 %v1094, 7
      %v1096 = vsub.s32 %v1093, %v1095
      %v1097 = vrot.slane %v1083, %v1096
      %v1098 = vcombine.low %v727, %v751
      %v1099 = vcombine.high %v727, %v751
      %v1101 = vunpack.c.l.s4 1983009808
      %v1102 = vunpack.c.0.s8 %v1101
      %v1103 = vlaneseq
      %v1104 = vshrl.u32 %v1103, 7
      %v1105 = vsub.s32 %v1102, %v1104
      %v1106 = vrot.slane %v1098, %v1105
      %v1108 = vunpack.c.l.s4 1983009808
      %v1109 = vunpack.c.0.s8 %v1108
      %v1110 = vlaneseq
      %v1111 = vshrl.u32 %v1110, 7
      %v1112 = vsub.s32 %v1109, %v1111
      %v1113 = vrot.slane %v1099, %v1112
      %v1114 = vcombine.low %v763, %v787
      %v1115 = vcombine.high %v763, %v787
      %v1117 = vunpack.c.l.s4 1983009808
      %v1118 = vunpack.c.0.s8 %v1117
      %v1119 = vlaneseq
      %v1120 = vshrl.u32 %v1119, 7
      %v1121 = vsub.s32 %v1118, %v1120
      %v1122 = vrot.slane %v1114, %v1121
      %v1124 = vunpack.c.l.s4 1983009808
      %v1125 = vunpack.c.0.s8 %v1124
      %v1126 = vlaneseq
      %v1127 = vshrl.u32 %v1126, 7
      %v1128 = vsub.s32 %v1125, %v1127
      %v1129 = vrot.slane %v1115, %v1128
      %v1130 = vcombine.low %v775, %v799
      %v1131 = vcombine.high %v775, %v799
      %v1133 = vunpack.c.l.s4 1983009808
      %v1134 = vunpack.c.0.s8 %v1133
      %v1135 = vlaneseq
      %v1136 = vshrl.u32 %v1135, 7
      %v1137 = vsub.s32 %v1134, %v1136
      %v1138 = vrot.slane %v1130, %v1137
      %v1140 = vunpack.c.l.s4 1983009808
      %v1141 = vunpack.c.0.s8 %v1140
      %v1142 = vlaneseq
      %v1143 = vshrl.u32 %v1142, 7
      %v1144 = vsub.s32 %v1141, %v1143
      %v1145 = vrot.slane %v1131, %v1144
      %v1146 = vcombine.low %v1090, %v1106
      %v1147 = vcombine.high %v1090, %v1106
      %v1149 = vunpack.c.l.s4 1934713408
      %v1150 = vunpack.c.0.s8 %v1149
      %v1151 = vlaneseq
      %v1152 = vshrl.u32 %v1151, 7
      %v1153 = vsub.s32 %v1150, %v1152
      %v1154 = vrot.slane %v1146, %v1153
      %v1156 = vunpack.c.l.s4 1934713408
      %v1157 = vunpack.c.0.s8 %v1156
      %v1158 = vlaneseq
      %v1159 = vshrl.u32 %v1158, 7
      %v1160 = vsub.s32 %v1157, %v1159
      %v1161 = vrot.slane %v1147, %v1160
      %v1162 = vcombine.low %v1097, %v1113
      %v1163 = vcombine.high %v1097, %v1113
      %v1165 = vunpack.c.l.s4 1934713408
      %v1166 = vunpack.c.0.s8 %v1165
      %v1167 = vlaneseq
      %v1168 = vshrl.u32 %v1167, 7
      %v1169 = vsub.s32 %v1166, %v1168
      %v1170 = vrot.slane %v1162, %v1169
      %v1172 = vunpack.c.l.s4 1934713408
      %v1173 = vunpack.c.0.s8 %v1172
      %v1174 = vlaneseq
      %v1175 = vshrl.u32 %v1174, 7
      %v1176 = vsub.s32 %v1173, %v1175
      %v1177 = vrot.slane %v1163, %v1176
      %v1178 = vcombine.low %v1122, %v1138
      %v1179 = vcombine.high %v1122, %v1138
      %v1181 = vunpack.c.l.s4 1934713408
      %v1182 = vunpack.c.0.s8 %v1181
      %v1183 = vlaneseq
      %v1184 = vshrl.u32 %v1183, 7
      %v1185 = vsub.s32 %v1182, %v1184
      %v1186 = vrot.slane %v1178, %v1185
      %v1188 = vunpack.c.l.s4 1934713408
      %v1189 = vunpack.c.0.s8 %v1188
      %v1190 = vlaneseq
      %v1191 = vshrl.u32 %v1190, 7
      %v1192 = vsub.s32 %v1189, %v1191
      %v1193 = vrot.slane %v1179, %v1192
      %v1194 = vcombine.low %v1129, %v1145
      %v1195 = vcombine.high %v1129, %v1145
      %v1197 = vunpack.c.l.s4 1934713408
      %v1198 = vunpack.c.0.s8 %v1197
      %v1199 = vlaneseq
      %v1200 = vshrl.u32 %v1199, 7
      %v1201 = vsub.s32 %v1198, %v1200
      %v1202 = vrot.slane %v1194, %v1201
      %v1204 = vunpack.c.l.s4 1934713408
      %v1205 = vunpack.c.0.s8 %v1204
      %v1206 = vlaneseq
      %v1207 = vshrl.u32 %v1206, 7
      %v1208 = vsub.s32 %v1205, %v1207
      %v1209 = vrot.slane %v1195, %v1208
      %v1210 = vcombine.low %v1154, %v1186
      %v1211 = vcombine.high %v1154, %v1186
      %v1212 = vcombine.low %v1161, %v1193
      %v1213 = vcombine.high %v1161, %v1193
      %v1214 = vcombine.low %v1170, %v1202
      %v1215 = vcombine.high %v1170, %v1202
      %v1216 = vcombine.low %v1177, %v1209
      %v1217 = vcombine.high %v1177, %v1209
      %v1218 = vcombine.low %v519, %v549
      %v1219 = vcombine.high %v519, %v549
      %v1221 = vunpack.c.l.s4 1983009808
      %v1222 = vunpack.c.0.s8 %v1221
      %v1223 = vlaneseq
      %v1224 = vshrl.u32 %v1223, 7
      %v1225 = vsub.s32 %v1222, %v1224
      %v1226 = vrot.slane %v1218, %v1225
      %v1228 = vunpack.c.l.s4 1983009808
      %v1229 = vunpack.c.0.s8 %v1228
      %v1230 = vlaneseq
      %v1231 = vshrl.u32 %v1230, 7
      %v1232 = vsub.s32 %v1229, %v1231
      %v1233 = vrot.slane %v1219, %v1232
      %v1234 = vcombine.low %v537, %v561
      %v1235 = vcombine.high %v537, %v561
      %v1237 = vunpack.c.l.s4 1983009808
      %v1238 = vunpack.c.0.s8 %v1237
      %v1239 = vlaneseq
      %v1240 = vshrl.u32 %v1239, 7
      %v1241 = vsub.s32 %v1238, %v1240
      %v1242 = vrot.slane %v1234, %v1241
      %v1244 = vunpack.c.l.s4 1983009808
      %v1245 = vunpack.c.0.s8 %v1244
      %v1246 = vlaneseq
      %v1247 = vshrl.u32 %v1246, 7
      %v1248 = vsub.s32 %v1245, %v1247
      %v1249 = vrot.slane %v1235, %v1248
      %v1250 = vcombine.low %v573, %v597
      %v1251 = vcombine.high %v573, %v597
      %v1253 = vunpack.c.l.s4 1983009808
      %v1254 = vunpack.c.0.s8 %v1253
      %v1255 = vlaneseq
      %v1256 = vshrl.u32 %v1255, 7
      %v1257 = vsub.s32 %v1254, %v1256
      %v1258 = vrot.slane %v1250, %v1257
      %v1260 = vunpack.c.l.s4 1983009808
      %v1261 = vunpack.c.0.s8 %v1260
      %v1262 = vlaneseq
      %v1263 = vshrl.u32 %v1262, 7
      %v1264 = vsub.s32 %v1261, %v1263
      %v1265 = vrot.slane %v1251, %v1264
      %v1266 = vcombine.low %v585, %v609
      %v1267 = vcombine.high %v585, %v609
      %v1269 = vunpack.c.l.s4 1983009808
      %v1270 = vunpack.c.0.s8 %v1269
      %v1271 = vlaneseq
      %v1272 = vshrl.u32 %v1271, 7
      %v1273 = vsub.s32 %v1270, %v1272
      %v1274 = vrot.slane %v1266, %v1273
      %v1276 = vunpack.c.l.s4 1983009808
      %v1277 = vunpack.c.0.s8 %v1276
      %v1278 = vlaneseq
      %v1279 = vshrl.u32 %v1278, 7
      %v1280 = vsub.s32 %v1277, %v1279
      %v1281 = vrot.slane %v1267, %v1280
      %v1282 = vcombine.low %v1226, %v1242
      %v1283 = vcombine.high %v1226, %v1242
      %v1285 = vunpack.c.l.s4 1934713408
      %v1286 = vunpack.c.0.s8 %v1285
      %v1287 = vlaneseq
      %v1288 = vshrl.u32 %v1287, 7
      %v1289 = vsub.s32 %v1286, %v1288
      %v1290 = vrot.slane %v1282, %v1289
      %v1292 = vunpack.c.l.s4 1934713408
      %v1293 = vunpack.c.0.s8 %v1292
      %v1294 = vlaneseq
      %v1295 = vshrl.u32 %v1294, 7
      %v1296 = vsub.s32 %v1293, %v1295
      %v1297 = vrot.slane %v1283, %v1296
      %v1298 = vcombine.low %v1233, %v1249
      %v1299 = vcombine.high %v1233, %v1249
      %v1301 = vunpack.c.l.s4 1934713408
      %v1302 = vunpack.c.0.s8 %v1301
      %v1303 = vlaneseq
      %v1304 = vshrl.u32 %v1303, 7
      %v1305 = vsub.s32 %v1302, %v1304
      %v1306 = vrot.slane %v1298, %v1305
      %v1308 = vunpack.c.l.s4 1934713408
      %v1309 = vunpack.c.0.s8 %v1308
      %v1310 = vlaneseq
      %v1311 = vshrl.u32 %v1310, 7
      %v1312 = vsub.s32 %v1309, %v1311
      %v1313 = vrot.slane %v1299, %v1312
      %v1314 = vcombine.low %v1258, %v1274
      %v1315 = vcombine.high %v1258, %v1274
      %v1317 = vunpack.c.l.s4 1934713408
      %v1318 = vunpack.c.0.s8 %v1317
      %v1319 = vlaneseq
      %v1320 = vshrl.u32 %v1319, 7
      %v1321 = vsub.s32 %v1318, %v1320
      %v1322 = vrot.slane %v1314, %v1321
      %v1324 = vunpack.c.l.s4 1934713408
      %v1325 = vunpack.c.0.s8 %v1324
      %v1326 = vlaneseq
      %v1327 = vshrl.u32 %v1326, 7
      %v1328 = vsub.s32 %v1325, %v1327
      %v1329 = vrot.slane %v1315, %v1328
      %v1330 = vcombine.low %v1265, %v1281
      %v1331 = vcombine.high %v1265, %v1281
      %v1333 = vunpack.c.l.s4 1934713408
      %v1334 = vunpack.c.0.s8 %v1333
      %v1335 = vlaneseq
      %v1336 = vshrl.u32 %v1335, 7
      %v1337 = vsub.s32 %v1334, %v1336
      %v1338 = vrot.slane %v1330, %v1337
      %v1340 = vunpack.c.l.s4 1934713408
      %v1341 = vunpack.c.0.s8 %v1340
      %v1342 = vlaneseq
      %v1343 = vshrl.u32 %v1342, 7
      %v1344 = vsub.s32 %v1341, %v1343
      %v1345 = vrot.slane %v1331, %v1344
      %v1346 = vcombine.low %v1290, %v1322
      %v1347 = vcombine.high %v1290, %v1322
      %v1348 = vcombine.low %v1297, %v1329
      %v1349 = vcombine.high %v1297, %v1329
      %v1350 = vcombine.low %v1306, %v1338
      %v1351 = vcombine.high %v1306, %v1338
      %v1352 = vcombine.low %v1313, %v1345
      %v1353 = vcombine.high %v1313, %v1345
      %v1354 = vcombine.low %v621, %v645
      %v1355 = vcombine.high %v621, %v645
      %v1357 = vunpack.c.l.s4 1983009808
      %v1358 = vunpack.c.0.s8 %v1357
      %v1359 = vlaneseq
      %v1360 = vshrl.u32 %v1359, 7
      %v1361 = vsub.s32 %v1358, %v1360
      %v1362 = vrot.slane %v1354, %v1361
      %v1364 = vunpack.c.l.s4 1983009808
      %v1365 = vunpack.c.0.s8 %v1364
      %v1366 = vlaneseq
      %v1367 = vshrl.u32 %v1366, 7
      %v1368 = vsub.s32 %v1365, %v1367
      %v1369 = vrot.slane %v1355, %v1368
      %v1370 = vcombine.low %v633, %v657
      %v1371 = vcombine.high %v633, %v657
      %v1373 = vunpack.c.l.s4 1983009808
      %v1374 = vunpack.c.0.s8 %v1373
      %v1375 = vlaneseq
      %v1376 = vshrl.u32 %v1375, 7
      %v1377 = vsub.s32 %v1374, %v1376
      %v1378 = vrot.slane %v1370, %v1377
      %v1380 = vunpack.c.l.s4 1983009808
      %v1381 = vunpack.c.0.s8 %v1380
      %v1382 = vlaneseq
      %v1383 = vshrl.u32 %v1382, 7
      %v1384 = vsub.s32 %v1381, %v1383
      %v1385 = vrot.slane %v1371, %v1384
      %v1386 = vcombine.low %v669, %v693
      %v1387 = vcombine.high %v669, %v693
      %v1389 = vunpack.c.l.s4 1983009808
      %v1390 = vunpack.c.0.s8 %v1389
      %v1391 = vlaneseq
      %v1392 = vshrl.u32 %v1391, 7
      %v1393 = vsub.s32 %v1390, %v1392
      %v1394 = vrot.slane %v1386, %v1393
      %v1396 = vunpack.c.l.s4 1983009808
      %v1397 = vunpack.c.0.s8 %v1396
      %v1398 = vlaneseq
      %v1399 = vshrl.u32 %v1398, 7
      %v1400 = vsub.s32 %v1397, %v1399
      %v1401 = vrot.slane %v1387, %v1400
      %v1402 = vcombine.low %v681, %v705
      %v1403 = vcombine.high %v681, %v705
      %v1405 = vunpack.c.l.s4 1983009808
      %v1406 = vunpack.c.0.s8 %v1405
      %v1407 = vlaneseq
      %v1408 = vshrl.u32 %v1407, 7
      %v1409 = vsub.s32 %v1406, %v1408
      %v1410 = vrot.slane %v1402, %v1409
      %v1412 = vunpack.c.l.s4 1983009808
      %v1413 = vunpack.c.0.s8 %v1412
      %v1414 = vlaneseq
      %v1415 = vshrl.u32 %v1414, 7
      %v1416 = vsub.s32 %v1413, %v1415
      %v1417 = vrot.slane %v1403, %v1416
      %v1418 = vcombine.low %v1362, %v1378
      %v1419 = vcombine.high %v1362, %v1378
      %v1421 = vunpack.c.l.s4 1934713408
      %v1422 = vunpack.c.0.s8 %v1421
      %v1423 = vlaneseq
      %v1424 = vshrl.u32 %v1423, 7
      %v1425 = vsub.s32 %v1422, %v1424
      %v1426 = vrot.slane %v1418, %v1425
      %v1428 = vunpack.c.l.s4 1934713408
      %v1429 = vunpack.c.0.s8 %v1428
      %v1430 = vlaneseq
      %v1431 = vshrl.u32 %v1430, 7
      %v1432 = vsub.s32 %v1429, %v1431
      %v1433 = vrot.slane %v1419, %v1432
      %v1434 = vcombine.low %v1369, %v1385
      %v1435 = vcombine.high %v1369, %v1385
      %v1437 = vunpack.c.l.s4 1934713408
      %v1438 = vunpack.c.0.s8 %v1437
      %v1439 = vlaneseq
      %v1440 = vshrl.u32 %v1439, 7
      %v1441 = vsub.s32 %v1438, %v1440
      %v1442 = vrot.slane %v1434, %v1441
      %v1444 = vunpack.c.l.s4 1934713408
      %v1445 = vunpack.c.0.s8 %v1444
      %v1446 = vlaneseq
      %v1447 = vshrl.u32 %v1446, 7
      %v1448 = vsub.s32 %v1445, %v1447
      %v1449 = vrot.slane %v1435, %v1448
      %v1450 = vcombine.low %v1394, %v1410
      %v1451 = vcombine.high %v1394, %v1410
      %v1453 = vunpack.c.l.s4 1934713408
      %v1454 = vunpack.c.0.s8 %v1453
      %v1455 = vlaneseq
      %v1456 = vshrl.u32 %v1455, 7
      %v1457 = vsub.s32 %v1454, %v1456
      %v1458 = vrot.slane %v1450, %v1457
      %v1460 = vunpack.c.l.s4 1934713408
      %v1461 = vunpack.c.0.s8 %v1460
      %v1462 = vlaneseq
      %v1463 = vshrl.u32 %v1462, 7
      %v1464 = vsub.s32 %v1461, %v1463
      %v1465 = vrot.slane %v1451, %v1464
      %v1466 = vcombine.low %v1401, %v1417
      %v1467 = vcombine.high %v1401, %v1417
      %v1469 = vunpack.c.l.s4 1934713408
      %v1470 = vunpack.c.0.s8 %v1469
      %v1471 = vlaneseq
      %v1472 = vshrl.u32 %v1471, 7
      %v1473 = vsub.s32 %v1470, %v1472
      %v1474 = vrot.slane %v1466, %v1473
      %v1476 = vunpack.c.l.s4 1934713408
      %v1477 = vunpack.c.0.s8 %v1476
      %v1478 = vlaneseq
      %v1479 = vshrl.u32 %v1478, 7
      %v1480 = vsub.s32 %v1477, %v1479
      %v1481 = vrot.slane %v1467, %v1480
      %v1482 = vcombine.low %v1426, %v1458
      %v1483 = vcombine.high %v1426, %v1458
      %v1484 = vcombine.low %v1433, %v1465
      %v1485 = vcombine.high %v1433, %v1465
      %v1486 = vcombine.low %v1442, %v1474
      %v1487 = vcombine.high %v1442, %v1474
      %v1488 = vcombine.low %v1449, %v1481
      %v1489 = vcombine.high %v1449, %v1481
      %v1490 = vcombine.low %v717, %v741
      %v1491 = vcombine.high %v717, %v741
      %v1493 = vunpack.c.l.s4 1983009808
      %v1494 = vunpack.c.0.s8 %v1493
      %v1495 = vlaneseq
      %v1496 = vshrl.u32 %v1495, 7
      %v1497 = vsub.s32 %v1494, %v1496
      %v1498 = vrot.slane %v1490, %v1497
      %v1500 = vunpack.c.l.s4 1983009808
      %v1501 = vunpack.c.0.s8 %v1500
      %v1502 = vlaneseq
      %v1503 = vshrl.u32 %v1502, 7
      %v1504 = vsub.s32 %v1501, %v1503
      %v1505 = vrot.slane %v1491, %v1504
      %v1506 = vcombine.low %v729, %v753
      %v1507 = vcombine.high %v729, %v753
      %v1509 = vunpack.c.l.s4 1983009808
      %v1510 = vunpack.c.0.s8 %v1509
      %v1511 = vlaneseq
      %v1512 = vshrl.u32 %v1511, 7
      %v1513 = vsub.s32 %v1510, %v1512
      %v1514 = vrot.slane %v1506, %v1513
      %v1516 = vunpack.c.l.s4 1983009808
      %v1517 = vunpack.c.0.s8 %v1516
      %v1518 = vlaneseq
      %v1519 = vshrl.u32 %v1518, 7
      %v1520 = vsub.s32 %v1517, %v1519
      %v1521 = vrot.slane %v1507, %v1520
      %v1522 = vcombine.low %v765, %v789
      %v1523 = vcombine.high %v765, %v789
      %v1525 = vunpack.c.l.s4 1983009808
      %v1526 = vunpack.c.0.s8 %v1525
      %v1527 = vlaneseq
      %v1528 = vshrl.u32 %v1527, 7
      %v1529 = vsub.s32 %v1526, %v1528
      %v1530 = vrot.slane %v1522, %v1529
      %v1532 = vunpack.c.l.s4 1983009808
      %v1533 = vunpack.c.0.s8 %v1532
      %v1534 = vlaneseq
      %v1535 = vshrl.u32 %v1534, 7
      %v1536 = vsub.s32 %v1533, %v1535
      %v1537 = vrot.slane %v1523, %v1536
      %v1538 = vcombine.low %v777, %v801
      %v1539 = vcombine.high %v777, %v801
      %v1541 = vunpack.c.l.s4 1983009808
      %v1542 = vunpack.c.0.s8 %v1541
      %v1543 = vlaneseq
      %v1544 = vshrl.u32 %v1543, 7
      %v1545 = vsub.s32 %v1542, %v1544
      %v1546 = vrot.slane %v1538, %v1545
      %v1548 = vunpack.c.l.s4 1983009808
      %v1549 = vunpack.c.0.s8 %v1548
      %v1550 = vlaneseq
      %v1551 = vshrl.u32 %v1550, 7
      %v1552 = vsub.s32 %v1549, %v1551
      %v1553 = vrot.slane %v1539, %v1552
      %v1554 = vcombine.low %v1498, %v1514
      %v1555 = vcombine.high %v1498, %v1514
      %v1557 = vunpack.c.l.s4 1934713408
      %v1558 = vunpack.c.0.s8 %v1557
      %v1559 = vlaneseq
      %v1560 = vshrl.u32 %v1559, 7
      %v1561 = vsub.s32 %v1558, %v1560
      %v1562 = vrot.slane %v1554, %v1561
      %v1564 = vunpack.c.l.s4 1934713408
      %v1565 = vunpack.c.0.s8 %v1564
      %v1566 = vlaneseq
      %v1567 = vshrl.u32 %v1566, 7
      %v1568 = vsub.s32 %v1565, %v1567
      %v1569 = vrot.slane %v1555, %v1568
      %v1570 = vcombine.low %v1505, %v1521
      %v1571 = vcombine.high %v1505, %v1521
      %v1573 = vunpack.c.l.s4 1934713408
      %v1574 = vunpack.c.0.s8 %v1573
      %v1575 = vlaneseq
      %v1576 = vshrl.u32 %v1575, 7
      %v1577 = vsub.s32 %v1574, %v1576
      %v1578 = vrot.slane %v1570, %v1577
      %v1580 = vunpack.c.l.s4 1934713408
      %v1581 = vunpack.c.0.s8 %v1580
      %v1582 = vlaneseq
      %v1583 = vshrl.u32 %v1582, 7
      %v1584 = vsub.s32 %v1581, %v1583
      %v1585 = vrot.slane %v1571, %v1584
      %v1586 = vcombine.low %v1530, %v1546
      %v1587 = vcombine.high %v1530, %v1546
      %v1589 = vunpack.c.l.s4 1934713408
      %v1590 = vunpack.c.0.s8 %v1589
      %v1591 = vlaneseq
      %v1592 = vshrl.u32 %v1591, 7
      %v1593 = vsub.s32 %v1590, %v1592
      %v1594 = vrot.slane %v1586, %v1593
      %v1596 = vunpack.c.l.s4 1934713408
      %v1597 = vunpack.c.0.s8 %v1596
      %v1598 = vlaneseq
      %v1599 = vshrl.u32 %v1598, 7
      %v1600 = vsub.s32 %v1597, %v1599
      %v1601 = vrot.slane %v1587, %v1600
      %v1602 = vcombine.low %v1537, %v1553
      %v1603 = vcombine.high %v1537, %v1553
      %v1605 = vunpack.c.l.s4 1934713408
      %v1606 = vunpack.c.0.s8 %v1605
      %v1607 = vlaneseq
      %v1608 = vshrl.u32 %v1607, 7
      %v1609 = vsub.s32 %v1606, %v1608
      %v1610 = vrot.slane %v1602, %v1609
      %v1612 = vunpack.c.l.s4 1934713408
      %v1613 = vunpack.c.0.s8 %v1612
      %v1614 = vlaneseq
      %v1615 = vshrl.u32 %v1614, 7
      %v1616 = vsub.s32 %v1613, %v1615
      %v1617 = vrot.slane %v1603, %v1616
      %v1618 = vcombine.low %v1562, %v1594
      %v1619 = vcombine.high %v1562, %v1594
      %v1620 = vcombine.low %v1569, %v1601
      %v1621 = vcombine.high %v1569, %v1601
      %v1622 = vcombine.low %v1578, %v1610
      %v1623 = vcombine.high %v1578, %v1610
      %v1624 = vcombine.low %v1585, %v1617
      %v1625 = vcombine.high %v1585, %v1617
      %v1626 = vcombine.low %v524, %v551
      %v1627 = vcombine.high %v524, %v551
      %v1629 = vunpack.c.l.s4 1983009808
      %v1630 = vunpack.c.0.s8 %v1629
      %v1631 = vlaneseq
      %v1632 = vshrl.u32 %v1631, 7
      %v1633 = vsub.s32 %v1630, %v1632
      %v1634 = vrot.slane %v1626, %v1633
      %v1636 = vunpack.c.l.s4 1983009808
      %v1637 = vunpack.c.0.s8 %v1636
      %v1638 = vlaneseq
      %v1639 = vshrl.u32 %v1638, 7
      %v1640 = vsub.s32 %v1637, %v1639
      %v1641 = vrot.slane %v1627, %v1640
      %v1642 = vcombine.low %v539, %v563
      %v1643 = vcombine.high %v539, %v563
      %v1645 = vunpack.c.l.s4 1983009808
      %v1646 = vunpack.c.0.s8 %v1645
      %v1647 = vlaneseq
      %v1648 = vshrl.u32 %v1647, 7
      %v1649 = vsub.s32 %v1646, %v1648
      %v1650 = vrot.slane %v1642, %v1649
      %v1652 = vunpack.c.l.s4 1983009808
      %v1653 = vunpack.c.0.s8 %v1652
      %v1654 = vlaneseq
      %v1655 = vshrl.u32 %v1654, 7
      %v1656 = vsub.s32 %v1653, %v1655
      %v1657 = vrot.slane %v1643, %v1656
      %v1658 = vcombine.low %v575, %v599
      %v1659 = vcombine.high %v575, %v599
      %v1661 = vunpack.c.l.s4 1983009808
      %v1662 = vunpack.c.0.s8 %v1661
      %v1663 = vlaneseq
      %v1664 = vshrl.u32 %v1663, 7
      %v1665 = vsub.s32 %v1662, %v1664
      %v1666 = vrot.slane %v1658, %v1665
      %v1668 = vunpack.c.l.s4 1983009808
      %v1669 = vunpack.c.0.s8 %v1668
      %v1670 = vlaneseq
      %v1671 = vshrl.u32 %v1670, 7
      %v1672 = vsub.s32 %v1669, %v1671
      %v1673 = vrot.slane %v1659, %v1672
      %v1674 = vcombine.low %v587, %v611
      %v1675 = vcombine.high %v587, %v611
      %v1677 = vunpack.c.l.s4 1983009808
      %v1678 = vunpack.c.0.s8 %v1677
      %v1679 = vlaneseq
      %v1680 = vshrl.u32 %v1679, 7
      %v1681 = vsub.s32 %v1678, %v1680
      %v1682 = vrot.slane %v1674, %v1681
      %v1684 = vunpack.c.l.s4 1983009808
      %v1685 = vunpack.c.0.s8 %v1684
      %v1686 = vlaneseq
      %v1687 = vshrl.u32 %v1686, 7
      %v1688 = vsub.s32 %v1685, %v1687
      %v1689 = vrot.slane %v1675, %v1688
      %v1690 = vcombine.low %v1634, %v1650
      %v1691 = vcombine.high %v1634, %v1650
      %v1693 = vunpack.c.l.s4 1934713408
      %v1694 = vunpack.c.0.s8 %v1693
      %v1695 = vlaneseq
      %v1696 = vshrl.u32 %v1695, 7
      %v1697 = vsub.s32 %v1694, %v1696
      %v1698 = vrot.slane %v1690, %v1697
      %v1700 = vunpack.c.l.s4 1934713408
      %v1701 = vunpack.c.0.s8 %v1700
      %v1702 = vlaneseq
      %v1703 = vshrl.u32 %v1702, 7
      %v1704 = vsub.s32 %v1701, %v1703
      %v1705 = vrot.slane %v1691, %v1704
      %v1706 = vcombine.low %v1641, %v1657
      %v1707 = vcombine.high %v1641, %v1657
      %v1709 = vunpack.c.l.s4 1934713408
      %v1710 = vunpack.c.0.s8 %v1709
      %v1711 = vlaneseq
      %v1712 = vshrl.u32 %v1711, 7
      %v1713 = vsub.s32 %v1710, %v1712
      %v1714 = vrot.slane %v1706, %v1713
      %v1716 = vunpack.c.l.s4 1934713408
      %v1717 = vunpack.c.0.s8 %v1716
      %v1718 = vlaneseq
      %v1719 = vshrl.u32 %v1718, 7
      %v1720 = vsub.s32 %v1717, %v1719
      %v1721 = vrot.slane %v1707, %v1720
      %v1722 = vcombine.low %v1666, %v1682
      %v1723 = vcombine.high %v1666, %v1682
      %v1725 = vunpack.c.l.s4 1934713408
      %v1726 = vunpack.c.0.s8 %v1725
      %v1727 = vlaneseq
      %v1728 = vshrl.u32 %v1727, 7
      %v1729 = vsub.s32 %v1726, %v1728
      %v1730 = vrot.slane %v1722, %v1729
      %v1732 = vunpack.c.l.s4 1934713408
      %v1733 = vunpack.c.0.s8 %v1732
      %v1734 = vlaneseq
      %v1735 = vshrl.u32 %v1734, 7
      %v1736 = vsub.s32 %v1733, %v1735
      %v1737 = vrot.slane %v1723, %v1736
      %v1738 = vcombine.low %v1673, %v1689
      %v1739 = vcombine.high %v1673, %v1689
      %v1741 = vunpack.c.l.s4 1934713408
      %v1742 = vunpack.c.0.s8 %v1741
      %v1743 = vlaneseq
      %v1744 = vshrl.u32 %v1743, 7
      %v1745 = vsub.s32 %v1742, %v1744
      %v1746 = vrot.slane %v1738, %v1745
      %v1748 = vunpack.c.l.s4 1934713408
      %v1749 = vunpack.c.0.s8 %v1748
      %v1750 = vlaneseq
      %v1751 = vshrl.u32 %v1750, 7
      %v1752 = vsub.s32 %v1749, %v1751
      %v1753 = vrot.slane %v1739, %v1752
      %v1754 = vcombine.low %v1698, %v1730
      %v1755 = vcombine.high %v1698, %v1730
      %v1756 = vcombine.low %v1705, %v1737
      %v1757 = vcombine.high %v1705, %v1737
      %v1758 = vcombine.low %v1714, %v1746
      %v1759 = vcombine.high %v1714, %v1746
      %v1760 = vcombine.low %v1721, %v1753
      %v1761 = vcombine.high %v1721, %v1753
      %v1762 = vcombine.low %v623, %v647
      %v1763 = vcombine.high %v623, %v647
      %v1765 = vunpack.c.l.s4 1983009808
      %v1766 = vunpack.c.0.s8 %v1765
      %v1767 = vlaneseq
      %v1768 = vshrl.u32 %v1767, 7
      %v1769 = vsub.s32 %v1766, %v1768
      %v1770 = vrot.slane %v1762, %v1769
      %v1772 = vunpack.c.l.s4 1983009808
      %v1773 = vunpack.c.0.s8 %v1772
      %v1774 = vlaneseq
      %v1775 = vshrl.u32 %v1774, 7
      %v1776 = vsub.s32 %v1773, %v1775
      %v1777 = vrot.slane %v1763, %v1776
      %v1778 = vcombine.low %v635, %v659
      %v1779 = vcombine.high %v635, %v659
      %v1781 = vunpack.c.l.s4 1983009808
      %v1782 = vunpack.c.0.s8 %v1781
      %v1783 = vlaneseq
      %v1784 = vshrl.u32 %v1783, 7
      %v1785 = vsub.s32 %v1782, %v1784
      %v1786 = vrot.slane %v1778, %v1785
      %v1788 = vunpack.c.l.s4 1983009808
      %v1789 = vunpack.c.0.s8 %v1788
      %v1790 = vlaneseq
      %v1791 = vshrl.u32 %v1790, 7
      %v1792 = vsub.s32 %v1789, %v1791
      %v1793 = vrot.slane %v1779, %v1792
      %v1794 = vcombine.low %v671, %v695
      %v1795 = vcombine.high %v671, %v695
      %v1797 = vunpack.c.l.s4 1983009808
      %v1798 = vunpack.c.0.s8 %v1797
      %v1799 = vlaneseq
      %v1800 = vshrl.u32 %v1799, 7
      %v1801 = vsub.s32 %v1798, %v1800
      %v1802 = vrot.slane %v1794, %v1801
      %v1804 = vunpack.c.l.s4 1983009808
      %v1805 = vunpack.c.0.s8 %v1804
      %v1806 = vlaneseq
      %v1807 = vshrl.u32 %v1806, 7
      %v1808 = vsub.s32 %v1805, %v1807
      %v1809 = vrot.slane %v1795, %v1808
      %v1810 = vcombine.low %v683, %v707
      %v1811 = vcombine.high %v683, %v707
      %v1813 = vunpack.c.l.s4 1983009808
      %v1814 = vunpack.c.0.s8 %v1813
      %v1815 = vlaneseq
      %v1816 = vshrl.u32 %v1815, 7
      %v1817 = vsub.s32 %v1814, %v1816
      %v1818 = vrot.slane %v1810, %v1817
      %v1820 = vunpack.c.l.s4 1983009808
      %v1821 = vunpack.c.0.s8 %v1820
      %v1822 = vlaneseq
      %v1823 = vshrl.u32 %v1822, 7
      %v1824 = vsub.s32 %v1821, %v1823
      %v1825 = vrot.slane %v1811, %v1824
      %v1826 = vcombine.low %v1770, %v1786
      %v1827 = vcombine.high %v1770, %v1786
      %v1829 = vunpack.c.l.s4 1934713408
      %v1830 = vunpack.c.0.s8 %v1829
      %v1831 = vlaneseq
      %v1832 = vshrl.u32 %v1831, 7
      %v1833 = vsub.s32 %v1830, %v1832
      %v1834 = vrot.slane %v1826, %v1833
      %v1836 = vunpack.c.l.s4 1934713408
      %v1837 = vunpack.c.0.s8 %v1836
      %v1838 = vlaneseq
      %v1839 = vshrl.u32 %v1838, 7
      %v1840 = vsub.s32 %v1837, %v1839
      %v1841 = vrot.slane %v1827, %v1840
      %v1842 = vcombine.low %v1777, %v1793
      %v1843 = vcombine.high %v1777, %v1793
      %v1845 = vunpack.c.l.s4 1934713408
      %v1846 = vunpack.c.0.s8 %v1845
      %v1847 = vlaneseq
      %v1848 = vshrl.u32 %v1847, 7
      %v1849 = vsub.s32 %v1846, %v1848
      %v1850 = vrot.slane %v1842, %v1849
      %v1852 = vunpack.c.l.s4 1934713408
      %v1853 = vunpack.c.0.s8 %v1852
      %v1854 = vlaneseq
      %v1855 = vshrl.u32 %v1854, 7
      %v1856 = vsub.s32 %v1853, %v1855
      %v1857 = vrot.slane %v1843, %v1856
      %v1858 = vcombine.low %v1802, %v1818
      %v1859 = vcombine.high %v1802, %v1818
      %v1861 = vunpack.c.l.s4 1934713408
      %v1862 = vunpack.c.0.s8 %v1861
      %v1863 = vlaneseq
      %v1864 = vshrl.u32 %v1863, 7
      %v1865 = vsub.s32 %v1862, %v1864
      %v1866 = vrot.slane %v1858, %v1865
      %v1868 = vunpack.c.l.s4 1934713408
      %v1869 = vunpack.c.0.s8 %v1868
      %v1870 = vlaneseq
      %v1871 = vshrl.u32 %v1870, 7
      %v1872 = vsub.s32 %v1869, %v1871
      %v1873 = vrot.slane %v1859, %v1872
      %v1874 = vcombine.low %v1809, %v1825
      %v1875 = vcombine.high %v1809, %v1825
      %v1877 = vunpack.c.l.s4 1934713408
      %v1878 = vunpack.c.0.s8 %v1877
      %v1879 = vlaneseq
      %v1880 = vshrl.u32 %v1879, 7
      %v1881 = vsub.s32 %v1878, %v1880
      %v1882 = vrot.slane %v1874, %v1881
      %v1884 = vunpack.c.l.s4 1934713408
      %v1885 = vunpack.c.0.s8 %v1884
      %v1886 = vlaneseq
      %v1887 = vshrl.u32 %v1886, 7
      %v1888 = vsub.s32 %v1885, %v1887
      %v1889 = vrot.slane %v1875, %v1888
      %v1890 = vcombine.low %v1834, %v1866
      %v1891 = vcombine.high %v1834, %v1866
      %v1892 = vcombine.low %v1841, %v1873
      %v1893 = vcombine.high %v1841, %v1873
      %v1894 = vcombine.low %v1850, %v1882
      %v1895 = vcombine.high %v1850, %v1882
      %v1896 = vcombine.low %v1857, %v1889
      %v1897 = vcombine.high %v1857, %v1889
      %v1898 = vcombine.low %v719, %v743
      %v1899 = vcombine.high %v719, %v743
      %v1901 = vunpack.c.l.s4 1983009808
      %v1902 = vunpack.c.0.s8 %v1901
      %v1903 = vlaneseq
      %v1904 = vshrl.u32 %v1903, 7
      %v1905 = vsub.s32 %v1902, %v1904
      %v1906 = vrot.slane %v1898, %v1905
      %v1908 = vunpack.c.l.s4 1983009808
      %v1909 = vunpack.c.0.s8 %v1908
      %v1910 = vlaneseq
      %v1911 = vshrl.u32 %v1910, 7
      %v1912 = vsub.s32 %v1909, %v1911
      %v1913 = vrot.slane %v1899, %v1912
      %v1914 = vcombine.low %v731, %v755
      %v1915 = vcombine.high %v731, %v755
      %v1917 = vunpack.c.l.s4 1983009808
      %v1918 = vunpack.c.0.s8 %v1917
      %v1919 = vlaneseq
      %v1920 = vshrl.u32 %v1919, 7
      %v1921 = vsub.s32 %v1918, %v1920
      %v1922 = vrot.slane %v1914, %v1921
      %v1924 = vunpack.c.l.s4 1983009808
      %v1925 = vunpack.c.0.s8 %v1924
      %v1926 = vlaneseq
      %v1927 = vshrl.u32 %v1926, 7
      %v1928 = vsub.s32 %v1925, %v1927
      %v1929 = vrot.slane %v1915, %v1928
      %v1930 = vcombine.low %v767, %v791
      %v1931 = vcombine.high %v767, %v791
      %v1933 = vunpack.c.l.s4 1983009808
      %v1934 = vunpack.c.0.s8 %v1933
      %v1935 = vlaneseq
      %v1936 = vshrl.u32 %v1935, 7
      %v1937 = vsub.s32 %v1934, %v1936
      %v1938 = vrot.slane %v1930, %v1937
      %v1940 = vunpack.c.l.s4 1983009808
      %v1941 = vunpack.c.0.s8 %v1940
      %v1942 = vlaneseq
      %v1943 = vshrl.u32 %v1942, 7
      %v1944 = vsub.s32 %v1941, %v1943
      %v1945 = vrot.slane %v1931, %v1944
      %v1946 = vcombine.low %v779, %v803
      %v1947 = vcombine.high %v779, %v803
      %v1949 = vunpack.c.l.s4 1983009808
      %v1950 = vunpack.c.0.s8 %v1949
      %v1951 = vlaneseq
      %v1952 = vshrl.u32 %v1951, 7
      %v1953 = vsub.s32 %v1950, %v1952
      %v1954 = vrot.slane %v1946, %v1953
      %v1956 = vunpack.c.l.s4 1983009808
      %v1957 = vunpack.c.0.s8 %v1956
      %v1958 = vlaneseq
      %v1959 = vshrl.u32 %v1958, 7
      %v1960 = vsub.s32 %v1957, %v1959
      %v1961 = vrot.slane %v1947, %v1960
      %v1962 = vcombine.low %v1906, %v1922
      %v1963 = vcombine.high %v1906, %v1922
      %v1965 = vunpack.c.l.s4 1934713408
      %v1966 = vunpack.c.0.s8 %v1965
      %v1967 = vlaneseq
      %v1968 = vshrl.u32 %v1967, 7
      %v1969 = vsub.s32 %v1966, %v1968
      %v1970 = vrot.slane %v1962, %v1969
      %v1972 = vunpack.c.l.s4 1934713408
      %v1973 = vunpack.c.0.s8 %v1972
      %v1974 = vlaneseq
      %v1975 = vshrl.u32 %v1974, 7
      %v1976 = vsub.s32 %v1973, %v1975
      %v1977 = vrot.slane %v1963, %v1976
      %v1978 = vcombine.low %v1913, %v1929
      %v1979 = vcombine.high %v1913, %v1929
      %v1981 = vunpack.c.l.s4 1934713408
      %v1982 = vunpack.c.0.s8 %v1981
      %v1983 = vlaneseq
      %v1984 = vshrl.u32 %v1983, 7
      %v1985 = vsub.s32 %v1982, %v1984
      %v1986 = vrot.slane %v1978, %v1985
      %v1988 = vunpack.c.l.s4 1934713408
      %v1989 = vunpack.c.0.s8 %v1988
      %v1990 = vlaneseq
      %v1991 = vshrl.u32 %v1990, 7
      %v1992 = vsub.s32 %v1989, %v1991
      %v1993 = vrot.slane %v1979, %v1992
      %v1994 = vcombine.low %v1938, %v1954
      %v1995 = vcombine.high %v1938, %v1954
      %v1997 = vunpack.c.l.s4 1934713408
      %v1998 = vunpack.c.0.s8 %v1997
      %v1999 = vlaneseq
      %v2000 = vshrl.u32 %v1999, 7
      %v2001 = vsub.s32 %v1998, %v2000
      %v2002 = vrot.slane %v1994, %v2001
      %v2004 = vunpack.c.l.s4 1934713408
      %v2005 = vunpack.c.0.s8 %v2004
      %v2006 = vlaneseq
      %v2007 = vshrl.u32 %v2006, 7
      %v2008 = vsub.s32 %v2005, %v2007
      %v2009 = vrot.slane %v1995, %v2008
      %v2010 = vcombine.low %v1945, %v1961
      %v2011 = vcombine.high %v1945, %v1961
      %v2013 = vunpack.c.l.s4 1934713408
      %v2014 = vunpack.c.0.s8 %v2013
      %v2015 = vlaneseq
      %v2016 = vshrl.u32 %v2015, 7
      %v2017 = vsub.s32 %v2014, %v2016
      %v2018 = vrot.slane %v2010, %v2017
      %v2020 = vunpack.c.l.s4 1934713408
      %v2021 = vunpack.c.0.s8 %v2020
      %v2022 = vlaneseq
      %v2023 = vshrl.u32 %v2022, 7
      %v2024 = vsub.s32 %v2021, %v2023
      %v2025 = vrot.slane %v2011, %v2024
      %v2026 = vcombine.low %v1970, %v2002
      %v2027 = vcombine.high %v1970, %v2002
      %v2028 = vcombine.low %v1977, %v2009
      %v2029 = vcombine.high %v1977, %v2009
      %v2030 = vcombine.low %v1986, %v2018
      %v2031 = vcombine.high %v1986, %v2018
      %v2032 = vcombine.low %v1993, %v2025
      %v2033 = vcombine.high %v1993, %v2025
      %v2034 = vcombine.low %v527, %v553
      %v2035 = vcombine.high %v527, %v553
      %v2037 = vunpack.c.l.s4 1983009808
      %v2038 = vunpack.c.0.s8 %v2037
      %v2039 = vlaneseq
      %v2040 = vshrl.u32 %v2039, 7
      %v2041 = vsub.s32 %v2038, %v2040
      %v2042 = vrot.slane %v2034, %v2041
      %v2044 = vunpack.c.l.s4 1983009808
      %v2045 = vunpack.c.0.s8 %v2044
      %v2046 = vlaneseq
      %v2047 = vshrl.u32 %v2046, 7
      %v2048 = vsub.s32 %v2045, %v2047
      %v2049 = vrot.slane %v2035, %v2048
      %v2050 = vcombine.low %v541, %v565
      %v2051 = vcombine.high %v541, %v565
      %v2053 = vunpack.c.l.s4 1983009808
      %v2054 = vunpack.c.0.s8 %v2053
      %v2055 = vlaneseq
      %v2056 = vshrl.u32 %v2055, 7
      %v2057 = vsub.s32 %v2054, %v2056
      %v2058 = vrot.slane %v2050, %v2057
      %v2060 = vunpack.c.l.s4 1983009808
      %v2061 = vunpack.c.0.s8 %v2060
      %v2062 = vlaneseq
      %v2063 = vshrl.u32 %v2062, 7
      %v2064 = vsub.s32 %v2061, %v2063
      %v2065 = vrot.slane %v2051, %v2064
      %v2066 = vcombine.low %v577, %v601
      %v2067 = vcombine.high %v577, %v601
      %v2069 = vunpack.c.l.s4 1983009808
      %v2070 = vunpack.c.0.s8 %v2069
      %v2071 = vlaneseq
      %v2072 = vshrl.u32 %v2071, 7
      %v2073 = vsub.s32 %v2070, %v2072
      %v2074 = vrot.slane %v2066, %v2073
      %v2076 = vunpack.c.l.s4 1983009808
      %v2077 = vunpack.c.0.s8 %v2076
      %v2078 = vlaneseq
      %v2079 = vshrl.u32 %v2078, 7
      %v2080 = vsub.s32 %v2077, %v2079
      %v2081 = vrot.slane %v2067, %v2080
      %v2082 = vcombine.low %v589, %v613
      %v2083 = vcombine.high %v589, %v613
      %v2085 = vunpack.c.l.s4 1983009808
      %v2086 = vunpack.c.0.s8 %v2085
      %v2087 = vlaneseq
      %v2088 = vshrl.u32 %v2087, 7
      %v2089 = vsub.s32 %v2086, %v2088
      %v2090 = vrot.slane %v2082, %v2089
      %v2092 = vunpack.c.l.s4 1983009808
      %v2093 = vunpack.c.0.s8 %v2092
      %v2094 = vlaneseq
      %v2095 = vshrl.u32 %v2094, 7
      %v2096 = vsub.s32 %v2093, %v2095
      %v2097 = vrot.slane %v2083, %v2096
      %v2098 = vcombine.low %v2042, %v2058
      %v2099 = vcombine.high %v2042, %v2058
      %v2101 = vunpack.c.l.s4 1934713408
      %v2102 = vunpack.c.0.s8 %v2101
      %v2103 = vlaneseq
      %v2104 = vshrl.u32 %v2103, 7
      %v2105 = vsub.s32 %v2102, %v2104
      %v2106 = vrot.slane %v2098, %v2105
      %v2108 = vunpack.c.l.s4 1934713408
      %v2109 = vunpack.c.0.s8 %v2108
      %v2110 = vlaneseq
      %v2111 = vshrl.u32 %v2110, 7
      %v2112 = vsub.s32 %v2109, %v2111
      %v2113 = vrot.slane %v2099, %v2112
      %v2114 = vcombine.low %v2049, %v2065
      %v2115 = vcombine.high %v2049, %v2065
      %v2117 = vunpack.c.l.s4 1934713408
      %v2118 = vunpack.c.0.s8 %v2117
      %v2119 = vlaneseq
      %v2120 = vshrl.u32 %v2119, 7
      %v2121 = vsub.s32 %v2118, %v2120
      %v2122 = vrot.slane %v2114, %v2121
      %v2124 = vunpack.c.l.s4 1934713408
      %v2125 = vunpack.c.0.s8 %v2124
      %v2126 = vlaneseq
      %v2127 = vshrl.u32 %v2126, 7
      %v2128 = vsub.s32 %v2125, %v2127
      %v2129 = vrot.slane %v2115, %v2128
      %v2130 = vcombine.low %v2074, %v2090
      %v2131 = vcombine.high %v2074, %v2090
      %v2133 = vunpack.c.l.s4 1934713408
      %v2134 = vunpack.c.0.s8 %v2133
      %v2135 = vlaneseq
      %v2136 = vshrl.u32 %v2135, 7
      %v2137 = vsub.s32 %v2134, %v2136
      %v2138 = vrot.slane %v2130, %v2137
      %v2140 = vunpack.c.l.s4 1934713408
      %v2141 = vunpack.c.0.s8 %v2140
      %v2142 = vlaneseq
      %v2143 = vshrl.u32 %v2142, 7
      %v2144 = vsub.s32 %v2141, %v2143
      %v2145 = vrot.slane %v2131, %v2144
      %v2146 = vcombine.low %v2081, %v2097
      %v2147 = vcombine.high %v2081, %v2097
      %v2149 = vunpack.c.l.s4 1934713408
      %v2150 = vunpack.c.0.s8 %v2149
      %v2151 = vlaneseq
      %v2152 = vshrl.u32 %v2151, 7
      %v2153 = vsub.s32 %v2150, %v2152
      %v2154 = vrot.slane %v2146, %v2153
      %v2156 = vunpack.c.l.s4 1934713408
      %v2157 = vunpack.c.0.s8 %v2156
      %v2158 = vlaneseq
      %v2159 = vshrl.u32 %v2158, 7
      %v2160 = vsub.s32 %v2157, %v2159
      %v2161 = vrot.slane %v2147, %v2160
      %v2162 = vcombine.low %v2106, %v2138
      %v2163 = vcombine.high %v2106, %v2138
      %v2164 = vcombine.low %v2113, %v2145
      %v2165 = vcombine.high %v2113, %v2145
      %v2166 = vcombine.low %v2122, %v2154
      %v2167 = vcombine.high %v2122, %v2154
      %v2168 = vcombine.low %v2129, %v2161
      %v2169 = vcombine.high %v2129, %v2161
      %v2170 = vcombine.low %v625, %v649
      %v2171 = vcombine.high %v625, %v649
      %v2173 = vunpack.c.l.s4 1983009808
      %v2174 = vunpack.c.0.s8 %v2173
      %v2175 = vlaneseq
      %v2176 = vshrl.u32 %v2175, 7
      %v2177 = vsub.s32 %v2174, %v2176
      %v2178 = vrot.slane %v2170, %v2177
      %v2180 = vunpack.c.l.s4 1983009808
      %v2181 = vunpack.c.0.s8 %v2180
      %v2182 = vlaneseq
      %v2183 = vshrl.u32 %v2182, 7
      %v2184 = vsub.s32 %v2181, %v2183
      %v2185 = vrot.slane %v2171, %v2184
      %v2186 = vcombine.low %v637, %v661
      %v2187 = vcombine.high %v637, %v661
      %v2189 = vunpack.c.l.s4 1983009808
      %v2190 = vunpack.c.0.s8 %v2189
      %v2191 = vlaneseq
      %v2192 = vshrl.u32 %v2191, 7
      %v2193 = vsub.s32 %v2190, %v2192
      %v2194 = vrot.slane %v2186, %v2193
      %v2196 = vunpack.c.l.s4 1983009808
      %v2197 = vunpack.c.0.s8 %v2196
      %v2198 = vlaneseq
      %v2199 = vshrl.u32 %v2198, 7
      %v2200 = vsub.s32 %v2197, %v2199
      %v2201 = vrot.slane %v2187, %v2200
      %v2202 = vcombine.low %v673, %v697
      %v2203 = vcombine.high %v673, %v697
      %v2205 = vunpack.c.l.s4 1983009808
      %v2206 = vunpack.c.0.s8 %v2205
      %v2207 = vlaneseq
      %v2208 = vshrl.u32 %v2207, 7
      %v2209 = vsub.s32 %v2206, %v2208
      %v2210 = vrot.slane %v2202, %v2209
      %v2212 = vunpack.c.l.s4 1983009808
      %v2213 = vunpack.c.0.s8 %v2212
      %v2214 = vlaneseq
      %v2215 = vshrl.u32 %v2214, 7
      %v2216 = vsub.s32 %v2213, %v2215
      %v2217 = vrot.slane %v2203, %v2216
      %v2218 = vcombine.low %v685, %v709
      %v2219 = vcombine.high %v685, %v709
      %v2221 = vunpack.c.l.s4 1983009808
      %v2222 = vunpack.c.0.s8 %v2221
      %v2223 = vlaneseq
      %v2224 = vshrl.u32 %v2223, 7
      %v2225 = vsub.s32 %v2222, %v2224
      %v2226 = vrot.slane %v2218, %v2225
      %v2228 = vunpack.c.l.s4 1983009808
      %v2229 = vunpack.c.0.s8 %v2228
      %v2230 = vlaneseq
      %v2231 = vshrl.u32 %v2230, 7
      %v2232 = vsub.s32 %v2229, %v2231
      %v2233 = vrot.slane %v2219, %v2232
      %v2234 = vcombine.low %v2178, %v2194
      %v2235 = vcombine.high %v2178, %v2194
      %v2237 = vunpack.c.l.s4 1934713408
      %v2238 = vunpack.c.0.s8 %v2237
      %v2239 = vlaneseq
      %v2240 = vshrl.u32 %v2239, 7
      %v2241 = vsub.s32 %v2238, %v2240
      %v2242 = vrot.slane %v2234, %v2241
      %v2244 = vunpack.c.l.s4 1934713408
      %v2245 = vunpack.c.0.s8 %v2244
      %v2246 = vlaneseq
      %v2247 = vshrl.u32 %v2246, 7
      %v2248 = vsub.s32 %v2245, %v2247
      %v2249 = vrot.slane %v2235, %v2248
      %v2250 = vcombine.low %v2185, %v2201
      %v2251 = vcombine.high %v2185, %v2201
      %v2253 = vunpack.c.l.s4 1934713408
      %v2254 = vunpack.c.0.s8 %v2253
      %v2255 = vlaneseq
      %v2256 = vshrl.u32 %v2255, 7
      %v2257 = vsub.s32 %v2254, %v2256
      %v2258 = vrot.slane %v2250, %v2257
      %v2260 = vunpack.c.l.s4 1934713408
      %v2261 = vunpack.c.0.s8 %v2260
      %v2262 = vlaneseq
      %v2263 = vshrl.u32 %v2262, 7
      %v2264 = vsub.s32 %v2261, %v2263
      %v2265 = vrot.slane %v2251, %v2264
      %v2266 = vcombine.low %v2210, %v2226
      %v2267 = vcombine.high %v2210, %v2226
      %v2269 = vunpack.c.l.s4 1934713408
      %v2270 = vunpack.c.0.s8 %v2269
      %v2271 = vlaneseq
      %v2272 = vshrl.u32 %v2271, 7
      %v2273 = vsub.s32 %v2270, %v2272
      %v2274 = vrot.slane %v2266, %v2273
      %v2276 = vunpack.c.l.s4 1934713408
      %v2277 = vunpack.c.0.s8 %v2276
      %v2278 = vlaneseq
      %v2279 = vshrl.u32 %v2278, 7
      %v2280 = vsub.s32 %v2277, %v2279
      %v2281 = vrot.slane %v2267, %v2280
      %v2282 = vcombine.low %v2217, %v2233
      %v2283 = vcombine.high %v2217, %v2233
      %v2285 = vunpack.c.l.s4 1934713408
      %v2286 = vunpack.c.0.s8 %v2285
      %v2287 = vlaneseq
      %v2288 = vshrl.u32 %v2287, 7
      %v2289 = vsub.s32 %v2286, %v2288
      %v2290 = vrot.slane %v2282, %v2289
      %v2292 = vunpack.c.l.s4 1934713408
      %v2293 = vunpack.c.0.s8 %v2292
      %v2294 = vlaneseq
      %v2295 = vshrl.u32 %v2294, 7
      %v2296 = vsub.s32 %v2293, %v2295
      %v2297 = vrot.slane %v2283, %v2296
      %v2298 = vcombine.low %v2242, %v2274
      %v2299 = vcombine.high %v2242, %v2274
      %v2300 = vcombine.low %v2249, %v2281
      %v2301 = vcombine.high %v2249, %v2281
      %v2302 = vcombine.low %v2258, %v2290
      %v2303 = vcombine.high %v2258, %v2290
      %v2304 = vcombine.low %v2265, %v2297
      %v2305 = vcombine.high %v2265, %v2297
      %v2306 = vcombine.low %v721, %v745
      %v2307 = vcombine.high %v721, %v745
      %v2309 = vunpack.c.l.s4 1983009808
      %v2310 = vunpack.c.0.s8 %v2309
      %v2311 = vlaneseq
      %v2312 = vshrl.u32 %v2311, 7
      %v2313 = vsub.s32 %v2310, %v2312
      %v2314 = vrot.slane %v2306, %v2313
      %v2316 = vunpack.c.l.s4 1983009808
      %v2317 = vunpack.c.0.s8 %v2316
      %v2318 = vlaneseq
      %v2319 = vshrl.u32 %v2318, 7
      %v2320 = vsub.s32 %v2317, %v2319
      %v2321 = vrot.slane %v2307, %v2320
      %v2322 = vcombine.low %v733, %v757
      %v2323 = vcombine.high %v733, %v757
      %v2325 = vunpack.c.l.s4 1983009808
      %v2326 = vunpack.c.0.s8 %v2325
      %v2327 = vlaneseq
      %v2328 = vshrl.u32 %v2327, 7
      %v2329 = vsub.s32 %v2326, %v2328
      %v2330 = vrot.slane %v2322, %v2329
      %v2332 = vunpack.c.l.s4 1983009808
      %v2333 = vunpack.c.0.s8 %v2332
      %v2334 = vlaneseq
      %v2335 = vshrl.u32 %v2334, 7
      %v2336 = vsub.s32 %v2333, %v2335
      %v2337 = vrot.slane %v2323, %v2336
      %v2338 = vcombine.low %v769, %v793
      %v2339 = vcombine.high %v769, %v793
      %v2341 = vunpack.c.l.s4 1983009808
      %v2342 = vunpack.c.0.s8 %v2341
      %v2343 = vlaneseq
      %v2344 = vshrl.u32 %v2343, 7
      %v2345 = vsub.s32 %v2342, %v2344
      %v2346 = vrot.slane %v2338, %v2345
      %v2348 = vunpack.c.l.s4 1983009808
      %v2349 = vunpack.c.0.s8 %v2348
      %v2350 = vlaneseq
      %v2351 = vshrl.u32 %v2350, 7
      %v2352 = vsub.s32 %v2349, %v2351
      %v2353 = vrot.slane %v2339, %v2352
      %v2354 = vcombine.low %v781, %v805
      %v2355 = vcombine.high %v781, %v805
      %v2357 = vunpack.c.l.s4 1983009808
      %v2358 = vunpack.c.0.s8 %v2357
      %v2359 = vlaneseq
      %v2360 = vshrl.u32 %v2359, 7
      %v2361 = vsub.s32 %v2358, %v2360
      %v2362 = vrot.slane %v2354, %v2361
      %v2364 = vunpack.c.l.s4 1983009808
      %v2365 = vunpack.c.0.s8 %v2364
      %v2366 = vlaneseq
      %v2367 = vshrl.u32 %v2366, 7
      %v2368 = vsub.s32 %v2365, %v2367
      %v2369 = vrot.slane %v2355, %v2368
      %v2370 = vcombine.low %v2314, %v2330
      %v2371 = vcombine.high %v2314, %v2330
      %v2373 = vunpack.c.l.s4 1934713408
      %v2374 = vunpack.c.0.s8 %v2373
      %v2375 = vlaneseq
      %v2376 = vshrl.u32 %v2375, 7
      %v2377 = vsub.s32 %v2374, %v2376
      %v2378 = vrot.slane %v2370, %v2377
      %v2380 = vunpack.c.l.s4 1934713408
      %v2381 = vunpack.c.0.s8 %v2380
      %v2382 = vlaneseq
      %v2383 = vshrl.u32 %v2382, 7
      %v2384 = vsub.s32 %v2381, %v2383
      %v2385 = vrot.slane %v2371, %v2384
      %v2386 = vcombine.low %v2321, %v2337
      %v2387 = vcombine.high %v2321, %v2337
      %v2389 = vunpack.c.l.s4 1934713408
      %v2390 = vunpack.c.0.s8 %v2389
      %v2391 = vlaneseq
      %v2392 = vshrl.u32 %v2391, 7
      %v2393 = vsub.s32 %v2390, %v2392
      %v2394 = vrot.slane %v2386, %v2393
      %v2396 = vunpack.c.l.s4 1934713408
      %v2397 = vunpack.c.0.s8 %v2396
      %v2398 = vlaneseq
      %v2399 = vshrl.u32 %v2398, 7
      %v2400 = vsub.s32 %v2397, %v2399
      %v2401 = vrot.slane %v2387, %v2400
      %v2402 = vcombine.low %v2346, %v2362
      %v2403 = vcombine.high %v2346, %v2362
      %v2405 = vunpack.c.l.s4 1934713408
      %v2406 = vunpack.c.0.s8 %v2405
      %v2407 = vlaneseq
      %v2408 = vshrl.u32 %v2407, 7
      %v2409 = vsub.s32 %v2406, %v2408
      %v2410 = vrot.slane %v2402, %v2409
      %v2412 = vunpack.c.l.s4 1934713408
      %v2413 = vunpack.c.0.s8 %v2412
      %v2414 = vlaneseq
      %v2415 = vshrl.u32 %v2414, 7
      %v2416 = vsub.s32 %v2413, %v2415
      %v2417 = vrot.slane %v2403, %v2416
      %v2418 = vcombine.low %v2353, %v2369
      %v2419 = vcombine.high %v2353, %v2369
      %v2421 = vunpack.c.l.s4 1934713408
      %v2422 = vunpack.c.0.s8 %v2421
      %v2423 = vlaneseq
      %v2424 = vshrl.u32 %v2423, 7
      %v2425 = vsub.s32 %v2422, %v2424
      %v2426 = vrot.slane %v2418, %v2425
      %v2428 = vunpack.c.l.s4 1934713408
      %v2429 = vunpack.c.0.s8 %v2428
      %v2430 = vlaneseq
      %v2431 = vshrl.u32 %v2430, 7
      %v2432 = vsub.s32 %v2429, %v2431
      %v2433 = vrot.slane %v2419, %v2432
      %v2434 = vcombine.low %v2378, %v2410
      %v2435 = vcombine.high %v2378, %v2410
      %v2436 = vcombine.low %v2385, %v2417
      %v2437 = vcombine.high %v2385, %v2417
      %v2438 = vcombine.low %v2394, %v2426
      %v2439 = vcombine.high %v2394, %v2426
      %v2440 = vcombine.low %v2401, %v2433
      %v2441 = vcombine.high %v2401, %v2433
      %v2442 = vcombine.low %v938, %v940
      %v2443 = vcombine.high %v938, %v940
      %v2445 = vunpack.c.l.s4 1983009808
      %v2446 = vunpack.c.0.s8 %v2445
      %v2447 = vlaneseq
      %v2448 = vshrl.u32 %v2447, 7
      %v2449 = vsub.s32 %v2446, %v2448
      %v2450 = vrot.slane %v2442, %v2449
      %v2452 = vunpack.c.l.s4 1983009808
      %v2453 = vunpack.c.0.s8 %v2452
      %v2454 = vlaneseq
      %v2455 = vshrl.u32 %v2454, 7
      %v2456 = vsub.s32 %v2453, %v2455
      %v2457 = vrot.slane %v2443, %v2456
      %v2458 = vcombine.low %v939, %v941
      %v2459 = vcombine.high %v939, %v941
      %v2461 = vunpack.c.l.s4 1983009808
      %v2462 = vunpack.c.0.s8 %v2461
      %v2463 = vlaneseq
      %v2464 = vshrl.u32 %v2463, 7
      %v2465 = vsub.s32 %v2462, %v2464
      %v2466 = vrot.slane %v2458, %v2465
      %v2468 = vunpack.c.l.s4 1983009808
      %v2469 = vunpack.c.0.s8 %v2468
      %v2470 = vlaneseq
      %v2471 = vshrl.u32 %v2470, 7
      %v2472 = vsub.s32 %v2469, %v2471
      %v2473 = vrot.slane %v2459, %v2472
      %v2474 = vcombine.low %v942, %v944
      %v2475 = vcombine.high %v942, %v944
      %v2477 = vunpack.c.l.s4 1983009808
      %v2478 = vunpack.c.0.s8 %v2477
      %v2479 = vlaneseq
      %v2480 = vshrl.u32 %v2479, 7
      %v2481 = vsub.s32 %v2478, %v2480
      %v2482 = vrot.slane %v2474, %v2481
      %v2484 = vunpack.c.l.s4 1983009808
      %v2485 = vunpack.c.0.s8 %v2484
      %v2486 = vlaneseq
      %v2487 = vshrl.u32 %v2486, 7
      %v2488 = vsub.s32 %v2485, %v2487
      %v2489 = vrot.slane %v2475, %v2488
      %v2490 = vcombine.low %v943, %v945
      %v2491 = vcombine.high %v943, %v945
      %v2493 = vunpack.c.l.s4 1983009808
      %v2494 = vunpack.c.0.s8 %v2493
      %v2495 = vlaneseq
      %v2496 = vshrl.u32 %v2495, 7
      %v2497 = vsub.s32 %v2494, %v2496
      %v2498 = vrot.slane %v2490, %v2497
      %v2500 = vunpack.c.l.s4 1983009808
      %v2501 = vunpack.c.0.s8 %v2500
      %v2502 = vlaneseq
      %v2503 = vshrl.u32 %v2502, 7
      %v2504 = vsub.s32 %v2501, %v2503
      %v2505 = vrot.slane %v2491, %v2504
      %v2506 = vcombine.low %v2450, %v2466
      %v2507 = vcombine.high %v2450, %v2466
      %v2509 = vunpack.c.l.s4 1934713408
      %v2510 = vunpack.c.0.s8 %v2509
      %v2511 = vlaneseq
      %v2512 = vshrl.u32 %v2511, 7
      %v2513 = vsub.s32 %v2510, %v2512
      %v2514 = vrot.slane %v2506, %v2513
      %v2516 = vunpack.c.l.s4 1934713408
      %v2517 = vunpack.c.0.s8 %v2516
      %v2518 = vlaneseq
      %v2519 = vshrl.u32 %v2518, 7
      %v2520 = vsub.s32 %v2517, %v2519
      %v2521 = vrot.slane %v2507, %v2520
      %v2522 = vcombine.low %v2457, %v2473
      %v2523 = vcombine.high %v2457, %v2473
      %v2525 = vunpack.c.l.s4 1934713408
      %v2526 = vunpack.c.0.s8 %v2525
      %v2527 = vlaneseq
      %v2528 = vshrl.u32 %v2527, 7
      %v2529 = vsub.s32 %v2526, %v2528
      %v2530 = vrot.slane %v2522, %v2529
      %v2532 = vunpack.c.l.s4 1934713408
      %v2533 = vunpack.c.0.s8 %v2532
      %v2534 = vlaneseq
      %v2535 = vshrl.u32 %v2534, 7
      %v2536 = vsub.s32 %v2533, %v2535
      %v2537 = vrot.slane %v2523, %v2536
      %v2538 = vcombine.low %v2482, %v2498
      %v2539 = vcombine.high %v2482, %v2498
      %v2541 = vunpack.c.l.s4 1934713408
      %v2542 = vunpack.c.0.s8 %v2541
      %v2543 = vlaneseq
      %v2544 = vshrl.u32 %v2543, 7
      %v2545 = vsub.s32 %v2542, %v2544
      %v2546 = vrot.slane %v2538, %v2545
      %v2548 = vunpack.c.l.s4 1934713408
      %v2549 = vunpack.c.0.s8 %v2548
      %v2550 = vlaneseq
      %v2551 = vshrl.u32 %v2550, 7
      %v2552 = vsub.s32 %v2549, %v2551
      %v2553 = vrot.slane %v2539, %v2552
      %v2554 = vcombine.low %v2489, %v2505
      %v2555 = vcombine.high %v2489, %v2505
      %v2557 = vunpack.c.l.s4 1934713408
      %v2558 = vunpack.c.0.s8 %v2557
      %v2559 = vlaneseq
      %v2560 = vshrl.u32 %v2559, 7
      %v2561 = vsub.s32 %v2558, %v2560
      %v2562 = vrot.slane %v2554, %v2561
      %v2564 = vunpack.c.l.s4 1934713408
      %v2565 = vunpack.c.0.s8 %v2564
      %v2566 = vlaneseq
      %v2567 = vshrl.u32 %v2566, 7
      %v2568 = vsub.s32 %v2565, %v2567
      %v2569 = vrot.slane %v2555, %v2568
      %v2570 = vcombine.low %v2514, %v2546
      %v2571 = vcombine.high %v2514, %v2546
      %v2572 = vcombine.low %v2521, %v2553
      %v2573 = vcombine.high %v2521, %v2553
      %v2574 = vcombine.low %v2530, %v2562
      %v2575 = vcombine.high %v2530, %v2562
      %v2576 = vcombine.low %v2537, %v2569
      %v2577 = vcombine.high %v2537, %v2569
      %v2578 = vcombine.low %v1346, %v1348
      %v2579 = vcombine.high %v1346, %v1348
      %v2581 = vunpack.c.l.s4 1983009808
      %v2582 = vunpack.c.0.s8 %v2581
      %v2583 = vlaneseq
      %v2584 = vshrl.u32 %v2583, 7
      %v2585 = vsub.s32 %v2582, %v2584
      %v2586 = vrot.slane %v2578, %v2585
      %v2588 = vunpack.c.l.s4 1983009808
      %v2589 = vunpack.c.0.s8 %v2588
      %v2590 = vlaneseq
      %v2591 = vshrl.u32 %v2590, 7
      %v2592 = vsub.s32 %v2589, %v2591
      %v2593 = vrot.slane %v2579, %v2592
      %v2594 = vcombine.low %v1347, %v1349
      %v2595 = vcombine.high %v1347, %v1349
      %v2597 = vunpack.c.l.s4 1983009808
      %v2598 = vunpack.c.0.s8 %v2597
      %v2599 = vlaneseq
      %v2600 = vshrl.u32 %v2599, 7
      %v2601 = vsub.s32 %v2598, %v2600
      %v2602 = vrot.slane %v2594, %v2601
      %v2604 = vunpack.c.l.s4 1983009808
      %v2605 = vunpack.c.0.s8 %v2604
      %v2606 = vlaneseq
      %v2607 = vshrl.u32 %v2606, 7
      %v2608 = vsub.s32 %v2605, %v2607
      %v2609 = vrot.slane %v2595, %v2608
      %v2610 = vcombine.low %v1350, %v1352
      %v2611 = vcombine.high %v1350, %v1352
      %v2613 = vunpack.c.l.s4 1983009808
      %v2614 = vunpack.c.0.s8 %v2613
      %v2615 = vlaneseq
      %v2616 = vshrl.u32 %v2615, 7
      %v2617 = vsub.s32 %v2614, %v2616
      %v2618 = vrot.slane %v2610, %v2617
      %v2620 = vunpack.c.l.s4 1983009808
      %v2621 = vunpack.c.0.s8 %v2620
      %v2622 = vlaneseq
      %v2623 = vshrl.u32 %v2622, 7
      %v2624 = vsub.s32 %v2621, %v2623
      %v2625 = vrot.slane %v2611, %v2624
      %v2626 = vcombine.low %v1351, %v1353
      %v2627 = vcombine.high %v1351, %v1353
      %v2629 = vunpack.c.l.s4 1983009808
      %v2630 = vunpack.c.0.s8 %v2629
      %v2631 = vlaneseq
      %v2632 = vshrl.u32 %v2631, 7
      %v2633 = vsub.s32 %v2630, %v2632
      %v2634 = vrot.slane %v2626, %v2633
      %v2636 = vunpack.c.l.s4 1983009808
      %v2637 = vunpack.c.0.s8 %v2636
      %v2638 = vlaneseq
      %v2639 = vshrl.u32 %v2638, 7
      %v2640 = vsub.s32 %v2637, %v2639
      %v2641 = vrot.slane %v2627, %v2640
      %v2642 = vcombine.low %v2586, %v2602
      %v2643 = vcombine.high %v2586, %v2602
      %v2645 = vunpack.c.l.s4 1934713408
      %v2646 = vunpack.c.0.s8 %v2645
      %v2647 = vlaneseq
      %v2648 = vshrl.u32 %v2647, 7
      %v2649 = vsub.s32 %v2646, %v2648
      %v2650 = vrot.slane %v2642, %v2649
      %v2652 = vunpack.c.l.s4 1934713408
      %v2653 = vunpack.c.0.s8 %v2652
      %v2654 = vlaneseq
      %v2655 = vshrl.u32 %v2654, 7
      %v2656 = vsub.s32 %v2653, %v2655
      %v2657 = vrot.slane %v2643, %v2656
      %v2658 = vcombine.low %v2593, %v2609
      %v2659 = vcombine.high %v2593, %v2609
      %v2661 = vunpack.c.l.s4 1934713408
      %v2662 = vunpack.c.0.s8 %v2661
      %v2663 = vlaneseq
      %v2664 = vshrl.u32 %v2663, 7
      %v2665 = vsub.s32 %v2662, %v2664
      %v2666 = vrot.slane %v2658, %v2665
      %v2668 = vunpack.c.l.s4 1934713408
      %v2669 = vunpack.c.0.s8 %v2668
      %v2670 = vlaneseq
      %v2671 = vshrl.u32 %v2670, 7
      %v2672 = vsub.s32 %v2669, %v2671
      %v2673 = vrot.slane %v2659, %v2672
      %v2674 = vcombine.low %v2618, %v2634
      %v2675 = vcombine.high %v2618, %v2634
      %v2677 = vunpack.c.l.s4 1934713408
      %v2678 = vunpack.c.0.s8 %v2677
      %v2679 = vlaneseq
      %v2680 = vshrl.u32 %v2679, 7
      %v2681 = vsub.s32 %v2678, %v2680
      %v2682 = vrot.slane %v2674, %v2681
      %v2684 = vunpack.c.l.s4 1934713408
      %v2685 = vunpack.c.0.s8 %v2684
      %v2686 = vlaneseq
      %v2687 = vshrl.u32 %v2686, 7
      %v2688 = vsub.s32 %v2685, %v2687
      %v2689 = vrot.slane %v2675, %v2688
      %v2690 = vcombine.low %v2625, %v2641
      %v2691 = vcombine.high %v2625, %v2641
      %v2693 = vunpack.c.l.s4 1934713408
      %v2694 = vunpack.c.0.s8 %v2693
      %v2695 = vlaneseq
      %v2696 = vshrl.u32 %v2695, 7
      %v2697 = vsub.s32 %v2694, %v2696
      %v2698 = vrot.slane %v2690, %v2697
      %v2700 = vunpack.c.l.s4 1934713408
      %v2701 = vunpack.c.0.s8 %v2700
      %v2702 = vlaneseq
      %v2703 = vshrl.u32 %v2702, 7
      %v2704 = vsub.s32 %v2701, %v2703
      %v2705 = vrot.slane %v2691, %v2704
      %v2706 = vcombine.low %v2650, %v2682
      %v2707 = vcombine.high %v2650, %v2682
      %v2708 = vcombine.low %v2657, %v2689
      %v2709 = vcombine.high %v2657, %v2689
      %v2710 = vcombine.low %v2666, %v2698
      %v2711 = vcombine.high %v2666, %v2698
      %v2712 = vcombine.low %v2673, %v2705
      %v2713 = vcombine.high %v2673, %v2705
      %v2714 = vcombine.low %v1754, %v1756
      %v2715 = vcombine.high %v1754, %v1756
      %v2717 = vunpack.c.l.s4 1983009808
      %v2718 = vunpack.c.0.s8 %v2717
      %v2719 = vlaneseq
      %v2720 = vshrl.u32 %v2719, 7
      %v2721 = vsub.s32 %v2718, %v2720
      %v2722 = vrot.slane %v2714, %v2721
      %v2724 = vunpack.c.l.s4 1983009808
      %v2725 = vunpack.c.0.s8 %v2724
      %v2726 = vlaneseq
      %v2727 = vshrl.u32 %v2726, 7
      %v2728 = vsub.s32 %v2725, %v2727
      %v2729 = vrot.slane %v2715, %v2728
      %v2730 = vcombine.low %v1755, %v1757
      %v2731 = vcombine.high %v1755, %v1757
      %v2733 = vunpack.c.l.s4 1983009808
      %v2734 = vunpack.c.0.s8 %v2733
      %v2735 = vlaneseq
      %v2736 = vshrl.u32 %v2735, 7
      %v2737 = vsub.s32 %v2734, %v2736
      %v2738 = vrot.slane %v2730, %v2737
      %v2740 = vunpack.c.l.s4 1983009808
      %v2741 = vunpack.c.0.s8 %v2740
      %v2742 = vlaneseq
      %v2743 = vshrl.u32 %v2742, 7
      %v2744 = vsub.s32 %v2741, %v2743
      %v2745 = vrot.slane %v2731, %v2744
      %v2746 = vcombine.low %v1758, %v1760
      %v2747 = vcombine.high %v1758, %v1760
      %v2749 = vunpack.c.l.s4 1983009808
      %v2750 = vunpack.c.0.s8 %v2749
      %v2751 = vlaneseq
      %v2752 = vshrl.u32 %v2751, 7
      %v2753 = vsub.s32 %v2750, %v2752
      %v2754 = vrot.slane %v2746, %v2753
      %v2756 = vunpack.c.l.s4 1983009808
      %v2757 = vunpack.c.0.s8 %v2756
      %v2758 = vlaneseq
      %v2759 = vshrl.u32 %v2758, 7
      %v2760 = vsub.s32 %v2757, %v2759
      %v2761 = vrot.slane %v2747, %v2760
      %v2762 = vcombine.low %v1759, %v1761
      %v2763 = vcombine.high %v1759, %v1761
      %v2765 = vunpack.c.l.s4 1983009808
      %v2766 = vunpack.c.0.s8 %v2765
      %v2767 = vlaneseq
      %v2768 = vshrl.u32 %v2767, 7
      %v2769 = vsub.s32 %v2766, %v2768
      %v2770 = vrot.slane %v2762, %v2769
      %v2772 = vunpack.c.l.s4 1983009808
      %v2773 = vunpack.c.0.s8 %v2772
      %v2774 = vlaneseq
      %v2775 = vshrl.u32 %v2774, 7
      %v2776 = vsub.s32 %v2773, %v2775
      %v2777 = vrot.slane %v2763, %v2776
      %v2778 = vcombine.low %v2722, %v2738
      %v2779 = vcombine.high %v2722, %v2738
      %v2781 = vunpack.c.l.s4 1934713408
      %v2782 = vunpack.c.0.s8 %v2781
      %v2783 = vlaneseq
      %v2784 = vshrl.u32 %v2783, 7
      %v2785 = vsub.s32 %v2782, %v2784
      %v2786 = vrot.slane %v2778, %v2785
      %v2788 = vunpack.c.l.s4 1934713408
      %v2789 = vunpack.c.0.s8 %v2788
      %v2790 = vlaneseq
      %v2791 = vshrl.u32 %v2790, 7
      %v2792 = vsub.s32 %v2789, %v2791
      %v2793 = vrot.slane %v2779, %v2792
      %v2794 = vcombine.low %v2729, %v2745
      %v2795 = vcombine.high %v2729, %v2745
      %v2797 = vunpack.c.l.s4 1934713408
      %v2798 = vunpack.c.0.s8 %v2797
      %v2799 = vlaneseq
      %v2800 = vshrl.u32 %v2799, 7
      %v2801 = vsub.s32 %v2798, %v2800
      %v2802 = vrot.slane %v2794, %v2801
      %v2804 = vunpack.c.l.s4 1934713408
      %v2805 = vunpack.c.0.s8 %v2804
      %v2806 = vlaneseq
      %v2807 = vshrl.u32 %v2806, 7
      %v2808 = vsub.s32 %v2805, %v2807
      %v2809 = vrot.slane %v2795, %v2808
      %v2810 = vcombine.low %v2754, %v2770
      %v2811 = vcombine.high %v2754, %v2770
      %v2813 = vunpack.c.l.s4 1934713408
      %v2814 = vunpack.c.0.s8 %v2813
      %v2815 = vlaneseq
      %v2816 = vshrl.u32 %v2815, 7
      %v2817 = vsub.s32 %v2814, %v2816
      %v2818 = vrot.slane %v2810, %v2817
      %v2820 = vunpack.c.l.s4 1934713408
      %v2821 = vunpack.c.0.s8 %v2820
      %v2822 = vlaneseq
      %v2823 = vshrl.u32 %v2822, 7
      %v2824 = vsub.s32 %v2821, %v2823
      %v2825 = vrot.slane %v2811, %v2824
      %v2826 = vcombine.low %v2761, %v2777
      %v2827 = vcombine.high %v2761, %v2777
      %v2829 = vunpack.c.l.s4 1934713408
      %v2830 = vunpack.c.0.s8 %v2829
      %v2831 = vlaneseq
      %v2832 = vshrl.u32 %v2831, 7
      %v2833 = vsub.s32 %v2830, %v2832
      %v2834 = vrot.slane %v2826, %v2833
      %v2836 = vunpack.c.l.s4 1934713408
      %v2837 = vunpack.c.0.s8 %v2836
      %v2838 = vlaneseq
      %v2839 = vshrl.u32 %v2838, 7
      %v2840 = vsub.s32 %v2837, %v2839
      %v2841 = vrot.slane %v2827, %v2840
      %v2842 = vcombine.low %v2786, %v2818
      %v2843 = vcombine.high %v2786, %v2818
      %v2844 = vcombine.low %v2793, %v2825
      %v2845 = vcombine.high %v2793, %v2825
      %v2846 = vcombine.low %v2802, %v2834
      %v2847 = vcombine.high %v2802, %v2834
      %v2848 = vcombine.low %v2809, %v2841
      %v2849 = vcombine.high %v2809, %v2841
      %v2850 = vcombine.low %v2162, %v2164
      %v2851 = vcombine.high %v2162, %v2164
      %v2853 = vunpack.c.l.s4 1983009808
      %v2854 = vunpack.c.0.s8 %v2853
      %v2855 = vlaneseq
      %v2856 = vshrl.u32 %v2855, 7
      %v2857 = vsub.s32 %v2854, %v2856
      %v2858 = vrot.slane %v2850, %v2857
      %v2860 = vunpack.c.l.s4 1983009808
      %v2861 = vunpack.c.0.s8 %v2860
      %v2862 = vlaneseq
      %v2863 = vshrl.u32 %v2862, 7
      %v2864 = vsub.s32 %v2861, %v2863
      %v2865 = vrot.slane %v2851, %v2864
      %v2866 = vcombine.low %v2163, %v2165
      %v2867 = vcombine.high %v2163, %v2165
      %v2869 = vunpack.c.l.s4 1983009808
      %v2870 = vunpack.c.0.s8 %v2869
      %v2871 = vlaneseq
      %v2872 = vshrl.u32 %v2871, 7
      %v2873 = vsub.s32 %v2870, %v2872
      %v2874 = vrot.slane %v2866, %v2873
      %v2876 = vunpack.c.l.s4 1983009808
      %v2877 = vunpack.c.0.s8 %v2876
      %v2878 = vlaneseq
      %v2879 = vshrl.u32 %v2878, 7
      %v2880 = vsub.s32 %v2877, %v2879
      %v2881 = vrot.slane %v2867, %v2880
      %v2882 = vcombine.low %v2166, %v2168
      %v2883 = vcombine.high %v2166, %v2168
      %v2885 = vunpack.c.l.s4 1983009808
      %v2886 = vunpack.c.0.s8 %v2885
      %v2887 = vlaneseq
      %v2888 = vshrl.u32 %v2887, 7
      %v2889 = vsub.s32 %v2886, %v2888
      %v2890 = vrot.slane %v2882, %v2889
      %v2892 = vunpack.c.l.s4 1983009808
      %v2893 = vunpack.c.0.s8 %v2892
      %v2894 = vlaneseq
      %v2895 = vshrl.u32 %v2894, 7
      %v2896 = vsub.s32 %v2893, %v2895
      %v2897 = vrot.slane %v2883, %v2896
      %v2898 = vcombine.low %v2167, %v2169
      %v2899 = vcombine.high %v2167, %v2169
      %v2901 = vunpack.c.l.s4 1983009808
      %v2902 = vunpack.c.0.s8 %v2901
      %v2903 = vlaneseq
      %v2904 = vshrl.u32 %v2903, 7
      %v2905 = vsub.s32 %v2902, %v2904
      %v2906 = vrot.slane %v2898, %v2905
      %v2908 = vunpack.c.l.s4 1983009808
      %v2909 = vunpack.c.0.s8 %v2908
      %v2910 = vlaneseq
      %v2911 = vshrl.u32 %v2910, 7
      %v2912 = vsub.s32 %v2909, %v2911
      %v2913 = vrot.slane %v2899, %v2912
      %v2914 = vcombine.low %v2858, %v2874
      %v2915 = vcombine.high %v2858, %v2874
      %v2917 = vunpack.c.l.s4 1934713408
      %v2918 = vunpack.c.0.s8 %v2917
      %v2919 = vlaneseq
      %v2920 = vshrl.u32 %v2919, 7
      %v2921 = vsub.s32 %v2918, %v2920
      %v2922 = vrot.slane %v2914, %v2921
      %v2924 = vunpack.c.l.s4 1934713408
      %v2925 = vunpack.c.0.s8 %v2924
      %v2926 = vlaneseq
      %v2927 = vshrl.u32 %v2926, 7
      %v2928 = vsub.s32 %v2925, %v2927
      %v2929 = vrot.slane %v2915, %v2928
      %v2930 = vcombine.low %v2865, %v2881
      %v2931 = vcombine.high %v2865, %v2881
      %v2933 = vunpack.c.l.s4 1934713408
      %v2934 = vunpack.c.0.s8 %v2933
      %v2935 = vlaneseq
      %v2936 = vshrl.u32 %v2935, 7
      %v2937 = vsub.s32 %v2934, %v2936
      %v2938 = vrot.slane %v2930, %v2937
      %v2940 = vunpack.c.l.s4 1934713408
      %v2941 = vunpack.c.0.s8 %v2940
      %v2942 = vlaneseq
      %v2943 = vshrl.u32 %v2942, 7
      %v2944 = vsub.s32 %v2941, %v2943
      %v2945 = vrot.slane %v2931, %v2944
      %v2946 = vcombine.low %v2890, %v2906
      %v2947 = vcombine.high %v2890, %v2906
      %v2949 = vunpack.c.l.s4 1934713408
      %v2950 = vunpack.c.0.s8 %v2949
      %v2951 = vlaneseq
      %v2952 = vshrl.u32 %v2951, 7
      %v2953 = vsub.s32 %v2950, %v2952
      %v2954 = vrot.slane %v2946, %v2953
      %v2956 = vunpack.c.l.s4 1934713408
      %v2957 = vunpack.c.0.s8 %v2956
      %v2958 = vlaneseq
      %v2959 = vshrl.u32 %v2958, 7
      %v2960 = vsub.s32 %v2957, %v2959
      %v2961 = vrot.slane %v2947, %v2960
      %v2962 = vcombine.low %v2897, %v2913
      %v2963 = vcombine.high %v2897, %v2913
      %v2965 = vunpack.c.l.s4 1934713408
      %v2966 = vunpack.c.0.s8 %v2965
      %v2967 = vlaneseq
      %v2968 = vshrl.u32 %v2967, 7
      %v2969 = vsub.s32 %v2966, %v2968
      %v2970 = vrot.slane %v2962, %v2969
      %v2972 = vunpack.c.l.s4 1934713408
      %v2973 = vunpack.c.0.s8 %v2972
      %v2974 = vlaneseq
      %v2975 = vshrl.u32 %v2974, 7
      %v2976 = vsub.s32 %v2973, %v2975
      %v2977 = vrot.slane %v2963, %v2976
      %v2978 = vcombine.low %v2922, %v2954
      %v2979 = vcombine.high %v2922, %v2954
      %v2980 = vcombine.low %v2929, %v2961
      %v2981 = vcombine.high %v2929, %v2961
      %v2982 = vcombine.low %v2938, %v2970
      %v2983 = vcombine.high %v2938, %v2970
      %v2984 = vcombine.low %v2945, %v2977
      %v2985 = vcombine.high %v2945, %v2977
      %v2986 = vcombine.low %v1074, %v1076
      %v2987 = vcombine.high %v1074, %v1076
      %v2989 = vunpack.c.l.s4 1983009808
      %v2990 = vunpack.c.0.s8 %v2989
      %v2991 = vlaneseq
      %v2992 = vshrl.u32 %v2991, 7
      %v2993 = vsub.s32 %v2990, %v2992
      %v2994 = vrot.slane %v2986, %v2993
      %v2996 = vunpack.c.l.s4 1983009808
      %v2997 = vunpack.c.0.s8 %v2996
      %v2998 = vlaneseq
      %v2999 = vshrl.u32 %v2998, 7
      %v3000 = vsub.s32 %v2997, %v2999
      %v3001 = vrot.slane %v2987, %v3000
      %v3002 = vcombine.low %v1075, %v1077
      %v3003 = vcombine.high %v1075, %v1077
      %v3005 = vunpack.c.l.s4 1983009808
      %v3006 = vunpack.c.0.s8 %v3005
      %v3007 = vlaneseq
      %v3008 = vshrl.u32 %v3007, 7
      %v3009 = vsub.s32 %v3006, %v3008
      %v3010 = vrot.slane %v3002, %v3009
      %v3012 = vunpack.c.l.s4 1983009808
      %v3013 = vunpack.c.0.s8 %v3012
      %v3014 = vlaneseq
      %v3015 = vshrl.u32 %v3014, 7
      %v3016 = vsub.s32 %v3013, %v3015
      %v3017 = vrot.slane %v3003, %v3016
      %v3018 = vcombine.low %v1078, %v1080
      %v3019 = vcombine.high %v1078, %v1080
      %v3021 = vunpack.c.l.s4 1983009808
      %v3022 = vunpack.c.0.s8 %v3021
      %v3023 = vlaneseq
      %v3024 = vshrl.u32 %v3023, 7
      %v3025 = vsub.s32 %v3022, %v3024
      %v3026 = vrot.slane %v3018, %v3025
      %v3028 = vunpack.c.l.s4 1983009808
      %v3029 = vunpack.c.0.s8 %v3028
      %v3030 = vlaneseq
      %v3031 = vshrl.u32 %v3030, 7
      %v3032 = vsub.s32 %v3029, %v3031
      %v3033 = vrot.slane %v3019, %v3032
      %v3034 = vcombine.low %v1079, %v1081
      %v3035 = vcombine.high %v1079, %v1081
      %v3037 = vunpack.c.l.s4 1983009808
      %v3038 = vunpack.c.0.s8 %v3037
      %v3039 = vlaneseq
      %v3040 = vshrl.u32 %v3039, 7
      %v3041 = vsub.s32 %v3038, %v3040
      %v3042 = vrot.slane %v3034, %v3041
      %v3044 = vunpack.c.l.s4 1983009808
      %v3045 = vunpack.c.0.s8 %v3044
      %v3046 = vlaneseq
      %v3047 = vshrl.u32 %v3046, 7
      %v3048 = vsub.s32 %v3045, %v3047
      %v3049 = vrot.slane %v3035, %v3048
      %v3050 = vcombine.low %v2994, %v3010
      %v3051 = vcombine.high %v2994, %v3010
      %v3053 = vunpack.c.l.s4 1934713408
      %v3054 = vunpack.c.0.s8 %v3053
      %v3055 = vlaneseq
      %v3056 = vshrl.u32 %v3055, 7
      %v3057 = vsub.s32 %v3054, %v3056
      %v3058 = vrot.slane %v3050, %v3057
      %v3060 = vunpack.c.l.s4 1934713408
      %v3061 = vunpack.c.0.s8 %v3060
      %v3062 = vlaneseq
      %v3063 = vshrl.u32 %v3062, 7
      %v3064 = vsub.s32 %v3061, %v3063
      %v3065 = vrot.slane %v3051, %v3064
      %v3066 = vcombine.low %v3001, %v3017
      %v3067 = vcombine.high %v3001, %v3017
      %v3069 = vunpack.c.l.s4 1934713408
      %v3070 = vunpack.c.0.s8 %v3069
      %v3071 = vlaneseq
      %v3072 = vshrl.u32 %v3071, 7
      %v3073 = vsub.s32 %v3070, %v3072
      %v3074 = vrot.slane %v3066, %v3073
      %v3076 = vunpack.c.l.s4 1934713408
      %v3077 = vunpack.c.0.s8 %v3076
      %v3078 = vlaneseq
      %v3079 = vshrl.u32 %v3078, 7
      %v3080 = vsub.s32 %v3077, %v3079
      %v3081 = vrot.slane %v3067, %v3080
      %v3082 = vcombine.low %v3026, %v3042
      %v3083 = vcombine.high %v3026, %v3042
      %v3085 = vunpack.c.l.s4 1934713408
      %v3086 = vunpack.c.0.s8 %v3085
      %v3087 = vlaneseq
      %v3088 = vshrl.u32 %v3087, 7
      %v3089 = vsub.s32 %v3086, %v3088
      %v3090 = vrot.slane %v3082, %v3089
      %v3092 = vunpack.c.l.s4 1934713408
      %v3093 = vunpack.c.0.s8 %v3092
      %v3094 = vlaneseq
      %v3095 = vshrl.u32 %v3094, 7
      %v3096 = vsub.s32 %v3093, %v3095
      %v3097 = vrot.slane %v3083, %v3096
      %v3098 = vcombine.low %v3033, %v3049
      %v3099 = vcombine.high %v3033, %v3049
      %v3101 = vunpack.c.l.s4 1934713408
      %v3102 = vunpack.c.0.s8 %v3101
      %v3103 = vlaneseq
      %v3104 = vshrl.u32 %v3103, 7
      %v3105 = vsub.s32 %v3102, %v3104
      %v3106 = vrot.slane %v3098, %v3105
      %v3108 = vunpack.c.l.s4 1934713408
      %v3109 = vunpack.c.0.s8 %v3108
      %v3110 = vlaneseq
      %v3111 = vshrl.u32 %v3110, 7
      %v3112 = vsub.s32 %v3109, %v3111
      %v3113 = vrot.slane %v3099, %v3112
      %v3114 = vcombine.low %v3058, %v3090
      %v3115 = vcombine.high %v3058, %v3090
      %v3116 = vcombine.low %v3065, %v3097
      %v3117 = vcombine.high %v3065, %v3097
      %v3118 = vcombine.low %v3074, %v3106
      %v3119 = vcombine.high %v3074, %v3106
      %v3120 = vcombine.low %v3081, %v3113
      %v3121 = vcombine.high %v3081, %v3113
      %v3122 = vcombine.low %v1482, %v1484
      %v3123 = vcombine.high %v1482, %v1484
      %v3125 = vunpack.c.l.s4 1983009808
      %v3126 = vunpack.c.0.s8 %v3125
      %v3127 = vlaneseq
      %v3128 = vshrl.u32 %v3127, 7
      %v3129 = vsub.s32 %v3126, %v3128
      %v3130 = vrot.slane %v3122, %v3129
      %v3132 = vunpack.c.l.s4 1983009808
      %v3133 = vunpack.c.0.s8 %v3132
      %v3134 = vlaneseq
      %v3135 = vshrl.u32 %v3134, 7
      %v3136 = vsub.s32 %v3133, %v3135
      %v3137 = vrot.slane %v3123, %v3136
      %v3138 = vcombine.low %v1483, %v1485
      %v3139 = vcombine.high %v1483, %v1485
      %v3141 = vunpack.c.l.s4 1983009808
      %v3142 = vunpack.c.0.s8 %v3141
      %v3143 = vlaneseq
      %v3144 = vshrl.u32 %v3143, 7
      %v3145 = vsub.s32 %v3142, %v3144
      %v3146 = vrot.slane %v3138, %v3145
      %v3148 = vunpack.c.l.s4 1983009808
      %v3149 = vunpack.c.0.s8 %v3148
      %v3150 = vlaneseq
      %v3151 = vshrl.u32 %v3150, 7
      %v3152 = vsub.s32 %v3149, %v3151
      %v3153 = vrot.slane %v3139, %v3152
      %v3154 = vcombine.low %v1486, %v1488
      %v3155 = vcombine.high %v1486, %v1488
      %v3157 = vunpack.c.l.s4 1983009808
      %v3158 = vunpack.c.0.s8 %v3157
      %v3159 = vlaneseq
      %v3160 = vshrl.u32 %v3159, 7
      %v3161 = vsub.s32 %v3158, %v3160
      %v3162 = vrot.slane %v3154, %v3161
      %v3164 = vunpack.c.l.s4 1983009808
      %v3165 = vunpack.c.0.s8 %v3164
      %v3166 = vlaneseq
      %v3167 = vshrl.u32 %v3166, 7
      %v3168 = vsub.s32 %v3165, %v3167
      %v3169 = vrot.slane %v3155, %v3168
      %v3170 = vcombine.low %v1487, %v1489
      %v3171 = vcombine.high %v1487, %v1489
      %v3173 = vunpack.c.l.s4 1983009808
      %v3174 = vunpack.c.0.s8 %v3173
      %v3175 = vlaneseq
      %v3176 = vshrl.u32 %v3175, 7
      %v3177 = vsub.s32 %v3174, %v3176
      %v3178 = vrot.slane %v3170, %v3177
      %v3180 = vunpack.c.l.s4 1983009808
      %v3181 = vunpack.c.0.s8 %v3180
      %v3182 = vlaneseq
      %v3183 = vshrl.u32 %v3182, 7
      %v3184 = vsub.s32 %v3181, %v3183
      %v3185 = vrot.slane %v3171, %v3184
      %v3186 = vcombine.low %v3130, %v3146
      %v3187 = vcombine.high %v3130, %v3146
      %v3189 = vunpack.c.l.s4 1934713408
      %v3190 = vunpack.c.0.s8 %v3189
      %v3191 = vlaneseq
      %v3192 = vshrl.u32 %v3191, 7
      %v3193 = vsub.s32 %v3190, %v3192
      %v3194 = vrot.slane %v3186, %v3193
      %v3196 = vunpack.c.l.s4 1934713408
      %v3197 = vunpack.c.0.s8 %v3196
      %v3198 = vlaneseq
      %v3199 = vshrl.u32 %v3198, 7
      %v3200 = vsub.s32 %v3197, %v3199
      %v3201 = vrot.slane %v3187, %v3200
      %v3202 = vcombine.low %v3137, %v3153
      %v3203 = vcombine.high %v3137, %v3153
      %v3205 = vunpack.c.l.s4 1934713408
      %v3206 = vunpack.c.0.s8 %v3205
      %v3207 = vlaneseq
      %v3208 = vshrl.u32 %v3207, 7
      %v3209 = vsub.s32 %v3206, %v3208
      %v3210 = vrot.slane %v3202, %v3209
      %v3212 = vunpack.c.l.s4 1934713408
      %v3213 = vunpack.c.0.s8 %v3212
      %v3214 = vlaneseq
      %v3215 = vshrl.u32 %v3214, 7
      %v3216 = vsub.s32 %v3213, %v3215
      %v3217 = vrot.slane %v3203, %v3216
      %v3218 = vcombine.low %v3162, %v3178
      %v3219 = vcombine.high %v3162, %v3178
      %v3221 = vunpack.c.l.s4 1934713408
      %v3222 = vunpack.c.0.s8 %v3221
      %v3223 = vlaneseq
      %v3224 = vshrl.u32 %v3223, 7
      %v3225 = vsub.s32 %v3222, %v3224
      %v3226 = vrot.slane %v3218, %v3225
      %v3228 = vunpack.c.l.s4 1934713408
      %v3229 = vunpack.c.0.s8 %v3228
      %v3230 = vlaneseq
      %v3231 = vshrl.u32 %v3230, 7
      %v3232 = vsub.s32 %v3229, %v3231
      %v3233 = vrot.slane %v3219, %v3232
      %v3234 = vcombine.low %v3169, %v3185
      %v3235 = vcombine.high %v3169, %v3185
      %v3237 = vunpack.c.l.s4 1934713408
      %v3238 = vunpack.c.0.s8 %v3237
      %v3239 = vlaneseq
      %v3240 = vshrl.u32 %v3239, 7
      %v3241 = vsub.s32 %v3238, %v3240
      %v3242 = vrot.slane %v3234, %v3241
      %v3244 = vunpack.c.l.s4 1934713408
      %v3245 = vunpack.c.0.s8 %v3244
      %v3246 = vlaneseq
      %v3247 = vshrl.u32 %v3246, 7
      %v3248 = vsub.s32 %v3245, %v3247
      %v3249 = vrot.slane %v3235, %v3248
      %v3250 = vcombine.low %v3194, %v3226
      %v3251 = vcombine.high %v3194, %v3226
      %v3252 = vcombine.low %v3201, %v3233
      %v3253 = vcombine.high %v3201, %v3233
      %v3254 = vcombine.low %v3210, %v3242
      %v3255 = vcombine.high %v3210, %v3242
      %v3256 = vcombine.low %v3217, %v3249
      %v3257 = vcombine.high %v3217, %v3249
      %v3258 = vcombine.low %v1890, %v1892
      %v3259 = vcombine.high %v1890, %v1892
      %v3261 = vunpack.c.l.s4 1983009808
      %v3262 = vunpack.c.0.s8 %v3261
      %v3263 = vlaneseq
      %v3264 = vshrl.u32 %v3263, 7
      %v3265 = vsub.s32 %v3262, %v3264
      %v3266 = vrot.slane %v3258, %v3265
      %v3268 = vunpack.c.l.s4 1983009808
      %v3269 = vunpack.c.0.s8 %v3268
      %v3270 = vlaneseq
      %v3271 = vshrl.u32 %v3270, 7
      %v3272 = vsub.s32 %v3269, %v3271
      %v3273 = vrot.slane %v3259, %v3272
      %v3274 = vcombine.low %v1891, %v1893
      %v3275 = vcombine.high %v1891, %v1893
      %v3277 = vunpack.c.l.s4 1983009808
      %v3278 = vunpack.c.0.s8 %v3277
      %v3279 = vlaneseq
      %v3280 = vshrl.u32 %v3279, 7
      %v3281 = vsub.s32 %v3278, %v3280
      %v3282 = vrot.slane %v3274, %v3281
      %v3284 = vunpack.c.l.s4 1983009808
      %v3285 = vunpack.c.0.s8 %v3284
      %v3286 = vlaneseq
      %v3287 = vshrl.u32 %v3286, 7
      %v3288 = vsub.s32 %v3285, %v3287
      %v3289 = vrot.slane %v3275, %v3288
      %v3290 = vcombine.low %v1894, %v1896
      %v3291 = vcombine.high %v1894, %v1896
      %v3293 = vunpack.c.l.s4 1983009808
      %v3294 = vunpack.c.0.s8 %v3293
      %v3295 = vlaneseq
      %v3296 = vshrl.u32 %v3295, 7
      %v3297 = vsub.s32 %v3294, %v3296
      %v3298 = vrot.slane %v3290, %v3297
      %v3300 = vunpack.c.l.s4 1983009808
      %v3301 = vunpack.c.0.s8 %v3300
      %v3302 = vlaneseq
      %v3303 = vshrl.u32 %v3302, 7
      %v3304 = vsub.s32 %v3301, %v3303
      %v3305 = vrot.slane %v3291, %v3304
      %v3306 = vcombine.low %v1895, %v1897
      %v3307 = vcombine.high %v1895, %v1897
      %v3309 = vunpack.c.l.s4 1983009808
      %v3310 = vunpack.c.0.s8 %v3309
      %v3311 = vlaneseq
      %v3312 = vshrl.u32 %v3311, 7
      %v3313 = vsub.s32 %v3310, %v3312
      %v3314 = vrot.slane %v3306, %v3313
      %v3316 = vunpack.c.l.s4 1983009808
      %v3317 = vunpack.c.0.s8 %v3316
      %v3318 = vlaneseq
      %v3319 = vshrl.u32 %v3318, 7
      %v3320 = vsub.s32 %v3317, %v3319
      %v3321 = vrot.slane %v3307, %v3320
      %v3322 = vcombine.low %v3266, %v3282
      %v3323 = vcombine.high %v3266, %v3282
      %v3325 = vunpack.c.l.s4 1934713408
      %v3326 = vunpack.c.0.s8 %v3325
      %v3327 = vlaneseq
      %v3328 = vshrl.u32 %v3327, 7
      %v3329 = vsub.s32 %v3326, %v3328
      %v3330 = vrot.slane %v3322, %v3329
      %v3332 = vunpack.c.l.s4 1934713408
      %v3333 = vunpack.c.0.s8 %v3332
      %v3334 = vlaneseq
      %v3335 = vshrl.u32 %v3334, 7
      %v3336 = vsub.s32 %v3333, %v3335
      %v3337 = vrot.slane %v3323, %v3336
      %v3338 = vcombine.low %v3273, %v3289
      %v3339 = vcombine.high %v3273, %v3289
      %v3341 = vunpack.c.l.s4 1934713408
      %v3342 = vunpack.c.0.s8 %v3341
      %v3343 = vlaneseq
      %v3344 = vshrl.u32 %v3343, 7
      %v3345 = vsub.s32 %v3342, %v3344
      %v3346 = vrot.slane %v3338, %v3345
      %v3348 = vunpack.c.l.s4 1934713408
      %v3349 = vunpack.c.0.s8 %v3348
      %v3350 = vlaneseq
      %v3351 = vshrl.u32 %v3350, 7
      %v3352 = vsub.s32 %v3349, %v3351
      %v3353 = vrot.slane %v3339, %v3352
      %v3354 = vcombine.low %v3298, %v3314
      %v3355 = vcombine.high %v3298, %v3314
      %v3357 = vunpack.c.l.s4 1934713408
      %v3358 = vunpack.c.0.s8 %v3357
      %v3359 = vlaneseq
      %v3360 = vshrl.u32 %v3359, 7
      %v3361 = vsub.s32 %v3358, %v3360
      %v3362 = vrot.slane %v3354, %v3361
      %v3364 = vunpack.c.l.s4 1934713408
      %v3365 = vunpack.c.0.s8 %v3364
      %v3366 = vlaneseq
      %v3367 = vshrl.u32 %v3366, 7
      %v3368 = vsub.s32 %v3365, %v3367
      %v3369 = vrot.slane %v3355, %v3368
      %v3370 = vcombine.low %v3305, %v3321
      %v3371 = vcombine.high %v3305, %v3321
      %v3373 = vunpack.c.l.s4 1934713408
      %v3374 = vunpack.c.0.s8 %v3373
      %v3375 = vlaneseq
      %v3376 = vshrl.u32 %v3375, 7
      %v3377 = vsub.s32 %v3374, %v3376
      %v3378 = vrot.slane %v3370, %v3377
      %v3380 = vunpack.c.l.s4 1934713408
      %v3381 = vunpack.c.0.s8 %v3380
      %v3382 = vlaneseq
      %v3383 = vshrl.u32 %v3382, 7
      %v3384 = vsub.s32 %v3381, %v3383
      %v3385 = vrot.slane %v3371, %v3384
      %v3386 = vcombine.low %v3330, %v3362
      %v3387 = vcombine.high %v3330, %v3362
      %v3388 = vcombine.low %v3337, %v3369
      %v3389 = vcombine.high %v3337, %v3369
      %v3390 = vcombine.low %v3346, %v3378
      %v3391 = vcombine.high %v3346, %v3378
      %v3392 = vcombine.low %v3353, %v3385
      %v3393 = vcombine.high %v3353, %v3385
      %v3394 = vcombine.low %v2298, %v2300
      %v3395 = vcombine.high %v2298, %v2300
      %v3397 = vunpack.c.l.s4 1983009808
      %v3398 = vunpack.c.0.s8 %v3397
      %v3399 = vlaneseq
      %v3400 = vshrl.u32 %v3399, 7
      %v3401 = vsub.s32 %v3398, %v3400
      %v3402 = vrot.slane %v3394, %v3401
      %v3404 = vunpack.c.l.s4 1983009808
      %v3405 = vunpack.c.0.s8 %v3404
      %v3406 = vlaneseq
      %v3407 = vshrl.u32 %v3406, 7
      %v3408 = vsub.s32 %v3405, %v3407
      %v3409 = vrot.slane %v3395, %v3408
      %v3410 = vcombine.low %v2299, %v2301
      %v3411 = vcombine.high %v2299, %v2301
      %v3413 = vunpack.c.l.s4 1983009808
      %v3414 = vunpack.c.0.s8 %v3413
      %v3415 = vlaneseq
      %v3416 = vshrl.u32 %v3415, 7
      %v3417 = vsub.s32 %v3414, %v3416
      %v3418 = vrot.slane %v3410, %v3417
      %v3420 = vunpack.c.l.s4 1983009808
      %v3421 = vunpack.c.0.s8 %v3420
      %v3422 = vlaneseq
      %v3423 = vshrl.u32 %v3422, 7
      %v3424 = vsub.s32 %v3421, %v3423
      %v3425 = vrot.slane %v3411, %v3424
      %v3426 = vcombine.low %v2302, %v2304
      %v3427 = vcombine.high %v2302, %v2304
      %v3429 = vunpack.c.l.s4 1983009808
      %v3430 = vunpack.c.0.s8 %v3429
      %v3431 = vlaneseq
      %v3432 = vshrl.u32 %v3431, 7
      %v3433 = vsub.s32 %v3430, %v3432
      %v3434 = vrot.slane %v3426, %v3433
      %v3436 = vunpack.c.l.s4 1983009808
      %v3437 = vunpack.c.0.s8 %v3436
      %v3438 = vlaneseq
      %v3439 = vshrl.u32 %v3438, 7
      %v3440 = vsub.s32 %v3437, %v3439
      %v3441 = vrot.slane %v3427, %v3440
      %v3442 = vcombine.low %v2303, %v2305
      %v3443 = vcombine.high %v2303, %v2305
      %v3445 = vunpack.c.l.s4 1983009808
      %v3446 = vunpack.c.0.s8 %v3445
      %v3447 = vlaneseq
      %v3448 = vshrl.u32 %v3447, 7
      %v3449 = vsub.s32 %v3446, %v3448
      %v3450 = vrot.slane %v3442, %v3449
      %v3452 = vunpack.c.l.s4 1983009808
      %v3453 = vunpack.c.0.s8 %v3452
      %v3454 = vlaneseq
      %v3455 = vshrl.u32 %v3454, 7
      %v3456 = vsub.s32 %v3453, %v3455
      %v3457 = vrot.slane %v3443, %v3456
      %v3458 = vcombine.low %v3402, %v3418
      %v3459 = vcombine.high %v3402, %v3418
      %v3461 = vunpack.c.l.s4 1934713408
      %v3462 = vunpack.c.0.s8 %v3461
      %v3463 = vlaneseq
      %v3464 = vshrl.u32 %v3463, 7
      %v3465 = vsub.s32 %v3462, %v3464
      %v3466 = vrot.slane %v3458, %v3465
      %v3468 = vunpack.c.l.s4 1934713408
      %v3469 = vunpack.c.0.s8 %v3468
      %v3470 = vlaneseq
      %v3471 = vshrl.u32 %v3470, 7
      %v3472 = vsub.s32 %v3469, %v3471
      %v3473 = vrot.slane %v3459, %v3472
      %v3474 = vcombine.low %v3409, %v3425
      %v3475 = vcombine.high %v3409, %v3425
      %v3477 = vunpack.c.l.s4 1934713408
      %v3478 = vunpack.c.0.s8 %v3477
      %v3479 = vlaneseq
      %v3480 = vshrl.u32 %v3479, 7
      %v3481 = vsub.s32 %v3478, %v3480
      %v3482 = vrot.slane %v3474, %v3481
      %v3484 = vunpack.c.l.s4 1934713408
      %v3485 = vunpack.c.0.s8 %v3484
      %v3486 = vlaneseq
      %v3487 = vshrl.u32 %v3486, 7
      %v3488 = vsub.s32 %v3485, %v3487
      %v3489 = vrot.slane %v3475, %v3488
      %v3490 = vcombine.low %v3434, %v3450
      %v3491 = vcombine.high %v3434, %v3450
      %v3493 = vunpack.c.l.s4 1934713408
      %v3494 = vunpack.c.0.s8 %v3493
      %v3495 = vlaneseq
      %v3496 = vshrl.u32 %v3495, 7
      %v3497 = vsub.s32 %v3494, %v3496
      %v3498 = vrot.slane %v3490, %v3497
      %v3500 = vunpack.c.l.s4 1934713408
      %v3501 = vunpack.c.0.s8 %v3500
      %v3502 = vlaneseq
      %v3503 = vshrl.u32 %v3502, 7
      %v3504 = vsub.s32 %v3501, %v3503
      %v3505 = vrot.slane %v3491, %v3504
      %v3506 = vcombine.low %v3441, %v3457
      %v3507 = vcombine.high %v3441, %v3457
      %v3509 = vunpack.c.l.s4 1934713408
      %v3510 = vunpack.c.0.s8 %v3509
      %v3511 = vlaneseq
      %v3512 = vshrl.u32 %v3511, 7
      %v3513 = vsub.s32 %v3510, %v3512
      %v3514 = vrot.slane %v3506, %v3513
      %v3516 = vunpack.c.l.s4 1934713408
      %v3517 = vunpack.c.0.s8 %v3516
      %v3518 = vlaneseq
      %v3519 = vshrl.u32 %v3518, 7
      %v3520 = vsub.s32 %v3517, %v3519
      %v3521 = vrot.slane %v3507, %v3520
      %v3522 = vcombine.low %v3466, %v3498
      %v3523 = vcombine.high %v3466, %v3498
      %v3524 = vcombine.low %v3473, %v3505
      %v3525 = vcombine.high %v3473, %v3505
      %v3526 = vcombine.low %v3482, %v3514
      %v3527 = vcombine.high %v3482, %v3514
      %v3528 = vcombine.low %v3489, %v3521
      %v3529 = vcombine.high %v3489, %v3521
      %v3530 = vcombine.low %v1210, %v1212
      %v3531 = vcombine.high %v1210, %v1212
      %v3533 = vunpack.c.l.s4 1983009808
      %v3534 = vunpack.c.0.s8 %v3533
      %v3535 = vlaneseq
      %v3536 = vshrl.u32 %v3535, 7
      %v3537 = vsub.s32 %v3534, %v3536
      %v3538 = vrot.slane %v3530, %v3537
      %v3540 = vunpack.c.l.s4 1983009808
      %v3541 = vunpack.c.0.s8 %v3540
      %v3542 = vlaneseq
      %v3543 = vshrl.u32 %v3542, 7
      %v3544 = vsub.s32 %v3541, %v3543
      %v3545 = vrot.slane %v3531, %v3544
      %v3546 = vcombine.low %v1211, %v1213
      %v3547 = vcombine.high %v1211, %v1213
      %v3549 = vunpack.c.l.s4 1983009808
      %v3550 = vunpack.c.0.s8 %v3549
      %v3551 = vlaneseq
      %v3552 = vshrl.u32 %v3551, 7
      %v3553 = vsub.s32 %v3550, %v3552
      %v3554 = vrot.slane %v3546, %v3553
      %v3556 = vunpack.c.l.s4 1983009808
      %v3557 = vunpack.c.0.s8 %v3556
      %v3558 = vlaneseq
      %v3559 = vshrl.u32 %v3558, 7
      %v3560 = vsub.s32 %v3557, %v3559
      %v3561 = vrot.slane %v3547, %v3560
      %v3562 = vcombine.low %v1214, %v1216
      %v3563 = vcombine.high %v1214, %v1216
      %v3565 = vunpack.c.l.s4 1983009808
      %v3566 = vunpack.c.0.s8 %v3565
      %v3567 = vlaneseq
      %v3568 = vshrl.u32 %v3567, 7
      %v3569 = vsub.s32 %v3566, %v3568
      %v3570 = vrot.slane %v3562, %v3569
      %v3572 = vunpack.c.l.s4 1983009808
      %v3573 = vunpack.c.0.s8 %v3572
      %v3574 = vlaneseq
      %v3575 = vshrl.u32 %v3574, 7
      %v3576 = vsub.s32 %v3573, %v3575
      %v3577 = vrot.slane %v3563, %v3576
      %v3578 = vcombine.low %v1215, %v1217
      %v3579 = vcombine.high %v1215, %v1217
      %v3581 = vunpack.c.l.s4 1983009808
      %v3582 = vunpack.c.0.s8 %v3581
      %v3583 = vlaneseq
      %v3584 = vshrl.u32 %v3583, 7
      %v3585 = vsub.s32 %v3582, %v3584
      %v3586 = vrot.slane %v3578, %v3585
      %v3588 = vunpack.c.l.s4 1983009808
      %v3589 = vunpack.c.0.s8 %v3588
      %v3590 = vlaneseq
      %v3591 = vshrl.u32 %v3590, 7
      %v3592 = vsub.s32 %v3589, %v3591
      %v3593 = vrot.slane %v3579, %v3592
      %v3594 = vcombine.low %v3538, %v3554
      %v3595 = vcombine.high %v3538, %v3554
      %v3597 = vunpack.c.l.s4 1934713408
      %v3598 = vunpack.c.0.s8 %v3597
      %v3599 = vlaneseq
      %v3600 = vshrl.u32 %v3599, 7
      %v3601 = vsub.s32 %v3598, %v3600
      %v3602 = vrot.slane %v3594, %v3601
      %v3604 = vunpack.c.l.s4 1934713408
      %v3605 = vunpack.c.0.s8 %v3604
      %v3606 = vlaneseq
      %v3607 = vshrl.u32 %v3606, 7
      %v3608 = vsub.s32 %v3605, %v3607
      %v3609 = vrot.slane %v3595, %v3608
      %v3610 = vcombine.low %v3545, %v3561
      %v3611 = vcombine.high %v3545, %v3561
      %v3613 = vunpack.c.l.s4 1934713408
      %v3614 = vunpack.c.0.s8 %v3613
      %v3615 = vlaneseq
      %v3616 = vshrl.u32 %v3615, 7
      %v3617 = vsub.s32 %v3614, %v3616
      %v3618 = vrot.slane %v3610, %v3617
      %v3620 = vunpack.c.l.s4 1934713408
      %v3621 = vunpack.c.0.s8 %v3620
      %v3622 = vlaneseq
      %v3623 = vshrl.u32 %v3622, 7
      %v3624 = vsub.s32 %v3621, %v3623
      %v3625 = vrot.slane %v3611, %v3624
      %v3626 = vcombine.low %v3570, %v3586
      %v3627 = vcombine.high %v3570, %v3586
      %v3629 = vunpack.c.l.s4 1934713408
      %v3630 = vunpack.c.0.s8 %v3629
      %v3631 = vlaneseq
      %v3632 = vshrl.u32 %v3631, 7
      %v3633 = vsub.s32 %v3630, %v3632
      %v3634 = vrot.slane %v3626, %v3633
      %v3636 = vunpack.c.l.s4 1934713408
      %v3637 = vunpack.c.0.s8 %v3636
      %v3638 = vlaneseq
      %v3639 = vshrl.u32 %v3638, 7
      %v3640 = vsub.s32 %v3637, %v3639
      %v3641 = vrot.slane %v3627, %v3640
      %v3642 = vcombine.low %v3577, %v3593
      %v3643 = vcombine.high %v3577, %v3593
      %v3645 = vunpack.c.l.s4 1934713408
      %v3646 = vunpack.c.0.s8 %v3645
      %v3647 = vlaneseq
      %v3648 = vshrl.u32 %v3647, 7
      %v3649 = vsub.s32 %v3646, %v3648
      %v3650 = vrot.slane %v3642, %v3649
      %v3652 = vunpack.c.l.s4 1934713408
      %v3653 = vunpack.c.0.s8 %v3652
      %v3654 = vlaneseq
      %v3655 = vshrl.u32 %v3654, 7
      %v3656 = vsub.s32 %v3653, %v3655
      %v3657 = vrot.slane %v3643, %v3656
      %v3658 = vcombine.low %v3602, %v3634
      %v3659 = vcombine.high %v3602, %v3634
      %v3660 = vcombine.low %v3609, %v3641
      %v3661 = vcombine.high %v3609, %v3641
      %v3662 = vcombine.low %v3618, %v3650
      %v3663 = vcombine.high %v3618, %v3650
      %v3664 = vcombine.low %v3625, %v3657
      %v3665 = vcombine.high %v3625, %v3657
      %v3666 = vcombine.low %v1618, %v1620
      %v3667 = vcombine.high %v1618, %v1620
      %v3669 = vunpack.c.l.s4 1983009808
      %v3670 = vunpack.c.0.s8 %v3669
      %v3671 = vlaneseq
      %v3672 = vshrl.u32 %v3671, 7
      %v3673 = vsub.s32 %v3670, %v3672
      %v3674 = vrot.slane %v3666, %v3673
      %v3676 = vunpack.c.l.s4 1983009808
      %v3677 = vunpack.c.0.s8 %v3676
      %v3678 = vlaneseq
      %v3679 = vshrl.u32 %v3678, 7
      %v3680 = vsub.s32 %v3677, %v3679
      %v3681 = vrot.slane %v3667, %v3680
      %v3682 = vcombine.low %v1619, %v1621
      %v3683 = vcombine.high %v1619, %v1621
      %v3685 = vunpack.c.l.s4 1983009808
      %v3686 = vunpack.c.0.s8 %v3685
      %v3687 = vlaneseq
      %v3688 = vshrl.u32 %v3687, 7
      %v3689 = vsub.s32 %v3686, %v3688
      %v3690 = vrot.slane %v3682, %v3689
      %v3692 = vunpack.c.l.s4 1983009808
      %v3693 = vunpack.c.0.s8 %v3692
      %v3694 = vlaneseq
      %v3695 = vshrl.u32 %v3694, 7
      %v3696 = vsub.s32 %v3693, %v3695
      %v3697 = vrot.slane %v3683, %v3696
      %v3698 = vcombine.low %v1622, %v1624
      %v3699 = vcombine.high %v1622, %v1624
      %v3701 = vunpack.c.l.s4 1983009808
      %v3702 = vunpack.c.0.s8 %v3701
      %v3703 = vlaneseq
      %v3704 = vshrl.u32 %v3703, 7
      %v3705 = vsub.s32 %v3702, %v3704
      %v3706 = vrot.slane %v3698, %v3705
      %v3708 = vunpack.c.l.s4 1983009808
      %v3709 = vunpack.c.0.s8 %v3708
      %v3710 = vlaneseq
      %v3711 = vshrl.u32 %v3710, 7
      %v3712 = vsub.s32 %v3709, %v3711
      %v3713 = vrot.slane %v3699, %v3712
      %v3714 = vcombine.low %v1623, %v1625
      %v3715 = vcombine.high %v1623, %v1625
      %v3717 = vunpack.c.l.s4 1983009808
      %v3718 = vunpack.c.0.s8 %v3717
      %v3719 = vlaneseq
      %v3720 = vshrl.u32 %v3719, 7
      %v3721 = vsub.s32 %v3718, %v3720
      %v3722 = vrot.slane %v3714, %v3721
      %v3724 = vunpack.c.l.s4 1983009808
      %v3725 = vunpack.c.0.s8 %v3724
      %v3726 = vlaneseq
      %v3727 = vshrl.u32 %v3726, 7
      %v3728 = vsub.s32 %v3725, %v3727
      %v3729 = vrot.slane %v3715, %v3728
      %v3730 = vcombine.low %v3674, %v3690
      %v3731 = vcombine.high %v3674, %v3690
      %v3733 = vunpack.c.l.s4 1934713408
      %v3734 = vunpack.c.0.s8 %v3733
      %v3735 = vlaneseq
      %v3736 = vshrl.u32 %v3735, 7
      %v3737 = vsub.s32 %v3734, %v3736
      %v3738 = vrot.slane %v3730, %v3737
      %v3740 = vunpack.c.l.s4 1934713408
      %v3741 = vunpack.c.0.s8 %v3740
      %v3742 = vlaneseq
      %v3743 = vshrl.u32 %v3742, 7
      %v3744 = vsub.s32 %v3741, %v3743
      %v3745 = vrot.slane %v3731, %v3744
      %v3746 = vcombine.low %v3681, %v3697
      %v3747 = vcombine.high %v3681, %v3697
      %v3749 = vunpack.c.l.s4 1934713408
      %v3750 = vunpack.c.0.s8 %v3749
      %v3751 = vlaneseq
      %v3752 = vshrl.u32 %v3751, 7
      %v3753 = vsub.s32 %v3750, %v3752
      %v3754 = vrot.slane %v3746, %v3753
      %v3756 = vunpack.c.l.s4 1934713408
      %v3757 = vunpack.c.0.s8 %v3756
      %v3758 = vlaneseq
      %v3759 = vshrl.u32 %v3758, 7
      %v3760 = vsub.s32 %v3757, %v3759
      %v3761 = vrot.slane %v3747, %v3760
      %v3762 = vcombine.low %v3706, %v3722
      %v3763 = vcombine.high %v3706, %v3722
      %v3765 = vunpack.c.l.s4 1934713408
      %v3766 = vunpack.c.0.s8 %v3765
      %v3767 = vlaneseq
      %v3768 = vshrl.u32 %v3767, 7
      %v3769 = vsub.s32 %v3766, %v3768
      %v3770 = vrot.slane %v3762, %v3769
      %v3772 = vunpack.c.l.s4 1934713408
      %v3773 = vunpack.c.0.s8 %v3772
      %v3774 = vlaneseq
      %v3775 = vshrl.u32 %v3774, 7
      %v3776 = vsub.s32 %v3773, %v3775
      %v3777 = vrot.slane %v3763, %v3776
      %v3778 = vcombine.low %v3713, %v3729
      %v3779 = vcombine.high %v3713, %v3729
      %v3781 = vunpack.c.l.s4 1934713408
      %v3782 = vunpack.c.0.s8 %v3781
      %v3783 = vlaneseq
      %v3784 = vshrl.u32 %v3783, 7
      %v3785 = vsub.s32 %v3782, %v3784
      %v3786 = vrot.slane %v3778, %v3785
      %v3788 = vunpack.c.l.s4 1934713408
      %v3789 = vunpack.c.0.s8 %v3788
      %v3790 = vlaneseq
      %v3791 = vshrl.u32 %v3790, 7
      %v3792 = vsub.s32 %v3789, %v3791
      %v3793 = vrot.slane %v3779, %v3792
      %v3794 = vcombine.low %v3738, %v3770
      %v3795 = vcombine.high %v3738, %v3770
      %v3796 = vcombine.low %v3745, %v3777
      %v3797 = vcombine.high %v3745, %v3777
      %v3798 = vcombine.low %v3754, %v3786
      %v3799 = vcombine.high %v3754, %v3786
      %v3800 = vcombine.low %v3761, %v3793
      %v3801 = vcombine.high %v3761, %v3793
      %v3802 = vcombine.low %v2026, %v2028
      %v3803 = vcombine.high %v2026, %v2028
      %v3805 = vunpack.c.l.s4 1983009808
      %v3806 = vunpack.c.0.s8 %v3805
      %v3807 = vlaneseq
      %v3808 = vshrl.u32 %v3807, 7
      %v3809 = vsub.s32 %v3806, %v3808
      %v3810 = vrot.slane %v3802, %v3809
      %v3812 = vunpack.c.l.s4 1983009808
      %v3813 = vunpack.c.0.s8 %v3812
      %v3814 = vlaneseq
      %v3815 = vshrl.u32 %v3814, 7
      %v3816 = vsub.s32 %v3813, %v3815
      %v3817 = vrot.slane %v3803, %v3816
      %v3818 = vcombine.low %v2027, %v2029
      %v3819 = vcombine.high %v2027, %v2029
      %v3821 = vunpack.c.l.s4 1983009808
      %v3822 = vunpack.c.0.s8 %v3821
      %v3823 = vlaneseq
      %v3824 = vshrl.u32 %v3823, 7
      %v3825 = vsub.s32 %v3822, %v3824
      %v3826 = vrot.slane %v3818, %v3825
      %v3828 = vunpack.c.l.s4 1983009808
      %v3829 = vunpack.c.0.s8 %v3828
      %v3830 = vlaneseq
      %v3831 = vshrl.u32 %v3830, 7
      %v3832 = vsub.s32 %v3829, %v3831
      %v3833 = vrot.slane %v3819, %v3832
      %v3834 = vcombine.low %v2030, %v2032
      %v3835 = vcombine.high %v2030, %v2032
      %v3837 = vunpack.c.l.s4 1983009808
      %v3838 = vunpack.c.0.s8 %v3837
      %v3839 = vlaneseq
      %v3840 = vshrl.u32 %v3839, 7
      %v3841 = vsub.s32 %v3838, %v3840
      %v3842 = vrot.slane %v3834, %v3841
      %v3844 = vunpack.c.l.s4 1983009808
      %v3845 = vunpack.c.0.s8 %v3844
      %v3846 = vlaneseq
      %v3847 = vshrl.u32 %v3846, 7
      %v3848 = vsub.s32 %v3845, %v3847
      %v3849 = vrot.slane %v3835, %v3848
      %v3850 = vcombine.low %v2031, %v2033
      %v3851 = vcombine.high %v2031, %v2033
      %v3853 = vunpack.c.l.s4 1983009808
      %v3854 = vunpack.c.0.s8 %v3853
      %v3855 = vlaneseq
      %v3856 = vshrl.u32 %v3855, 7
      %v3857 = vsub.s32 %v3854, %v3856
      %v3858 = vrot.slane %v3850, %v3857
      %v3860 = vunpack.c.l.s4 1983009808
      %v3861 = vunpack.c.0.s8 %v3860
      %v3862 = vlaneseq
      %v3863 = vshrl.u32 %v3862, 7
      %v3864 = vsub.s32 %v3861, %v3863
      %v3865 = vrot.slane %v3851, %v3864
      %v3866 = vcombine.low %v3810, %v3826
      %v3867 = vcombine.high %v3810, %v3826
      %v3869 = vunpack.c.l.s4 1934713408
      %v3870 = vunpack.c.0.s8 %v3869
      %v3871 = vlaneseq
      %v3872 = vshrl.u32 %v3871, 7
      %v3873 = vsub.s32 %v3870, %v3872
      %v3874 = vrot.slane %v3866, %v3873
      %v3876 = vunpack.c.l.s4 1934713408
      %v3877 = vunpack.c.0.s8 %v3876
      %v3878 = vlaneseq
      %v3879 = vshrl.u32 %v3878, 7
      %v3880 = vsub.s32 %v3877, %v3879
      %v3881 = vrot.slane %v3867, %v3880
      %v3882 = vcombine.low %v3817, %v3833
      %v3883 = vcombine.high %v3817, %v3833
      %v3885 = vunpack.c.l.s4 1934713408
      %v3886 = vunpack.c.0.s8 %v3885
      %v3887 = vlaneseq
      %v3888 = vshrl.u32 %v3887, 7
      %v3889 = vsub.s32 %v3886, %v3888
      %v3890 = vrot.slane %v3882, %v3889
      %v3892 = vunpack.c.l.s4 1934713408
      %v3893 = vunpack.c.0.s8 %v3892
      %v3894 = vlaneseq
      %v3895 = vshrl.u32 %v3894, 7
      %v3896 = vsub.s32 %v3893, %v3895
      %v3897 = vrot.slane %v3883, %v3896
      %v3898 = vcombine.low %v3842, %v3858
      %v3899 = vcombine.high %v3842, %v3858
      %v3901 = vunpack.c.l.s4 1934713408
      %v3902 = vunpack.c.0.s8 %v3901
      %v3903 = vlaneseq
      %v3904 = vshrl.u32 %v3903, 7
      %v3905 = vsub.s32 %v3902, %v3904
      %v3906 = vrot.slane %v3898, %v3905
      %v3908 = vunpack.c.l.s4 1934713408
      %v3909 = vunpack.c.0.s8 %v3908
      %v3910 = vlaneseq
      %v3911 = vshrl.u32 %v3910, 7
      %v3912 = vsub.s32 %v3909, %v3911
      %v3913 = vrot.slane %v3899, %v3912
      %v3914 = vcombine.low %v3849, %v3865
      %v3915 = vcombine.high %v3849, %v3865
      %v3917 = vunpack.c.l.s4 1934713408
      %v3918 = vunpack.c.0.s8 %v3917
      %v3919 = vlaneseq
      %v3920 = vshrl.u32 %v3919, 7
      %v3921 = vsub.s32 %v3918, %v3920
      %v3922 = vrot.slane %v3914, %v3921
      %v3924 = vunpack.c.l.s4 1934713408
      %v3925 = vunpack.c.0.s8 %v3924
      %v3926 = vlaneseq
      %v3927 = vshrl.u32 %v3926, 7
      %v3928 = vsub.s32 %v3925, %v3927
      %v3929 = vrot.slane %v3915, %v3928
      %v3930 = vcombine.low %v3874, %v3906
      %v3931 = vcombine.high %v3874, %v3906
      %v3932 = vcombine.low %v3881, %v3913
      %v3933 = vcombine.high %v3881, %v3913
      %v3934 = vcombine.low %v3890, %v3922
      %v3935 = vcombine.high %v3890, %v3922
      %v3936 = vcombine.low %v3897, %v3929
      %v3937 = vcombine.high %v3897, %v3929
      %v3938 = vcombine.low %v2434, %v2436
      %v3939 = vcombine.high %v2434, %v2436
      %v3941 = vunpack.c.l.s4 1983009808
      %v3942 = vunpack.c.0.s8 %v3941
      %v3943 = vlaneseq
      %v3944 = vshrl.u32 %v3943, 7
      %v3945 = vsub.s32 %v3942, %v3944
      %v3946 = vrot.slane %v3938, %v3945
      %v3948 = vunpack.c.l.s4 1983009808
      %v3949 = vunpack.c.0.s8 %v3948
      %v3950 = vlaneseq
      %v3951 = vshrl.u32 %v3950, 7
      %v3952 = vsub.s32 %v3949, %v3951
      %v3953 = vrot.slane %v3939, %v3952
      %v3954 = vcombine.low %v2435, %v2437
      %v3955 = vcombine.high %v2435, %v2437
      %v3957 = vunpack.c.l.s4 1983009808
      %v3958 = vunpack.c.0.s8 %v3957
      %v3959 = vlaneseq
      %v3960 = vshrl.u32 %v3959, 7
      %v3961 = vsub.s32 %v3958, %v3960
      %v3962 = vrot.slane %v3954, %v3961
      %v3964 = vunpack.c.l.s4 1983009808
      %v3965 = vunpack.c.0.s8 %v3964
      %v3966 = vlaneseq
      %v3967 = vshrl.u32 %v3966, 7
      %v3968 = vsub.s32 %v3965, %v3967
      %v3969 = vrot.slane %v3955, %v3968
      %v3970 = vcombine.low %v2438, %v2440
      %v3971 = vcombine.high %v2438, %v2440
      %v3973 = vunpack.c.l.s4 1983009808
      %v3974 = vunpack.c.0.s8 %v3973
      %v3975 = vlaneseq
      %v3976 = vshrl.u32 %v3975, 7
      %v3977 = vsub.s32 %v3974, %v3976
      %v3978 = vrot.slane %v3970, %v3977
      %v3980 = vunpack.c.l.s4 1983009808
      %v3981 = vunpack.c.0.s8 %v3980
      %v3982 = vlaneseq
      %v3983 = vshrl.u32 %v3982, 7
      %v3984 = vsub.s32 %v3981, %v3983
      %v3985 = vrot.slane %v3971, %v3984
      %v3986 = vcombine.low %v2439, %v2441
      %v3987 = vcombine.high %v2439, %v2441
      %v3989 = vunpack.c.l.s4 1983009808
      %v3990 = vunpack.c.0.s8 %v3989
      %v3991 = vlaneseq
      %v3992 = vshrl.u32 %v3991, 7
      %v3993 = vsub.s32 %v3990, %v3992
      %v3994 = vrot.slane %v3986, %v3993
      %v3996 = vunpack.c.l.s4 1983009808
      %v3997 = vunpack.c.0.s8 %v3996
      %v3998 = vlaneseq
      %v3999 = vshrl.u32 %v3998, 7
      %v4000 = vsub.s32 %v3997, %v3999
      %v4001 = vrot.slane %v3987, %v4000
      %v4002 = vcombine.low %v3946, %v3962
      %v4003 = vcombine.high %v3946, %v3962
      %v4005 = vunpack.c.l.s4 1934713408
      %v4006 = vunpack.c.0.s8 %v4005
      %v4007 = vlaneseq
      %v4008 = vshrl.u32 %v4007, 7
      %v4009 = vsub.s32 %v4006, %v4008
      %v4010 = vrot.slane %v4002, %v4009
      %v4012 = vunpack.c.l.s4 1934713408
      %v4013 = vunpack.c.0.s8 %v4012
      %v4014 = vlaneseq
      %v4015 = vshrl.u32 %v4014, 7
      %v4016 = vsub.s32 %v4013, %v4015
      %v4017 = vrot.slane %v4003, %v4016
      %v4018 = vcombine.low %v3953, %v3969
      %v4019 = vcombine.high %v3953, %v3969
      %v4021 = vunpack.c.l.s4 1934713408
      %v4022 = vunpack.c.0.s8 %v4021
      %v4023 = vlaneseq
      %v4024 = vshrl.u32 %v4023, 7
      %v4025 = vsub.s32 %v4022, %v4024
      %v4026 = vrot.slane %v4018, %v4025
      %v4028 = vunpack.c.l.s4 1934713408
      %v4029 = vunpack.c.0.s8 %v4028
      %v4030 = vlaneseq
      %v4031 = vshrl.u32 %v4030, 7
      %v4032 = vsub.s32 %v4029, %v4031
      %v4033 = vrot.slane %v4019, %v4032
      %v4034 = vcombine.low %v3978, %v3994
      %v4035 = vcombine.high %v3978, %v3994
      %v4037 = vunpack.c.l.s4 1934713408
      %v4038 = vunpack.c.0.s8 %v4037
      %v4039 = vlaneseq
      %v4040 = vshrl.u32 %v4039, 7
      %v4041 = vsub.s32 %v4038, %v4040
      %v4042 = vrot.slane %v4034, %v4041
      %v4044 = vunpack.c.l.s4 1934713408
      %v4045 = vunpack.c.0.s8 %v4044
      %v4046 = vlaneseq
      %v4047 = vshrl.u32 %v4046, 7
      %v4048 = vsub.s32 %v4045, %v4047
      %v4049 = vrot.slane %v4035, %v4048
      %v4050 = vcombine.low %v3985, %v4001
      %v4051 = vcombine.high %v3985, %v4001
      %v4053 = vunpack.c.l.s4 1934713408
      %v4054 = vunpack.c.0.s8 %v4053
      %v4055 = vlaneseq
      %v4056 = vshrl.u32 %v4055, 7
      %v4057 = vsub.s32 %v4054, %v4056
      %v4058 = vrot.slane %v4050, %v4057
      %v4060 = vunpack.c.l.s4 1934713408
      %v4061 = vunpack.c.0.s8 %v4060
      %v4062 = vlaneseq
      %v4063 = vshrl.u32 %v4062, 7
      %v4064 = vsub.s32 %v4061, %v4063
      %v4065 = vrot.slane %v4051, %v4064
      %v4066 = vcombine.low %v4010, %v4042
      %v4067 = vcombine.high %v4010, %v4042
      %v4068 = vcombine.low %v4017, %v4049
      %v4069 = vcombine.high %v4017, %v4049
      %v4070 = vcombine.low %v4026, %v4058
      %v4071 = vcombine.high %v4026, %v4058
      %v4072 = vcombine.low %v4033, %v4065
      %v4073 = vcombine.high %v4033, %v4065
      %v4074 = vpack.c.bf16 %v2570, %v2570
      %v4075 = vpack.c.bf16 %v2706, %v2706
      %v4076 = vpack.c.bf16 %v2842, %v2842
      %v4077 = vpack.c.bf16 %v2978, %v2978
      %v4078 = vpack.c.bf16 %v2571, %v2571
      %v4079 = vpack.c.bf16 %v2707, %v2707
      %v4080 = vpack.c.bf16 %v2843, %v2843
      %v4081 = vpack.c.bf16 %v2979, %v2979
      %v4082 = vpack.c.bf16 %v2572, %v2572
      %v4083 = vpack.c.bf16 %v2708, %v2708
      %v4084 = vpack.c.bf16 %v2844, %v2844
      %v4085 = vpack.c.bf16 %v2980, %v2980
      %v4086 = vpack.c.bf16 %v2573, %v2573
      %v4087 = vpack.c.bf16 %v2709, %v2709
      %v4088 = vpack.c.bf16 %v2845, %v2845
      %v4089 = vpack.c.bf16 %v2981, %v2981
      %v4090 = vpack.c.bf16 %v2574, %v2574
      %v4091 = vpack.c.bf16 %v2710, %v2710
      %v4092 = vpack.c.bf16 %v2846, %v2846
      %v4093 = vpack.c.bf16 %v2982, %v2982
      %v4094 = vpack.c.bf16 %v2575, %v2575
      %v4095 = vpack.c.bf16 %v2711, %v2711
      %v4096 = vpack.c.bf16 %v2847, %v2847
      %v4097 = vpack.c.bf16 %v2983, %v2983
      %v4098 = vpack.c.bf16 %v2576, %v2576
      %v4099 = vpack.c.bf16 %v2712, %v2712
      %v4100 = vpack.c.bf16 %v2848, %v2848
      %v4101 = vpack.c.bf16 %v2984, %v2984
      %v4102 = vpack.c.bf16 %v2577, %v2577
      %v4103 = vpack.c.bf16 %v2713, %v2713
      %v4104 = vpack.c.bf16 %v2849, %v2849
      %v4105 = vpack.c.bf16 %v2985, %v2985
      %v4106 = vpack.c.bf16 %v3114, %v3114
      %v4107 = vpack.c.bf16 %v3250, %v3250
      %v4108 = vpack.c.bf16 %v3386, %v3386
      %v4109 = vpack.c.bf16 %v3522, %v3522
      %v4110 = vpack.c.bf16 %v3115, %v3115
      %v4111 = vpack.c.bf16 %v3251, %v3251
      %v4112 = vpack.c.bf16 %v3387, %v3387
      %v4113 = vpack.c.bf16 %v3523, %v3523
      %v4114 = vpack.c.bf16 %v3116, %v3116
      %v4115 = vpack.c.bf16 %v3252, %v3252
      %v4116 = vpack.c.bf16 %v3388, %v3388
      %v4117 = vpack.c.bf16 %v3524, %v3524
      %v4118 = vpack.c.bf16 %v3117, %v3117
      %v4119 = vpack.c.bf16 %v3253, %v3253
      %v4120 = vpack.c.bf16 %v3389, %v3389
      %v4121 = vpack.c.bf16 %v3525, %v3525
      %v4122 = vpack.c.bf16 %v3118, %v3118
      %v4123 = vpack.c.bf16 %v3254, %v3254
      %v4124 = vpack.c.bf16 %v3390, %v3390
      %v4125 = vpack.c.bf16 %v3526, %v3526
      %v4126 = vpack.c.bf16 %v3119, %v3119
      %v4127 = vpack.c.bf16 %v3255, %v3255
      %v4128 = vpack.c.bf16 %v3391, %v3391
      %v4129 = vpack.c.bf16 %v3527, %v3527
      %v4130 = vpack.c.bf16 %v3120, %v3120
      %v4131 = vpack.c.bf16 %v3256, %v3256
      %v4132 = vpack.c.bf16 %v3392, %v3392
      %v4133 = vpack.c.bf16 %v3528, %v3528
      %v4134 = vpack.c.bf16 %v3121, %v3121
      %v4135 = vpack.c.bf16 %v3257, %v3257
      %v4136 = vpack.c.bf16 %v3393, %v3393
      %v4137 = vpack.c.bf16 %v3529, %v3529
      %vm4138 = vcmask 31744
      %v4140 = vsel %vm4138, %v4074, 0
      %v4143 = vsel %vm4138, %v4106, 0
      %4145 = vmatprep.subr.bf16.mxu0 0
      %4146 = vmatpush1.bf16.xpose.msra.mxu0 0
      %4147 = vmatprep.subr.bf16.mxu0 0
      %4148 = vmatpush1.bf16.xpose.msra.mxu0 0
      %4149 = vmatprep.subr.bf16.mxu0 0
      %4150 = vmatpush1.bf16.xpose.msra.mxu0 0
      %4151 = vmatprep.subr.bf16.mxu0 0
      %4152 = vmatpush1.bf16.xpose.msra.mxu0 0
      %4153 = vmatprep.subr.bf16.mxu0 0
      %4154 = vmatpush1.bf16.xpose.msra.mxu0 0
      %4155 = vmatprep.subr.bf16.mxu0 0
      %4156 = vmatpush1.bf16.xpose.msra.mxu0 0
      %4157 = vmatprep.subr.bf16.mxu0 0
      %4158 = vmatpush1.bf16.xpose.msra.mxu0 0
      %4159 = vmatprep.subr.bf16.mxu0 0
      %4160 = vmatpush1.bf16.xpose.msra.mxu0 %v4143
      %4161 = vmatprep.subr.bf16.mxu0 0
      %4162 = vmatpush2.bf16.xpose.msra.mxu0 0
      %4163 = vmatprep.subr.bf16.mxu0 0
      %4164 = vmatpush2.bf16.xpose.msra.mxu0 0
      %4165 = vmatprep.subr.bf16.mxu0 0
      %4166 = vmatpush2.bf16.xpose.msra.mxu0 0
      %4167 = vmatprep.subr.bf16.mxu0 0
      %4168 = vmatpush2.bf16.xpose.msra.mxu0 0
      %4169 = vmatprep.subr.bf16.mxu0 0
      %4170 = vmatpush2.bf16.xpose.msra.mxu0 0
      %4171 = vmatprep.subr.bf16.mxu0 0
      %4172 = vmatpush2.bf16.xpose.msra.mxu0 0
      %4173 = vmatprep.subr.bf16.mxu0 0
      %4174 = vmatpush2.bf16.xpose.msra.mxu0 0
      %4175 = vmatprep.subr.bf16.mxu0 0
      %4176 = vmatpush2.bf16.xpose.msra.mxu0 0
      %4177 = vmatprep.mubr.bf16.mxu0 0
      %4178 = vmatmul.mubr.bf16.gmra.mxu0 %v4140
      %v4179 = vpop.f32.mrf.mxu0
      %v4180 = vadd.f32 0.0, %v4179
      %v4181 = vpop.f32.mrf.mxu0
      %v4182 = vpop.f32.mrf.mxu0
      %v4183 = vpop.f32.mrf.mxu0
      %4184 = vdwg.mxu0
      %v4186 = vsel %vm4138, %v4075, 0
      %v4189 = vsel %vm4138, %v4107, 0
      %4191 = vmatprep.subr.bf16.mxu0 0
      %4192 = vmatpush1.bf16.xpose.msra.mxu0 0
      %4193 = vmatprep.subr.bf16.mxu0 0
      %4194 = vmatpush1.bf16.xpose.msra.mxu0 0
      %4195 = vmatprep.subr.bf16.mxu0 0
      %4196 = vmatpush1.bf16.xpose.msra.mxu0 0
      %4197 = vmatprep.subr.bf16.mxu0 0
      %4198 = vmatpush1.bf16.xpose.msra.mxu0 0
      %4199 = vmatprep.subr.bf16.mxu0 0
      %4200 = vmatpush1.bf16.xpose.msra.mxu0 0
      %4201 = vmatprep.subr.bf16.mxu0 0
      %4202 = vmatpush1.bf16.xpose.msra.mxu0 0
      %4203 = vmatprep.subr.bf16.mxu0 0
      %4204 = vmatpush1.bf16.xpose.msra.mxu0 0
      %4205 = vmatprep.subr.bf16.mxu0 0
      %4206 = vmatpush1.bf16.xpose.msra.mxu0 %v4189
      %4207 = vmatprep.subr.bf16.mxu0 0
      %4208 = vmatpush2.bf16.xpose.msra.mxu0 0
      %4209 = vmatprep.subr.bf16.mxu0 0
      %4210 = vmatpush2.bf16.xpose.msra.mxu0 0
      %4211 = vmatprep.subr.bf16.mxu0 0
      %4212 = vmatpush2.bf16.xpose.msra.mxu0 0
      %4213 = vmatprep.subr.bf16.mxu0 0
      %4214 = vmatpush2.bf16.xpose.msra.mxu0 0
      %4215 = vmatprep.subr.bf16.mxu0 0
      %4216 = vmatpush2.bf16.xpose.msra.mxu0 0
      %4217 = vmatprep.subr.bf16.mxu0 0
      %4218 = vmatpush2.bf16.xpose.msra.mxu0 0
      %4219 = vmatprep.subr.bf16.mxu0 0
      %4220 = vmatpush2.bf16.xpose.msra.mxu0 0
      %4221 = vmatprep.subr.bf16.mxu0 0
      %4222 = vmatpush2.bf16.xpose.msra.mxu0 0
      %4223 = vmatprep.mubr.bf16.mxu0 0
      %4224 = vmatmul.mubr.bf16.gmra.mxu0 %v4186
      %v4225 = vpop.f32.mrf.mxu0
      %v4226 = vadd.f32 0.0, %v4225
      %v4227 = vpop.f32.mrf.mxu0
      %v4228 = vpop.f32.mrf.mxu0
      %v4229 = vpop.f32.mrf.mxu0
      %4230 = vdwg.mxu0
      %v4232 = vsel %vm4138, %v4076, 0
      %v4235 = vsel %vm4138, %v4108, 0
      %4237 = vmatprep.subr.bf16.mxu0 0
      %4238 = vmatpush1.bf16.xpose.msra.mxu0 0
      %4239 = vmatprep.subr.bf16.mxu0 0
      %4240 = vmatpush1.bf16.xpose.msra.mxu0 0
      %4241 = vmatprep.subr.bf16.mxu0 0
      %4242 = vmatpush1.bf16.xpose.msra.mxu0 0
      %4243 = vmatprep.subr.bf16.mxu0 0
      %4244 = vmatpush1.bf16.xpose.msra.mxu0 0
      %4245 = vmatprep.subr.bf16.mxu0 0
      %4246 = vmatpush1.bf16.xpose.msra.mxu0 0
      %4247 = vmatprep.subr.bf16.mxu0 0
      %4248 = vmatpush1.bf16.xpose.msra.mxu0 0
      %4249 = vmatprep.subr.bf16.mxu0 0
      %4250 = vmatpush1.bf16.xpose.msra.mxu0 0
      %4251 = vmatprep.subr.bf16.mxu0 0
      %4252 = vmatpush1.bf16.xpose.msra.mxu0 %v4235
      %4253 = vmatprep.subr.bf16.mxu0 0
      %4254 = vmatpush2.bf16.xpose.msra.mxu0 0
      %4255 = vmatprep.subr.bf16.mxu0 0
      %4256 = vmatpush2.bf16.xpose.msra.mxu0 0
      %4257 = vmatprep.subr.bf16.mxu0 0
      %4258 = vmatpush2.bf16.xpose.msra.mxu0 0
      %4259 = vmatprep.subr.bf16.mxu0 0
      %4260 = vmatpush2.bf16.xpose.msra.mxu0 0
      %4261 = vmatprep.subr.bf16.mxu0 0
      %4262 = vmatpush2.bf16.xpose.msra.mxu0 0
      %4263 = vmatprep.subr.bf16.mxu0 0
      %4264 = vmatpush2.bf16.xpose.msra.mxu0 0
      %4265 = vmatprep.subr.bf16.mxu0 0
      %4266 = vmatpush2.bf16.xpose.msra.mxu0 0
      %4267 = vmatprep.subr.bf16.mxu0 0
      %4268 = vmatpush2.bf16.xpose.msra.mxu0 0
      %4269 = vmatprep.mubr.bf16.mxu0 0
      %4270 = vmatmul.mubr.bf16.gmra.mxu0 %v4232
      %v4271 = vpop.f32.mrf.mxu0
      %v4272 = vadd.f32 0.0, %v4271
      %v4273 = vpop.f32.mrf.mxu0
      %v4274 = vpop.f32.mrf.mxu0
      %v4275 = vpop.f32.mrf.mxu0
      %4276 = vdwg.mxu0
      %v4278 = vsel %vm4138, %v4077, 0
      %v4281 = vsel %vm4138, %v4109, 0
      %4283 = vmatprep.subr.bf16.mxu0 0
      %4284 = vmatpush1.bf16.xpose.msra.mxu0 0
      %4285 = vmatprep.subr.bf16.mxu0 0
      %4286 = vmatpush1.bf16.xpose.msra.mxu0 0
      %4287 = vmatprep.subr.bf16.mxu0 0
      %4288 = vmatpush1.bf16.xpose.msra.mxu0 0
      %4289 = vmatprep.subr.bf16.mxu0 0
      %4290 = vmatpush1.bf16.xpose.msra.mxu0 0
      %4291 = vmatprep.subr.bf16.mxu0 0
      %4292 = vmatpush1.bf16.xpose.msra.mxu0 0
      %4293 = vmatprep.subr.bf16.mxu0 0
      %4294 = vmatpush1.bf16.xpose.msra.mxu0 0
      %4295 = vmatprep.subr.bf16.mxu0 0
      %4296 = vmatpush1.bf16.xpose.msra.mxu0 0
      %4297 = vmatprep.subr.bf16.mxu0 0
      %4298 = vmatpush1.bf16.xpose.msra.mxu0 %v4281
      %4299 = vmatprep.subr.bf16.mxu0 0
      %4300 = vmatpush2.bf16.xpose.msra.mxu0 0
      %4301 = vmatprep.subr.bf16.mxu0 0
      %4302 = vmatpush2.bf16.xpose.msra.mxu0 0
      %4303 = vmatprep.subr.bf16.mxu0 0
      %4304 = vmatpush2.bf16.xpose.msra.mxu0 0
      %4305 = vmatprep.subr.bf16.mxu0 0
      %4306 = vmatpush2.bf16.xpose.msra.mxu0 0
      %4307 = vmatprep.subr.bf16.mxu0 0
      %4308 = vmatpush2.bf16.xpose.msra.mxu0 0
      %4309 = vmatprep.subr.bf16.mxu0 0
      %4310 = vmatpush2.bf16.xpose.msra.mxu0 0
      %4311 = vmatprep.subr.bf16.mxu0 0
      %4312 = vmatpush2.bf16.xpose.msra.mxu0 0
      %4313 = vmatprep.subr.bf16.mxu0 0
      %4314 = vmatpush2.bf16.xpose.msra.mxu0 0
      %4315 = vmatprep.mubr.bf16.mxu0 0
      %4316 = vmatmul.mubr.bf16.gmra.mxu0 %v4278
      %v4317 = vpop.f32.mrf.mxu0
      %v4318 = vadd.f32 0.0, %v4317
      %v4319 = vpop.f32.mrf.mxu0
      %v4320 = vpop.f32.mrf.mxu0
      %v4321 = vpop.f32.mrf.mxu0
      %4322 = vdwg.mxu0
      %v4324 = vsel %vm4138, %v4078, 0
      %v4327 = vsel %vm4138, %v4110, 0
      %4329 = vmatprep.subr.bf16.mxu0 0
      %4330 = vmatpush1.bf16.xpose.msra.mxu0 0
      %4331 = vmatprep.subr.bf16.mxu0 0
      %4332 = vmatpush1.bf16.xpose.msra.mxu0 0
      %4333 = vmatprep.subr.bf16.mxu0 0
      %4334 = vmatpush1.bf16.xpose.msra.mxu0 0
      %4335 = vmatprep.subr.bf16.mxu0 0
      %4336 = vmatpush1.bf16.xpose.msra.mxu0 0
      %4337 = vmatprep.subr.bf16.mxu0 0
      %4338 = vmatpush1.bf16.xpose.msra.mxu0 0
      %4339 = vmatprep.subr.bf16.mxu0 0
      %4340 = vmatpush1.bf16.xpose.msra.mxu0 0
      %4341 = vmatprep.subr.bf16.mxu0 0
      %4342 = vmatpush1.bf16.xpose.msra.mxu0 0
      %4343 = vmatprep.subr.bf16.mxu0 0
      %4344 = vmatpush1.bf16.xpose.msra.mxu0 %v4327
      %4345 = vmatprep.subr.bf16.mxu0 0
      %4346 = vmatpush2.bf16.xpose.msra.mxu0 0
      %4347 = vmatprep.subr.bf16.mxu0 0
      %4348 = vmatpush2.bf16.xpose.msra.mxu0 0
      %4349 = vmatprep.subr.bf16.mxu0 0
      %4350 = vmatpush2.bf16.xpose.msra.mxu0 0
      %4351 = vmatprep.subr.bf16.mxu0 0
      %4352 = vmatpush2.bf16.xpose.msra.mxu0 0
      %4353 = vmatprep.subr.bf16.mxu0 0
      %4354 = vmatpush2.bf16.xpose.msra.mxu0 0
      %4355 = vmatprep.subr.bf16.mxu0 0
      %4356 = vmatpush2.bf16.xpose.msra.mxu0 0
      %4357 = vmatprep.subr.bf16.mxu0 0
      %4358 = vmatpush2.bf16.xpose.msra.mxu0 0
      %4359 = vmatprep.subr.bf16.mxu0 0
      %4360 = vmatpush2.bf16.xpose.msra.mxu0 0
      %4361 = vmatprep.mubr.bf16.mxu0 0
      %4362 = vmatmul.mubr.bf16.gmra.mxu0 %v4324
      %v4363 = vpop.f32.mrf.mxu0
      %v4364 = vadd.f32 0.0, %v4363
      %v4365 = vpop.f32.mrf.mxu0
      %v4366 = vpop.f32.mrf.mxu0
      %v4367 = vpop.f32.mrf.mxu0
      %4368 = vdwg.mxu0
      %v4370 = vsel %vm4138, %v4079, 0
      %v4373 = vsel %vm4138, %v4111, 0
      %4375 = vmatprep.subr.bf16.mxu0 0
      %4376 = vmatpush1.bf16.xpose.msra.mxu0 0
      %4377 = vmatprep.subr.bf16.mxu0 0
      %4378 = vmatpush1.bf16.xpose.msra.mxu0 0
      %4379 = vmatprep.subr.bf16.mxu0 0
      %4380 = vmatpush1.bf16.xpose.msra.mxu0 0
      %4381 = vmatprep.subr.bf16.mxu0 0
      %4382 = vmatpush1.bf16.xpose.msra.mxu0 0
      %4383 = vmatprep.subr.bf16.mxu0 0
      %4384 = vmatpush1.bf16.xpose.msra.mxu0 0
      %4385 = vmatprep.subr.bf16.mxu0 0
      %4386 = vmatpush1.bf16.xpose.msra.mxu0 0
      %4387 = vmatprep.subr.bf16.mxu0 0
      %4388 = vmatpush1.bf16.xpose.msra.mxu0 0
      %4389 = vmatprep.subr.bf16.mxu0 0
      %4390 = vmatpush1.bf16.xpose.msra.mxu0 %v4373
      %4391 = vmatprep.subr.bf16.mxu0 0
      %4392 = vmatpush2.bf16.xpose.msra.mxu0 0
      %4393 = vmatprep.subr.bf16.mxu0 0
      %4394 = vmatpush2.bf16.xpose.msra.mxu0 0
      %4395 = vmatprep.subr.bf16.mxu0 0
      %4396 = vmatpush2.bf16.xpose.msra.mxu0 0
      %4397 = vmatprep.subr.bf16.mxu0 0
      %4398 = vmatpush2.bf16.xpose.msra.mxu0 0
      %4399 = vmatprep.subr.bf16.mxu0 0
      %4400 = vmatpush2.bf16.xpose.msra.mxu0 0
      %4401 = vmatprep.subr.bf16.mxu0 0
      %4402 = vmatpush2.bf16.xpose.msra.mxu0 0
      %4403 = vmatprep.subr.bf16.mxu0 0
      %4404 = vmatpush2.bf16.xpose.msra.mxu0 0
      %4405 = vmatprep.subr.bf16.mxu0 0
      %4406 = vmatpush2.bf16.xpose.msra.mxu0 0
      %4407 = vmatprep.mubr.bf16.mxu0 0
      %4408 = vmatmul.mubr.bf16.gmra.mxu0 %v4370
      %v4409 = vpop.f32.mrf.mxu0
      %v4410 = vadd.f32 0.0, %v4409
      %v4411 = vpop.f32.mrf.mxu0
      %v4412 = vpop.f32.mrf.mxu0
      %v4413 = vpop.f32.mrf.mxu0
      %4414 = vdwg.mxu0
      %v4416 = vsel %vm4138, %v4080, 0
      %v4419 = vsel %vm4138, %v4112, 0
      %4421 = vmatprep.subr.bf16.mxu0 0
      %4422 = vmatpush1.bf16.xpose.msra.mxu0 0
      %4423 = vmatprep.subr.bf16.mxu0 0
      %4424 = vmatpush1.bf16.xpose.msra.mxu0 0
      %4425 = vmatprep.subr.bf16.mxu0 0
      %4426 = vmatpush1.bf16.xpose.msra.mxu0 0
      %4427 = vmatprep.subr.bf16.mxu0 0
      %4428 = vmatpush1.bf16.xpose.msra.mxu0 0
      %4429 = vmatprep.subr.bf16.mxu0 0
      %4430 = vmatpush1.bf16.xpose.msra.mxu0 0
      %4431 = vmatprep.subr.bf16.mxu0 0
      %4432 = vmatpush1.bf16.xpose.msra.mxu0 0
      %4433 = vmatprep.subr.bf16.mxu0 0
      %4434 = vmatpush1.bf16.xpose.msra.mxu0 0
      %4435 = vmatprep.subr.bf16.mxu0 0
      %4436 = vmatpush1.bf16.xpose.msra.mxu0 %v4419
      %4437 = vmatprep.subr.bf16.mxu0 0
      %4438 = vmatpush2.bf16.xpose.msra.mxu0 0
      %4439 = vmatprep.subr.bf16.mxu0 0
      %4440 = vmatpush2.bf16.xpose.msra.mxu0 0
      %4441 = vmatprep.subr.bf16.mxu0 0
      %4442 = vmatpush2.bf16.xpose.msra.mxu0 0
      %4443 = vmatprep.subr.bf16.mxu0 0
      %4444 = vmatpush2.bf16.xpose.msra.mxu0 0
      %4445 = vmatprep.subr.bf16.mxu0 0
      %4446 = vmatpush2.bf16.xpose.msra.mxu0 0
      %4447 = vmatprep.subr.bf16.mxu0 0
      %4448 = vmatpush2.bf16.xpose.msra.mxu0 0
      %4449 = vmatprep.subr.bf16.mxu0 0
      %4450 = vmatpush2.bf16.xpose.msra.mxu0 0
      %4451 = vmatprep.subr.bf16.mxu0 0
      %4452 = vmatpush2.bf16.xpose.msra.mxu0 0
      %4453 = vmatprep.mubr.bf16.mxu0 0
      %4454 = vmatmul.mubr.bf16.gmra.mxu0 %v4416
      %v4455 = vpop.f32.mrf.mxu0
      %v4456 = vadd.f32 0.0, %v4455
      %v4457 = vpop.f32.mrf.mxu0
      %v4458 = vpop.f32.mrf.mxu0
      %v4459 = vpop.f32.mrf.mxu0
      %4460 = vdwg.mxu0
      %v4462 = vsel %vm4138, %v4081, 0
      %v4465 = vsel %vm4138, %v4113, 0
      %4467 = vmatprep.subr.bf16.mxu0 0
      %4468 = vmatpush1.bf16.xpose.msra.mxu0 0
      %4469 = vmatprep.subr.bf16.mxu0 0
      %4470 = vmatpush1.bf16.xpose.msra.mxu0 0
      %4471 = vmatprep.subr.bf16.mxu0 0
      %4472 = vmatpush1.bf16.xpose.msra.mxu0 0
      %4473 = vmatprep.subr.bf16.mxu0 0
      %4474 = vmatpush1.bf16.xpose.msra.mxu0 0
      %4475 = vmatprep.subr.bf16.mxu0 0
      %4476 = vmatpush1.bf16.xpose.msra.mxu0 0
      %4477 = vmatprep.subr.bf16.mxu0 0
      %4478 = vmatpush1.bf16.xpose.msra.mxu0 0
      %4479 = vmatprep.subr.bf16.mxu0 0
      %4480 = vmatpush1.bf16.xpose.msra.mxu0 0
      %4481 = vmatprep.subr.bf16.mxu0 0
      %4482 = vmatpush1.bf16.xpose.msra.mxu0 %v4465
      %4483 = vmatprep.subr.bf16.mxu0 0
      %4484 = vmatpush2.bf16.xpose.msra.mxu0 0
      %4485 = vmatprep.subr.bf16.mxu0 0
      %4486 = vmatpush2.bf16.xpose.msra.mxu0 0
      %4487 = vmatprep.subr.bf16.mxu0 0
      %4488 = vmatpush2.bf16.xpose.msra.mxu0 0
      %4489 = vmatprep.subr.bf16.mxu0 0
      %4490 = vmatpush2.bf16.xpose.msra.mxu0 0
      %4491 = vmatprep.subr.bf16.mxu0 0
      %4492 = vmatpush2.bf16.xpose.msra.mxu0 0
      %4493 = vmatprep.subr.bf16.mxu0 0
      %4494 = vmatpush2.bf16.xpose.msra.mxu0 0
      %4495 = vmatprep.subr.bf16.mxu0 0
      %4496 = vmatpush2.bf16.xpose.msra.mxu0 0
      %4497 = vmatprep.subr.bf16.mxu0 0
      %4498 = vmatpush2.bf16.xpose.msra.mxu0 0
      %4499 = vmatprep.mubr.bf16.mxu0 0
      %4500 = vmatmul.mubr.bf16.gmra.mxu0 %v4462
      %v4501 = vpop.f32.mrf.mxu0
      %v4502 = vadd.f32 0.0, %v4501
      %v4503 = vpop.f32.mrf.mxu0
      %v4504 = vpop.f32.mrf.mxu0
      %v4505 = vpop.f32.mrf.mxu0
      %4506 = vdwg.mxu0
      %v4508 = vsel %vm4138, %v4082, 0
      %v4511 = vsel %vm4138, %v4114, 0
      %4513 = vmatprep.subr.bf16.mxu0 0
      %4514 = vmatpush1.bf16.xpose.msra.mxu0 0
      %4515 = vmatprep.subr.bf16.mxu0 0
      %4516 = vmatpush1.bf16.xpose.msra.mxu0 0
      %4517 = vmatprep.subr.bf16.mxu0 0
      %4518 = vmatpush1.bf16.xpose.msra.mxu0 0
      %4519 = vmatprep.subr.bf16.mxu0 0
      %4520 = vmatpush1.bf16.xpose.msra.mxu0 0
      %4521 = vmatprep.subr.bf16.mxu0 0
      %4522 = vmatpush1.bf16.xpose.msra.mxu0 0
      %4523 = vmatprep.subr.bf16.mxu0 0
      %4524 = vmatpush1.bf16.xpose.msra.mxu0 0
      %4525 = vmatprep.subr.bf16.mxu0 0
      %4526 = vmatpush1.bf16.xpose.msra.mxu0 0
      %4527 = vmatprep.subr.bf16.mxu0 0
      %4528 = vmatpush1.bf16.xpose.msra.mxu0 %v4511
      %4529 = vmatprep.subr.bf16.mxu0 0
      %4530 = vmatpush2.bf16.xpose.msra.mxu0 0
      %4531 = vmatprep.subr.bf16.mxu0 0
      %4532 = vmatpush2.bf16.xpose.msra.mxu0 0
      %4533 = vmatprep.subr.bf16.mxu0 0
      %4534 = vmatpush2.bf16.xpose.msra.mxu0 0
      %4535 = vmatprep.subr.bf16.mxu0 0
      %4536 = vmatpush2.bf16.xpose.msra.mxu0 0
      %4537 = vmatprep.subr.bf16.mxu0 0
      %4538 = vmatpush2.bf16.xpose.msra.mxu0 0
      %4539 = vmatprep.subr.bf16.mxu0 0
      %4540 = vmatpush2.bf16.xpose.msra.mxu0 0
      %4541 = vmatprep.subr.bf16.mxu0 0
      %4542 = vmatpush2.bf16.xpose.msra.mxu0 0
      %4543 = vmatprep.subr.bf16.mxu0 0
      %4544 = vmatpush2.bf16.xpose.msra.mxu0 0
      %4545 = vmatprep.mubr.bf16.mxu0 0
      %4546 = vmatmul.mubr.bf16.gmra.mxu0 %v4508
      %v4547 = vpop.f32.mrf.mxu0
      %v4548 = vadd.f32 0.0, %v4547
      %v4549 = vpop.f32.mrf.mxu0
      %v4550 = vpop.f32.mrf.mxu0
      %v4551 = vpop.f32.mrf.mxu0
      %4552 = vdwg.mxu0
      %v4554 = vsel %vm4138, %v4083, 0
      %v4557 = vsel %vm4138, %v4115, 0
      %4559 = vmatprep.subr.bf16.mxu0 0
      %4560 = vmatpush1.bf16.xpose.msra.mxu0 0
      %4561 = vmatprep.subr.bf16.mxu0 0
      %4562 = vmatpush1.bf16.xpose.msra.mxu0 0
      %4563 = vmatprep.subr.bf16.mxu0 0
      %4564 = vmatpush1.bf16.xpose.msra.mxu0 0
      %4565 = vmatprep.subr.bf16.mxu0 0
      %4566 = vmatpush1.bf16.xpose.msra.mxu0 0
      %4567 = vmatprep.subr.bf16.mxu0 0
      %4568 = vmatpush1.bf16.xpose.msra.mxu0 0
      %4569 = vmatprep.subr.bf16.mxu0 0
      %4570 = vmatpush1.bf16.xpose.msra.mxu0 0
      %4571 = vmatprep.subr.bf16.mxu0 0
      %4572 = vmatpush1.bf16.xpose.msra.mxu0 0
      %4573 = vmatprep.subr.bf16.mxu0 0
      %4574 = vmatpush1.bf16.xpose.msra.mxu0 %v4557
      %4575 = vmatprep.subr.bf16.mxu0 0
      %4576 = vmatpush2.bf16.xpose.msra.mxu0 0
      %4577 = vmatprep.subr.bf16.mxu0 0
      %4578 = vmatpush2.bf16.xpose.msra.mxu0 0
      %4579 = vmatprep.subr.bf16.mxu0 0
      %4580 = vmatpush2.bf16.xpose.msra.mxu0 0
      %4581 = vmatprep.subr.bf16.mxu0 0
      %4582 = vmatpush2.bf16.xpose.msra.mxu0 0
      %4583 = vmatprep.subr.bf16.mxu0 0
      %4584 = vmatpush2.bf16.xpose.msra.mxu0 0
      %4585 = vmatprep.subr.bf16.mxu0 0
      %4586 = vmatpush2.bf16.xpose.msra.mxu0 0
      %4587 = vmatprep.subr.bf16.mxu0 0
      %4588 = vmatpush2.bf16.xpose.msra.mxu0 0
      %4589 = vmatprep.subr.bf16.mxu0 0
      %4590 = vmatpush2.bf16.xpose.msra.mxu0 0
      %4591 = vmatprep.mubr.bf16.mxu0 0
      %4592 = vmatmul.mubr.bf16.gmra.mxu0 %v4554
      %v4593 = vpop.f32.mrf.mxu0
      %v4594 = vadd.f32 0.0, %v4593
      %v4595 = vpop.f32.mrf.mxu0
      %v4596 = vpop.f32.mrf.mxu0
      %v4597 = vpop.f32.mrf.mxu0
      %4598 = vdwg.mxu0
      %v4600 = vsel %vm4138, %v4084, 0
      %v4603 = vsel %vm4138, %v4116, 0
      %4605 = vmatprep.subr.bf16.mxu0 0
      %4606 = vmatpush1.bf16.xpose.msra.mxu0 0
      %4607 = vmatprep.subr.bf16.mxu0 0
      %4608 = vmatpush1.bf16.xpose.msra.mxu0 0
      %4609 = vmatprep.subr.bf16.mxu0 0
      %4610 = vmatpush1.bf16.xpose.msra.mxu0 0
      %4611 = vmatprep.subr.bf16.mxu0 0
      %4612 = vmatpush1.bf16.xpose.msra.mxu0 0
      %4613 = vmatprep.subr.bf16.mxu0 0
      %4614 = vmatpush1.bf16.xpose.msra.mxu0 0
      %4615 = vmatprep.subr.bf16.mxu0 0
      %4616 = vmatpush1.bf16.xpose.msra.mxu0 0
      %4617 = vmatprep.subr.bf16.mxu0 0
      %4618 = vmatpush1.bf16.xpose.msra.mxu0 0
      %4619 = vmatprep.subr.bf16.mxu0 0
      %4620 = vmatpush1.bf16.xpose.msra.mxu0 %v4603
      %4621 = vmatprep.subr.bf16.mxu0 0
      %4622 = vmatpush2.bf16.xpose.msra.mxu0 0
      %4623 = vmatprep.subr.bf16.mxu0 0
      %4624 = vmatpush2.bf16.xpose.msra.mxu0 0
      %4625 = vmatprep.subr.bf16.mxu0 0
      %4626 = vmatpush2.bf16.xpose.msra.mxu0 0
      %4627 = vmatprep.subr.bf16.mxu0 0
      %4628 = vmatpush2.bf16.xpose.msra.mxu0 0
      %4629 = vmatprep.subr.bf16.mxu0 0
      %4630 = vmatpush2.bf16.xpose.msra.mxu0 0
      %4631 = vmatprep.subr.bf16.mxu0 0
      %4632 = vmatpush2.bf16.xpose.msra.mxu0 0
      %4633 = vmatprep.subr.bf16.mxu0 0
      %4634 = vmatpush2.bf16.xpose.msra.mxu0 0
      %4635 = vmatprep.subr.bf16.mxu0 0
      %4636 = vmatpush2.bf16.xpose.msra.mxu0 0
      %4637 = vmatprep.mubr.bf16.mxu0 0
      %4638 = vmatmul.mubr.bf16.gmra.mxu0 %v4600
      %v4639 = vpop.f32.mrf.mxu0
      %v4640 = vadd.f32 0.0, %v4639
      %v4641 = vpop.f32.mrf.mxu0
      %v4642 = vpop.f32.mrf.mxu0
      %v4643 = vpop.f32.mrf.mxu0
      %4644 = vdwg.mxu0
      %v4646 = vsel %vm4138, %v4085, 0
      %v4649 = vsel %vm4138, %v4117, 0
      %4651 = vmatprep.subr.bf16.mxu0 0
      %4652 = vmatpush1.bf16.xpose.msra.mxu0 0
      %4653 = vmatprep.subr.bf16.mxu0 0
      %4654 = vmatpush1.bf16.xpose.msra.mxu0 0
      %4655 = vmatprep.subr.bf16.mxu0 0
      %4656 = vmatpush1.bf16.xpose.msra.mxu0 0
      %4657 = vmatprep.subr.bf16.mxu0 0
      %4658 = vmatpush1.bf16.xpose.msra.mxu0 0
      %4659 = vmatprep.subr.bf16.mxu0 0
      %4660 = vmatpush1.bf16.xpose.msra.mxu0 0
      %4661 = vmatprep.subr.bf16.mxu0 0
      %4662 = vmatpush1.bf16.xpose.msra.mxu0 0
      %4663 = vmatprep.subr.bf16.mxu0 0
      %4664 = vmatpush1.bf16.xpose.msra.mxu0 0
      %4665 = vmatprep.subr.bf16.mxu0 0
      %4666 = vmatpush1.bf16.xpose.msra.mxu0 %v4649
      %4667 = vmatprep.subr.bf16.mxu0 0
      %4668 = vmatpush2.bf16.xpose.msra.mxu0 0
      %4669 = vmatprep.subr.bf16.mxu0 0
      %4670 = vmatpush2.bf16.xpose.msra.mxu0 0
      %4671 = vmatprep.subr.bf16.mxu0 0
      %4672 = vmatpush2.bf16.xpose.msra.mxu0 0
      %4673 = vmatprep.subr.bf16.mxu0 0
      %4674 = vmatpush2.bf16.xpose.msra.mxu0 0
      %4675 = vmatprep.subr.bf16.mxu0 0
      %4676 = vmatpush2.bf16.xpose.msra.mxu0 0
      %4677 = vmatprep.subr.bf16.mxu0 0
      %4678 = vmatpush2.bf16.xpose.msra.mxu0 0
      %4679 = vmatprep.subr.bf16.mxu0 0
      %4680 = vmatpush2.bf16.xpose.msra.mxu0 0
      %4681 = vmatprep.subr.bf16.mxu0 0
      %4682 = vmatpush2.bf16.xpose.msra.mxu0 0
      %4683 = vmatprep.mubr.bf16.mxu0 0
      %4684 = vmatmul.mubr.bf16.gmra.mxu0 %v4646
      %v4685 = vpop.f32.mrf.mxu0
      %v4686 = vadd.f32 0.0, %v4685
      %v4687 = vpop.f32.mrf.mxu0
      %v4688 = vpop.f32.mrf.mxu0
      %v4689 = vpop.f32.mrf.mxu0
      %4690 = vdwg.mxu0
      %v4692 = vsel %vm4138, %v4086, 0
      %v4695 = vsel %vm4138, %v4118, 0
      %4697 = vmatprep.subr.bf16.mxu0 0
      %4698 = vmatpush1.bf16.xpose.msra.mxu0 0
      %4699 = vmatprep.subr.bf16.mxu0 0
      %4700 = vmatpush1.bf16.xpose.msra.mxu0 0
      %4701 = vmatprep.subr.bf16.mxu0 0
      %4702 = vmatpush1.bf16.xpose.msra.mxu0 0
      %4703 = vmatprep.subr.bf16.mxu0 0
      %4704 = vmatpush1.bf16.xpose.msra.mxu0 0
      %4705 = vmatprep.subr.bf16.mxu0 0
      %4706 = vmatpush1.bf16.xpose.msra.mxu0 0
      %4707 = vmatprep.subr.bf16.mxu0 0
      %4708 = vmatpush1.bf16.xpose.msra.mxu0 0
      %4709 = vmatprep.subr.bf16.mxu0 0
      %4710 = vmatpush1.bf16.xpose.msra.mxu0 0
      %4711 = vmatprep.subr.bf16.mxu0 0
      %4712 = vmatpush1.bf16.xpose.msra.mxu0 %v4695
      %4713 = vmatprep.subr.bf16.mxu0 0
      %4714 = vmatpush2.bf16.xpose.msra.mxu0 0
      %4715 = vmatprep.subr.bf16.mxu0 0
      %4716 = vmatpush2.bf16.xpose.msra.mxu0 0
      %4717 = vmatprep.subr.bf16.mxu0 0
      %4718 = vmatpush2.bf16.xpose.msra.mxu0 0
      %4719 = vmatprep.subr.bf16.mxu0 0
      %4720 = vmatpush2.bf16.xpose.msra.mxu0 0
      %4721 = vmatprep.subr.bf16.mxu0 0
      %4722 = vmatpush2.bf16.xpose.msra.mxu0 0
      %4723 = vmatprep.subr.bf16.mxu0 0
      %4724 = vmatpush2.bf16.xpose.msra.mxu0 0
      %4725 = vmatprep.subr.bf16.mxu0 0
      %4726 = vmatpush2.bf16.xpose.msra.mxu0 0
      %4727 = vmatprep.subr.bf16.mxu0 0
      %4728 = vmatpush2.bf16.xpose.msra.mxu0 0
      %4729 = vmatprep.mubr.bf16.mxu0 0
      %4730 = vmatmul.mubr.bf16.gmra.mxu0 %v4692
      %v4731 = vpop.f32.mrf.mxu0
      %v4732 = vadd.f32 0.0, %v4731
      %v4733 = vpop.f32.mrf.mxu0
      %v4734 = vpop.f32.mrf.mxu0
      %v4735 = vpop.f32.mrf.mxu0
      %4736 = vdwg.mxu0
      %v4738 = vsel %vm4138, %v4087, 0
      %v4741 = vsel %vm4138, %v4119, 0
      %4743 = vmatprep.subr.bf16.mxu0 0
      %4744 = vmatpush1.bf16.xpose.msra.mxu0 0
      %4745 = vmatprep.subr.bf16.mxu0 0
      %4746 = vmatpush1.bf16.xpose.msra.mxu0 0
      %4747 = vmatprep.subr.bf16.mxu0 0
      %4748 = vmatpush1.bf16.xpose.msra.mxu0 0
      %4749 = vmatprep.subr.bf16.mxu0 0
      %4750 = vmatpush1.bf16.xpose.msra.mxu0 0
      %4751 = vmatprep.subr.bf16.mxu0 0
      %4752 = vmatpush1.bf16.xpose.msra.mxu0 0
      %4753 = vmatprep.subr.bf16.mxu0 0
      %4754 = vmatpush1.bf16.xpose.msra.mxu0 0
      %4755 = vmatprep.subr.bf16.mxu0 0
      %4756 = vmatpush1.bf16.xpose.msra.mxu0 0
      %4757 = vmatprep.subr.bf16.mxu0 0
      %4758 = vmatpush1.bf16.xpose.msra.mxu0 %v4741
      %4759 = vmatprep.subr.bf16.mxu0 0
      %4760 = vmatpush2.bf16.xpose.msra.mxu0 0
      %4761 = vmatprep.subr.bf16.mxu0 0
      %4762 = vmatpush2.bf16.xpose.msra.mxu0 0
      %4763 = vmatprep.subr.bf16.mxu0 0
      %4764 = vmatpush2.bf16.xpose.msra.mxu0 0
      %4765 = vmatprep.subr.bf16.mxu0 0
      %4766 = vmatpush2.bf16.xpose.msra.mxu0 0
      %4767 = vmatprep.subr.bf16.mxu0 0
      %4768 = vmatpush2.bf16.xpose.msra.mxu0 0
      %4769 = vmatprep.subr.bf16.mxu0 0
      %4770 = vmatpush2.bf16.xpose.msra.mxu0 0
      %4771 = vmatprep.subr.bf16.mxu0 0
      %4772 = vmatpush2.bf16.xpose.msra.mxu0 0
      %4773 = vmatprep.subr.bf16.mxu0 0
      %4774 = vmatpush2.bf16.xpose.msra.mxu0 0
      %4775 = vmatprep.mubr.bf16.mxu0 0
      %4776 = vmatmul.mubr.bf16.gmra.mxu0 %v4738
      %v4777 = vpop.f32.mrf.mxu0
      %v4778 = vadd.f32 0.0, %v4777
      %v4779 = vpop.f32.mrf.mxu0
      %v4780 = vpop.f32.mrf.mxu0
      %v4781 = vpop.f32.mrf.mxu0
      %4782 = vdwg.mxu0
      %v4784 = vsel %vm4138, %v4088, 0
      %v4787 = vsel %vm4138, %v4120, 0
      %4789 = vmatprep.subr.bf16.mxu0 0
      %4790 = vmatpush1.bf16.xpose.msra.mxu0 0
      %4791 = vmatprep.subr.bf16.mxu0 0
      %4792 = vmatpush1.bf16.xpose.msra.mxu0 0
      %4793 = vmatprep.subr.bf16.mxu0 0
      %4794 = vmatpush1.bf16.xpose.msra.mxu0 0
      %4795 = vmatprep.subr.bf16.mxu0 0
      %4796 = vmatpush1.bf16.xpose.msra.mxu0 0
      %4797 = vmatprep.subr.bf16.mxu0 0
      %4798 = vmatpush1.bf16.xpose.msra.mxu0 0
      %4799 = vmatprep.subr.bf16.mxu0 0
      %4800 = vmatpush1.bf16.xpose.msra.mxu0 0
      %4801 = vmatprep.subr.bf16.mxu0 0
      %4802 = vmatpush1.bf16.xpose.msra.mxu0 0
      %4803 = vmatprep.subr.bf16.mxu0 0
      %4804 = vmatpush1.bf16.xpose.msra.mxu0 %v4787
      %4805 = vmatprep.subr.bf16.mxu0 0
      %4806 = vmatpush2.bf16.xpose.msra.mxu0 0
      %4807 = vmatprep.subr.bf16.mxu0 0
      %4808 = vmatpush2.bf16.xpose.msra.mxu0 0
      %4809 = vmatprep.subr.bf16.mxu0 0
      %4810 = vmatpush2.bf16.xpose.msra.mxu0 0
      %4811 = vmatprep.subr.bf16.mxu0 0
      %4812 = vmatpush2.bf16.xpose.msra.mxu0 0
      %4813 = vmatprep.subr.bf16.mxu0 0
      %4814 = vmatpush2.bf16.xpose.msra.mxu0 0
      %4815 = vmatprep.subr.bf16.mxu0 0
      %4816 = vmatpush2.bf16.xpose.msra.mxu0 0
      %4817 = vmatprep.subr.bf16.mxu0 0
      %4818 = vmatpush2.bf16.xpose.msra.mxu0 0
      %4819 = vmatprep.subr.bf16.mxu0 0
      %4820 = vmatpush2.bf16.xpose.msra.mxu0 0
      %4821 = vmatprep.mubr.bf16.mxu0 0
      %4822 = vmatmul.mubr.bf16.gmra.mxu0 %v4784
      %v4823 = vpop.f32.mrf.mxu0
      %v4824 = vadd.f32 0.0, %v4823
      %v4825 = vpop.f32.mrf.mxu0
      %v4826 = vpop.f32.mrf.mxu0
      %v4827 = vpop.f32.mrf.mxu0
      %4828 = vdwg.mxu0
      %v4830 = vsel %vm4138, %v4089, 0
      %v4833 = vsel %vm4138, %v4121, 0
      %4835 = vmatprep.subr.bf16.mxu0 0
      %4836 = vmatpush1.bf16.xpose.msra.mxu0 0
      %4837 = vmatprep.subr.bf16.mxu0 0
      %4838 = vmatpush1.bf16.xpose.msra.mxu0 0
      %4839 = vmatprep.subr.bf16.mxu0 0
      %4840 = vmatpush1.bf16.xpose.msra.mxu0 0
      %4841 = vmatprep.subr.bf16.mxu0 0
      %4842 = vmatpush1.bf16.xpose.msra.mxu0 0
      %4843 = vmatprep.subr.bf16.mxu0 0
      %4844 = vmatpush1.bf16.xpose.msra.mxu0 0
      %4845 = vmatprep.subr.bf16.mxu0 0
      %4846 = vmatpush1.bf16.xpose.msra.mxu0 0
      %4847 = vmatprep.subr.bf16.mxu0 0
      %4848 = vmatpush1.bf16.xpose.msra.mxu0 0
      %4849 = vmatprep.subr.bf16.mxu0 0
      %4850 = vmatpush1.bf16.xpose.msra.mxu0 %v4833
      %4851 = vmatprep.subr.bf16.mxu0 0
      %4852 = vmatpush2.bf16.xpose.msra.mxu0 0
      %4853 = vmatprep.subr.bf16.mxu0 0
      %4854 = vmatpush2.bf16.xpose.msra.mxu0 0
      %4855 = vmatprep.subr.bf16.mxu0 0
      %4856 = vmatpush2.bf16.xpose.msra.mxu0 0
      %4857 = vmatprep.subr.bf16.mxu0 0
      %4858 = vmatpush2.bf16.xpose.msra.mxu0 0
      %4859 = vmatprep.subr.bf16.mxu0 0
      %4860 = vmatpush2.bf16.xpose.msra.mxu0 0
      %4861 = vmatprep.subr.bf16.mxu0 0
      %4862 = vmatpush2.bf16.xpose.msra.mxu0 0
      %4863 = vmatprep.subr.bf16.mxu0 0
      %4864 = vmatpush2.bf16.xpose.msra.mxu0 0
      %4865 = vmatprep.subr.bf16.mxu0 0
      %4866 = vmatpush2.bf16.xpose.msra.mxu0 0
      %4867 = vmatprep.mubr.bf16.mxu0 0
      %4868 = vmatmul.mubr.bf16.gmra.mxu0 %v4830
      %v4869 = vpop.f32.mrf.mxu0
      %v4870 = vadd.f32 0.0, %v4869
      %v4871 = vpop.f32.mrf.mxu0
      %v4872 = vpop.f32.mrf.mxu0
      %v4873 = vpop.f32.mrf.mxu0
      %4874 = vdwg.mxu0
      %v4876 = vsel %vm4138, %v4090, 0
      %v4879 = vsel %vm4138, %v4122, 0
      %4881 = vmatprep.subr.bf16.mxu0 0
      %4882 = vmatpush1.bf16.xpose.msra.mxu0 0
      %4883 = vmatprep.subr.bf16.mxu0 0
      %4884 = vmatpush1.bf16.xpose.msra.mxu0 0
      %4885 = vmatprep.subr.bf16.mxu0 0
      %4886 = vmatpush1.bf16.xpose.msra.mxu0 0
      %4887 = vmatprep.subr.bf16.mxu0 0
      %4888 = vmatpush1.bf16.xpose.msra.mxu0 0
      %4889 = vmatprep.subr.bf16.mxu0 0
      %4890 = vmatpush1.bf16.xpose.msra.mxu0 0
      %4891 = vmatprep.subr.bf16.mxu0 0
      %4892 = vmatpush1.bf16.xpose.msra.mxu0 0
      %4893 = vmatprep.subr.bf16.mxu0 0
      %4894 = vmatpush1.bf16.xpose.msra.mxu0 0
      %4895 = vmatprep.subr.bf16.mxu0 0
      %4896 = vmatpush1.bf16.xpose.msra.mxu0 %v4879
      %4897 = vmatprep.subr.bf16.mxu0 0
      %4898 = vmatpush2.bf16.xpose.msra.mxu0 0
      %4899 = vmatprep.subr.bf16.mxu0 0
      %4900 = vmatpush2.bf16.xpose.msra.mxu0 0
      %4901 = vmatprep.subr.bf16.mxu0 0
      %4902 = vmatpush2.bf16.xpose.msra.mxu0 0
      %4903 = vmatprep.subr.bf16.mxu0 0
      %4904 = vmatpush2.bf16.xpose.msra.mxu0 0
      %4905 = vmatprep.subr.bf16.mxu0 0
      %4906 = vmatpush2.bf16.xpose.msra.mxu0 0
      %4907 = vmatprep.subr.bf16.mxu0 0
      %4908 = vmatpush2.bf16.xpose.msra.mxu0 0
      %4909 = vmatprep.subr.bf16.mxu0 0
      %4910 = vmatpush2.bf16.xpose.msra.mxu0 0
      %4911 = vmatprep.subr.bf16.mxu0 0
      %4912 = vmatpush2.bf16.xpose.msra.mxu0 0
      %4913 = vmatprep.mubr.bf16.mxu0 0
      %4914 = vmatmul.mubr.bf16.gmra.mxu0 %v4876
      %v4915 = vpop.f32.mrf.mxu0
      %v4916 = vadd.f32 0.0, %v4915
      %v4917 = vpop.f32.mrf.mxu0
      %v4918 = vpop.f32.mrf.mxu0
      %v4919 = vpop.f32.mrf.mxu0
      %4920 = vdwg.mxu0
      %v4922 = vsel %vm4138, %v4091, 0
      %v4925 = vsel %vm4138, %v4123, 0
      %4927 = vmatprep.subr.bf16.mxu0 0
      %4928 = vmatpush1.bf16.xpose.msra.mxu0 0
      %4929 = vmatprep.subr.bf16.mxu0 0
      %4930 = vmatpush1.bf16.xpose.msra.mxu0 0
      %4931 = vmatprep.subr.bf16.mxu0 0
      %4932 = vmatpush1.bf16.xpose.msra.mxu0 0
      %4933 = vmatprep.subr.bf16.mxu0 0
      %4934 = vmatpush1.bf16.xpose.msra.mxu0 0
      %4935 = vmatprep.subr.bf16.mxu0 0
      %4936 = vmatpush1.bf16.xpose.msra.mxu0 0
      %4937 = vmatprep.subr.bf16.mxu0 0
      %4938 = vmatpush1.bf16.xpose.msra.mxu0 0
      %4939 = vmatprep.subr.bf16.mxu0 0
      %4940 = vmatpush1.bf16.xpose.msra.mxu0 0
      %4941 = vmatprep.subr.bf16.mxu0 0
      %4942 = vmatpush1.bf16.xpose.msra.mxu0 %v4925
      %4943 = vmatprep.subr.bf16.mxu0 0
      %4944 = vmatpush2.bf16.xpose.msra.mxu0 0
      %4945 = vmatprep.subr.bf16.mxu0 0
      %4946 = vmatpush2.bf16.xpose.msra.mxu0 0
      %4947 = vmatprep.subr.bf16.mxu0 0
      %4948 = vmatpush2.bf16.xpose.msra.mxu0 0
      %4949 = vmatprep.subr.bf16.mxu0 0
      %4950 = vmatpush2.bf16.xpose.msra.mxu0 0
      %4951 = vmatprep.subr.bf16.mxu0 0
      %4952 = vmatpush2.bf16.xpose.msra.mxu0 0
      %4953 = vmatprep.subr.bf16.mxu0 0
      %4954 = vmatpush2.bf16.xpose.msra.mxu0 0
      %4955 = vmatprep.subr.bf16.mxu0 0
      %4956 = vmatpush2.bf16.xpose.msra.mxu0 0
      %4957 = vmatprep.subr.bf16.mxu0 0
      %4958 = vmatpush2.bf16.xpose.msra.mxu0 0
      %4959 = vmatprep.mubr.bf16.mxu0 0
      %4960 = vmatmul.mubr.bf16.gmra.mxu0 %v4922
      %v4961 = vpop.f32.mrf.mxu0
      %v4962 = vadd.f32 0.0, %v4961
      %v4963 = vpop.f32.mrf.mxu0
      %v4964 = vpop.f32.mrf.mxu0
      %v4965 = vpop.f32.mrf.mxu0
      %4966 = vdwg.mxu0
      %v4968 = vsel %vm4138, %v4092, 0
      %v4971 = vsel %vm4138, %v4124, 0
      %4973 = vmatprep.subr.bf16.mxu0 0
      %4974 = vmatpush1.bf16.xpose.msra.mxu0 0
      %4975 = vmatprep.subr.bf16.mxu0 0
      %4976 = vmatpush1.bf16.xpose.msra.mxu0 0
      %4977 = vmatprep.subr.bf16.mxu0 0
      %4978 = vmatpush1.bf16.xpose.msra.mxu0 0
      %4979 = vmatprep.subr.bf16.mxu0 0
      %4980 = vmatpush1.bf16.xpose.msra.mxu0 0
      %4981 = vmatprep.subr.bf16.mxu0 0
      %4982 = vmatpush1.bf16.xpose.msra.mxu0 0
      %4983 = vmatprep.subr.bf16.mxu0 0
      %4984 = vmatpush1.bf16.xpose.msra.mxu0 0
      %4985 = vmatprep.subr.bf16.mxu0 0
      %4986 = vmatpush1.bf16.xpose.msra.mxu0 0
      %4987 = vmatprep.subr.bf16.mxu0 0
      %4988 = vmatpush1.bf16.xpose.msra.mxu0 %v4971
      %4989 = vmatprep.subr.bf16.mxu0 0
      %4990 = vmatpush2.bf16.xpose.msra.mxu0 0
      %4991 = vmatprep.subr.bf16.mxu0 0
      %4992 = vmatpush2.bf16.xpose.msra.mxu0 0
      %4993 = vmatprep.subr.bf16.mxu0 0
      %4994 = vmatpush2.bf16.xpose.msra.mxu0 0
      %4995 = vmatprep.subr.bf16.mxu0 0
      %4996 = vmatpush2.bf16.xpose.msra.mxu0 0
      %4997 = vmatprep.subr.bf16.mxu0 0
      %4998 = vmatpush2.bf16.xpose.msra.mxu0 0
      %4999 = vmatprep.subr.bf16.mxu0 0
      %5000 = vmatpush2.bf16.xpose.msra.mxu0 0
      %5001 = vmatprep.subr.bf16.mxu0 0
      %5002 = vmatpush2.bf16.xpose.msra.mxu0 0
      %5003 = vmatprep.subr.bf16.mxu0 0
      %5004 = vmatpush2.bf16.xpose.msra.mxu0 0
      %5005 = vmatprep.mubr.bf16.mxu0 0
      %5006 = vmatmul.mubr.bf16.gmra.mxu0 %v4968
      %v5007 = vpop.f32.mrf.mxu0
      %v5008 = vadd.f32 0.0, %v5007
      %v5009 = vpop.f32.mrf.mxu0
      %v5010 = vpop.f32.mrf.mxu0
      %v5011 = vpop.f32.mrf.mxu0
      %5012 = vdwg.mxu0
      %v5014 = vsel %vm4138, %v4093, 0
      %v5017 = vsel %vm4138, %v4125, 0
      %5019 = vmatprep.subr.bf16.mxu0 0
      %5020 = vmatpush1.bf16.xpose.msra.mxu0 0
      %5021 = vmatprep.subr.bf16.mxu0 0
      %5022 = vmatpush1.bf16.xpose.msra.mxu0 0
      %5023 = vmatprep.subr.bf16.mxu0 0
      %5024 = vmatpush1.bf16.xpose.msra.mxu0 0
      %5025 = vmatprep.subr.bf16.mxu0 0
      %5026 = vmatpush1.bf16.xpose.msra.mxu0 0
      %5027 = vmatprep.subr.bf16.mxu0 0
      %5028 = vmatpush1.bf16.xpose.msra.mxu0 0
      %5029 = vmatprep.subr.bf16.mxu0 0
      %5030 = vmatpush1.bf16.xpose.msra.mxu0 0
      %5031 = vmatprep.subr.bf16.mxu0 0
      %5032 = vmatpush1.bf16.xpose.msra.mxu0 0
      %5033 = vmatprep.subr.bf16.mxu0 0
      %5034 = vmatpush1.bf16.xpose.msra.mxu0 %v5017
      %5035 = vmatprep.subr.bf16.mxu0 0
      %5036 = vmatpush2.bf16.xpose.msra.mxu0 0
      %5037 = vmatprep.subr.bf16.mxu0 0
      %5038 = vmatpush2.bf16.xpose.msra.mxu0 0
      %5039 = vmatprep.subr.bf16.mxu0 0
      %5040 = vmatpush2.bf16.xpose.msra.mxu0 0
      %5041 = vmatprep.subr.bf16.mxu0 0
      %5042 = vmatpush2.bf16.xpose.msra.mxu0 0
      %5043 = vmatprep.subr.bf16.mxu0 0
      %5044 = vmatpush2.bf16.xpose.msra.mxu0 0
      %5045 = vmatprep.subr.bf16.mxu0 0
      %5046 = vmatpush2.bf16.xpose.msra.mxu0 0
      %5047 = vmatprep.subr.bf16.mxu0 0
      %5048 = vmatpush2.bf16.xpose.msra.mxu0 0
      %5049 = vmatprep.subr.bf16.mxu0 0
      %5050 = vmatpush2.bf16.xpose.msra.mxu0 0
      %5051 = vmatprep.mubr.bf16.mxu0 0
      %5052 = vmatmul.mubr.bf16.gmra.mxu0 %v5014
      %v5053 = vpop.f32.mrf.mxu0
      %v5054 = vadd.f32 0.0, %v5053
      %v5055 = vpop.f32.mrf.mxu0
      %v5056 = vpop.f32.mrf.mxu0
      %v5057 = vpop.f32.mrf.mxu0
      %5058 = vdwg.mxu0
      %v5060 = vsel %vm4138, %v4094, 0
      %v5063 = vsel %vm4138, %v4126, 0
      %5065 = vmatprep.subr.bf16.mxu0 0
      %5066 = vmatpush1.bf16.xpose.msra.mxu0 0
      %5067 = vmatprep.subr.bf16.mxu0 0
      %5068 = vmatpush1.bf16.xpose.msra.mxu0 0
      %5069 = vmatprep.subr.bf16.mxu0 0
      %5070 = vmatpush1.bf16.xpose.msra.mxu0 0
      %5071 = vmatprep.subr.bf16.mxu0 0
      %5072 = vmatpush1.bf16.xpose.msra.mxu0 0
      %5073 = vmatprep.subr.bf16.mxu0 0
      %5074 = vmatpush1.bf16.xpose.msra.mxu0 0
      %5075 = vmatprep.subr.bf16.mxu0 0
      %5076 = vmatpush1.bf16.xpose.msra.mxu0 0
      %5077 = vmatprep.subr.bf16.mxu0 0
      %5078 = vmatpush1.bf16.xpose.msra.mxu0 0
      %5079 = vmatprep.subr.bf16.mxu0 0
      %5080 = vmatpush1.bf16.xpose.msra.mxu0 %v5063
      %5081 = vmatprep.subr.bf16.mxu0 0
      %5082 = vmatpush2.bf16.xpose.msra.mxu0 0
      %5083 = vmatprep.subr.bf16.mxu0 0
      %5084 = vmatpush2.bf16.xpose.msra.mxu0 0
      %5085 = vmatprep.subr.bf16.mxu0 0
      %5086 = vmatpush2.bf16.xpose.msra.mxu0 0
      %5087 = vmatprep.subr.bf16.mxu0 0
      %5088 = vmatpush2.bf16.xpose.msra.mxu0 0
      %5089 = vmatprep.subr.bf16.mxu0 0
      %5090 = vmatpush2.bf16.xpose.msra.mxu0 0
      %5091 = vmatprep.subr.bf16.mxu0 0
      %5092 = vmatpush2.bf16.xpose.msra.mxu0 0
      %5093 = vmatprep.subr.bf16.mxu0 0
      %5094 = vmatpush2.bf16.xpose.msra.mxu0 0
      %5095 = vmatprep.subr.bf16.mxu0 0
      %5096 = vmatpush2.bf16.xpose.msra.mxu0 0
      %5097 = vmatprep.mubr.bf16.mxu0 0
      %5098 = vmatmul.mubr.bf16.gmra.mxu0 %v5060
      %v5099 = vpop.f32.mrf.mxu0
      %v5100 = vadd.f32 0.0, %v5099
      %v5101 = vpop.f32.mrf.mxu0
      %v5102 = vpop.f32.mrf.mxu0
      %v5103 = vpop.f32.mrf.mxu0
      %5104 = vdwg.mxu0
      %v5106 = vsel %vm4138, %v4095, 0
      %v5109 = vsel %vm4138, %v4127, 0
      %5111 = vmatprep.subr.bf16.mxu0 0
      %5112 = vmatpush1.bf16.xpose.msra.mxu0 0
      %5113 = vmatprep.subr.bf16.mxu0 0
      %5114 = vmatpush1.bf16.xpose.msra.mxu0 0
      %5115 = vmatprep.subr.bf16.mxu0 0
      %5116 = vmatpush1.bf16.xpose.msra.mxu0 0
      %5117 = vmatprep.subr.bf16.mxu0 0
      %5118 = vmatpush1.bf16.xpose.msra.mxu0 0
      %5119 = vmatprep.subr.bf16.mxu0 0
      %5120 = vmatpush1.bf16.xpose.msra.mxu0 0
      %5121 = vmatprep.subr.bf16.mxu0 0
      %5122 = vmatpush1.bf16.xpose.msra.mxu0 0
      %5123 = vmatprep.subr.bf16.mxu0 0
      %5124 = vmatpush1.bf16.xpose.msra.mxu0 0
      %5125 = vmatprep.subr.bf16.mxu0 0
      %5126 = vmatpush1.bf16.xpose.msra.mxu0 %v5109
      %5127 = vmatprep.subr.bf16.mxu0 0
      %5128 = vmatpush2.bf16.xpose.msra.mxu0 0
      %5129 = vmatprep.subr.bf16.mxu0 0
      %5130 = vmatpush2.bf16.xpose.msra.mxu0 0
      %5131 = vmatprep.subr.bf16.mxu0 0
      %5132 = vmatpush2.bf16.xpose.msra.mxu0 0
      %5133 = vmatprep.subr.bf16.mxu0 0
      %5134 = vmatpush2.bf16.xpose.msra.mxu0 0
      %5135 = vmatprep.subr.bf16.mxu0 0
      %5136 = vmatpush2.bf16.xpose.msra.mxu0 0
      %5137 = vmatprep.subr.bf16.mxu0 0
      %5138 = vmatpush2.bf16.xpose.msra.mxu0 0
      %5139 = vmatprep.subr.bf16.mxu0 0
      %5140 = vmatpush2.bf16.xpose.msra.mxu0 0
      %5141 = vmatprep.subr.bf16.mxu0 0
      %5142 = vmatpush2.bf16.xpose.msra.mxu0 0
      %5143 = vmatprep.mubr.bf16.mxu0 0
      %5144 = vmatmul.mubr.bf16.gmra.mxu0 %v5106
      %v5145 = vpop.f32.mrf.mxu0
      %v5146 = vadd.f32 0.0, %v5145
      %v5147 = vpop.f32.mrf.mxu0
      %v5148 = vpop.f32.mrf.mxu0
      %v5149 = vpop.f32.mrf.mxu0
      %5150 = vdwg.mxu0
      %v5152 = vsel %vm4138, %v4096, 0
      %v5155 = vsel %vm4138, %v4128, 0
      %5157 = vmatprep.subr.bf16.mxu0 0
      %5158 = vmatpush1.bf16.xpose.msra.mxu0 0
      %5159 = vmatprep.subr.bf16.mxu0 0
      %5160 = vmatpush1.bf16.xpose.msra.mxu0 0
      %5161 = vmatprep.subr.bf16.mxu0 0
      %5162 = vmatpush1.bf16.xpose.msra.mxu0 0
      %5163 = vmatprep.subr.bf16.mxu0 0
      %5164 = vmatpush1.bf16.xpose.msra.mxu0 0
      %5165 = vmatprep.subr.bf16.mxu0 0
      %5166 = vmatpush1.bf16.xpose.msra.mxu0 0
      %5167 = vmatprep.subr.bf16.mxu0 0
      %5168 = vmatpush1.bf16.xpose.msra.mxu0 0
      %5169 = vmatprep.subr.bf16.mxu0 0
      %5170 = vmatpush1.bf16.xpose.msra.mxu0 0
      %5171 = vmatprep.subr.bf16.mxu0 0
      %5172 = vmatpush1.bf16.xpose.msra.mxu0 %v5155
      %5173 = vmatprep.subr.bf16.mxu0 0
      %5174 = vmatpush2.bf16.xpose.msra.mxu0 0
      %5175 = vmatprep.subr.bf16.mxu0 0
      %5176 = vmatpush2.bf16.xpose.msra.mxu0 0
      %5177 = vmatprep.subr.bf16.mxu0 0
      %5178 = vmatpush2.bf16.xpose.msra.mxu0 0
      %5179 = vmatprep.subr.bf16.mxu0 0
      %5180 = vmatpush2.bf16.xpose.msra.mxu0 0
      %5181 = vmatprep.subr.bf16.mxu0 0
      %5182 = vmatpush2.bf16.xpose.msra.mxu0 0
      %5183 = vmatprep.subr.bf16.mxu0 0
      %5184 = vmatpush2.bf16.xpose.msra.mxu0 0
      %5185 = vmatprep.subr.bf16.mxu0 0
      %5186 = vmatpush2.bf16.xpose.msra.mxu0 0
      %5187 = vmatprep.subr.bf16.mxu0 0
      %5188 = vmatpush2.bf16.xpose.msra.mxu0 0
      %5189 = vmatprep.mubr.bf16.mxu0 0
      %5190 = vmatmul.mubr.bf16.gmra.mxu0 %v5152
      %v5191 = vpop.f32.mrf.mxu0
      %v5192 = vadd.f32 0.0, %v5191
      %v5193 = vpop.f32.mrf.mxu0
      %v5194 = vpop.f32.mrf.mxu0
      %v5195 = vpop.f32.mrf.mxu0
      %5196 = vdwg.mxu0
      %v5198 = vsel %vm4138, %v4097, 0
      %v5201 = vsel %vm4138, %v4129, 0
      %5203 = vmatprep.subr.bf16.mxu0 0
      %5204 = vmatpush1.bf16.xpose.msra.mxu0 0
      %5205 = vmatprep.subr.bf16.mxu0 0
      %5206 = vmatpush1.bf16.xpose.msra.mxu0 0
      %5207 = vmatprep.subr.bf16.mxu0 0
      %5208 = vmatpush1.bf16.xpose.msra.mxu0 0
      %5209 = vmatprep.subr.bf16.mxu0 0
      %5210 = vmatpush1.bf16.xpose.msra.mxu0 0
      %5211 = vmatprep.subr.bf16.mxu0 0
      %5212 = vmatpush1.bf16.xpose.msra.mxu0 0
      %5213 = vmatprep.subr.bf16.mxu0 0
      %5214 = vmatpush1.bf16.xpose.msra.mxu0 0
      %5215 = vmatprep.subr.bf16.mxu0 0
      %5216 = vmatpush1.bf16.xpose.msra.mxu0 0
      %5217 = vmatprep.subr.bf16.mxu0 0
      %5218 = vmatpush1.bf16.xpose.msra.mxu0 %v5201
      %5219 = vmatprep.subr.bf16.mxu0 0
      %5220 = vmatpush2.bf16.xpose.msra.mxu0 0
      %5221 = vmatprep.subr.bf16.mxu0 0
      %5222 = vmatpush2.bf16.xpose.msra.mxu0 0
      %5223 = vmatprep.subr.bf16.mxu0 0
      %5224 = vmatpush2.bf16.xpose.msra.mxu0 0
      %5225 = vmatprep.subr.bf16.mxu0 0
      %5226 = vmatpush2.bf16.xpose.msra.mxu0 0
      %5227 = vmatprep.subr.bf16.mxu0 0
      %5228 = vmatpush2.bf16.xpose.msra.mxu0 0
      %5229 = vmatprep.subr.bf16.mxu0 0
      %5230 = vmatpush2.bf16.xpose.msra.mxu0 0
      %5231 = vmatprep.subr.bf16.mxu0 0
      %5232 = vmatpush2.bf16.xpose.msra.mxu0 0
      %5233 = vmatprep.subr.bf16.mxu0 0
      %5234 = vmatpush2.bf16.xpose.msra.mxu0 0
      %5235 = vmatprep.mubr.bf16.mxu0 0
      %5236 = vmatmul.mubr.bf16.gmra.mxu0 %v5198
      %v5237 = vpop.f32.mrf.mxu0
      %v5238 = vadd.f32 0.0, %v5237
      %v5239 = vpop.f32.mrf.mxu0
      %v5240 = vpop.f32.mrf.mxu0
      %v5241 = vpop.f32.mrf.mxu0
      %5242 = vdwg.mxu0
      %v5244 = vsel %vm4138, %v4098, 0
      %v5247 = vsel %vm4138, %v4130, 0
      %5249 = vmatprep.subr.bf16.mxu0 0
      %5250 = vmatpush1.bf16.xpose.msra.mxu0 0
      %5251 = vmatprep.subr.bf16.mxu0 0
      %5252 = vmatpush1.bf16.xpose.msra.mxu0 0
      %5253 = vmatprep.subr.bf16.mxu0 0
      %5254 = vmatpush1.bf16.xpose.msra.mxu0 0
      %5255 = vmatprep.subr.bf16.mxu0 0
      %5256 = vmatpush1.bf16.xpose.msra.mxu0 0
      %5257 = vmatprep.subr.bf16.mxu0 0
      %5258 = vmatpush1.bf16.xpose.msra.mxu0 0
      %5259 = vmatprep.subr.bf16.mxu0 0
      %5260 = vmatpush1.bf16.xpose.msra.mxu0 0
      %5261 = vmatprep.subr.bf16.mxu0 0
      %5262 = vmatpush1.bf16.xpose.msra.mxu0 0
      %5263 = vmatprep.subr.bf16.mxu0 0
      %5264 = vmatpush1.bf16.xpose.msra.mxu0 %v5247
      %5265 = vmatprep.subr.bf16.mxu0 0
      %5266 = vmatpush2.bf16.xpose.msra.mxu0 0
      %5267 = vmatprep.subr.bf16.mxu0 0
      %5268 = vmatpush2.bf16.xpose.msra.mxu0 0
      %5269 = vmatprep.subr.bf16.mxu0 0
      %5270 = vmatpush2.bf16.xpose.msra.mxu0 0
      %5271 = vmatprep.subr.bf16.mxu0 0
      %5272 = vmatpush2.bf16.xpose.msra.mxu0 0
      %5273 = vmatprep.subr.bf16.mxu0 0
      %5274 = vmatpush2.bf16.xpose.msra.mxu0 0
      %5275 = vmatprep.subr.bf16.mxu0 0
      %5276 = vmatpush2.bf16.xpose.msra.mxu0 0
      %5277 = vmatprep.subr.bf16.mxu0 0
      %5278 = vmatpush2.bf16.xpose.msra.mxu0 0
      %5279 = vmatprep.subr.bf16.mxu0 0
      %5280 = vmatpush2.bf16.xpose.msra.mxu0 0
      %5281 = vmatprep.mubr.bf16.mxu0 0
      %5282 = vmatmul.mubr.bf16.gmra.mxu0 %v5244
      %v5283 = vpop.f32.mrf.mxu0
      %v5284 = vadd.f32 0.0, %v5283
      %v5285 = vpop.f32.mrf.mxu0
      %v5286 = vpop.f32.mrf.mxu0
      %v5287 = vpop.f32.mrf.mxu0
      %5288 = vdwg.mxu0
      %v5290 = vsel %vm4138, %v4099, 0
      %v5293 = vsel %vm4138, %v4131, 0
      %5295 = vmatprep.subr.bf16.mxu0 0
      %5296 = vmatpush1.bf16.xpose.msra.mxu0 0
      %5297 = vmatprep.subr.bf16.mxu0 0
      %5298 = vmatpush1.bf16.xpose.msra.mxu0 0
      %5299 = vmatprep.subr.bf16.mxu0 0
      %5300 = vmatpush1.bf16.xpose.msra.mxu0 0
      %5301 = vmatprep.subr.bf16.mxu0 0
      %5302 = vmatpush1.bf16.xpose.msra.mxu0 0
      %5303 = vmatprep.subr.bf16.mxu0 0
      %5304 = vmatpush1.bf16.xpose.msra.mxu0 0
      %5305 = vmatprep.subr.bf16.mxu0 0
      %5306 = vmatpush1.bf16.xpose.msra.mxu0 0
      %5307 = vmatprep.subr.bf16.mxu0 0
      %5308 = vmatpush1.bf16.xpose.msra.mxu0 0
      %5309 = vmatprep.subr.bf16.mxu0 0
      %5310 = vmatpush1.bf16.xpose.msra.mxu0 %v5293
      %5311 = vmatprep.subr.bf16.mxu0 0
      %5312 = vmatpush2.bf16.xpose.msra.mxu0 0
      %5313 = vmatprep.subr.bf16.mxu0 0
      %5314 = vmatpush2.bf16.xpose.msra.mxu0 0
      %5315 = vmatprep.subr.bf16.mxu0 0
      %5316 = vmatpush2.bf16.xpose.msra.mxu0 0
      %5317 = vmatprep.subr.bf16.mxu0 0
      %5318 = vmatpush2.bf16.xpose.msra.mxu0 0
      %5319 = vmatprep.subr.bf16.mxu0 0
      %5320 = vmatpush2.bf16.xpose.msra.mxu0 0
      %5321 = vmatprep.subr.bf16.mxu0 0
      %5322 = vmatpush2.bf16.xpose.msra.mxu0 0
      %5323 = vmatprep.subr.bf16.mxu0 0
      %5324 = vmatpush2.bf16.xpose.msra.mxu0 0
      %5325 = vmatprep.subr.bf16.mxu0 0
      %5326 = vmatpush2.bf16.xpose.msra.mxu0 0
      %5327 = vmatprep.mubr.bf16.mxu0 0
      %5328 = vmatmul.mubr.bf16.gmra.mxu0 %v5290
      %v5329 = vpop.f32.mrf.mxu0
      %v5330 = vadd.f32 0.0, %v5329
      %v5331 = vpop.f32.mrf.mxu0
      %v5332 = vpop.f32.mrf.mxu0
      %v5333 = vpop.f32.mrf.mxu0
      %5334 = vdwg.mxu0
      %v5336 = vsel %vm4138, %v4100, 0
      %v5339 = vsel %vm4138, %v4132, 0
      %5341 = vmatprep.subr.bf16.mxu0 0
      %5342 = vmatpush1.bf16.xpose.msra.mxu0 0
      %5343 = vmatprep.subr.bf16.mxu0 0
      %5344 = vmatpush1.bf16.xpose.msra.mxu0 0
      %5345 = vmatprep.subr.bf16.mxu0 0
      %5346 = vmatpush1.bf16.xpose.msra.mxu0 0
      %5347 = vmatprep.subr.bf16.mxu0 0
      %5348 = vmatpush1.bf16.xpose.msra.mxu0 0
      %5349 = vmatprep.subr.bf16.mxu0 0
      %5350 = vmatpush1.bf16.xpose.msra.mxu0 0
      %5351 = vmatprep.subr.bf16.mxu0 0
      %5352 = vmatpush1.bf16.xpose.msra.mxu0 0
      %5353 = vmatprep.subr.bf16.mxu0 0
      %5354 = vmatpush1.bf16.xpose.msra.mxu0 0
      %5355 = vmatprep.subr.bf16.mxu0 0
      %5356 = vmatpush1.bf16.xpose.msra.mxu0 %v5339
      %5357 = vmatprep.subr.bf16.mxu0 0
      %5358 = vmatpush2.bf16.xpose.msra.mxu0 0
      %5359 = vmatprep.subr.bf16.mxu0 0
      %5360 = vmatpush2.bf16.xpose.msra.mxu0 0
      %5361 = vmatprep.subr.bf16.mxu0 0
      %5362 = vmatpush2.bf16.xpose.msra.mxu0 0
      %5363 = vmatprep.subr.bf16.mxu0 0
      %5364 = vmatpush2.bf16.xpose.msra.mxu0 0
      %5365 = vmatprep.subr.bf16.mxu0 0
      %5366 = vmatpush2.bf16.xpose.msra.mxu0 0
      %5367 = vmatprep.subr.bf16.mxu0 0
      %5368 = vmatpush2.bf16.xpose.msra.mxu0 0
      %5369 = vmatprep.subr.bf16.mxu0 0
      %5370 = vmatpush2.bf16.xpose.msra.mxu0 0
      %5371 = vmatprep.subr.bf16.mxu0 0
      %5372 = vmatpush2.bf16.xpose.msra.mxu0 0
      %5373 = vmatprep.mubr.bf16.mxu0 0
      %5374 = vmatmul.mubr.bf16.gmra.mxu0 %v5336
      %v5375 = vpop.f32.mrf.mxu0
      %v5376 = vadd.f32 0.0, %v5375
      %v5377 = vpop.f32.mrf.mxu0
      %v5378 = vpop.f32.mrf.mxu0
      %v5379 = vpop.f32.mrf.mxu0
      %5380 = vdwg.mxu0
      %v5382 = vsel %vm4138, %v4101, 0
      %v5385 = vsel %vm4138, %v4133, 0
      %5387 = vmatprep.subr.bf16.mxu0 0
      %5388 = vmatpush1.bf16.xpose.msra.mxu0 0
      %5389 = vmatprep.subr.bf16.mxu0 0
      %5390 = vmatpush1.bf16.xpose.msra.mxu0 0
      %5391 = vmatprep.subr.bf16.mxu0 0
      %5392 = vmatpush1.bf16.xpose.msra.mxu0 0
      %5393 = vmatprep.subr.bf16.mxu0 0
      %5394 = vmatpush1.bf16.xpose.msra.mxu0 0
      %5395 = vmatprep.subr.bf16.mxu0 0
      %5396 = vmatpush1.bf16.xpose.msra.mxu0 0
      %5397 = vmatprep.subr.bf16.mxu0 0
      %5398 = vmatpush1.bf16.xpose.msra.mxu0 0
      %5399 = vmatprep.subr.bf16.mxu0 0
      %5400 = vmatpush1.bf16.xpose.msra.mxu0 0
      %5401 = vmatprep.subr.bf16.mxu0 0
      %5402 = vmatpush1.bf16.xpose.msra.mxu0 %v5385
      %5403 = vmatprep.subr.bf16.mxu0 0
      %5404 = vmatpush2.bf16.xpose.msra.mxu0 0
      %5405 = vmatprep.subr.bf16.mxu0 0
      %5406 = vmatpush2.bf16.xpose.msra.mxu0 0
      %5407 = vmatprep.subr.bf16.mxu0 0
      %5408 = vmatpush2.bf16.xpose.msra.mxu0 0
      %5409 = vmatprep.subr.bf16.mxu0 0
      %5410 = vmatpush2.bf16.xpose.msra.mxu0 0
      %5411 = vmatprep.subr.bf16.mxu0 0
      %5412 = vmatpush2.bf16.xpose.msra.mxu0 0
      %5413 = vmatprep.subr.bf16.mxu0 0
      %5414 = vmatpush2.bf16.xpose.msra.mxu0 0
      %5415 = vmatprep.subr.bf16.mxu0 0
      %5416 = vmatpush2.bf16.xpose.msra.mxu0 0
      %5417 = vmatprep.subr.bf16.mxu0 0
      %5418 = vmatpush2.bf16.xpose.msra.mxu0 0
      %5419 = vmatprep.mubr.bf16.mxu0 0
      %5420 = vmatmul.mubr.bf16.gmra.mxu0 %v5382
      %v5421 = vpop.f32.mrf.mxu0
      %v5422 = vadd.f32 0.0, %v5421
      %v5423 = vpop.f32.mrf.mxu0
      %v5424 = vpop.f32.mrf.mxu0
      %v5425 = vpop.f32.mrf.mxu0
      %5426 = vdwg.mxu0
      %v5428 = vsel %vm4138, %v4102, 0
      %v5431 = vsel %vm4138, %v4134, 0
      %5433 = vmatprep.subr.bf16.mxu0 0
      %5434 = vmatpush1.bf16.xpose.msra.mxu0 0
      %5435 = vmatprep.subr.bf16.mxu0 0
      %5436 = vmatpush1.bf16.xpose.msra.mxu0 0
      %5437 = vmatprep.subr.bf16.mxu0 0
      %5438 = vmatpush1.bf16.xpose.msra.mxu0 0
      %5439 = vmatprep.subr.bf16.mxu0 0
      %5440 = vmatpush1.bf16.xpose.msra.mxu0 0
      %5441 = vmatprep.subr.bf16.mxu0 0
      %5442 = vmatpush1.bf16.xpose.msra.mxu0 0
      %5443 = vmatprep.subr.bf16.mxu0 0
      %5444 = vmatpush1.bf16.xpose.msra.mxu0 0
      %5445 = vmatprep.subr.bf16.mxu0 0
      %5446 = vmatpush1.bf16.xpose.msra.mxu0 0
      %5447 = vmatprep.subr.bf16.mxu0 0
      %5448 = vmatpush1.bf16.xpose.msra.mxu0 %v5431
      %5449 = vmatprep.subr.bf16.mxu0 0
      %5450 = vmatpush2.bf16.xpose.msra.mxu0 0
      %5451 = vmatprep.subr.bf16.mxu0 0
      %5452 = vmatpush2.bf16.xpose.msra.mxu0 0
      %5453 = vmatprep.subr.bf16.mxu0 0
      %5454 = vmatpush2.bf16.xpose.msra.mxu0 0
      %5455 = vmatprep.subr.bf16.mxu0 0
      %5456 = vmatpush2.bf16.xpose.msra.mxu0 0
      %5457 = vmatprep.subr.bf16.mxu0 0
      %5458 = vmatpush2.bf16.xpose.msra.mxu0 0
      %5459 = vmatprep.subr.bf16.mxu0 0
      %5460 = vmatpush2.bf16.xpose.msra.mxu0 0
      %5461 = vmatprep.subr.bf16.mxu0 0
      %5462 = vmatpush2.bf16.xpose.msra.mxu0 0
      %5463 = vmatprep.subr.bf16.mxu0 0
      %5464 = vmatpush2.bf16.xpose.msra.mxu0 0
      %5465 = vmatprep.mubr.bf16.mxu0 0
      %5466 = vmatmul.mubr.bf16.gmra.mxu0 %v5428
      %v5467 = vpop.f32.mrf.mxu0
      %v5468 = vadd.f32 0.0, %v5467
      %v5469 = vpop.f32.mrf.mxu0
      %v5470 = vpop.f32.mrf.mxu0
      %v5471 = vpop.f32.mrf.mxu0
      %5472 = vdwg.mxu0
      %v5474 = vsel %vm4138, %v4103, 0
      %v5477 = vsel %vm4138, %v4135, 0
      %5479 = vmatprep.subr.bf16.mxu0 0
      %5480 = vmatpush1.bf16.xpose.msra.mxu0 0
      %5481 = vmatprep.subr.bf16.mxu0 0
      %5482 = vmatpush1.bf16.xpose.msra.mxu0 0
      %5483 = vmatprep.subr.bf16.mxu0 0
      %5484 = vmatpush1.bf16.xpose.msra.mxu0 0
      %5485 = vmatprep.subr.bf16.mxu0 0
      %5486 = vmatpush1.bf16.xpose.msra.mxu0 0
      %5487 = vmatprep.subr.bf16.mxu0 0
      %5488 = vmatpush1.bf16.xpose.msra.mxu0 0
      %5489 = vmatprep.subr.bf16.mxu0 0
      %5490 = vmatpush1.bf16.xpose.msra.mxu0 0
      %5491 = vmatprep.subr.bf16.mxu0 0
      %5492 = vmatpush1.bf16.xpose.msra.mxu0 0
      %5493 = vmatprep.subr.bf16.mxu0 0
      %5494 = vmatpush1.bf16.xpose.msra.mxu0 %v5477
      %5495 = vmatprep.subr.bf16.mxu0 0
      %5496 = vmatpush2.bf16.xpose.msra.mxu0 0
      %5497 = vmatprep.subr.bf16.mxu0 0
      %5498 = vmatpush2.bf16.xpose.msra.mxu0 0
      %5499 = vmatprep.subr.bf16.mxu0 0
      %5500 = vmatpush2.bf16.xpose.msra.mxu0 0
      %5501 = vmatprep.subr.bf16.mxu0 0
      %5502 = vmatpush2.bf16.xpose.msra.mxu0 0
      %5503 = vmatprep.subr.bf16.mxu0 0
      %5504 = vmatpush2.bf16.xpose.msra.mxu0 0
      %5505 = vmatprep.subr.bf16.mxu0 0
      %5506 = vmatpush2.bf16.xpose.msra.mxu0 0
      %5507 = vmatprep.subr.bf16.mxu0 0
      %5508 = vmatpush2.bf16.xpose.msra.mxu0 0
      %5509 = vmatprep.subr.bf16.mxu0 0
      %5510 = vmatpush2.bf16.xpose.msra.mxu0 0
      %5511 = vmatprep.mubr.bf16.mxu0 0
      %5512 = vmatmul.mubr.bf16.gmra.mxu0 %v5474
      %v5513 = vpop.f32.mrf.mxu0
      %v5514 = vadd.f32 0.0, %v5513
      %v5515 = vpop.f32.mrf.mxu0
      %v5516 = vpop.f32.mrf.mxu0
      %v5517 = vpop.f32.mrf.mxu0
      %5518 = vdwg.mxu0
      %v5520 = vsel %vm4138, %v4104, 0
      %v5523 = vsel %vm4138, %v4136, 0
      %5525 = vmatprep.subr.bf16.mxu0 0
      %5526 = vmatpush1.bf16.xpose.msra.mxu0 0
      %5527 = vmatprep.subr.bf16.mxu0 0
      %5528 = vmatpush1.bf16.xpose.msra.mxu0 0
      %5529 = vmatprep.subr.bf16.mxu0 0
      %5530 = vmatpush1.bf16.xpose.msra.mxu0 0
      %5531 = vmatprep.subr.bf16.mxu0 0
      %5532 = vmatpush1.bf16.xpose.msra.mxu0 0
      %5533 = vmatprep.subr.bf16.mxu0 0
      %5534 = vmatpush1.bf16.xpose.msra.mxu0 0
      %5535 = vmatprep.subr.bf16.mxu0 0
      %5536 = vmatpush1.bf16.xpose.msra.mxu0 0
      %5537 = vmatprep.subr.bf16.mxu0 0
      %5538 = vmatpush1.bf16.xpose.msra.mxu0 0
      %5539 = vmatprep.subr.bf16.mxu0 0
      %5540 = vmatpush1.bf16.xpose.msra.mxu0 %v5523
      %5541 = vmatprep.subr.bf16.mxu0 0
      %5542 = vmatpush2.bf16.xpose.msra.mxu0 0
      %5543 = vmatprep.subr.bf16.mxu0 0
      %5544 = vmatpush2.bf16.xpose.msra.mxu0 0
      %5545 = vmatprep.subr.bf16.mxu0 0
      %5546 = vmatpush2.bf16.xpose.msra.mxu0 0
      %5547 = vmatprep.subr.bf16.mxu0 0
      %5548 = vmatpush2.bf16.xpose.msra.mxu0 0
      %5549 = vmatprep.subr.bf16.mxu0 0
      %5550 = vmatpush2.bf16.xpose.msra.mxu0 0
      %5551 = vmatprep.subr.bf16.mxu0 0
      %5552 = vmatpush2.bf16.xpose.msra.mxu0 0
      %5553 = vmatprep.subr.bf16.mxu0 0
      %5554 = vmatpush2.bf16.xpose.msra.mxu0 0
      %5555 = vmatprep.subr.bf16.mxu0 0
      %5556 = vmatpush2.bf16.xpose.msra.mxu0 0
      %5557 = vmatprep.mubr.bf16.mxu0 0
      %5558 = vmatmul.mubr.bf16.gmra.mxu0 %v5520
      %v5559 = vpop.f32.mrf.mxu0
      %v5560 = vadd.f32 0.0, %v5559
      %v5561 = vpop.f32.mrf.mxu0
      %v5562 = vpop.f32.mrf.mxu0
      %v5563 = vpop.f32.mrf.mxu0
      %5564 = vdwg.mxu0
      %v5566 = vsel %vm4138, %v4105, 0
      %v5569 = vsel %vm4138, %v4137, 0
      %5571 = vmatprep.subr.bf16.mxu0 0
      %5572 = vmatpush1.bf16.xpose.msra.mxu0 0
      %5573 = vmatprep.subr.bf16.mxu0 0
      %5574 = vmatpush1.bf16.xpose.msra.mxu0 0
      %5575 = vmatprep.subr.bf16.mxu0 0
      %5576 = vmatpush1.bf16.xpose.msra.mxu0 0
      %5577 = vmatprep.subr.bf16.mxu0 0
      %5578 = vmatpush1.bf16.xpose.msra.mxu0 0
      %5579 = vmatprep.subr.bf16.mxu0 0
      %5580 = vmatpush1.bf16.xpose.msra.mxu0 0
      %5581 = vmatprep.subr.bf16.mxu0 0
      %5582 = vmatpush1.bf16.xpose.msra.mxu0 0
      %5583 = vmatprep.subr.bf16.mxu0 0
      %5584 = vmatpush1.bf16.xpose.msra.mxu0 0
      %5585 = vmatprep.subr.bf16.mxu0 0
      %5586 = vmatpush1.bf16.xpose.msra.mxu0 %v5569
      %5587 = vmatprep.subr.bf16.mxu0 0
      %5588 = vmatpush2.bf16.xpose.msra.mxu0 0
      %5589 = vmatprep.subr.bf16.mxu0 0
      %5590 = vmatpush2.bf16.xpose.msra.mxu0 0
      %5591 = vmatprep.subr.bf16.mxu0 0
      %5592 = vmatpush2.bf16.xpose.msra.mxu0 0
      %5593 = vmatprep.subr.bf16.mxu0 0
      %5594 = vmatpush2.bf16.xpose.msra.mxu0 0
      %5595 = vmatprep.subr.bf16.mxu0 0
      %5596 = vmatpush2.bf16.xpose.msra.mxu0 0
      %5597 = vmatprep.subr.bf16.mxu0 0
      %5598 = vmatpush2.bf16.xpose.msra.mxu0 0
      %5599 = vmatprep.subr.bf16.mxu0 0
      %5600 = vmatpush2.bf16.xpose.msra.mxu0 0
      %5601 = vmatprep.subr.bf16.mxu0 0
      %5602 = vmatpush2.bf16.xpose.msra.mxu0 0
      %5603 = vmatprep.mubr.bf16.mxu0 0
      %5604 = vmatmul.mubr.bf16.gmra.mxu0 %v5566
      %v5605 = vpop.f32.mrf.mxu0
      %v5606 = vadd.f32 0.0, %v5605
      %v5607 = vpop.f32.mrf.mxu0
      %v5608 = vpop.f32.mrf.mxu0
      %v5609 = vpop.f32.mrf.mxu0
      %5610 = vdwg.mxu0
      %v5611 = vmul.f32 %v4180, 0.5
      %v5612 = vmul.f32 %v4226, 0.5
      %v5613 = vmul.f32 %v4272, 0.5
      %v5614 = vmul.f32 %v4318, 0.5
      %v5615 = vmul.f32 %v4364, 0.5
      %v5616 = vmul.f32 %v4410, 0.5
      %v5617 = vmul.f32 %v4456, 0.5
      %v5618 = vmul.f32 %v4502, 0.5
      %v5619 = vmul.f32 %v4548, 0.5
      %v5620 = vmul.f32 %v4594, 0.5
      %v5621 = vmul.f32 %v4640, 0.5
      %v5622 = vmul.f32 %v4686, 0.5
      %v5623 = vmul.f32 %v4732, 0.5
      %v5624 = vmul.f32 %v4778, 0.5
      %v5625 = vmul.f32 %v4824, 0.5
      %v5626 = vmul.f32 %v4870, 0.5
      %v5627 = vmul.f32 %v4916, 0.5
      %v5628 = vmul.f32 %v4962, 0.5
      %v5629 = vmul.f32 %v5008, 0.5
      %v5630 = vmul.f32 %v5054, 0.5
      %v5631 = vmul.f32 %v5100, 0.5
      %v5632 = vmul.f32 %v5146, 0.5
      %v5633 = vmul.f32 %v5192, 0.5
      %v5634 = vmul.f32 %v5238, 0.5
      %v5635 = vmul.f32 %v5284, 0.5
      %v5636 = vmul.f32 %v5330, 0.5
      %v5637 = vmul.f32 %v5376, 0.5
      %v5638 = vmul.f32 %v5422, 0.5
      %v5639 = vmul.f32 %v5468, 0.5
      %v5640 = vmul.f32 %v5514, 0.5
      %v5641 = vmul.f32 %v5560, 0.5
      %v5642 = vmul.f32 %v5606, 0.5
      %vm5643 = vcmask 64512
      %v5644 = vsel %vm5643, %v5611, -inf
      %5645 = vmax.xlane.f32.xlu0 %v5644
      %v5646 = vpop.xlane.xlu0 %5645
      %v5647 = vsel %vm5643, %v5612, -inf
      %5648 = vmax.xlane.f32.xlu0 %v5647
      %v5649 = vpop.xlane.xlu0 %5648
      %v5650 = vsel %vm5643, %v5613, -inf
      %5651 = vmax.xlane.f32.xlu0 %v5650
      %v5652 = vpop.xlane.xlu0 %5651
      %v5653 = vsel %vm5643, %v5614, -inf
      %5654 = vmax.xlane.f32.xlu0 %v5653
      %v5655 = vpop.xlane.xlu0 %5654
      %v5656 = vsel %vm5643, %v5615, -inf
      %5657 = vmax.xlane.f32.xlu0 %v5656
      %v5658 = vpop.xlane.xlu0 %5657
      %v5659 = vsel %vm5643, %v5616, -inf
      %5660 = vmax.xlane.f32.xlu0 %v5659
      %v5661 = vpop.xlane.xlu0 %5660
      %v5662 = vsel %vm5643, %v5617, -inf
      %5663 = vmax.xlane.f32.xlu0 %v5662
      %v5664 = vpop.xlane.xlu0 %5663
      %v5665 = vsel %vm5643, %v5618, -inf
      %5666 = vmax.xlane.f32.xlu0 %v5665
      %v5667 = vpop.xlane.xlu0 %5666
      %v5668 = vsel %vm5643, %v5619, -inf
      %5669 = vmax.xlane.f32.xlu0 %v5668
      %v5670 = vpop.xlane.xlu0 %5669
      %v5671 = vsel %vm5643, %v5620, -inf
      %5672 = vmax.xlane.f32.xlu0 %v5671
      %v5673 = vpop.xlane.xlu0 %5672
      %v5674 = vsel %vm5643, %v5621, -inf
      %5675 = vmax.xlane.f32.xlu0 %v5674
      %v5676 = vpop.xlane.xlu0 %5675
      %v5677 = vsel %vm5643, %v5622, -inf
      %5678 = vmax.xlane.f32.xlu0 %v5677
      %v5679 = vpop.xlane.xlu0 %5678
      %v5680 = vsel %vm5643, %v5623, -inf
      %5681 = vmax.xlane.f32.xlu0 %v5680
      %v5682 = vpop.xlane.xlu0 %5681
      %v5683 = vsel %vm5643, %v5624, -inf
      %5684 = vmax.xlane.f32.xlu0 %v5683
      %v5685 = vpop.xlane.xlu0 %5684
      %v5686 = vsel %vm5643, %v5625, -inf
      %5687 = vmax.xlane.f32.xlu0 %v5686
      %v5688 = vpop.xlane.xlu0 %5687
      %v5689 = vsel %vm5643, %v5626, -inf
      %5690 = vmax.xlane.f32.xlu0 %v5689
      %v5691 = vpop.xlane.xlu0 %5690
      %v5692 = vsel %vm5643, %v5627, -inf
      %5693 = vmax.xlane.f32.xlu0 %v5692
      %v5694 = vpop.xlane.xlu0 %5693
      %v5695 = vsel %vm5643, %v5628, -inf
      %5696 = vmax.xlane.f32.xlu0 %v5695
      %v5697 = vpop.xlane.xlu0 %5696
      %v5698 = vsel %vm5643, %v5629, -inf
      %5699 = vmax.xlane.f32.xlu0 %v5698
      %v5700 = vpop.xlane.xlu0 %5699
      %v5701 = vsel %vm5643, %v5630, -inf
      %5702 = vmax.xlane.f32.xlu0 %v5701
      %v5703 = vpop.xlane.xlu0 %5702
      %v5704 = vsel %vm5643, %v5631, -inf
      %5705 = vmax.xlane.f32.xlu0 %v5704
      %v5706 = vpop.xlane.xlu0 %5705
      %v5707 = vsel %vm5643, %v5632, -inf
      %5708 = vmax.xlane.f32.xlu0 %v5707
      %v5709 = vpop.xlane.xlu0 %5708
      %v5710 = vsel %vm5643, %v5633, -inf
      %5711 = vmax.xlane.f32.xlu0 %v5710
      %v5712 = vpop.xlane.xlu0 %5711
      %v5713 = vsel %vm5643, %v5634, -inf
      %5714 = vmax.xlane.f32.xlu0 %v5713
      %v5715 = vpop.xlane.xlu0 %5714
      %v5716 = vsel %vm5643, %v5635, -inf
      %5717 = vmax.xlane.f32.xlu0 %v5716
      %v5718 = vpop.xlane.xlu0 %5717
      %v5719 = vsel %vm5643, %v5636, -inf
      %5720 = vmax.xlane.f32.xlu0 %v5719
      %v5721 = vpop.xlane.xlu0 %5720
      %v5722 = vsel %vm5643, %v5637, -inf
      %5723 = vmax.xlane.f32.xlu0 %v5722
      %v5724 = vpop.xlane.xlu0 %5723
      %v5725 = vsel %vm5643, %v5638, -inf
      %5726 = vmax.xlane.f32.xlu0 %v5725
      %v5727 = vpop.xlane.xlu0 %5726
      %v5728 = vsel %vm5643, %v5639, -inf
      %5729 = vmax.xlane.f32.xlu0 %v5728
      %v5730 = vpop.xlane.xlu0 %5729
      %v5731 = vsel %vm5643, %v5640, -inf
      %5732 = vmax.xlane.f32.xlu0 %v5731
      %v5733 = vpop.xlane.xlu0 %5732
      %v5734 = vsel %vm5643, %v5641, -inf
      %5735 = vmax.xlane.f32.xlu0 %v5734
      %v5736 = vpop.xlane.xlu0 %5735
      %v5737 = vsel %vm5643, %v5642, -inf
      %5738 = vmax.xlane.f32.xlu0 %v5737
      %v5739 = vpop.xlane.xlu0 %5738
      %v5740 = vsub.f32 %v5611, %v5646
      %v5741 = vsub.f32 %v5612, %v5649
      %v5742 = vsub.f32 %v5613, %v5652
      %v5743 = vsub.f32 %v5614, %v5655
      %v5744 = vsub.f32 %v5615, %v5658
      %v5745 = vsub.f32 %v5616, %v5661
      %v5746 = vsub.f32 %v5617, %v5664
      %v5747 = vsub.f32 %v5618, %v5667
      %v5748 = vsub.f32 %v5619, %v5670
      %v5749 = vsub.f32 %v5620, %v5673
      %v5750 = vsub.f32 %v5621, %v5676
      %v5751 = vsub.f32 %v5622, %v5679
      %v5752 = vsub.f32 %v5623, %v5682
      %v5753 = vsub.f32 %v5624, %v5685
      %v5754 = vsub.f32 %v5625, %v5688
      %v5755 = vsub.f32 %v5626, %v5691
      %v5756 = vsub.f32 %v5627, %v5694
      %v5757 = vsub.f32 %v5628, %v5697
      %v5758 = vsub.f32 %v5629, %v5700
      %v5759 = vsub.f32 %v5630, %v5703
      %v5760 = vsub.f32 %v5631, %v5706
      %v5761 = vsub.f32 %v5632, %v5709
      %v5762 = vsub.f32 %v5633, %v5712
      %v5763 = vsub.f32 %v5634, %v5715
      %v5764 = vsub.f32 %v5635, %v5718
      %v5765 = vsub.f32 %v5636, %v5721
      %v5766 = vsub.f32 %v5637, %v5724
      %v5767 = vsub.f32 %v5638, %v5727
      %v5768 = vsub.f32 %v5639, %v5730
      %v5769 = vsub.f32 %v5640, %v5733
      %v5770 = vsub.f32 %v5641, %v5736
      %v5771 = vsub.f32 %v5642, %v5739
      %v5772 = vmul.f32 %v5740, 1.442695
      %v5773 = vpow.pop %v5772
      %v5774 = vmul.f32 %v5741, 1.442695
      %v5775 = vpow.pop %v5774
      %v5776 = vmul.f32 %v5742, 1.442695
      %v5777 = vpow.pop %v5776
      %v5778 = vmul.f32 %v5743, 1.442695
      %v5779 = vpow.pop %v5778
      %v5780 = vmul.f32 %v5744, 1.442695
      %v5781 = vpow.pop %v5780
      %v5782 = vmul.f32 %v5745, 1.442695
      %v5783 = vpow.pop %v5782
      %v5784 = vmul.f32 %v5746, 1.442695
      %v5785 = vpow.pop %v5784
      %v5786 = vmul.f32 %v5747, 1.442695
      %v5787 = vpow.pop %v5786
      %v5788 = vmul.f32 %v5748, 1.442695
      %v5789 = vpow.pop %v5788
      %v5790 = vmul.f32 %v5749, 1.442695
      %v5791 = vpow.pop %v5790
      %v5792 = vmul.f32 %v5750, 1.442695
      %v5793 = vpow.pop %v5792
      %v5794 = vmul.f32 %v5751, 1.442695
      %v5795 = vpow.pop %v5794
      %v5796 = vmul.f32 %v5752, 1.442695
      %v5797 = vpow.pop %v5796
      %v5798 = vmul.f32 %v5753, 1.442695
      %v5799 = vpow.pop %v5798
      %v5800 = vmul.f32 %v5754, 1.442695
      %v5801 = vpow.pop %v5800
      %v5802 = vmul.f32 %v5755, 1.442695
      %v5803 = vpow.pop %v5802
      %v5804 = vmul.f32 %v5756, 1.442695
      %v5805 = vpow.pop %v5804
      %v5806 = vmul.f32 %v5757, 1.442695
      %v5807 = vpow.pop %v5806
      %v5808 = vmul.f32 %v5758, 1.442695
      %v5809 = vpow.pop %v5808
      %v5810 = vmul.f32 %v5759, 1.442695
      %v5811 = vpow.pop %v5810
      %v5812 = vmul.f32 %v5760, 1.442695
      %v5813 = vpow.pop %v5812
      %v5814 = vmul.f32 %v5761, 1.442695
      %v5815 = vpow.pop %v5814
      %v5816 = vmul.f32 %v5762, 1.442695
      %v5817 = vpow.pop %v5816
      %v5818 = vmul.f32 %v5763, 1.442695
      %v5819 = vpow.pop %v5818
      %v5820 = vmul.f32 %v5764, 1.442695
      %v5821 = vpow.pop %v5820
      %v5822 = vmul.f32 %v5765, 1.442695
      %v5823 = vpow.pop %v5822
      %v5824 = vmul.f32 %v5766, 1.442695
      %v5825 = vpow.pop %v5824
      %v5826 = vmul.f32 %v5767, 1.442695
      %v5827 = vpow.pop %v5826
      %v5828 = vmul.f32 %v5768, 1.442695
      %v5829 = vpow.pop %v5828
      %v5830 = vmul.f32 %v5769, 1.442695
      %v5831 = vpow.pop %v5830
      %v5832 = vmul.f32 %v5770, 1.442695
      %v5833 = vpow.pop %v5832
      %v5834 = vmul.f32 %v5771, 1.442695
      %v5835 = vpow.pop %v5834
      %v5836 = vsel %vm5643, %v5773, 0.0
      %5837 = vadd.xlane.f32.xlu0 %v5836
      %v5838 = vpop.xlane.xlu0 %5837
      %v5839 = vsel %vm5643, %v5775, 0.0
      %5840 = vadd.xlane.f32.xlu0 %v5839
      %v5841 = vpop.xlane.xlu0 %5840
      %v5842 = vsel %vm5643, %v5777, 0.0
      %5843 = vadd.xlane.f32.xlu0 %v5842
      %v5844 = vpop.xlane.xlu0 %5843
      %v5845 = vsel %vm5643, %v5779, 0.0
      %5846 = vadd.xlane.f32.xlu0 %v5845
      %v5847 = vpop.xlane.xlu0 %5846
      %v5848 = vsel %vm5643, %v5781, 0.0
      %5849 = vadd.xlane.f32.xlu0 %v5848
      %v5850 = vpop.xlane.xlu0 %5849
      %v5851 = vsel %vm5643, %v5783, 0.0
      %5852 = vadd.xlane.f32.xlu0 %v5851
      %v5853 = vpop.xlane.xlu0 %5852
      %v5854 = vsel %vm5643, %v5785, 0.0
      %5855 = vadd.xlane.f32.xlu0 %v5854
      %v5856 = vpop.xlane.xlu0 %5855
      %v5857 = vsel %vm5643, %v5787, 0.0
      %5858 = vadd.xlane.f32.xlu0 %v5857
      %v5859 = vpop.xlane.xlu0 %5858
      %v5860 = vsel %vm5643, %v5789, 0.0
      %5861 = vadd.xlane.f32.xlu0 %v5860
      %v5862 = vpop.xlane.xlu0 %5861
      %v5863 = vsel %vm5643, %v5791, 0.0
      %5864 = vadd.xlane.f32.xlu0 %v5863
      %v5865 = vpop.xlane.xlu0 %5864
      %v5866 = vsel %vm5643, %v5793, 0.0
      %5867 = vadd.xlane.f32.xlu0 %v5866
      %v5868 = vpop.xlane.xlu0 %5867
      %v5869 = vsel %vm5643, %v5795, 0.0
      %5870 = vadd.xlane.f32.xlu0 %v5869
      %v5871 = vpop.xlane.xlu0 %5870
      %v5872 = vsel %vm5643, %v5797, 0.0
      %5873 = vadd.xlane.f32.xlu0 %v5872
      %v5874 = vpop.xlane.xlu0 %5873
      %v5875 = vsel %vm5643, %v5799, 0.0
      %5876 = vadd.xlane.f32.xlu0 %v5875
      %v5877 = vpop.xlane.xlu0 %5876
      %v5878 = vsel %vm5643, %v5801, 0.0
      %5879 = vadd.xlane.f32.xlu0 %v5878
      %v5880 = vpop.xlane.xlu0 %5879
      %v5881 = vsel %vm5643, %v5803, 0.0
      %5882 = vadd.xlane.f32.xlu0 %v5881
      %v5883 = vpop.xlane.xlu0 %5882
      %v5884 = vsel %vm5643, %v5805, 0.0
      %5885 = vadd.xlane.f32.xlu0 %v5884
      %v5886 = vpop.xlane.xlu0 %5885
      %v5887 = vsel %vm5643, %v5807, 0.0
      %5888 = vadd.xlane.f32.xlu0 %v5887
      %v5889 = vpop.xlane.xlu0 %5888
      %v5890 = vsel %vm5643, %v5809, 0.0
      %5891 = vadd.xlane.f32.xlu0 %v5890
      %v5892 = vpop.xlane.xlu0 %5891
      %v5893 = vsel %vm5643, %v5811, 0.0
      %5894 = vadd.xlane.f32.xlu0 %v5893
      %v5895 = vpop.xlane.xlu0 %5894
      %v5896 = vsel %vm5643, %v5813, 0.0
      %5897 = vadd.xlane.f32.xlu0 %v5896
      %v5898 = vpop.xlane.xlu0 %5897
      %v5899 = vsel %vm5643, %v5815, 0.0
      %5900 = vadd.xlane.f32.xlu0 %v5899
      %v5901 = vpop.xlane.xlu0 %5900
      %v5902 = vsel %vm5643, %v5817, 0.0
      %5903 = vadd.xlane.f32.xlu0 %v5902
      %v5904 = vpop.xlane.xlu0 %5903
      %v5905 = vsel %vm5643, %v5819, 0.0
      %5906 = vadd.xlane.f32.xlu0 %v5905
      %v5907 = vpop.xlane.xlu0 %5906
      %v5908 = vsel %vm5643, %v5821, 0.0
      %5909 = vadd.xlane.f32.xlu0 %v5908
      %v5910 = vpop.xlane.xlu0 %5909
      %v5911 = vsel %vm5643, %v5823, 0.0
      %5912 = vadd.xlane.f32.xlu0 %v5911
      %v5913 = vpop.xlane.xlu0 %5912
      %v5914 = vsel %vm5643, %v5825, 0.0
      %5915 = vadd.xlane.f32.xlu0 %v5914
      %v5916 = vpop.xlane.xlu0 %5915
      %v5917 = vsel %vm5643, %v5827, 0.0
      %5918 = vadd.xlane.f32.xlu0 %v5917
      %v5919 = vpop.xlane.xlu0 %5918
      %v5920 = vsel %vm5643, %v5829, 0.0
      %5921 = vadd.xlane.f32.xlu0 %v5920
      %v5922 = vpop.xlane.xlu0 %5921
      %v5923 = vsel %vm5643, %v5831, 0.0
      %5924 = vadd.xlane.f32.xlu0 %v5923
      %v5925 = vpop.xlane.xlu0 %5924
      %v5926 = vsel %vm5643, %v5833, 0.0
      %5927 = vadd.xlane.f32.xlu0 %v5926
      %v5928 = vpop.xlane.xlu0 %5927
      %v5929 = vsel %vm5643, %v5835, 0.0
      %5930 = vadd.xlane.f32.xlu0 %v5929
      %v5931 = vpop.xlane.xlu0 %5930
      %v5932 = vrcp.pop %v5838
      %v5933 = vrcp.pop %v5841
      %v5934 = vrcp.pop %v5844
      %v5935 = vrcp.pop %v5847
      %v5936 = vrcp.pop %v5850
      %v5937 = vrcp.pop %v5853
      %v5938 = vrcp.pop %v5856
      %v5939 = vrcp.pop %v5859
      %v5940 = vrcp.pop %v5862
      %v5941 = vrcp.pop %v5865
      %v5942 = vrcp.pop %v5868
      %v5943 = vrcp.pop %v5871
      %v5944 = vrcp.pop %v5874
      %v5945 = vrcp.pop %v5877
      %v5946 = vrcp.pop %v5880
      %v5947 = vrcp.pop %v5883
      %v5948 = vrcp.pop %v5886
      %v5949 = vrcp.pop %v5889
      %v5950 = vrcp.pop %v5892
      %v5951 = vrcp.pop %v5895
      %v5952 = vrcp.pop %v5898
      %v5953 = vrcp.pop %v5901
      %v5954 = vrcp.pop %v5904
      %v5955 = vrcp.pop %v5907
      %v5956 = vrcp.pop %v5910
      %v5957 = vrcp.pop %v5913
      %v5958 = vrcp.pop %v5916
      %v5959 = vrcp.pop %v5919
      %v5960 = vrcp.pop %v5922
      %v5961 = vrcp.pop %v5925
      %v5962 = vrcp.pop %v5928
      %v5963 = vrcp.pop %v5931
      %v5964 = vmul.f32 %v5773, %v5932
      %v5965 = vmul.f32 %v5775, %v5933
      %v5966 = vmul.f32 %v5777, %v5934
      %v5967 = vmul.f32 %v5779, %v5935
      %v5968 = vmul.f32 %v5781, %v5936
      %v5969 = vmul.f32 %v5783, %v5937
      %v5970 = vmul.f32 %v5785, %v5938
      %v5971 = vmul.f32 %v5787, %v5939
      %v5972 = vmul.f32 %v5789, %v5940
      %v5973 = vmul.f32 %v5791, %v5941
      %v5974 = vmul.f32 %v5793, %v5942
      %v5975 = vmul.f32 %v5795, %v5943
      %v5976 = vmul.f32 %v5797, %v5944
      %v5977 = vmul.f32 %v5799, %v5945
      %v5978 = vmul.f32 %v5801, %v5946
      %v5979 = vmul.f32 %v5803, %v5947
      %v5980 = vmul.f32 %v5805, %v5948
      %v5981 = vmul.f32 %v5807, %v5949
      %v5982 = vmul.f32 %v5809, %v5950
      %v5983 = vmul.f32 %v5811, %v5951
      %v5984 = vmul.f32 %v5813, %v5952
      %v5985 = vmul.f32 %v5815, %v5953
      %v5986 = vmul.f32 %v5817, %v5954
      %v5987 = vmul.f32 %v5819, %v5955
      %v5988 = vmul.f32 %v5821, %v5956
      %v5989 = vmul.f32 %v5823, %v5957
      %v5990 = vmul.f32 %v5825, %v5958
      %v5991 = vmul.f32 %v5827, %v5959
      %v5992 = vmul.f32 %v5829, %v5960
      %v5993 = vmul.f32 %v5831, %v5961
      %v5994 = vmul.f32 %v5833, %v5962
      %v5995 = vmul.f32 %v5835, %v5963
      %v5996 = vpack.c.bf16 %v5964, %v5964
      %v5997 = vpack.c.bf16 %v5965, %v5965
      %v5998 = vpack.c.bf16 %v5966, %v5966
      %v5999 = vpack.c.bf16 %v5967, %v5967
      %v6000 = vpack.c.bf16 %v5968, %v5968
      %v6001 = vpack.c.bf16 %v5969, %v5969
      %v6002 = vpack.c.bf16 %v5970, %v5970
      %v6003 = vpack.c.bf16 %v5971, %v5971
      %v6004 = vpack.c.bf16 %v5972, %v5972
      %v6005 = vpack.c.bf16 %v5973, %v5973
      %v6006 = vpack.c.bf16 %v5974, %v5974
      %v6007 = vpack.c.bf16 %v5975, %v5975
      %v6008 = vpack.c.bf16 %v5976, %v5976
      %v6009 = vpack.c.bf16 %v5977, %v5977
      %v6010 = vpack.c.bf16 %v5978, %v5978
      %v6011 = vpack.c.bf16 %v5979, %v5979
      %v6012 = vpack.c.bf16 %v5980, %v5980
      %v6013 = vpack.c.bf16 %v5981, %v5981
      %v6014 = vpack.c.bf16 %v5982, %v5982
      %v6015 = vpack.c.bf16 %v5983, %v5983
      %v6016 = vpack.c.bf16 %v5984, %v5984
      %v6017 = vpack.c.bf16 %v5985, %v5985
      %v6018 = vpack.c.bf16 %v5986, %v5986
      %v6019 = vpack.c.bf16 %v5987, %v5987
      %v6020 = vpack.c.bf16 %v5988, %v5988
      %v6021 = vpack.c.bf16 %v5989, %v5989
      %v6022 = vpack.c.bf16 %v5990, %v5990
      %v6023 = vpack.c.bf16 %v5991, %v5991
      %v6024 = vpack.c.bf16 %v5992, %v5992
      %v6025 = vpack.c.bf16 %v5993, %v5993
      %v6026 = vpack.c.bf16 %v5994, %v5994
      %v6027 = vpack.c.bf16 %v5995, %v5995
      %v6028 = vpack.c.bf16 %v3658, %v3658
      %v6029 = vpack.c.bf16 %v3794, %v3794
      %v6030 = vpack.c.bf16 %v3930, %v3930
      %v6031 = vpack.c.bf16 %v4066, %v4066
      %v6032 = vpack.c.bf16 %v3659, %v3659
      %v6033 = vpack.c.bf16 %v3795, %v3795
      %v6034 = vpack.c.bf16 %v3931, %v3931
      %v6035 = vpack.c.bf16 %v4067, %v4067
      %v6036 = vpack.c.bf16 %v3660, %v3660
      %v6037 = vpack.c.bf16 %v3796, %v3796
      %v6038 = vpack.c.bf16 %v3932, %v3932
      %v6039 = vpack.c.bf16 %v4068, %v4068
      %v6040 = vpack.c.bf16 %v3661, %v3661
      %v6041 = vpack.c.bf16 %v3797, %v3797
      %v6042 = vpack.c.bf16 %v3933, %v3933
      %v6043 = vpack.c.bf16 %v4069, %v4069
      %v6044 = vpack.c.bf16 %v3662, %v3662
      %v6045 = vpack.c.bf16 %v3798, %v3798
      %v6046 = vpack.c.bf16 %v3934, %v3934
      %v6047 = vpack.c.bf16 %v4070, %v4070
      %v6048 = vpack.c.bf16 %v3663, %v3663
      %v6049 = vpack.c.bf16 %v3799, %v3799
      %v6050 = vpack.c.bf16 %v3935, %v3935
      %v6051 = vpack.c.bf16 %v4071, %v4071
      %v6052 = vpack.c.bf16 %v3664, %v3664
      %v6053 = vpack.c.bf16 %v3800, %v3800
      %v6054 = vpack.c.bf16 %v3936, %v3936
      %v6055 = vpack.c.bf16 %v4072, %v4072
      %v6056 = vpack.c.bf16 %v3665, %v3665
      %v6057 = vpack.c.bf16 %v3801, %v3801
      %v6058 = vpack.c.bf16 %v3937, %v3937
      %v6059 = vpack.c.bf16 %v4073, %v4073
      %v6061 = vsel %vm5643, %v5996, 0
      %vm6063 = vcmask 1043456
      %v6065 = vsel %vm6063, %v6028, 0
      %6067 = vmatprep.subr.bf16.mxu0 0
      %6068 = vmatpush1.bf16.msra.mxu0 0
      %6069 = vmatprep.subr.bf16.mxu0 0
      %6070 = vmatpush1.bf16.msra.mxu0 0
      %6071 = vmatprep.subr.bf16.mxu0 0
      %6072 = vmatpush1.bf16.msra.mxu0 0
      %6073 = vmatprep.subr.bf16.mxu0 0
      %6074 = vmatpush1.bf16.msra.mxu0 0
      %6075 = vmatprep.subr.bf16.mxu0 0
      %6076 = vmatpush1.bf16.msra.mxu0 0
      %6077 = vmatprep.subr.bf16.mxu0 0
      %6078 = vmatpush1.bf16.msra.mxu0 0
      %6079 = vmatprep.subr.bf16.mxu0 0
      %6080 = vmatpush1.bf16.msra.mxu0 0
      %6081 = vmatprep.subr.bf16.mxu0 0
      %6082 = vmatpush1.bf16.msra.mxu0 %v6065
      %6083 = vmatprep.subr.bf16.mxu0 0
      %6084 = vmatpush2.bf16.msra.mxu0 0
      %6085 = vmatprep.subr.bf16.mxu0 0
      %6086 = vmatpush2.bf16.msra.mxu0 0
      %6087 = vmatprep.subr.bf16.mxu0 0
      %6088 = vmatpush2.bf16.msra.mxu0 0
      %6089 = vmatprep.subr.bf16.mxu0 0
      %6090 = vmatpush2.bf16.msra.mxu0 0
      %6091 = vmatprep.subr.bf16.mxu0 0
      %6092 = vmatpush2.bf16.msra.mxu0 0
      %6093 = vmatprep.subr.bf16.mxu0 0
      %6094 = vmatpush2.bf16.msra.mxu0 0
      %6095 = vmatprep.subr.bf16.mxu0 0
      %6096 = vmatpush2.bf16.msra.mxu0 0
      %6097 = vmatprep.subr.bf16.mxu0 0
      %6098 = vmatpush2.bf16.msra.mxu0 0
      %6099 = vmatprep.mubr.bf16.mxu0 0
      %6100 = vmatmul.mubr.bf16.gmra.mxu0 %v6061
      %v6101 = vpop.f32.mrf.mxu0
      %v6102 = vadd.f32 0.0, %v6101
      %v6103 = vpop.f32.mrf.mxu0
      %v6104 = vpop.f32.mrf.mxu0
      %v6105 = vpop.f32.mrf.mxu0
      %6106 = vdwg.mxu0
      %v6108 = vsel %vm5643, %v5997, 0
      %v6111 = vsel %vm6063, %v6029, 0
      %6113 = vmatprep.subr.bf16.mxu0 0
      %6114 = vmatpush1.bf16.msra.mxu0 0
      %6115 = vmatprep.subr.bf16.mxu0 0
      %6116 = vmatpush1.bf16.msra.mxu0 0
      %6117 = vmatprep.subr.bf16.mxu0 0
      %6118 = vmatpush1.bf16.msra.mxu0 0
      %6119 = vmatprep.subr.bf16.mxu0 0
      %6120 = vmatpush1.bf16.msra.mxu0 0
      %6121 = vmatprep.subr.bf16.mxu0 0
      %6122 = vmatpush1.bf16.msra.mxu0 0
      %6123 = vmatprep.subr.bf16.mxu0 0
      %6124 = vmatpush1.bf16.msra.mxu0 0
      %6125 = vmatprep.subr.bf16.mxu0 0
      %6126 = vmatpush1.bf16.msra.mxu0 0
      %6127 = vmatprep.subr.bf16.mxu0 0
      %6128 = vmatpush1.bf16.msra.mxu0 %v6111
      %6129 = vmatprep.subr.bf16.mxu0 0
      %6130 = vmatpush2.bf16.msra.mxu0 0
      %6131 = vmatprep.subr.bf16.mxu0 0
      %6132 = vmatpush2.bf16.msra.mxu0 0
      %6133 = vmatprep.subr.bf16.mxu0 0
      %6134 = vmatpush2.bf16.msra.mxu0 0
      %6135 = vmatprep.subr.bf16.mxu0 0
      %6136 = vmatpush2.bf16.msra.mxu0 0
      %6137 = vmatprep.subr.bf16.mxu0 0
      %6138 = vmatpush2.bf16.msra.mxu0 0
      %6139 = vmatprep.subr.bf16.mxu0 0
      %6140 = vmatpush2.bf16.msra.mxu0 0
      %6141 = vmatprep.subr.bf16.mxu0 0
      %6142 = vmatpush2.bf16.msra.mxu0 0
      %6143 = vmatprep.subr.bf16.mxu0 0
      %6144 = vmatpush2.bf16.msra.mxu0 0
      %6145 = vmatprep.mubr.bf16.mxu0 0
      %6146 = vmatmul.mubr.bf16.gmra.mxu0 %v6108
      %v6147 = vpop.f32.mrf.mxu0
      %v6148 = vadd.f32 0.0, %v6147
      %v6149 = vpop.f32.mrf.mxu0
      %v6150 = vpop.f32.mrf.mxu0
      %v6151 = vpop.f32.mrf.mxu0
      %6152 = vdwg.mxu0
      %v6154 = vsel %vm5643, %v5998, 0
      %v6157 = vsel %vm6063, %v6030, 0
      %6159 = vmatprep.subr.bf16.mxu0 0
      %6160 = vmatpush1.bf16.msra.mxu0 0
      %6161 = vmatprep.subr.bf16.mxu0 0
      %6162 = vmatpush1.bf16.msra.mxu0 0
      %6163 = vmatprep.subr.bf16.mxu0 0
      %6164 = vmatpush1.bf16.msra.mxu0 0
      %6165 = vmatprep.subr.bf16.mxu0 0
      %6166 = vmatpush1.bf16.msra.mxu0 0
      %6167 = vmatprep.subr.bf16.mxu0 0
      %6168 = vmatpush1.bf16.msra.mxu0 0
      %6169 = vmatprep.subr.bf16.mxu0 0
      %6170 = vmatpush1.bf16.msra.mxu0 0
      %6171 = vmatprep.subr.bf16.mxu0 0
      %6172 = vmatpush1.bf16.msra.mxu0 0
      %6173 = vmatprep.subr.bf16.mxu0 0
      %6174 = vmatpush1.bf16.msra.mxu0 %v6157
      %6175 = vmatprep.subr.bf16.mxu0 0
      %6176 = vmatpush2.bf16.msra.mxu0 0
      %6177 = vmatprep.subr.bf16.mxu0 0
      %6178 = vmatpush2.bf16.msra.mxu0 0
      %6179 = vmatprep.subr.bf16.mxu0 0
      %6180 = vmatpush2.bf16.msra.mxu0 0
      %6181 = vmatprep.subr.bf16.mxu0 0
      %6182 = vmatpush2.bf16.msra.mxu0 0
      %6183 = vmatprep.subr.bf16.mxu0 0
      %6184 = vmatpush2.bf16.msra.mxu0 0
      %6185 = vmatprep.subr.bf16.mxu0 0
      %6186 = vmatpush2.bf16.msra.mxu0 0
      %6187 = vmatprep.subr.bf16.mxu0 0
      %6188 = vmatpush2.bf16.msra.mxu0 0
      %6189 = vmatprep.subr.bf16.mxu0 0
      %6190 = vmatpush2.bf16.msra.mxu0 0
      %6191 = vmatprep.mubr.bf16.mxu0 0
      %6192 = vmatmul.mubr.bf16.gmra.mxu0 %v6154
      %v6193 = vpop.f32.mrf.mxu0
      %v6194 = vadd.f32 0.0, %v6193
      %v6195 = vpop.f32.mrf.mxu0
      %v6196 = vpop.f32.mrf.mxu0
      %v6197 = vpop.f32.mrf.mxu0
      %6198 = vdwg.mxu0
      %v6200 = vsel %vm5643, %v5999, 0
      %v6203 = vsel %vm6063, %v6031, 0
      %6205 = vmatprep.subr.bf16.mxu0 0
      %6206 = vmatpush1.bf16.msra.mxu0 0
      %6207 = vmatprep.subr.bf16.mxu0 0
      %6208 = vmatpush1.bf16.msra.mxu0 0
      %6209 = vmatprep.subr.bf16.mxu0 0
      %6210 = vmatpush1.bf16.msra.mxu0 0
      %6211 = vmatprep.subr.bf16.mxu0 0
      %6212 = vmatpush1.bf16.msra.mxu0 0
      %6213 = vmatprep.subr.bf16.mxu0 0
      %6214 = vmatpush1.bf16.msra.mxu0 0
      %6215 = vmatprep.subr.bf16.mxu0 0
      %6216 = vmatpush1.bf16.msra.mxu0 0
      %6217 = vmatprep.subr.bf16.mxu0 0
      %6218 = vmatpush1.bf16.msra.mxu0 0
      %6219 = vmatprep.subr.bf16.mxu0 0
      %6220 = vmatpush1.bf16.msra.mxu0 %v6203
      %6221 = vmatprep.subr.bf16.mxu0 0
      %6222 = vmatpush2.bf16.msra.mxu0 0
      %6223 = vmatprep.subr.bf16.mxu0 0
      %6224 = vmatpush2.bf16.msra.mxu0 0
      %6225 = vmatprep.subr.bf16.mxu0 0
      %6226 = vmatpush2.bf16.msra.mxu0 0
      %6227 = vmatprep.subr.bf16.mxu0 0
      %6228 = vmatpush2.bf16.msra.mxu0 0
      %6229 = vmatprep.subr.bf16.mxu0 0
      %6230 = vmatpush2.bf16.msra.mxu0 0
      %6231 = vmatprep.subr.bf16.mxu0 0
      %6232 = vmatpush2.bf16.msra.mxu0 0
      %6233 = vmatprep.subr.bf16.mxu0 0
      %6234 = vmatpush2.bf16.msra.mxu0 0
      %6235 = vmatprep.subr.bf16.mxu0 0
      %6236 = vmatpush2.bf16.msra.mxu0 0
      %6237 = vmatprep.mubr.bf16.mxu0 0
      %6238 = vmatmul.mubr.bf16.gmra.mxu0 %v6200
      %v6239 = vpop.f32.mrf.mxu0
      %v6240 = vadd.f32 0.0, %v6239
      %v6241 = vpop.f32.mrf.mxu0
      %v6242 = vpop.f32.mrf.mxu0
      %v6243 = vpop.f32.mrf.mxu0
      %6244 = vdwg.mxu0
      %v6246 = vsel %vm5643, %v6000, 0
      %v6249 = vsel %vm6063, %v6032, 0
      %6251 = vmatprep.subr.bf16.mxu0 0
      %6252 = vmatpush1.bf16.msra.mxu0 0
      %6253 = vmatprep.subr.bf16.mxu0 0
      %6254 = vmatpush1.bf16.msra.mxu0 0
      %6255 = vmatprep.subr.bf16.mxu0 0
      %6256 = vmatpush1.bf16.msra.mxu0 0
      %6257 = vmatprep.subr.bf16.mxu0 0
      %6258 = vmatpush1.bf16.msra.mxu0 0
      %6259 = vmatprep.subr.bf16.mxu0 0
      %6260 = vmatpush1.bf16.msra.mxu0 0
      %6261 = vmatprep.subr.bf16.mxu0 0
      %6262 = vmatpush1.bf16.msra.mxu0 0
      %6263 = vmatprep.subr.bf16.mxu0 0
      %6264 = vmatpush1.bf16.msra.mxu0 0
      %6265 = vmatprep.subr.bf16.mxu0 0
      %6266 = vmatpush1.bf16.msra.mxu0 %v6249
      %6267 = vmatprep.subr.bf16.mxu0 0
      %6268 = vmatpush2.bf16.msra.mxu0 0
      %6269 = vmatprep.subr.bf16.mxu0 0
      %6270 = vmatpush2.bf16.msra.mxu0 0
      %6271 = vmatprep.subr.bf16.mxu0 0
      %6272 = vmatpush2.bf16.msra.mxu0 0
      %6273 = vmatprep.subr.bf16.mxu0 0
      %6274 = vmatpush2.bf16.msra.mxu0 0
      %6275 = vmatprep.subr.bf16.mxu0 0
      %6276 = vmatpush2.bf16.msra.mxu0 0
      %6277 = vmatprep.subr.bf16.mxu0 0
      %6278 = vmatpush2.bf16.msra.mxu0 0
      %6279 = vmatprep.subr.bf16.mxu0 0
      %6280 = vmatpush2.bf16.msra.mxu0 0
      %6281 = vmatprep.subr.bf16.mxu0 0
      %6282 = vmatpush2.bf16.msra.mxu0 0
      %6283 = vmatprep.mubr.bf16.mxu0 0
      %6284 = vmatmul.mubr.bf16.gmra.mxu0 %v6246
      %v6285 = vpop.f32.mrf.mxu0
      %v6286 = vadd.f32 0.0, %v6285
      %v6287 = vpop.f32.mrf.mxu0
      %v6288 = vpop.f32.mrf.mxu0
      %v6289 = vpop.f32.mrf.mxu0
      %6290 = vdwg.mxu0
      %v6292 = vsel %vm5643, %v6001, 0
      %v6295 = vsel %vm6063, %v6033, 0
      %6297 = vmatprep.subr.bf16.mxu0 0
      %6298 = vmatpush1.bf16.msra.mxu0 0
      %6299 = vmatprep.subr.bf16.mxu0 0
      %6300 = vmatpush1.bf16.msra.mxu0 0
      %6301 = vmatprep.subr.bf16.mxu0 0
      %6302 = vmatpush1.bf16.msra.mxu0 0
      %6303 = vmatprep.subr.bf16.mxu0 0
      %6304 = vmatpush1.bf16.msra.mxu0 0
      %6305 = vmatprep.subr.bf16.mxu0 0
      %6306 = vmatpush1.bf16.msra.mxu0 0
      %6307 = vmatprep.subr.bf16.mxu0 0
      %6308 = vmatpush1.bf16.msra.mxu0 0
      %6309 = vmatprep.subr.bf16.mxu0 0
      %6310 = vmatpush1.bf16.msra.mxu0 0
      %6311 = vmatprep.subr.bf16.mxu0 0
      %6312 = vmatpush1.bf16.msra.mxu0 %v6295
      %6313 = vmatprep.subr.bf16.mxu0 0
      %6314 = vmatpush2.bf16.msra.mxu0 0
      %6315 = vmatprep.subr.bf16.mxu0 0
      %6316 = vmatpush2.bf16.msra.mxu0 0
      %6317 = vmatprep.subr.bf16.mxu0 0
      %6318 = vmatpush2.bf16.msra.mxu0 0
      %6319 = vmatprep.subr.bf16.mxu0 0
      %6320 = vmatpush2.bf16.msra.mxu0 0
      %6321 = vmatprep.subr.bf16.mxu0 0
      %6322 = vmatpush2.bf16.msra.mxu0 0
      %6323 = vmatprep.subr.bf16.mxu0 0
      %6324 = vmatpush2.bf16.msra.mxu0 0
      %6325 = vmatprep.subr.bf16.mxu0 0
      %6326 = vmatpush2.bf16.msra.mxu0 0
      %6327 = vmatprep.subr.bf16.mxu0 0
      %6328 = vmatpush2.bf16.msra.mxu0 0
      %6329 = vmatprep.mubr.bf16.mxu0 0
      %6330 = vmatmul.mubr.bf16.gmra.mxu0 %v6292
      %v6331 = vpop.f32.mrf.mxu0
      %v6332 = vadd.f32 0.0, %v6331
      %v6333 = vpop.f32.mrf.mxu0
      %v6334 = vpop.f32.mrf.mxu0
      %v6335 = vpop.f32.mrf.mxu0
      %6336 = vdwg.mxu0
      %v6338 = vsel %vm5643, %v6002, 0
      %v6341 = vsel %vm6063, %v6034, 0
      %6343 = vmatprep.subr.bf16.mxu0 0
      %6344 = vmatpush1.bf16.msra.mxu0 0
      %6345 = vmatprep.subr.bf16.mxu0 0
      %6346 = vmatpush1.bf16.msra.mxu0 0
      %6347 = vmatprep.subr.bf16.mxu0 0
      %6348 = vmatpush1.bf16.msra.mxu0 0
      %6349 = vmatprep.subr.bf16.mxu0 0
      %6350 = vmatpush1.bf16.msra.mxu0 0
      %6351 = vmatprep.subr.bf16.mxu0 0
      %6352 = vmatpush1.bf16.msra.mxu0 0
      %6353 = vmatprep.subr.bf16.mxu0 0
      %6354 = vmatpush1.bf16.msra.mxu0 0
      %6355 = vmatprep.subr.bf16.mxu0 0
      %6356 = vmatpush1.bf16.msra.mxu0 0
      %6357 = vmatprep.subr.bf16.mxu0 0
      %6358 = vmatpush1.bf16.msra.mxu0 %v6341
      %6359 = vmatprep.subr.bf16.mxu0 0
      %6360 = vmatpush2.bf16.msra.mxu0 0
      %6361 = vmatprep.subr.bf16.mxu0 0
      %6362 = vmatpush2.bf16.msra.mxu0 0
      %6363 = vmatprep.subr.bf16.mxu0 0
      %6364 = vmatpush2.bf16.msra.mxu0 0
      %6365 = vmatprep.subr.bf16.mxu0 0
      %6366 = vmatpush2.bf16.msra.mxu0 0
      %6367 = vmatprep.subr.bf16.mxu0 0
      %6368 = vmatpush2.bf16.msra.mxu0 0
      %6369 = vmatprep.subr.bf16.mxu0 0
      %6370 = vmatpush2.bf16.msra.mxu0 0
      %6371 = vmatprep.subr.bf16.mxu0 0
      %6372 = vmatpush2.bf16.msra.mxu0 0
      %6373 = vmatprep.subr.bf16.mxu0 0
      %6374 = vmatpush2.bf16.msra.mxu0 0
      %6375 = vmatprep.mubr.bf16.mxu0 0
      %6376 = vmatmul.mubr.bf16.gmra.mxu0 %v6338
      %v6377 = vpop.f32.mrf.mxu0
      %v6378 = vadd.f32 0.0, %v6377
      %v6379 = vpop.f32.mrf.mxu0
      %v6380 = vpop.f32.mrf.mxu0
      %v6381 = vpop.f32.mrf.mxu0
      %6382 = vdwg.mxu0
      %v6384 = vsel %vm5643, %v6003, 0
      %v6387 = vsel %vm6063, %v6035, 0
      %6389 = vmatprep.subr.bf16.mxu0 0
      %6390 = vmatpush1.bf16.msra.mxu0 0
      %6391 = vmatprep.subr.bf16.mxu0 0
      %6392 = vmatpush1.bf16.msra.mxu0 0
      %6393 = vmatprep.subr.bf16.mxu0 0
      %6394 = vmatpush1.bf16.msra.mxu0 0
      %6395 = vmatprep.subr.bf16.mxu0 0
      %6396 = vmatpush1.bf16.msra.mxu0 0
      %6397 = vmatprep.subr.bf16.mxu0 0
      %6398 = vmatpush1.bf16.msra.mxu0 0
      %6399 = vmatprep.subr.bf16.mxu0 0
      %6400 = vmatpush1.bf16.msra.mxu0 0
      %6401 = vmatprep.subr.bf16.mxu0 0
      %6402 = vmatpush1.bf16.msra.mxu0 0
      %6403 = vmatprep.subr.bf16.mxu0 0
      %6404 = vmatpush1.bf16.msra.mxu0 %v6387
      %6405 = vmatprep.subr.bf16.mxu0 0
      %6406 = vmatpush2.bf16.msra.mxu0 0
      %6407 = vmatprep.subr.bf16.mxu0 0
      %6408 = vmatpush2.bf16.msra.mxu0 0
      %6409 = vmatprep.subr.bf16.mxu0 0
      %6410 = vmatpush2.bf16.msra.mxu0 0
      %6411 = vmatprep.subr.bf16.mxu0 0
      %6412 = vmatpush2.bf16.msra.mxu0 0
      %6413 = vmatprep.subr.bf16.mxu0 0
      %6414 = vmatpush2.bf16.msra.mxu0 0
      %6415 = vmatprep.subr.bf16.mxu0 0
      %6416 = vmatpush2.bf16.msra.mxu0 0
      %6417 = vmatprep.subr.bf16.mxu0 0
      %6418 = vmatpush2.bf16.msra.mxu0 0
      %6419 = vmatprep.subr.bf16.mxu0 0
      %6420 = vmatpush2.bf16.msra.mxu0 0
      %6421 = vmatprep.mubr.bf16.mxu0 0
      %6422 = vmatmul.mubr.bf16.gmra.mxu0 %v6384
      %v6423 = vpop.f32.mrf.mxu0
      %v6424 = vadd.f32 0.0, %v6423
      %v6425 = vpop.f32.mrf.mxu0
      %v6426 = vpop.f32.mrf.mxu0
      %v6427 = vpop.f32.mrf.mxu0
      %6428 = vdwg.mxu0
      %v6430 = vsel %vm5643, %v6004, 0
      %v6433 = vsel %vm6063, %v6036, 0
      %6435 = vmatprep.subr.bf16.mxu0 0
      %6436 = vmatpush1.bf16.msra.mxu0 0
      %6437 = vmatprep.subr.bf16.mxu0 0
      %6438 = vmatpush1.bf16.msra.mxu0 0
      %6439 = vmatprep.subr.bf16.mxu0 0
      %6440 = vmatpush1.bf16.msra.mxu0 0
      %6441 = vmatprep.subr.bf16.mxu0 0
      %6442 = vmatpush1.bf16.msra.mxu0 0
      %6443 = vmatprep.subr.bf16.mxu0 0
      %6444 = vmatpush1.bf16.msra.mxu0 0
      %6445 = vmatprep.subr.bf16.mxu0 0
      %6446 = vmatpush1.bf16.msra.mxu0 0
      %6447 = vmatprep.subr.bf16.mxu0 0
      %6448 = vmatpush1.bf16.msra.mxu0 0
      %6449 = vmatprep.subr.bf16.mxu0 0
      %6450 = vmatpush1.bf16.msra.mxu0 %v6433
      %6451 = vmatprep.subr.bf16.mxu0 0
      %6452 = vmatpush2.bf16.msra.mxu0 0
      %6453 = vmatprep.subr.bf16.mxu0 0
      %6454 = vmatpush2.bf16.msra.mxu0 0
      %6455 = vmatprep.subr.bf16.mxu0 0
      %6456 = vmatpush2.bf16.msra.mxu0 0
      %6457 = vmatprep.subr.bf16.mxu0 0
      %6458 = vmatpush2.bf16.msra.mxu0 0
      %6459 = vmatprep.subr.bf16.mxu0 0
      %6460 = vmatpush2.bf16.msra.mxu0 0
      %6461 = vmatprep.subr.bf16.mxu0 0
      %6462 = vmatpush2.bf16.msra.mxu0 0
      %6463 = vmatprep.subr.bf16.mxu0 0
      %6464 = vmatpush2.bf16.msra.mxu0 0
      %6465 = vmatprep.subr.bf16.mxu0 0
      %6466 = vmatpush2.bf16.msra.mxu0 0
      %6467 = vmatprep.mubr.bf16.mxu0 0
      %6468 = vmatmul.mubr.bf16.gmra.mxu0 %v6430
      %v6469 = vpop.f32.mrf.mxu0
      %v6470 = vadd.f32 0.0, %v6469
      %v6471 = vpop.f32.mrf.mxu0
      %v6472 = vpop.f32.mrf.mxu0
      %v6473 = vpop.f32.mrf.mxu0
      %6474 = vdwg.mxu0
      %v6476 = vsel %vm5643, %v6005, 0
      %v6479 = vsel %vm6063, %v6037, 0
      %6481 = vmatprep.subr.bf16.mxu0 0
      %6482 = vmatpush1.bf16.msra.mxu0 0
      %6483 = vmatprep.subr.bf16.mxu0 0
      %6484 = vmatpush1.bf16.msra.mxu0 0
      %6485 = vmatprep.subr.bf16.mxu0 0
      %6486 = vmatpush1.bf16.msra.mxu0 0
      %6487 = vmatprep.subr.bf16.mxu0 0
      %6488 = vmatpush1.bf16.msra.mxu0 0
      %6489 = vmatprep.subr.bf16.mxu0 0
      %6490 = vmatpush1.bf16.msra.mxu0 0
      %6491 = vmatprep.subr.bf16.mxu0 0
      %6492 = vmatpush1.bf16.msra.mxu0 0
      %6493 = vmatprep.subr.bf16.mxu0 0
      %6494 = vmatpush1.bf16.msra.mxu0 0
      %6495 = vmatprep.subr.bf16.mxu0 0
      %6496 = vmatpush1.bf16.msra.mxu0 %v6479
      %6497 = vmatprep.subr.bf16.mxu0 0
      %6498 = vmatpush2.bf16.msra.mxu0 0
      %6499 = vmatprep.subr.bf16.mxu0 0
      %6500 = vmatpush2.bf16.msra.mxu0 0
      %6501 = vmatprep.subr.bf16.mxu0 0
      %6502 = vmatpush2.bf16.msra.mxu0 0
      %6503 = vmatprep.subr.bf16.mxu0 0
      %6504 = vmatpush2.bf16.msra.mxu0 0
      %6505 = vmatprep.subr.bf16.mxu0 0
      %6506 = vmatpush2.bf16.msra.mxu0 0
      %6507 = vmatprep.subr.bf16.mxu0 0
      %6508 = vmatpush2.bf16.msra.mxu0 0
      %6509 = vmatprep.subr.bf16.mxu0 0
      %6510 = vmatpush2.bf16.msra.mxu0 0
      %6511 = vmatprep.subr.bf16.mxu0 0
      %6512 = vmatpush2.bf16.msra.mxu0 0
      %6513 = vmatprep.mubr.bf16.mxu0 0
      %6514 = vmatmul.mubr.bf16.gmra.mxu0 %v6476
      %v6515 = vpop.f32.mrf.mxu0
      %v6516 = vadd.f32 0.0, %v6515
      %v6517 = vpop.f32.mrf.mxu0
      %v6518 = vpop.f32.mrf.mxu0
      %v6519 = vpop.f32.mrf.mxu0
      %6520 = vdwg.mxu0
      %v6522 = vsel %vm5643, %v6006, 0
      %v6525 = vsel %vm6063, %v6038, 0
      %6527 = vmatprep.subr.bf16.mxu0 0
      %6528 = vmatpush1.bf16.msra.mxu0 0
      %6529 = vmatprep.subr.bf16.mxu0 0
      %6530 = vmatpush1.bf16.msra.mxu0 0
      %6531 = vmatprep.subr.bf16.mxu0 0
      %6532 = vmatpush1.bf16.msra.mxu0 0
      %6533 = vmatprep.subr.bf16.mxu0 0
      %6534 = vmatpush1.bf16.msra.mxu0 0
      %6535 = vmatprep.subr.bf16.mxu0 0
      %6536 = vmatpush1.bf16.msra.mxu0 0
      %6537 = vmatprep.subr.bf16.mxu0 0
      %6538 = vmatpush1.bf16.msra.mxu0 0
      %6539 = vmatprep.subr.bf16.mxu0 0
      %6540 = vmatpush1.bf16.msra.mxu0 0
      %6541 = vmatprep.subr.bf16.mxu0 0
      %6542 = vmatpush1.bf16.msra.mxu0 %v6525
      %6543 = vmatprep.subr.bf16.mxu0 0
      %6544 = vmatpush2.bf16.msra.mxu0 0
      %6545 = vmatprep.subr.bf16.mxu0 0
      %6546 = vmatpush2.bf16.msra.mxu0 0
      %6547 = vmatprep.subr.bf16.mxu0 0
      %6548 = vmatpush2.bf16.msra.mxu0 0
      %6549 = vmatprep.subr.bf16.mxu0 0
      %6550 = vmatpush2.bf16.msra.mxu0 0
      %6551 = vmatprep.subr.bf16.mxu0 0
      %6552 = vmatpush2.bf16.msra.mxu0 0
      %6553 = vmatprep.subr.bf16.mxu0 0
      %6554 = vmatpush2.bf16.msra.mxu0 0
      %6555 = vmatprep.subr.bf16.mxu0 0
      %6556 = vmatpush2.bf16.msra.mxu0 0
      %6557 = vmatprep.subr.bf16.mxu0 0
      %6558 = vmatpush2.bf16.msra.mxu0 0
      %6559 = vmatprep.mubr.bf16.mxu0 0
      %6560 = vmatmul.mubr.bf16.gmra.mxu0 %v6522
      %v6561 = vpop.f32.mrf.mxu0
      %v6562 = vadd.f32 0.0, %v6561
      %v6563 = vpop.f32.mrf.mxu0
      %v6564 = vpop.f32.mrf.mxu0
      %v6565 = vpop.f32.mrf.mxu0
      %6566 = vdwg.mxu0
      %v6568 = vsel %vm5643, %v6007, 0
      %v6571 = vsel %vm6063, %v6039, 0
      %6573 = vmatprep.subr.bf16.mxu0 0
      %6574 = vmatpush1.bf16.msra.mxu0 0
      %6575 = vmatprep.subr.bf16.mxu0 0
      %6576 = vmatpush1.bf16.msra.mxu0 0
      %6577 = vmatprep.subr.bf16.mxu0 0
      %6578 = vmatpush1.bf16.msra.mxu0 0
      %6579 = vmatprep.subr.bf16.mxu0 0
      %6580 = vmatpush1.bf16.msra.mxu0 0
      %6581 = vmatprep.subr.bf16.mxu0 0
      %6582 = vmatpush1.bf16.msra.mxu0 0
      %6583 = vmatprep.subr.bf16.mxu0 0
      %6584 = vmatpush1.bf16.msra.mxu0 0
      %6585 = vmatprep.subr.bf16.mxu0 0
      %6586 = vmatpush1.bf16.msra.mxu0 0
      %6587 = vmatprep.subr.bf16.mxu0 0
      %6588 = vmatpush1.bf16.msra.mxu0 %v6571
      %6589 = vmatprep.subr.bf16.mxu0 0
      %6590 = vmatpush2.bf16.msra.mxu0 0
      %6591 = vmatprep.subr.bf16.mxu0 0
      %6592 = vmatpush2.bf16.msra.mxu0 0
      %6593 = vmatprep.subr.bf16.mxu0 0
      %6594 = vmatpush2.bf16.msra.mxu0 0
      %6595 = vmatprep.subr.bf16.mxu0 0
      %6596 = vmatpush2.bf16.msra.mxu0 0
      %6597 = vmatprep.subr.bf16.mxu0 0
      %6598 = vmatpush2.bf16.msra.mxu0 0
      %6599 = vmatprep.subr.bf16.mxu0 0
      %6600 = vmatpush2.bf16.msra.mxu0 0
      %6601 = vmatprep.subr.bf16.mxu0 0
      %6602 = vmatpush2.bf16.msra.mxu0 0
      %6603 = vmatprep.subr.bf16.mxu0 0
      %6604 = vmatpush2.bf16.msra.mxu0 0
      %6605 = vmatprep.mubr.bf16.mxu0 0
      %6606 = vmatmul.mubr.bf16.gmra.mxu0 %v6568
      %v6607 = vpop.f32.mrf.mxu0
      %v6608 = vadd.f32 0.0, %v6607
      %v6609 = vpop.f32.mrf.mxu0
      %v6610 = vpop.f32.mrf.mxu0
      %v6611 = vpop.f32.mrf.mxu0
      %6612 = vdwg.mxu0
      %v6614 = vsel %vm5643, %v6008, 0
      %v6617 = vsel %vm6063, %v6040, 0
      %6619 = vmatprep.subr.bf16.mxu0 0
      %6620 = vmatpush1.bf16.msra.mxu0 0
      %6621 = vmatprep.subr.bf16.mxu0 0
      %6622 = vmatpush1.bf16.msra.mxu0 0
      %6623 = vmatprep.subr.bf16.mxu0 0
      %6624 = vmatpush1.bf16.msra.mxu0 0
      %6625 = vmatprep.subr.bf16.mxu0 0
      %6626 = vmatpush1.bf16.msra.mxu0 0
      %6627 = vmatprep.subr.bf16.mxu0 0
      %6628 = vmatpush1.bf16.msra.mxu0 0
      %6629 = vmatprep.subr.bf16.mxu0 0
      %6630 = vmatpush1.bf16.msra.mxu0 0
      %6631 = vmatprep.subr.bf16.mxu0 0
      %6632 = vmatpush1.bf16.msra.mxu0 0
      %6633 = vmatprep.subr.bf16.mxu0 0
      %6634 = vmatpush1.bf16.msra.mxu0 %v6617
      %6635 = vmatprep.subr.bf16.mxu0 0
      %6636 = vmatpush2.bf16.msra.mxu0 0
      %6637 = vmatprep.subr.bf16.mxu0 0
      %6638 = vmatpush2.bf16.msra.mxu0 0
      %6639 = vmatprep.subr.bf16.mxu0 0
      %6640 = vmatpush2.bf16.msra.mxu0 0
      %6641 = vmatprep.subr.bf16.mxu0 0
      %6642 = vmatpush2.bf16.msra.mxu0 0
      %6643 = vmatprep.subr.bf16.mxu0 0
      %6644 = vmatpush2.bf16.msra.mxu0 0
      %6645 = vmatprep.subr.bf16.mxu0 0
      %6646 = vmatpush2.bf16.msra.mxu0 0
      %6647 = vmatprep.subr.bf16.mxu0 0
      %6648 = vmatpush2.bf16.msra.mxu0 0
      %6649 = vmatprep.subr.bf16.mxu0 0
      %6650 = vmatpush2.bf16.msra.mxu0 0
      %6651 = vmatprep.mubr.bf16.mxu0 0
      %6652 = vmatmul.mubr.bf16.gmra.mxu0 %v6614
      %v6653 = vpop.f32.mrf.mxu0
      %v6654 = vadd.f32 0.0, %v6653
      %v6655 = vpop.f32.mrf.mxu0
      %v6656 = vpop.f32.mrf.mxu0
      %v6657 = vpop.f32.mrf.mxu0
      %6658 = vdwg.mxu0
      %v6660 = vsel %vm5643, %v6009, 0
      %v6663 = vsel %vm6063, %v6041, 0
      %6665 = vmatprep.subr.bf16.mxu0 0
      %6666 = vmatpush1.bf16.msra.mxu0 0
      %6667 = vmatprep.subr.bf16.mxu0 0
      %6668 = vmatpush1.bf16.msra.mxu0 0
      %6669 = vmatprep.subr.bf16.mxu0 0
      %6670 = vmatpush1.bf16.msra.mxu0 0
      %6671 = vmatprep.subr.bf16.mxu0 0
      %6672 = vmatpush1.bf16.msra.mxu0 0
      %6673 = vmatprep.subr.bf16.mxu0 0
      %6674 = vmatpush1.bf16.msra.mxu0 0
      %6675 = vmatprep.subr.bf16.mxu0 0
      %6676 = vmatpush1.bf16.msra.mxu0 0
      %6677 = vmatprep.subr.bf16.mxu0 0
      %6678 = vmatpush1.bf16.msra.mxu0 0
      %6679 = vmatprep.subr.bf16.mxu0 0
      %6680 = vmatpush1.bf16.msra.mxu0 %v6663
      %6681 = vmatprep.subr.bf16.mxu0 0
      %6682 = vmatpush2.bf16.msra.mxu0 0
      %6683 = vmatprep.subr.bf16.mxu0 0
      %6684 = vmatpush2.bf16.msra.mxu0 0
      %6685 = vmatprep.subr.bf16.mxu0 0
      %6686 = vmatpush2.bf16.msra.mxu0 0
      %6687 = vmatprep.subr.bf16.mxu0 0
      %6688 = vmatpush2.bf16.msra.mxu0 0
      %6689 = vmatprep.subr.bf16.mxu0 0
      %6690 = vmatpush2.bf16.msra.mxu0 0
      %6691 = vmatprep.subr.bf16.mxu0 0
      %6692 = vmatpush2.bf16.msra.mxu0 0
      %6693 = vmatprep.subr.bf16.mxu0 0
      %6694 = vmatpush2.bf16.msra.mxu0 0
      %6695 = vmatprep.subr.bf16.mxu0 0
      %6696 = vmatpush2.bf16.msra.mxu0 0
      %6697 = vmatprep.mubr.bf16.mxu0 0
      %6698 = vmatmul.mubr.bf16.gmra.mxu0 %v6660
      %v6699 = vpop.f32.mrf.mxu0
      %v6700 = vadd.f32 0.0, %v6699
      %v6701 = vpop.f32.mrf.mxu0
      %v6702 = vpop.f32.mrf.mxu0
      %v6703 = vpop.f32.mrf.mxu0
      %6704 = vdwg.mxu0
      %v6706 = vsel %vm5643, %v6010, 0
      %v6709 = vsel %vm6063, %v6042, 0
      %6711 = vmatprep.subr.bf16.mxu0 0
      %6712 = vmatpush1.bf16.msra.mxu0 0
      %6713 = vmatprep.subr.bf16.mxu0 0
      %6714 = vmatpush1.bf16.msra.mxu0 0
      %6715 = vmatprep.subr.bf16.mxu0 0
      %6716 = vmatpush1.bf16.msra.mxu0 0
      %6717 = vmatprep.subr.bf16.mxu0 0
      %6718 = vmatpush1.bf16.msra.mxu0 0
      %6719 = vmatprep.subr.bf16.mxu0 0
      %6720 = vmatpush1.bf16.msra.mxu0 0
      %6721 = vmatprep.subr.bf16.mxu0 0
      %6722 = vmatpush1.bf16.msra.mxu0 0
      %6723 = vmatprep.subr.bf16.mxu0 0
      %6724 = vmatpush1.bf16.msra.mxu0 0
      %6725 = vmatprep.subr.bf16.mxu0 0
      %6726 = vmatpush1.bf16.msra.mxu0 %v6709
      %6727 = vmatprep.subr.bf16.mxu0 0
      %6728 = vmatpush2.bf16.msra.mxu0 0
      %6729 = vmatprep.subr.bf16.mxu0 0
      %6730 = vmatpush2.bf16.msra.mxu0 0
      %6731 = vmatprep.subr.bf16.mxu0 0
      %6732 = vmatpush2.bf16.msra.mxu0 0
      %6733 = vmatprep.subr.bf16.mxu0 0
      %6734 = vmatpush2.bf16.msra.mxu0 0
      %6735 = vmatprep.subr.bf16.mxu0 0
      %6736 = vmatpush2.bf16.msra.mxu0 0
      %6737 = vmatprep.subr.bf16.mxu0 0
      %6738 = vmatpush2.bf16.msra.mxu0 0
      %6739 = vmatprep.subr.bf16.mxu0 0
      %6740 = vmatpush2.bf16.msra.mxu0 0
      %6741 = vmatprep.subr.bf16.mxu0 0
      %6742 = vmatpush2.bf16.msra.mxu0 0
      %6743 = vmatprep.mubr.bf16.mxu0 0
      %6744 = vmatmul.mubr.bf16.gmra.mxu0 %v6706
      %v6745 = vpop.f32.mrf.mxu0
      %v6746 = vadd.f32 0.0, %v6745
      %v6747 = vpop.f32.mrf.mxu0
      %v6748 = vpop.f32.mrf.mxu0
      %v6749 = vpop.f32.mrf.mxu0
      %6750 = vdwg.mxu0
      %v6752 = vsel %vm5643, %v6011, 0
      %v6755 = vsel %vm6063, %v6043, 0
      %6757 = vmatprep.subr.bf16.mxu0 0
      %6758 = vmatpush1.bf16.msra.mxu0 0
      %6759 = vmatprep.subr.bf16.mxu0 0
      %6760 = vmatpush1.bf16.msra.mxu0 0
      %6761 = vmatprep.subr.bf16.mxu0 0
      %6762 = vmatpush1.bf16.msra.mxu0 0
      %6763 = vmatprep.subr.bf16.mxu0 0
      %6764 = vmatpush1.bf16.msra.mxu0 0
      %6765 = vmatprep.subr.bf16.mxu0 0
      %6766 = vmatpush1.bf16.msra.mxu0 0
      %6767 = vmatprep.subr.bf16.mxu0 0
      %6768 = vmatpush1.bf16.msra.mxu0 0
      %6769 = vmatprep.subr.bf16.mxu0 0
      %6770 = vmatpush1.bf16.msra.mxu0 0
      %6771 = vmatprep.subr.bf16.mxu0 0
      %6772 = vmatpush1.bf16.msra.mxu0 %v6755
      %6773 = vmatprep.subr.bf16.mxu0 0
      %6774 = vmatpush2.bf16.msra.mxu0 0
      %6775 = vmatprep.subr.bf16.mxu0 0
      %6776 = vmatpush2.bf16.msra.mxu0 0
      %6777 = vmatprep.subr.bf16.mxu0 0
      %6778 = vmatpush2.bf16.msra.mxu0 0
      %6779 = vmatprep.subr.bf16.mxu0 0
      %6780 = vmatpush2.bf16.msra.mxu0 0
      %6781 = vmatprep.subr.bf16.mxu0 0
      %6782 = vmatpush2.bf16.msra.mxu0 0
      %6783 = vmatprep.subr.bf16.mxu0 0
      %6784 = vmatpush2.bf16.msra.mxu0 0
      %6785 = vmatprep.subr.bf16.mxu0 0
      %6786 = vmatpush2.bf16.msra.mxu0 0
      %6787 = vmatprep.subr.bf16.mxu0 0
      %6788 = vmatpush2.bf16.msra.mxu0 0
      %6789 = vmatprep.mubr.bf16.mxu0 0
      %6790 = vmatmul.mubr.bf16.gmra.mxu0 %v6752
      %v6791 = vpop.f32.mrf.mxu0
      %v6792 = vadd.f32 0.0, %v6791
      %v6793 = vpop.f32.mrf.mxu0
      %v6794 = vpop.f32.mrf.mxu0
      %v6795 = vpop.f32.mrf.mxu0
      %6796 = vdwg.mxu0
      %v6798 = vsel %vm5643, %v6012, 0
      %v6801 = vsel %vm6063, %v6044, 0
      %6803 = vmatprep.subr.bf16.mxu0 0
      %6804 = vmatpush1.bf16.msra.mxu0 0
      %6805 = vmatprep.subr.bf16.mxu0 0
      %6806 = vmatpush1.bf16.msra.mxu0 0
      %6807 = vmatprep.subr.bf16.mxu0 0
      %6808 = vmatpush1.bf16.msra.mxu0 0
      %6809 = vmatprep.subr.bf16.mxu0 0
      %6810 = vmatpush1.bf16.msra.mxu0 0
      %6811 = vmatprep.subr.bf16.mxu0 0
      %6812 = vmatpush1.bf16.msra.mxu0 0
      %6813 = vmatprep.subr.bf16.mxu0 0
      %6814 = vmatpush1.bf16.msra.mxu0 0
      %6815 = vmatprep.subr.bf16.mxu0 0
      %6816 = vmatpush1.bf16.msra.mxu0 0
      %6817 = vmatprep.subr.bf16.mxu0 0
      %6818 = vmatpush1.bf16.msra.mxu0 %v6801
      %6819 = vmatprep.subr.bf16.mxu0 0
      %6820 = vmatpush2.bf16.msra.mxu0 0
      %6821 = vmatprep.subr.bf16.mxu0 0
      %6822 = vmatpush2.bf16.msra.mxu0 0
      %6823 = vmatprep.subr.bf16.mxu0 0
      %6824 = vmatpush2.bf16.msra.mxu0 0
      %6825 = vmatprep.subr.bf16.mxu0 0
      %6826 = vmatpush2.bf16.msra.mxu0 0
      %6827 = vmatprep.subr.bf16.mxu0 0
      %6828 = vmatpush2.bf16.msra.mxu0 0
      %6829 = vmatprep.subr.bf16.mxu0 0
      %6830 = vmatpush2.bf16.msra.mxu0 0
      %6831 = vmatprep.subr.bf16.mxu0 0
      %6832 = vmatpush2.bf16.msra.mxu0 0
      %6833 = vmatprep.subr.bf16.mxu0 0
      %6834 = vmatpush2.bf16.msra.mxu0 0
      %6835 = vmatprep.mubr.bf16.mxu0 0
      %6836 = vmatmul.mubr.bf16.gmra.mxu0 %v6798
      %v6837 = vpop.f32.mrf.mxu0
      %v6838 = vadd.f32 0.0, %v6837
      %v6839 = vpop.f32.mrf.mxu0
      %v6840 = vpop.f32.mrf.mxu0
      %v6841 = vpop.f32.mrf.mxu0
      %6842 = vdwg.mxu0
      %v6844 = vsel %vm5643, %v6013, 0
      %v6847 = vsel %vm6063, %v6045, 0
      %6849 = vmatprep.subr.bf16.mxu0 0
      %6850 = vmatpush1.bf16.msra.mxu0 0
      %6851 = vmatprep.subr.bf16.mxu0 0
      %6852 = vmatpush1.bf16.msra.mxu0 0
      %6853 = vmatprep.subr.bf16.mxu0 0
      %6854 = vmatpush1.bf16.msra.mxu0 0
      %6855 = vmatprep.subr.bf16.mxu0 0
      %6856 = vmatpush1.bf16.msra.mxu0 0
      %6857 = vmatprep.subr.bf16.mxu0 0
      %6858 = vmatpush1.bf16.msra.mxu0 0
      %6859 = vmatprep.subr.bf16.mxu0 0
      %6860 = vmatpush1.bf16.msra.mxu0 0
      %6861 = vmatprep.subr.bf16.mxu0 0
      %6862 = vmatpush1.bf16.msra.mxu0 0
      %6863 = vmatprep.subr.bf16.mxu0 0
      %6864 = vmatpush1.bf16.msra.mxu0 %v6847
      %6865 = vmatprep.subr.bf16.mxu0 0
      %6866 = vmatpush2.bf16.msra.mxu0 0
      %6867 = vmatprep.subr.bf16.mxu0 0
      %6868 = vmatpush2.bf16.msra.mxu0 0
      %6869 = vmatprep.subr.bf16.mxu0 0
      %6870 = vmatpush2.bf16.msra.mxu0 0
      %6871 = vmatprep.subr.bf16.mxu0 0
      %6872 = vmatpush2.bf16.msra.mxu0 0
      %6873 = vmatprep.subr.bf16.mxu0 0
      %6874 = vmatpush2.bf16.msra.mxu0 0
      %6875 = vmatprep.subr.bf16.mxu0 0
      %6876 = vmatpush2.bf16.msra.mxu0 0
      %6877 = vmatprep.subr.bf16.mxu0 0
      %6878 = vmatpush2.bf16.msra.mxu0 0
      %6879 = vmatprep.subr.bf16.mxu0 0
      %6880 = vmatpush2.bf16.msra.mxu0 0
      %6881 = vmatprep.mubr.bf16.mxu0 0
      %6882 = vmatmul.mubr.bf16.gmra.mxu0 %v6844
      %v6883 = vpop.f32.mrf.mxu0
      %v6884 = vadd.f32 0.0, %v6883
      %v6885 = vpop.f32.mrf.mxu0
      %v6886 = vpop.f32.mrf.mxu0
      %v6887 = vpop.f32.mrf.mxu0
      %6888 = vdwg.mxu0
      %v6890 = vsel %vm5643, %v6014, 0
      %v6893 = vsel %vm6063, %v6046, 0
      %6895 = vmatprep.subr.bf16.mxu0 0
      %6896 = vmatpush1.bf16.msra.mxu0 0
      %6897 = vmatprep.subr.bf16.mxu0 0
      %6898 = vmatpush1.bf16.msra.mxu0 0
      %6899 = vmatprep.subr.bf16.mxu0 0
      %6900 = vmatpush1.bf16.msra.mxu0 0
      %6901 = vmatprep.subr.bf16.mxu0 0
      %6902 = vmatpush1.bf16.msra.mxu0 0
      %6903 = vmatprep.subr.bf16.mxu0 0
      %6904 = vmatpush1.bf16.msra.mxu0 0
      %6905 = vmatprep.subr.bf16.mxu0 0
      %6906 = vmatpush1.bf16.msra.mxu0 0
      %6907 = vmatprep.subr.bf16.mxu0 0
      %6908 = vmatpush1.bf16.msra.mxu0 0
      %6909 = vmatprep.subr.bf16.mxu0 0
      %6910 = vmatpush1.bf16.msra.mxu0 %v6893
      %6911 = vmatprep.subr.bf16.mxu0 0
      %6912 = vmatpush2.bf16.msra.mxu0 0
      %6913 = vmatprep.subr.bf16.mxu0 0
      %6914 = vmatpush2.bf16.msra.mxu0 0
      %6915 = vmatprep.subr.bf16.mxu0 0
      %6916 = vmatpush2.bf16.msra.mxu0 0
      %6917 = vmatprep.subr.bf16.mxu0 0
      %6918 = vmatpush2.bf16.msra.mxu0 0
      %6919 = vmatprep.subr.bf16.mxu0 0
      %6920 = vmatpush2.bf16.msra.mxu0 0
      %6921 = vmatprep.subr.bf16.mxu0 0
      %6922 = vmatpush2.bf16.msra.mxu0 0
      %6923 = vmatprep.subr.bf16.mxu0 0
      %6924 = vmatpush2.bf16.msra.mxu0 0
      %6925 = vmatprep.subr.bf16.mxu0 0
      %6926 = vmatpush2.bf16.msra.mxu0 0
      %6927 = vmatprep.mubr.bf16.mxu0 0
      %6928 = vmatmul.mubr.bf16.gmra.mxu0 %v6890
      %v6929 = vpop.f32.mrf.mxu0
      %v6930 = vadd.f32 0.0, %v6929
      %v6931 = vpop.f32.mrf.mxu0
      %v6932 = vpop.f32.mrf.mxu0
      %v6933 = vpop.f32.mrf.mxu0
      %6934 = vdwg.mxu0
      %v6936 = vsel %vm5643, %v6015, 0
      %v6939 = vsel %vm6063, %v6047, 0
      %6941 = vmatprep.subr.bf16.mxu0 0
      %6942 = vmatpush1.bf16.msra.mxu0 0
      %6943 = vmatprep.subr.bf16.mxu0 0
      %6944 = vmatpush1.bf16.msra.mxu0 0
      %6945 = vmatprep.subr.bf16.mxu0 0
      %6946 = vmatpush1.bf16.msra.mxu0 0
      %6947 = vmatprep.subr.bf16.mxu0 0
      %6948 = vmatpush1.bf16.msra.mxu0 0
      %6949 = vmatprep.subr.bf16.mxu0 0
      %6950 = vmatpush1.bf16.msra.mxu0 0
      %6951 = vmatprep.subr.bf16.mxu0 0
      %6952 = vmatpush1.bf16.msra.mxu0 0
      %6953 = vmatprep.subr.bf16.mxu0 0
      %6954 = vmatpush1.bf16.msra.mxu0 0
      %6955 = vmatprep.subr.bf16.mxu0 0
      %6956 = vmatpush1.bf16.msra.mxu0 %v6939
      %6957 = vmatprep.subr.bf16.mxu0 0
      %6958 = vmatpush2.bf16.msra.mxu0 0
      %6959 = vmatprep.subr.bf16.mxu0 0
      %6960 = vmatpush2.bf16.msra.mxu0 0
      %6961 = vmatprep.subr.bf16.mxu0 0
      %6962 = vmatpush2.bf16.msra.mxu0 0
      %6963 = vmatprep.subr.bf16.mxu0 0
      %6964 = vmatpush2.bf16.msra.mxu0 0
      %6965 = vmatprep.subr.bf16.mxu0 0
      %6966 = vmatpush2.bf16.msra.mxu0 0
      %6967 = vmatprep.subr.bf16.mxu0 0
      %6968 = vmatpush2.bf16.msra.mxu0 0
      %6969 = vmatprep.subr.bf16.mxu0 0
      %6970 = vmatpush2.bf16.msra.mxu0 0
      %6971 = vmatprep.subr.bf16.mxu0 0
      %6972 = vmatpush2.bf16.msra.mxu0 0
      %6973 = vmatprep.mubr.bf16.mxu0 0
      %6974 = vmatmul.mubr.bf16.gmra.mxu0 %v6936
      %v6975 = vpop.f32.mrf.mxu0
      %v6976 = vadd.f32 0.0, %v6975
      %v6977 = vpop.f32.mrf.mxu0
      %v6978 = vpop.f32.mrf.mxu0
      %v6979 = vpop.f32.mrf.mxu0
      %6980 = vdwg.mxu0
      %v6982 = vsel %vm5643, %v6016, 0
      %v6985 = vsel %vm6063, %v6048, 0
      %6987 = vmatprep.subr.bf16.mxu0 0
      %6988 = vmatpush1.bf16.msra.mxu0 0
      %6989 = vmatprep.subr.bf16.mxu0 0
      %6990 = vmatpush1.bf16.msra.mxu0 0
      %6991 = vmatprep.subr.bf16.mxu0 0
      %6992 = vmatpush1.bf16.msra.mxu0 0
      %6993 = vmatprep.subr.bf16.mxu0 0
      %6994 = vmatpush1.bf16.msra.mxu0 0
      %6995 = vmatprep.subr.bf16.mxu0 0
      %6996 = vmatpush1.bf16.msra.mxu0 0
      %6997 = vmatprep.subr.bf16.mxu0 0
      %6998 = vmatpush1.bf16.msra.mxu0 0
      %6999 = vmatprep.subr.bf16.mxu0 0
      %7000 = vmatpush1.bf16.msra.mxu0 0
      %7001 = vmatprep.subr.bf16.mxu0 0
      %7002 = vmatpush1.bf16.msra.mxu0 %v6985
      %7003 = vmatprep.subr.bf16.mxu0 0
      %7004 = vmatpush2.bf16.msra.mxu0 0
      %7005 = vmatprep.subr.bf16.mxu0 0
      %7006 = vmatpush2.bf16.msra.mxu0 0
      %7007 = vmatprep.subr.bf16.mxu0 0
      %7008 = vmatpush2.bf16.msra.mxu0 0
      %7009 = vmatprep.subr.bf16.mxu0 0
      %7010 = vmatpush2.bf16.msra.mxu0 0
      %7011 = vmatprep.subr.bf16.mxu0 0
      %7012 = vmatpush2.bf16.msra.mxu0 0
      %7013 = vmatprep.subr.bf16.mxu0 0
      %7014 = vmatpush2.bf16.msra.mxu0 0
      %7015 = vmatprep.subr.bf16.mxu0 0
      %7016 = vmatpush2.bf16.msra.mxu0 0
      %7017 = vmatprep.subr.bf16.mxu0 0
      %7018 = vmatpush2.bf16.msra.mxu0 0
      %7019 = vmatprep.mubr.bf16.mxu0 0
      %7020 = vmatmul.mubr.bf16.gmra.mxu0 %v6982
      %v7021 = vpop.f32.mrf.mxu0
      %v7022 = vadd.f32 0.0, %v7021
      %v7023 = vpop.f32.mrf.mxu0
      %v7024 = vpop.f32.mrf.mxu0
      %v7025 = vpop.f32.mrf.mxu0
      %7026 = vdwg.mxu0
      %v7028 = vsel %vm5643, %v6017, 0
      %v7031 = vsel %vm6063, %v6049, 0
      %7033 = vmatprep.subr.bf16.mxu0 0
      %7034 = vmatpush1.bf16.msra.mxu0 0
      %7035 = vmatprep.subr.bf16.mxu0 0
      %7036 = vmatpush1.bf16.msra.mxu0 0
      %7037 = vmatprep.subr.bf16.mxu0 0
      %7038 = vmatpush1.bf16.msra.mxu0 0
      %7039 = vmatprep.subr.bf16.mxu0 0
      %7040 = vmatpush1.bf16.msra.mxu0 0
      %7041 = vmatprep.subr.bf16.mxu0 0
      %7042 = vmatpush1.bf16.msra.mxu0 0
      %7043 = vmatprep.subr.bf16.mxu0 0
      %7044 = vmatpush1.bf16.msra.mxu0 0
      %7045 = vmatprep.subr.bf16.mxu0 0
      %7046 = vmatpush1.bf16.msra.mxu0 0
      %7047 = vmatprep.subr.bf16.mxu0 0
      %7048 = vmatpush1.bf16.msra.mxu0 %v7031
      %7049 = vmatprep.subr.bf16.mxu0 0
      %7050 = vmatpush2.bf16.msra.mxu0 0
      %7051 = vmatprep.subr.bf16.mxu0 0
      %7052 = vmatpush2.bf16.msra.mxu0 0
      %7053 = vmatprep.subr.bf16.mxu0 0
      %7054 = vmatpush2.bf16.msra.mxu0 0
      %7055 = vmatprep.subr.bf16.mxu0 0
      %7056 = vmatpush2.bf16.msra.mxu0 0
      %7057 = vmatprep.subr.bf16.mxu0 0
      %7058 = vmatpush2.bf16.msra.mxu0 0
      %7059 = vmatprep.subr.bf16.mxu0 0
      %7060 = vmatpush2.bf16.msra.mxu0 0
      %7061 = vmatprep.subr.bf16.mxu0 0
      %7062 = vmatpush2.bf16.msra.mxu0 0
      %7063 = vmatprep.subr.bf16.mxu0 0
      %7064 = vmatpush2.bf16.msra.mxu0 0
      %7065 = vmatprep.mubr.bf16.mxu0 0
      %7066 = vmatmul.mubr.bf16.gmra.mxu0 %v7028
      %v7067 = vpop.f32.mrf.mxu0
      %v7068 = vadd.f32 0.0, %v7067
      %v7069 = vpop.f32.mrf.mxu0
      %v7070 = vpop.f32.mrf.mxu0
      %v7071 = vpop.f32.mrf.mxu0
      %7072 = vdwg.mxu0
      %v7074 = vsel %vm5643, %v6018, 0
      %v7077 = vsel %vm6063, %v6050, 0
      %7079 = vmatprep.subr.bf16.mxu0 0
      %7080 = vmatpush1.bf16.msra.mxu0 0
      %7081 = vmatprep.subr.bf16.mxu0 0
      %7082 = vmatpush1.bf16.msra.mxu0 0
      %7083 = vmatprep.subr.bf16.mxu0 0
      %7084 = vmatpush1.bf16.msra.mxu0 0
      %7085 = vmatprep.subr.bf16.mxu0 0
      %7086 = vmatpush1.bf16.msra.mxu0 0
      %7087 = vmatprep.subr.bf16.mxu0 0
      %7088 = vmatpush1.bf16.msra.mxu0 0
      %7089 = vmatprep.subr.bf16.mxu0 0
      %7090 = vmatpush1.bf16.msra.mxu0 0
      %7091 = vmatprep.subr.bf16.mxu0 0
      %7092 = vmatpush1.bf16.msra.mxu0 0
      %7093 = vmatprep.subr.bf16.mxu0 0
      %7094 = vmatpush1.bf16.msra.mxu0 %v7077
      %7095 = vmatprep.subr.bf16.mxu0 0
      %7096 = vmatpush2.bf16.msra.mxu0 0
      %7097 = vmatprep.subr.bf16.mxu0 0
      %7098 = vmatpush2.bf16.msra.mxu0 0
      %7099 = vmatprep.subr.bf16.mxu0 0
      %7100 = vmatpush2.bf16.msra.mxu0 0
      %7101 = vmatprep.subr.bf16.mxu0 0
      %7102 = vmatpush2.bf16.msra.mxu0 0
      %7103 = vmatprep.subr.bf16.mxu0 0
      %7104 = vmatpush2.bf16.msra.mxu0 0
      %7105 = vmatprep.subr.bf16.mxu0 0
      %7106 = vmatpush2.bf16.msra.mxu0 0
      %7107 = vmatprep.subr.bf16.mxu0 0
      %7108 = vmatpush2.bf16.msra.mxu0 0
      %7109 = vmatprep.subr.bf16.mxu0 0
      %7110 = vmatpush2.bf16.msra.mxu0 0
      %7111 = vmatprep.mubr.bf16.mxu0 0
      %7112 = vmatmul.mubr.bf16.gmra.mxu0 %v7074
      %v7113 = vpop.f32.mrf.mxu0
      %v7114 = vadd.f32 0.0, %v7113
      %v7115 = vpop.f32.mrf.mxu0
      %v7116 = vpop.f32.mrf.mxu0
      %v7117 = vpop.f32.mrf.mxu0
      %7118 = vdwg.mxu0
      %v7120 = vsel %vm5643, %v6019, 0
      %v7123 = vsel %vm6063, %v6051, 0
      %7125 = vmatprep.subr.bf16.mxu0 0
      %7126 = vmatpush1.bf16.msra.mxu0 0
      %7127 = vmatprep.subr.bf16.mxu0 0
      %7128 = vmatpush1.bf16.msra.mxu0 0
      %7129 = vmatprep.subr.bf16.mxu0 0
      %7130 = vmatpush1.bf16.msra.mxu0 0
      %7131 = vmatprep.subr.bf16.mxu0 0
      %7132 = vmatpush1.bf16.msra.mxu0 0
      %7133 = vmatprep.subr.bf16.mxu0 0
      %7134 = vmatpush1.bf16.msra.mxu0 0
      %7135 = vmatprep.subr.bf16.mxu0 0
      %7136 = vmatpush1.bf16.msra.mxu0 0
      %7137 = vmatprep.subr.bf16.mxu0 0
      %7138 = vmatpush1.bf16.msra.mxu0 0
      %7139 = vmatprep.subr.bf16.mxu0 0
      %7140 = vmatpush1.bf16.msra.mxu0 %v7123
      %7141 = vmatprep.subr.bf16.mxu0 0
      %7142 = vmatpush2.bf16.msra.mxu0 0
      %7143 = vmatprep.subr.bf16.mxu0 0
      %7144 = vmatpush2.bf16.msra.mxu0 0
      %7145 = vmatprep.subr.bf16.mxu0 0
      %7146 = vmatpush2.bf16.msra.mxu0 0
      %7147 = vmatprep.subr.bf16.mxu0 0
      %7148 = vmatpush2.bf16.msra.mxu0 0
      %7149 = vmatprep.subr.bf16.mxu0 0
      %7150 = vmatpush2.bf16.msra.mxu0 0
      %7151 = vmatprep.subr.bf16.mxu0 0
      %7152 = vmatpush2.bf16.msra.mxu0 0
      %7153 = vmatprep.subr.bf16.mxu0 0
      %7154 = vmatpush2.bf16.msra.mxu0 0
      %7155 = vmatprep.subr.bf16.mxu0 0
      %7156 = vmatpush2.bf16.msra.mxu0 0
      %7157 = vmatprep.mubr.bf16.mxu0 0
      %7158 = vmatmul.mubr.bf16.gmra.mxu0 %v7120
      %v7159 = vpop.f32.mrf.mxu0
      %v7160 = vadd.f32 0.0, %v7159
      %v7161 = vpop.f32.mrf.mxu0
      %v7162 = vpop.f32.mrf.mxu0
      %v7163 = vpop.f32.mrf.mxu0
      %7164 = vdwg.mxu0
      %v7166 = vsel %vm5643, %v6020, 0
      %v7169 = vsel %vm6063, %v6052, 0
      %7171 = vmatprep.subr.bf16.mxu0 0
      %7172 = vmatpush1.bf16.msra.mxu0 0
      %7173 = vmatprep.subr.bf16.mxu0 0
      %7174 = vmatpush1.bf16.msra.mxu0 0
      %7175 = vmatprep.subr.bf16.mxu0 0
      %7176 = vmatpush1.bf16.msra.mxu0 0
      %7177 = vmatprep.subr.bf16.mxu0 0
      %7178 = vmatpush1.bf16.msra.mxu0 0
      %7179 = vmatprep.subr.bf16.mxu0 0
      %7180 = vmatpush1.bf16.msra.mxu0 0
      %7181 = vmatprep.subr.bf16.mxu0 0
      %7182 = vmatpush1.bf16.msra.mxu0 0
      %7183 = vmatprep.subr.bf16.mxu0 0
      %7184 = vmatpush1.bf16.msra.mxu0 0
      %7185 = vmatprep.subr.bf16.mxu0 0
      %7186 = vmatpush1.bf16.msra.mxu0 %v7169
      %7187 = vmatprep.subr.bf16.mxu0 0
      %7188 = vmatpush2.bf16.msra.mxu0 0
      %7189 = vmatprep.subr.bf16.mxu0 0
      %7190 = vmatpush2.bf16.msra.mxu0 0
      %7191 = vmatprep.subr.bf16.mxu0 0
      %7192 = vmatpush2.bf16.msra.mxu0 0
      %7193 = vmatprep.subr.bf16.mxu0 0
      %7194 = vmatpush2.bf16.msra.mxu0 0
      %7195 = vmatprep.subr.bf16.mxu0 0
      %7196 = vmatpush2.bf16.msra.mxu0 0
      %7197 = vmatprep.subr.bf16.mxu0 0
      %7198 = vmatpush2.bf16.msra.mxu0 0
      %7199 = vmatprep.subr.bf16.mxu0 0
      %7200 = vmatpush2.bf16.msra.mxu0 0
      %7201 = vmatprep.subr.bf16.mxu0 0
      %7202 = vmatpush2.bf16.msra.mxu0 0
      %7203 = vmatprep.mubr.bf16.mxu0 0
      %7204 = vmatmul.mubr.bf16.gmra.mxu0 %v7166
      %v7205 = vpop.f32.mrf.mxu0
      %v7206 = vadd.f32 0.0, %v7205
      %v7207 = vpop.f32.mrf.mxu0
      %v7208 = vpop.f32.mrf.mxu0
      %v7209 = vpop.f32.mrf.mxu0
      %7210 = vdwg.mxu0
      %v7212 = vsel %vm5643, %v6021, 0
      %v7215 = vsel %vm6063, %v6053, 0
      %7217 = vmatprep.subr.bf16.mxu0 0
      %7218 = vmatpush1.bf16.msra.mxu0 0
      %7219 = vmatprep.subr.bf16.mxu0 0
      %7220 = vmatpush1.bf16.msra.mxu0 0
      %7221 = vmatprep.subr.bf16.mxu0 0
      %7222 = vmatpush1.bf16.msra.mxu0 0
      %7223 = vmatprep.subr.bf16.mxu0 0
      %7224 = vmatpush1.bf16.msra.mxu0 0
      %7225 = vmatprep.subr.bf16.mxu0 0
      %7226 = vmatpush1.bf16.msra.mxu0 0
      %7227 = vmatprep.subr.bf16.mxu0 0
      %7228 = vmatpush1.bf16.msra.mxu0 0
      %7229 = vmatprep.subr.bf16.mxu0 0
      %7230 = vmatpush1.bf16.msra.mxu0 0
      %7231 = vmatprep.subr.bf16.mxu0 0
      %7232 = vmatpush1.bf16.msra.mxu0 %v7215
      %7233 = vmatprep.subr.bf16.mxu0 0
      %7234 = vmatpush2.bf16.msra.mxu0 0
      %7235 = vmatprep.subr.bf16.mxu0 0
      %7236 = vmatpush2.bf16.msra.mxu0 0
      %7237 = vmatprep.subr.bf16.mxu0 0
      %7238 = vmatpush2.bf16.msra.mxu0 0
      %7239 = vmatprep.subr.bf16.mxu0 0
      %7240 = vmatpush2.bf16.msra.mxu0 0
      %7241 = vmatprep.subr.bf16.mxu0 0
      %7242 = vmatpush2.bf16.msra.mxu0 0
      %7243 = vmatprep.subr.bf16.mxu0 0
      %7244 = vmatpush2.bf16.msra.mxu0 0
      %7245 = vmatprep.subr.bf16.mxu0 0
      %7246 = vmatpush2.bf16.msra.mxu0 0
      %7247 = vmatprep.subr.bf16.mxu0 0
      %7248 = vmatpush2.bf16.msra.mxu0 0
      %7249 = vmatprep.mubr.bf16.mxu0 0
      %7250 = vmatmul.mubr.bf16.gmra.mxu0 %v7212
      %v7251 = vpop.f32.mrf.mxu0
      %v7252 = vadd.f32 0.0, %v7251
      %v7253 = vpop.f32.mrf.mxu0
      %v7254 = vpop.f32.mrf.mxu0
      %v7255 = vpop.f32.mrf.mxu0
      %7256 = vdwg.mxu0
      %v7258 = vsel %vm5643, %v6022, 0
      %v7261 = vsel %vm6063, %v6054, 0
      %7263 = vmatprep.subr.bf16.mxu0 0
      %7264 = vmatpush1.bf16.msra.mxu0 0
      %7265 = vmatprep.subr.bf16.mxu0 0
      %7266 = vmatpush1.bf16.msra.mxu0 0
      %7267 = vmatprep.subr.bf16.mxu0 0
      %7268 = vmatpush1.bf16.msra.mxu0 0
      %7269 = vmatprep.subr.bf16.mxu0 0
      %7270 = vmatpush1.bf16.msra.mxu0 0
      %7271 = vmatprep.subr.bf16.mxu0 0
      %7272 = vmatpush1.bf16.msra.mxu0 0
      %7273 = vmatprep.subr.bf16.mxu0 0
      %7274 = vmatpush1.bf16.msra.mxu0 0
      %7275 = vmatprep.subr.bf16.mxu0 0
      %7276 = vmatpush1.bf16.msra.mxu0 0
      %7277 = vmatprep.subr.bf16.mxu0 0
      %7278 = vmatpush1.bf16.msra.mxu0 %v7261
      %7279 = vmatprep.subr.bf16.mxu0 0
      %7280 = vmatpush2.bf16.msra.mxu0 0
      %7281 = vmatprep.subr.bf16.mxu0 0
      %7282 = vmatpush2.bf16.msra.mxu0 0
      %7283 = vmatprep.subr.bf16.mxu0 0
      %7284 = vmatpush2.bf16.msra.mxu0 0
      %7285 = vmatprep.subr.bf16.mxu0 0
      %7286 = vmatpush2.bf16.msra.mxu0 0
      %7287 = vmatprep.subr.bf16.mxu0 0
      %7288 = vmatpush2.bf16.msra.mxu0 0
      %7289 = vmatprep.subr.bf16.mxu0 0
      %7290 = vmatpush2.bf16.msra.mxu0 0
      %7291 = vmatprep.subr.bf16.mxu0 0
      %7292 = vmatpush2.bf16.msra.mxu0 0
      %7293 = vmatprep.subr.bf16.mxu0 0
      %7294 = vmatpush2.bf16.msra.mxu0 0
      %7295 = vmatprep.mubr.bf16.mxu0 0
      %7296 = vmatmul.mubr.bf16.gmra.mxu0 %v7258
      %v7297 = vpop.f32.mrf.mxu0
      %v7298 = vadd.f32 0.0, %v7297
      %v7299 = vpop.f32.mrf.mxu0
      %v7300 = vpop.f32.mrf.mxu0
      %v7301 = vpop.f32.mrf.mxu0
      %7302 = vdwg.mxu0
      %v7304 = vsel %vm5643, %v6023, 0
      %v7307 = vsel %vm6063, %v6055, 0
      %7309 = vmatprep.subr.bf16.mxu0 0
      %7310 = vmatpush1.bf16.msra.mxu0 0
      %7311 = vmatprep.subr.bf16.mxu0 0
      %7312 = vmatpush1.bf16.msra.mxu0 0
      %7313 = vmatprep.subr.bf16.mxu0 0
      %7314 = vmatpush1.bf16.msra.mxu0 0
      %7315 = vmatprep.subr.bf16.mxu0 0
      %7316 = vmatpush1.bf16.msra.mxu0 0
      %7317 = vmatprep.subr.bf16.mxu0 0
      %7318 = vmatpush1.bf16.msra.mxu0 0
      %7319 = vmatprep.subr.bf16.mxu0 0
      %7320 = vmatpush1.bf16.msra.mxu0 0
      %7321 = vmatprep.subr.bf16.mxu0 0
      %7322 = vmatpush1.bf16.msra.mxu0 0
      %7323 = vmatprep.subr.bf16.mxu0 0
      %7324 = vmatpush1.bf16.msra.mxu0 %v7307
      %7325 = vmatprep.subr.bf16.mxu0 0
      %7326 = vmatpush2.bf16.msra.mxu0 0
      %7327 = vmatprep.subr.bf16.mxu0 0
      %7328 = vmatpush2.bf16.msra.mxu0 0
      %7329 = vmatprep.subr.bf16.mxu0 0
      %7330 = vmatpush2.bf16.msra.mxu0 0
      %7331 = vmatprep.subr.bf16.mxu0 0
      %7332 = vmatpush2.bf16.msra.mxu0 0
      %7333 = vmatprep.subr.bf16.mxu0 0
      %7334 = vmatpush2.bf16.msra.mxu0 0
      %7335 = vmatprep.subr.bf16.mxu0 0
      %7336 = vmatpush2.bf16.msra.mxu0 0
      %7337 = vmatprep.subr.bf16.mxu0 0
      %7338 = vmatpush2.bf16.msra.mxu0 0
      %7339 = vmatprep.subr.bf16.mxu0 0
      %7340 = vmatpush2.bf16.msra.mxu0 0
      %7341 = vmatprep.mubr.bf16.mxu0 0
      %7342 = vmatmul.mubr.bf16.gmra.mxu0 %v7304
      %v7343 = vpop.f32.mrf.mxu0
      %v7344 = vadd.f32 0.0, %v7343
      %v7345 = vpop.f32.mrf.mxu0
      %v7346 = vpop.f32.mrf.mxu0
      %v7347 = vpop.f32.mrf.mxu0
      %7348 = vdwg.mxu0
      %v7350 = vsel %vm5643, %v6024, 0
      %v7353 = vsel %vm6063, %v6056, 0
      %7355 = vmatprep.subr.bf16.mxu0 0
      %7356 = vmatpush1.bf16.msra.mxu0 0
      %7357 = vmatprep.subr.bf16.mxu0 0
      %7358 = vmatpush1.bf16.msra.mxu0 0
      %7359 = vmatprep.subr.bf16.mxu0 0
      %7360 = vmatpush1.bf16.msra.mxu0 0
      %7361 = vmatprep.subr.bf16.mxu0 0
      %7362 = vmatpush1.bf16.msra.mxu0 0
      %7363 = vmatprep.subr.bf16.mxu0 0
      %7364 = vmatpush1.bf16.msra.mxu0 0
      %7365 = vmatprep.subr.bf16.mxu0 0
      %7366 = vmatpush1.bf16.msra.mxu0 0
      %7367 = vmatprep.subr.bf16.mxu0 0
      %7368 = vmatpush1.bf16.msra.mxu0 0
      %7369 = vmatprep.subr.bf16.mxu0 0
      %7370 = vmatpush1.bf16.msra.mxu0 %v7353
      %7371 = vmatprep.subr.bf16.mxu0 0
      %7372 = vmatpush2.bf16.msra.mxu0 0
      %7373 = vmatprep.subr.bf16.mxu0 0
      %7374 = vmatpush2.bf16.msra.mxu0 0
      %7375 = vmatprep.subr.bf16.mxu0 0
      %7376 = vmatpush2.bf16.msra.mxu0 0
      %7377 = vmatprep.subr.bf16.mxu0 0
      %7378 = vmatpush2.bf16.msra.mxu0 0
      %7379 = vmatprep.subr.bf16.mxu0 0
      %7380 = vmatpush2.bf16.msra.mxu0 0
      %7381 = vmatprep.subr.bf16.mxu0 0
      %7382 = vmatpush2.bf16.msra.mxu0 0
      %7383 = vmatprep.subr.bf16.mxu0 0
      %7384 = vmatpush2.bf16.msra.mxu0 0
      %7385 = vmatprep.subr.bf16.mxu0 0
      %7386 = vmatpush2.bf16.msra.mxu0 0
      %7387 = vmatprep.mubr.bf16.mxu0 0
      %7388 = vmatmul.mubr.bf16.gmra.mxu0 %v7350
      %v7389 = vpop.f32.mrf.mxu0
      %v7390 = vadd.f32 0.0, %v7389
      %v7391 = vpop.f32.mrf.mxu0
      %v7392 = vpop.f32.mrf.mxu0
      %v7393 = vpop.f32.mrf.mxu0
      %7394 = vdwg.mxu0
      %v7396 = vsel %vm5643, %v6025, 0
      %v7399 = vsel %vm6063, %v6057, 0
      %7401 = vmatprep.subr.bf16.mxu0 0
      %7402 = vmatpush1.bf16.msra.mxu0 0
      %7403 = vmatprep.subr.bf16.mxu0 0
      %7404 = vmatpush1.bf16.msra.mxu0 0
      %7405 = vmatprep.subr.bf16.mxu0 0
      %7406 = vmatpush1.bf16.msra.mxu0 0
      %7407 = vmatprep.subr.bf16.mxu0 0
      %7408 = vmatpush1.bf16.msra.mxu0 0
      %7409 = vmatprep.subr.bf16.mxu0 0
      %7410 = vmatpush1.bf16.msra.mxu0 0
      %7411 = vmatprep.subr.bf16.mxu0 0
      %7412 = vmatpush1.bf16.msra.mxu0 0
      %7413 = vmatprep.subr.bf16.mxu0 0
      %7414 = vmatpush1.bf16.msra.mxu0 0
      %7415 = vmatprep.subr.bf16.mxu0 0
      %7416 = vmatpush1.bf16.msra.mxu0 %v7399
      %7417 = vmatprep.subr.bf16.mxu0 0
      %7418 = vmatpush2.bf16.msra.mxu0 0
      %7419 = vmatprep.subr.bf16.mxu0 0
      %7420 = vmatpush2.bf16.msra.mxu0 0
      %7421 = vmatprep.subr.bf16.mxu0 0
      %7422 = vmatpush2.bf16.msra.mxu0 0
      %7423 = vmatprep.subr.bf16.mxu0 0
      %7424 = vmatpush2.bf16.msra.mxu0 0
      %7425 = vmatprep.subr.bf16.mxu0 0
      %7426 = vmatpush2.bf16.msra.mxu0 0
      %7427 = vmatprep.subr.bf16.mxu0 0
      %7428 = vmatpush2.bf16.msra.mxu0 0
      %7429 = vmatprep.subr.bf16.mxu0 0
      %7430 = vmatpush2.bf16.msra.mxu0 0
      %7431 = vmatprep.subr.bf16.mxu0 0
      %7432 = vmatpush2.bf16.msra.mxu0 0
      %7433 = vmatprep.mubr.bf16.mxu0 0
      %7434 = vmatmul.mubr.bf16.gmra.mxu0 %v7396
      %v7435 = vpop.f32.mrf.mxu0
      %v7436 = vadd.f32 0.0, %v7435
      %v7437 = vpop.f32.mrf.mxu0
      %v7438 = vpop.f32.mrf.mxu0
      %v7439 = vpop.f32.mrf.mxu0
      %7440 = vdwg.mxu0
      %v7442 = vsel %vm5643, %v6026, 0
      %v7445 = vsel %vm6063, %v6058, 0
      %7447 = vmatprep.subr.bf16.mxu0 0
      %7448 = vmatpush1.bf16.msra.mxu0 0
      %7449 = vmatprep.subr.bf16.mxu0 0
      %7450 = vmatpush1.bf16.msra.mxu0 0
      %7451 = vmatprep.subr.bf16.mxu0 0
      %7452 = vmatpush1.bf16.msra.mxu0 0
      %7453 = vmatprep.subr.bf16.mxu0 0
      %7454 = vmatpush1.bf16.msra.mxu0 0
      %7455 = vmatprep.subr.bf16.mxu0 0
      %7456 = vmatpush1.bf16.msra.mxu0 0
      %7457 = vmatprep.subr.bf16.mxu0 0
      %7458 = vmatpush1.bf16.msra.mxu0 0
      %7459 = vmatprep.subr.bf16.mxu0 0
      %7460 = vmatpush1.bf16.msra.mxu0 0
      %7461 = vmatprep.subr.bf16.mxu0 0
      %7462 = vmatpush1.bf16.msra.mxu0 %v7445
      %7463 = vmatprep.subr.bf16.mxu0 0
      %7464 = vmatpush2.bf16.msra.mxu0 0
      %7465 = vmatprep.subr.bf16.mxu0 0
      %7466 = vmatpush2.bf16.msra.mxu0 0
      %7467 = vmatprep.subr.bf16.mxu0 0
      %7468 = vmatpush2.bf16.msra.mxu0 0
      %7469 = vmatprep.subr.bf16.mxu0 0
      %7470 = vmatpush2.bf16.msra.mxu0 0
      %7471 = vmatprep.subr.bf16.mxu0 0
      %7472 = vmatpush2.bf16.msra.mxu0 0
      %7473 = vmatprep.subr.bf16.mxu0 0
      %7474 = vmatpush2.bf16.msra.mxu0 0
      %7475 = vmatprep.subr.bf16.mxu0 0
      %7476 = vmatpush2.bf16.msra.mxu0 0
      %7477 = vmatprep.subr.bf16.mxu0 0
      %7478 = vmatpush2.bf16.msra.mxu0 0
      %7479 = vmatprep.mubr.bf16.mxu0 0
      %7480 = vmatmul.mubr.bf16.gmra.mxu0 %v7442
      %v7481 = vpop.f32.mrf.mxu0
      %v7482 = vadd.f32 0.0, %v7481
      %v7483 = vpop.f32.mrf.mxu0
      %v7484 = vpop.f32.mrf.mxu0
      %v7485 = vpop.f32.mrf.mxu0
      %7486 = vdwg.mxu0
      %v7488 = vsel %vm5643, %v6027, 0
      %v7491 = vsel %vm6063, %v6059, 0
      %7493 = vmatprep.subr.bf16.mxu0 0
      %7494 = vmatpush1.bf16.msra.mxu0 0
      %7495 = vmatprep.subr.bf16.mxu0 0
      %7496 = vmatpush1.bf16.msra.mxu0 0
      %7497 = vmatprep.subr.bf16.mxu0 0
      %7498 = vmatpush1.bf16.msra.mxu0 0
      %7499 = vmatprep.subr.bf16.mxu0 0
      %7500 = vmatpush1.bf16.msra.mxu0 0
      %7501 = vmatprep.subr.bf16.mxu0 0
      %7502 = vmatpush1.bf16.msra.mxu0 0
      %7503 = vmatprep.subr.bf16.mxu0 0
      %7504 = vmatpush1.bf16.msra.mxu0 0
      %7505 = vmatprep.subr.bf16.mxu0 0
      %7506 = vmatpush1.bf16.msra.mxu0 0
      %7507 = vmatprep.subr.bf16.mxu0 0
      %7508 = vmatpush1.bf16.msra.mxu0 %v7491
      %7509 = vmatprep.subr.bf16.mxu0 0
      %7510 = vmatpush2.bf16.msra.mxu0 0
      %7511 = vmatprep.subr.bf16.mxu0 0
      %7512 = vmatpush2.bf16.msra.mxu0 0
      %7513 = vmatprep.subr.bf16.mxu0 0
      %7514 = vmatpush2.bf16.msra.mxu0 0
      %7515 = vmatprep.subr.bf16.mxu0 0
      %7516 = vmatpush2.bf16.msra.mxu0 0
      %7517 = vmatprep.subr.bf16.mxu0 0
      %7518 = vmatpush2.bf16.msra.mxu0 0
      %7519 = vmatprep.subr.bf16.mxu0 0
      %7520 = vmatpush2.bf16.msra.mxu0 0
      %7521 = vmatprep.subr.bf16.mxu0 0
      %7522 = vmatpush2.bf16.msra.mxu0 0
      %7523 = vmatprep.subr.bf16.mxu0 0
      %7524 = vmatpush2.bf16.msra.mxu0 0
      %7525 = vmatprep.mubr.bf16.mxu0 0
      %7526 = vmatmul.mubr.bf16.gmra.mxu0 %v7488
      %v7527 = vpop.f32.mrf.mxu0
      %v7528 = vadd.f32 0.0, %v7527
      %v7529 = vpop.f32.mrf.mxu0
      %v7530 = vpop.f32.mrf.mxu0
      %v7531 = vpop.f32.mrf.mxu0
      %7532 = vdwg.mxu0
      %v7533 = vcombine.low %v6102, %v6470
      %v7534 = vcombine.high %v6102, %v6470
      %v7536 = vunpack.c.l.s4 1983009808
      %v7537 = vunpack.c.0.s8 %v7536
      %v7538 = vlaneseq
      %v7539 = vshrl.u32 %v7538, 7
      %v7540 = vsub.s32 %v7537, %v7539
      %v7541 = vrot.slane %v7533, %v7540
      %v7543 = vunpack.c.l.s4 1983009808
      %v7544 = vunpack.c.0.s8 %v7543
      %v7545 = vlaneseq
      %v7546 = vshrl.u32 %v7545, 7
      %v7547 = vsub.s32 %v7544, %v7546
      %v7548 = vrot.slane %v7534, %v7547
      %v7549 = vcombine.low %v6286, %v6654
      %v7550 = vcombine.high %v6286, %v6654
      %v7552 = vunpack.c.l.s4 1983009808
      %v7553 = vunpack.c.0.s8 %v7552
      %v7554 = vlaneseq
      %v7555 = vshrl.u32 %v7554, 7
      %v7556 = vsub.s32 %v7553, %v7555
      %v7557 = vrot.slane %v7549, %v7556
      %v7559 = vunpack.c.l.s4 1983009808
      %v7560 = vunpack.c.0.s8 %v7559
      %v7561 = vlaneseq
      %v7562 = vshrl.u32 %v7561, 7
      %v7563 = vsub.s32 %v7560, %v7562
      %v7564 = vrot.slane %v7550, %v7563
      %v7565 = vcombine.low %v6838, %v7206
      %v7566 = vcombine.high %v6838, %v7206
      %v7568 = vunpack.c.l.s4 1983009808
      %v7569 = vunpack.c.0.s8 %v7568
      %v7570 = vlaneseq
      %v7571 = vshrl.u32 %v7570, 7
      %v7572 = vsub.s32 %v7569, %v7571
      %v7573 = vrot.slane %v7565, %v7572
      %v7575 = vunpack.c.l.s4 1983009808
      %v7576 = vunpack.c.0.s8 %v7575
      %v7577 = vlaneseq
      %v7578 = vshrl.u32 %v7577, 7
      %v7579 = vsub.s32 %v7576, %v7578
      %v7580 = vrot.slane %v7566, %v7579
      %v7581 = vcombine.low %v7022, %v7390
      %v7582 = vcombine.high %v7022, %v7390
      %v7584 = vunpack.c.l.s4 1983009808
      %v7585 = vunpack.c.0.s8 %v7584
      %v7586 = vlaneseq
      %v7587 = vshrl.u32 %v7586, 7
      %v7588 = vsub.s32 %v7585, %v7587
      %v7589 = vrot.slane %v7581, %v7588
      %v7591 = vunpack.c.l.s4 1983009808
      %v7592 = vunpack.c.0.s8 %v7591
      %v7593 = vlaneseq
      %v7594 = vshrl.u32 %v7593, 7
      %v7595 = vsub.s32 %v7592, %v7594
      %v7596 = vrot.slane %v7582, %v7595
      %v7597 = vcombine.low %v7541, %v7557
      %v7598 = vcombine.high %v7541, %v7557
      %v7600 = vunpack.c.l.s4 1934713408
      %v7601 = vunpack.c.0.s8 %v7600
      %v7602 = vlaneseq
      %v7603 = vshrl.u32 %v7602, 7
      %v7604 = vsub.s32 %v7601, %v7603
      %v7605 = vrot.slane %v7597, %v7604
      %v7607 = vunpack.c.l.s4 1934713408
      %v7608 = vunpack.c.0.s8 %v7607
      %v7609 = vlaneseq
      %v7610 = vshrl.u32 %v7609, 7
      %v7611 = vsub.s32 %v7608, %v7610
      %v7612 = vrot.slane %v7598, %v7611
      %v7613 = vcombine.low %v7548, %v7564
      %v7614 = vcombine.high %v7548, %v7564
      %v7616 = vunpack.c.l.s4 1934713408
      %v7617 = vunpack.c.0.s8 %v7616
      %v7618 = vlaneseq
      %v7619 = vshrl.u32 %v7618, 7
      %v7620 = vsub.s32 %v7617, %v7619
      %v7621 = vrot.slane %v7613, %v7620
      %v7623 = vunpack.c.l.s4 1934713408
      %v7624 = vunpack.c.0.s8 %v7623
      %v7625 = vlaneseq
      %v7626 = vshrl.u32 %v7625, 7
      %v7627 = vsub.s32 %v7624, %v7626
      %v7628 = vrot.slane %v7614, %v7627
      %v7629 = vcombine.low %v7573, %v7589
      %v7630 = vcombine.high %v7573, %v7589
      %v7632 = vunpack.c.l.s4 1934713408
      %v7633 = vunpack.c.0.s8 %v7632
      %v7634 = vlaneseq
      %v7635 = vshrl.u32 %v7634, 7
      %v7636 = vsub.s32 %v7633, %v7635
      %v7637 = vrot.slane %v7629, %v7636
      %v7639 = vunpack.c.l.s4 1934713408
      %v7640 = vunpack.c.0.s8 %v7639
      %v7641 = vlaneseq
      %v7642 = vshrl.u32 %v7641, 7
      %v7643 = vsub.s32 %v7640, %v7642
      %v7644 = vrot.slane %v7630, %v7643
      %v7645 = vcombine.low %v7580, %v7596
      %v7646 = vcombine.high %v7580, %v7596
      %v7648 = vunpack.c.l.s4 1934713408
      %v7649 = vunpack.c.0.s8 %v7648
      %v7650 = vlaneseq
      %v7651 = vshrl.u32 %v7650, 7
      %v7652 = vsub.s32 %v7649, %v7651
      %v7653 = vrot.slane %v7645, %v7652
      %v7655 = vunpack.c.l.s4 1934713408
      %v7656 = vunpack.c.0.s8 %v7655
      %v7657 = vlaneseq
      %v7658 = vshrl.u32 %v7657, 7
      %v7659 = vsub.s32 %v7656, %v7658
      %v7660 = vrot.slane %v7646, %v7659
      %v7661 = vcombine.low %v7605, %v7637
      %v7662 = vcombine.high %v7605, %v7637
      %v7663 = vcombine.low %v7612, %v7644
      %v7664 = vcombine.high %v7612, %v7644
      %v7665 = vcombine.low %v7621, %v7653
      %v7666 = vcombine.high %v7621, %v7653
      %v7667 = vcombine.low %v7628, %v7660
      %v7668 = vcombine.high %v7628, %v7660
      %v7669 = vcombine.low %v6148, %v6516
      %v7670 = vcombine.high %v6148, %v6516
      %v7672 = vunpack.c.l.s4 1983009808
      %v7673 = vunpack.c.0.s8 %v7672
      %v7674 = vlaneseq
      %v7675 = vshrl.u32 %v7674, 7
      %v7676 = vsub.s32 %v7673, %v7675
      %v7677 = vrot.slane %v7669, %v7676
      %v7679 = vunpack.c.l.s4 1983009808
      %v7680 = vunpack.c.0.s8 %v7679
      %v7681 = vlaneseq
      %v7682 = vshrl.u32 %v7681, 7
      %v7683 = vsub.s32 %v7680, %v7682
      %v7684 = vrot.slane %v7670, %v7683
      %v7685 = vcombine.low %v6332, %v6700
      %v7686 = vcombine.high %v6332, %v6700
      %v7688 = vunpack.c.l.s4 1983009808
      %v7689 = vunpack.c.0.s8 %v7688
      %v7690 = vlaneseq
      %v7691 = vshrl.u32 %v7690, 7
      %v7692 = vsub.s32 %v7689, %v7691
      %v7693 = vrot.slane %v7685, %v7692
      %v7695 = vunpack.c.l.s4 1983009808
      %v7696 = vunpack.c.0.s8 %v7695
      %v7697 = vlaneseq
      %v7698 = vshrl.u32 %v7697, 7
      %v7699 = vsub.s32 %v7696, %v7698
      %v7700 = vrot.slane %v7686, %v7699
      %v7701 = vcombine.low %v6884, %v7252
      %v7702 = vcombine.high %v6884, %v7252
      %v7704 = vunpack.c.l.s4 1983009808
      %v7705 = vunpack.c.0.s8 %v7704
      %v7706 = vlaneseq
      %v7707 = vshrl.u32 %v7706, 7
      %v7708 = vsub.s32 %v7705, %v7707
      %v7709 = vrot.slane %v7701, %v7708
      %v7711 = vunpack.c.l.s4 1983009808
      %v7712 = vunpack.c.0.s8 %v7711
      %v7713 = vlaneseq
      %v7714 = vshrl.u32 %v7713, 7
      %v7715 = vsub.s32 %v7712, %v7714
      %v7716 = vrot.slane %v7702, %v7715
      %v7717 = vcombine.low %v7068, %v7436
      %v7718 = vcombine.high %v7068, %v7436
      %v7720 = vunpack.c.l.s4 1983009808
      %v7721 = vunpack.c.0.s8 %v7720
      %v7722 = vlaneseq
      %v7723 = vshrl.u32 %v7722, 7
      %v7724 = vsub.s32 %v7721, %v7723
      %v7725 = vrot.slane %v7717, %v7724
      %v7727 = vunpack.c.l.s4 1983009808
      %v7728 = vunpack.c.0.s8 %v7727
      %v7729 = vlaneseq
      %v7730 = vshrl.u32 %v7729, 7
      %v7731 = vsub.s32 %v7728, %v7730
      %v7732 = vrot.slane %v7718, %v7731
      %v7733 = vcombine.low %v7677, %v7693
      %v7734 = vcombine.high %v7677, %v7693
      %v7736 = vunpack.c.l.s4 1934713408
      %v7737 = vunpack.c.0.s8 %v7736
      %v7738 = vlaneseq
      %v7739 = vshrl.u32 %v7738, 7
      %v7740 = vsub.s32 %v7737, %v7739
      %v7741 = vrot.slane %v7733, %v7740
      %v7743 = vunpack.c.l.s4 1934713408
      %v7744 = vunpack.c.0.s8 %v7743
      %v7745 = vlaneseq
      %v7746 = vshrl.u32 %v7745, 7
      %v7747 = vsub.s32 %v7744, %v7746
      %v7748 = vrot.slane %v7734, %v7747
      %v7749 = vcombine.low %v7684, %v7700
      %v7750 = vcombine.high %v7684, %v7700
      %v7752 = vunpack.c.l.s4 1934713408
      %v7753 = vunpack.c.0.s8 %v7752
      %v7754 = vlaneseq
      %v7755 = vshrl.u32 %v7754, 7
      %v7756 = vsub.s32 %v7753, %v7755
      %v7757 = vrot.slane %v7749, %v7756
      %v7759 = vunpack.c.l.s4 1934713408
      %v7760 = vunpack.c.0.s8 %v7759
      %v7761 = vlaneseq
      %v7762 = vshrl.u32 %v7761, 7
      %v7763 = vsub.s32 %v7760, %v7762
      %v7764 = vrot.slane %v7750, %v7763
      %v7765 = vcombine.low %v7709, %v7725
      %v7766 = vcombine.high %v7709, %v7725
      %v7768 = vunpack.c.l.s4 1934713408
      %v7769 = vunpack.c.0.s8 %v7768
      %v7770 = vlaneseq
      %v7771 = vshrl.u32 %v7770, 7
      %v7772 = vsub.s32 %v7769, %v7771
      %v7773 = vrot.slane %v7765, %v7772
      %v7775 = vunpack.c.l.s4 1934713408
      %v7776 = vunpack.c.0.s8 %v7775
      %v7777 = vlaneseq
      %v7778 = vshrl.u32 %v7777, 7
      %v7779 = vsub.s32 %v7776, %v7778
      %v7780 = vrot.slane %v7766, %v7779
      %v7781 = vcombine.low %v7716, %v7732
      %v7782 = vcombine.high %v7716, %v7732
      %v7784 = vunpack.c.l.s4 1934713408
      %v7785 = vunpack.c.0.s8 %v7784
      %v7786 = vlaneseq
      %v7787 = vshrl.u32 %v7786, 7
      %v7788 = vsub.s32 %v7785, %v7787
      %v7789 = vrot.slane %v7781, %v7788
      %v7791 = vunpack.c.l.s4 1934713408
      %v7792 = vunpack.c.0.s8 %v7791
      %v7793 = vlaneseq
      %v7794 = vshrl.u32 %v7793, 7
      %v7795 = vsub.s32 %v7792, %v7794
      %v7796 = vrot.slane %v7782, %v7795
      %v7797 = vcombine.low %v7741, %v7773
      %v7798 = vcombine.high %v7741, %v7773
      %v7799 = vcombine.low %v7748, %v7780
      %v7800 = vcombine.high %v7748, %v7780
      %v7801 = vcombine.low %v7757, %v7789
      %v7802 = vcombine.high %v7757, %v7789
      %v7803 = vcombine.low %v7764, %v7796
      %v7804 = vcombine.high %v7764, %v7796
      %v7805 = vcombine.low %v6194, %v6562
      %v7806 = vcombine.high %v6194, %v6562
      %v7808 = vunpack.c.l.s4 1983009808
      %v7809 = vunpack.c.0.s8 %v7808
      %v7810 = vlaneseq
      %v7811 = vshrl.u32 %v7810, 7
      %v7812 = vsub.s32 %v7809, %v7811
      %v7813 = vrot.slane %v7805, %v7812
      %v7815 = vunpack.c.l.s4 1983009808
      %v7816 = vunpack.c.0.s8 %v7815
      %v7817 = vlaneseq
      %v7818 = vshrl.u32 %v7817, 7
      %v7819 = vsub.s32 %v7816, %v7818
      %v7820 = vrot.slane %v7806, %v7819
      %v7821 = vcombine.low %v6378, %v6746
      %v7822 = vcombine.high %v6378, %v6746
      %v7824 = vunpack.c.l.s4 1983009808
      %v7825 = vunpack.c.0.s8 %v7824
      %v7826 = vlaneseq
      %v7827 = vshrl.u32 %v7826, 7
      %v7828 = vsub.s32 %v7825, %v7827
      %v7829 = vrot.slane %v7821, %v7828
      %v7831 = vunpack.c.l.s4 1983009808
      %v7832 = vunpack.c.0.s8 %v7831
      %v7833 = vlaneseq
      %v7834 = vshrl.u32 %v7833, 7
      %v7835 = vsub.s32 %v7832, %v7834
      %v7836 = vrot.slane %v7822, %v7835
      %v7837 = vcombine.low %v6930, %v7298
      %v7838 = vcombine.high %v6930, %v7298
      %v7840 = vunpack.c.l.s4 1983009808
      %v7841 = vunpack.c.0.s8 %v7840
      %v7842 = vlaneseq
      %v7843 = vshrl.u32 %v7842, 7
      %v7844 = vsub.s32 %v7841, %v7843
      %v7845 = vrot.slane %v7837, %v7844
      %v7847 = vunpack.c.l.s4 1983009808
      %v7848 = vunpack.c.0.s8 %v7847
      %v7849 = vlaneseq
      %v7850 = vshrl.u32 %v7849, 7
      %v7851 = vsub.s32 %v7848, %v7850
      %v7852 = vrot.slane %v7838, %v7851
      %v7853 = vcombine.low %v7114, %v7482
      %v7854 = vcombine.high %v7114, %v7482
      %v7856 = vunpack.c.l.s4 1983009808
      %v7857 = vunpack.c.0.s8 %v7856
      %v7858 = vlaneseq
      %v7859 = vshrl.u32 %v7858, 7
      %v7860 = vsub.s32 %v7857, %v7859
      %v7861 = vrot.slane %v7853, %v7860
      %v7863 = vunpack.c.l.s4 1983009808
      %v7864 = vunpack.c.0.s8 %v7863
      %v7865 = vlaneseq
      %v7866 = vshrl.u32 %v7865, 7
      %v7867 = vsub.s32 %v7864, %v7866
      %v7868 = vrot.slane %v7854, %v7867
      %v7869 = vcombine.low %v7813, %v7829
      %v7870 = vcombine.high %v7813, %v7829
      %v7872 = vunpack.c.l.s4 1934713408
      %v7873 = vunpack.c.0.s8 %v7872
      %v7874 = vlaneseq
      %v7875 = vshrl.u32 %v7874, 7
      %v7876 = vsub.s32 %v7873, %v7875
      %v7877 = vrot.slane %v7869, %v7876
      %v7879 = vunpack.c.l.s4 1934713408
      %v7880 = vunpack.c.0.s8 %v7879
      %v7881 = vlaneseq
      %v7882 = vshrl.u32 %v7881, 7
      %v7883 = vsub.s32 %v7880, %v7882
      %v7884 = vrot.slane %v7870, %v7883
      %v7885 = vcombine.low %v7820, %v7836
      %v7886 = vcombine.high %v7820, %v7836
      %v7888 = vunpack.c.l.s4 1934713408
      %v7889 = vunpack.c.0.s8 %v7888
      %v7890 = vlaneseq
      %v7891 = vshrl.u32 %v7890, 7
      %v7892 = vsub.s32 %v7889, %v7891
      %v7893 = vrot.slane %v7885, %v7892
      %v7895 = vunpack.c.l.s4 1934713408
      %v7896 = vunpack.c.0.s8 %v7895
      %v7897 = vlaneseq
      %v7898 = vshrl.u32 %v7897, 7
      %v7899 = vsub.s32 %v7896, %v7898
      %v7900 = vrot.slane %v7886, %v7899
      %v7901 = vcombine.low %v7845, %v7861
      %v7902 = vcombine.high %v7845, %v7861
      %v7904 = vunpack.c.l.s4 1934713408
      %v7905 = vunpack.c.0.s8 %v7904
      %v7906 = vlaneseq
      %v7907 = vshrl.u32 %v7906, 7
      %v7908 = vsub.s32 %v7905, %v7907
      %v7909 = vrot.slane %v7901, %v7908
      %v7911 = vunpack.c.l.s4 1934713408
      %v7912 = vunpack.c.0.s8 %v7911
      %v7913 = vlaneseq
      %v7914 = vshrl.u32 %v7913, 7
      %v7915 = vsub.s32 %v7912, %v7914
      %v7916 = vrot.slane %v7902, %v7915
      %v7917 = vcombine.low %v7852, %v7868
      %v7918 = vcombine.high %v7852, %v7868
      %v7920 = vunpack.c.l.s4 1934713408
      %v7921 = vunpack.c.0.s8 %v7920
      %v7922 = vlaneseq
      %v7923 = vshrl.u32 %v7922, 7
      %v7924 = vsub.s32 %v7921, %v7923
      %v7925 = vrot.slane %v7917, %v7924
      %v7927 = vunpack.c.l.s4 1934713408
      %v7928 = vunpack.c.0.s8 %v7927
      %v7929 = vlaneseq
      %v7930 = vshrl.u32 %v7929, 7
      %v7931 = vsub.s32 %v7928, %v7930
      %v7932 = vrot.slane %v7918, %v7931
      %v7933 = vcombine.low %v7877, %v7909
      %v7934 = vcombine.high %v7877, %v7909
      %v7935 = vcombine.low %v7884, %v7916
      %v7936 = vcombine.high %v7884, %v7916
      %v7937 = vcombine.low %v7893, %v7925
      %v7938 = vcombine.high %v7893, %v7925
      %v7939 = vcombine.low %v7900, %v7932
      %v7940 = vcombine.high %v7900, %v7932
      %v7941 = vcombine.low %v6240, %v6608
      %v7942 = vcombine.high %v6240, %v6608
      %v7944 = vunpack.c.l.s4 1983009808
      %v7945 = vunpack.c.0.s8 %v7944
      %v7946 = vlaneseq
      %v7947 = vshrl.u32 %v7946, 7
      %v7948 = vsub.s32 %v7945, %v7947
      %v7949 = vrot.slane %v7941, %v7948
      %v7951 = vunpack.c.l.s4 1983009808
      %v7952 = vunpack.c.0.s8 %v7951
      %v7953 = vlaneseq
      %v7954 = vshrl.u32 %v7953, 7
      %v7955 = vsub.s32 %v7952, %v7954
      %v7956 = vrot.slane %v7942, %v7955
      %v7957 = vcombine.low %v6424, %v6792
      %v7958 = vcombine.high %v6424, %v6792
      %v7960 = vunpack.c.l.s4 1983009808
      %v7961 = vunpack.c.0.s8 %v7960
      %v7962 = vlaneseq
      %v7963 = vshrl.u32 %v7962, 7
      %v7964 = vsub.s32 %v7961, %v7963
      %v7965 = vrot.slane %v7957, %v7964
      %v7967 = vunpack.c.l.s4 1983009808
      %v7968 = vunpack.c.0.s8 %v7967
      %v7969 = vlaneseq
      %v7970 = vshrl.u32 %v7969, 7
      %v7971 = vsub.s32 %v7968, %v7970
      %v7972 = vrot.slane %v7958, %v7971
      %v7973 = vcombine.low %v6976, %v7344
      %v7974 = vcombine.high %v6976, %v7344
      %v7976 = vunpack.c.l.s4 1983009808
      %v7977 = vunpack.c.0.s8 %v7976
      %v7978 = vlaneseq
      %v7979 = vshrl.u32 %v7978, 7
      %v7980 = vsub.s32 %v7977, %v7979
      %v7981 = vrot.slane %v7973, %v7980
      %v7983 = vunpack.c.l.s4 1983009808
      %v7984 = vunpack.c.0.s8 %v7983
      %v7985 = vlaneseq
      %v7986 = vshrl.u32 %v7985, 7
      %v7987 = vsub.s32 %v7984, %v7986
      %v7988 = vrot.slane %v7974, %v7987
      %v7989 = vcombine.low %v7160, %v7528
      %v7990 = vcombine.high %v7160, %v7528
      %v7992 = vunpack.c.l.s4 1983009808
      %v7993 = vunpack.c.0.s8 %v7992
      %v7994 = vlaneseq
      %v7995 = vshrl.u32 %v7994, 7
      %v7996 = vsub.s32 %v7993, %v7995
      %v7997 = vrot.slane %v7989, %v7996
      %v7999 = vunpack.c.l.s4 1983009808
      %v8000 = vunpack.c.0.s8 %v7999
      %v8001 = vlaneseq
      %v8002 = vshrl.u32 %v8001, 7
      %v8003 = vsub.s32 %v8000, %v8002
      %v8004 = vrot.slane %v7990, %v8003
      %v8005 = vcombine.low %v7949, %v7965
      %v8006 = vcombine.high %v7949, %v7965
      %v8008 = vunpack.c.l.s4 1934713408
      %v8009 = vunpack.c.0.s8 %v8008
      %v8010 = vlaneseq
      %v8011 = vshrl.u32 %v8010, 7
      %v8012 = vsub.s32 %v8009, %v8011
      %v8013 = vrot.slane %v8005, %v8012
      %v8015 = vunpack.c.l.s4 1934713408
      %v8016 = vunpack.c.0.s8 %v8015
      %v8017 = vlaneseq
      %v8018 = vshrl.u32 %v8017, 7
      %v8019 = vsub.s32 %v8016, %v8018
      %v8020 = vrot.slane %v8006, %v8019
      %v8021 = vcombine.low %v7956, %v7972
      %v8022 = vcombine.high %v7956, %v7972
      %v8024 = vunpack.c.l.s4 1934713408
      %v8025 = vunpack.c.0.s8 %v8024
      %v8026 = vlaneseq
      %v8027 = vshrl.u32 %v8026, 7
      %v8028 = vsub.s32 %v8025, %v8027
      %v8029 = vrot.slane %v8021, %v8028
      %v8031 = vunpack.c.l.s4 1934713408
      %v8032 = vunpack.c.0.s8 %v8031
      %v8033 = vlaneseq
      %v8034 = vshrl.u32 %v8033, 7
      %v8035 = vsub.s32 %v8032, %v8034
      %v8036 = vrot.slane %v8022, %v8035
      %v8037 = vcombine.low %v7981, %v7997
      %v8038 = vcombine.high %v7981, %v7997
      %v8040 = vunpack.c.l.s4 1934713408
      %v8041 = vunpack.c.0.s8 %v8040
      %v8042 = vlaneseq
      %v8043 = vshrl.u32 %v8042, 7
      %v8044 = vsub.s32 %v8041, %v8043
      %v8045 = vrot.slane %v8037, %v8044
      %v8047 = vunpack.c.l.s4 1934713408
      %v8048 = vunpack.c.0.s8 %v8047
      %v8049 = vlaneseq
      %v8050 = vshrl.u32 %v8049, 7
      %v8051 = vsub.s32 %v8048, %v8050
      %v8052 = vrot.slane %v8038, %v8051
      %v8053 = vcombine.low %v7988, %v8004
      %v8054 = vcombine.high %v7988, %v8004
      %v8056 = vunpack.c.l.s4 1934713408
      %v8057 = vunpack.c.0.s8 %v8056
      %v8058 = vlaneseq
      %v8059 = vshrl.u32 %v8058, 7
      %v8060 = vsub.s32 %v8057, %v8059
      %v8061 = vrot.slane %v8053, %v8060
      %v8063 = vunpack.c.l.s4 1934713408
      %v8064 = vunpack.c.0.s8 %v8063
      %v8065 = vlaneseq
      %v8066 = vshrl.u32 %v8065, 7
      %v8067 = vsub.s32 %v8064, %v8066
      %v8068 = vrot.slane %v8054, %v8067
      %v8069 = vcombine.low %v8013, %v8045
      %v8070 = vcombine.high %v8013, %v8045
      %v8071 = vcombine.low %v8020, %v8052
      %v8072 = vcombine.high %v8020, %v8052
      %v8073 = vcombine.low %v8029, %v8061
      %v8074 = vcombine.high %v8029, %v8061
      %v8075 = vcombine.low %v8036, %v8068
      %v8076 = vcombine.high %v8036, %v8068
      %v8077 = vcombine.low %v7661, %v7663
      %v8078 = vcombine.high %v7661, %v7663
      %v8080 = vunpack.c.l.s4 1983009808
      %v8081 = vunpack.c.0.s8 %v8080
      %v8082 = vlaneseq
      %v8083 = vshrl.u32 %v8082, 7
      %v8084 = vsub.s32 %v8081, %v8083
      %v8085 = vrot.slane %v8077, %v8084
      %v8087 = vunpack.c.l.s4 1983009808
      %v8088 = vunpack.c.0.s8 %v8087
      %v8089 = vlaneseq
      %v8090 = vshrl.u32 %v8089, 7
      %v8091 = vsub.s32 %v8088, %v8090
      %v8092 = vrot.slane %v8078, %v8091
      %v8093 = vcombine.low %v7662, %v7664
      %v8094 = vcombine.high %v7662, %v7664
      %v8096 = vunpack.c.l.s4 1983009808
      %v8097 = vunpack.c.0.s8 %v8096
      %v8098 = vlaneseq
      %v8099 = vshrl.u32 %v8098, 7
      %v8100 = vsub.s32 %v8097, %v8099
      %v8101 = vrot.slane %v8093, %v8100
      %v8103 = vunpack.c.l.s4 1983009808
      %v8104 = vunpack.c.0.s8 %v8103
      %v8105 = vlaneseq
      %v8106 = vshrl.u32 %v8105, 7
      %v8107 = vsub.s32 %v8104, %v8106
      %v8108 = vrot.slane %v8094, %v8107
      %v8109 = vcombine.low %v7665, %v7667
      %v8110 = vcombine.high %v7665, %v7667
      %v8112 = vunpack.c.l.s4 1983009808
      %v8113 = vunpack.c.0.s8 %v8112
      %v8114 = vlaneseq
      %v8115 = vshrl.u32 %v8114, 7
      %v8116 = vsub.s32 %v8113, %v8115
      %v8117 = vrot.slane %v8109, %v8116
      %v8119 = vunpack.c.l.s4 1983009808
      %v8120 = vunpack.c.0.s8 %v8119
      %v8121 = vlaneseq
      %v8122 = vshrl.u32 %v8121, 7
      %v8123 = vsub.s32 %v8120, %v8122
      %v8124 = vrot.slane %v8110, %v8123
      %v8125 = vcombine.low %v7666, %v7668
      %v8126 = vcombine.high %v7666, %v7668
      %v8128 = vunpack.c.l.s4 1983009808
      %v8129 = vunpack.c.0.s8 %v8128
      %v8130 = vlaneseq
      %v8131 = vshrl.u32 %v8130, 7
      %v8132 = vsub.s32 %v8129, %v8131
      %v8133 = vrot.slane %v8125, %v8132
      %v8135 = vunpack.c.l.s4 1983009808
      %v8136 = vunpack.c.0.s8 %v8135
      %v8137 = vlaneseq
      %v8138 = vshrl.u32 %v8137, 7
      %v8139 = vsub.s32 %v8136, %v8138
      %v8140 = vrot.slane %v8126, %v8139
      %v8141 = vcombine.low %v8085, %v8101
      %v8142 = vcombine.high %v8085, %v8101
      %v8144 = vunpack.c.l.s4 1934713408
      %v8145 = vunpack.c.0.s8 %v8144
      %v8146 = vlaneseq
      %v8147 = vshrl.u32 %v8146, 7
      %v8148 = vsub.s32 %v8145, %v8147
      %v8149 = vrot.slane %v8141, %v8148
      %v8151 = vunpack.c.l.s4 1934713408
      %v8152 = vunpack.c.0.s8 %v8151
      %v8153 = vlaneseq
      %v8154 = vshrl.u32 %v8153, 7
      %v8155 = vsub.s32 %v8152, %v8154
      %v8156 = vrot.slane %v8142, %v8155
      %v8157 = vcombine.low %v8092, %v8108
      %v8158 = vcombine.high %v8092, %v8108
      %v8160 = vunpack.c.l.s4 1934713408
      %v8161 = vunpack.c.0.s8 %v8160
      %v8162 = vlaneseq
      %v8163 = vshrl.u32 %v8162, 7
      %v8164 = vsub.s32 %v8161, %v8163
      %v8165 = vrot.slane %v8157, %v8164
      %v8167 = vunpack.c.l.s4 1934713408
      %v8168 = vunpack.c.0.s8 %v8167
      %v8169 = vlaneseq
      %v8170 = vshrl.u32 %v8169, 7
      %v8171 = vsub.s32 %v8168, %v8170
      %v8172 = vrot.slane %v8158, %v8171
      %v8173 = vcombine.low %v8117, %v8133
      %v8174 = vcombine.high %v8117, %v8133
      %v8176 = vunpack.c.l.s4 1934713408
      %v8177 = vunpack.c.0.s8 %v8176
      %v8178 = vlaneseq
      %v8179 = vshrl.u32 %v8178, 7
      %v8180 = vsub.s32 %v8177, %v8179
      %v8181 = vrot.slane %v8173, %v8180
      %v8183 = vunpack.c.l.s4 1934713408
      %v8184 = vunpack.c.0.s8 %v8183
      %v8185 = vlaneseq
      %v8186 = vshrl.u32 %v8185, 7
      %v8187 = vsub.s32 %v8184, %v8186
      %v8188 = vrot.slane %v8174, %v8187
      %v8189 = vcombine.low %v8124, %v8140
      %v8190 = vcombine.high %v8124, %v8140
      %v8192 = vunpack.c.l.s4 1934713408
      %v8193 = vunpack.c.0.s8 %v8192
      %v8194 = vlaneseq
      %v8195 = vshrl.u32 %v8194, 7
      %v8196 = vsub.s32 %v8193, %v8195
      %v8197 = vrot.slane %v8189, %v8196
      %v8199 = vunpack.c.l.s4 1934713408
      %v8200 = vunpack.c.0.s8 %v8199
      %v8201 = vlaneseq
      %v8202 = vshrl.u32 %v8201, 7
      %v8203 = vsub.s32 %v8200, %v8202
      %v8204 = vrot.slane %v8190, %v8203
      %v8205 = vcombine.low %v8149, %v8181
      %v8206 = vcombine.high %v8149, %v8181
      %v8207 = vcombine.low %v8156, %v8188
      %v8208 = vcombine.high %v8156, %v8188
      %v8209 = vcombine.low %v8165, %v8197
      %v8210 = vcombine.high %v8165, %v8197
      %v8211 = vcombine.low %v8172, %v8204
      %v8212 = vcombine.high %v8172, %v8204
      %v8213 = vcombine.low %v7797, %v7799
      %v8214 = vcombine.high %v7797, %v7799
      %v8216 = vunpack.c.l.s4 1983009808
      %v8217 = vunpack.c.0.s8 %v8216
      %v8218 = vlaneseq
      %v8219 = vshrl.u32 %v8218, 7
      %v8220 = vsub.s32 %v8217, %v8219
      %v8221 = vrot.slane %v8213, %v8220
      %v8223 = vunpack.c.l.s4 1983009808
      %v8224 = vunpack.c.0.s8 %v8223
      %v8225 = vlaneseq
      %v8226 = vshrl.u32 %v8225, 7
      %v8227 = vsub.s32 %v8224, %v8226
      %v8228 = vrot.slane %v8214, %v8227
      %v8229 = vcombine.low %v7798, %v7800
      %v8230 = vcombine.high %v7798, %v7800
      %v8232 = vunpack.c.l.s4 1983009808
      %v8233 = vunpack.c.0.s8 %v8232
      %v8234 = vlaneseq
      %v8235 = vshrl.u32 %v8234, 7
      %v8236 = vsub.s32 %v8233, %v8235
      %v8237 = vrot.slane %v8229, %v8236
      %v8239 = vunpack.c.l.s4 1983009808
      %v8240 = vunpack.c.0.s8 %v8239
      %v8241 = vlaneseq
      %v8242 = vshrl.u32 %v8241, 7
      %v8243 = vsub.s32 %v8240, %v8242
      %v8244 = vrot.slane %v8230, %v8243
      %v8245 = vcombine.low %v7801, %v7803
      %v8246 = vcombine.high %v7801, %v7803
      %v8248 = vunpack.c.l.s4 1983009808
      %v8249 = vunpack.c.0.s8 %v8248
      %v8250 = vlaneseq
      %v8251 = vshrl.u32 %v8250, 7
      %v8252 = vsub.s32 %v8249, %v8251
      %v8253 = vrot.slane %v8245, %v8252
      %v8255 = vunpack.c.l.s4 1983009808
      %v8256 = vunpack.c.0.s8 %v8255
      %v8257 = vlaneseq
      %v8258 = vshrl.u32 %v8257, 7
      %v8259 = vsub.s32 %v8256, %v8258
      %v8260 = vrot.slane %v8246, %v8259
      %v8261 = vcombine.low %v7802, %v7804
      %v8262 = vcombine.high %v7802, %v7804
      %v8264 = vunpack.c.l.s4 1983009808
      %v8265 = vunpack.c.0.s8 %v8264
      %v8266 = vlaneseq
      %v8267 = vshrl.u32 %v8266, 7
      %v8268 = vsub.s32 %v8265, %v8267
      %v8269 = vrot.slane %v8261, %v8268
      %v8271 = vunpack.c.l.s4 1983009808
      %v8272 = vunpack.c.0.s8 %v8271
      %v8273 = vlaneseq
      %v8274 = vshrl.u32 %v8273, 7
      %v8275 = vsub.s32 %v8272, %v8274
      %v8276 = vrot.slane %v8262, %v8275
      %v8277 = vcombine.low %v8221, %v8237
      %v8278 = vcombine.high %v8221, %v8237
      %v8280 = vunpack.c.l.s4 1934713408
      %v8281 = vunpack.c.0.s8 %v8280
      %v8282 = vlaneseq
      %v8283 = vshrl.u32 %v8282, 7
      %v8284 = vsub.s32 %v8281, %v8283
      %v8285 = vrot.slane %v8277, %v8284
      %v8287 = vunpack.c.l.s4 1934713408
      %v8288 = vunpack.c.0.s8 %v8287
      %v8289 = vlaneseq
      %v8290 = vshrl.u32 %v8289, 7
      %v8291 = vsub.s32 %v8288, %v8290
      %v8292 = vrot.slane %v8278, %v8291
      %v8293 = vcombine.low %v8228, %v8244
      %v8294 = vcombine.high %v8228, %v8244
      %v8296 = vunpack.c.l.s4 1934713408
      %v8297 = vunpack.c.0.s8 %v8296
      %v8298 = vlaneseq
      %v8299 = vshrl.u32 %v8298, 7
      %v8300 = vsub.s32 %v8297, %v8299
      %v8301 = vrot.slane %v8293, %v8300
      %v8303 = vunpack.c.l.s4 1934713408
      %v8304 = vunpack.c.0.s8 %v8303
      %v8305 = vlaneseq
      %v8306 = vshrl.u32 %v8305, 7
      %v8307 = vsub.s32 %v8304, %v8306
      %v8308 = vrot.slane %v8294, %v8307
      %v8309 = vcombine.low %v8253, %v8269
      %v8310 = vcombine.high %v8253, %v8269
      %v8312 = vunpack.c.l.s4 1934713408
      %v8313 = vunpack.c.0.s8 %v8312
      %v8314 = vlaneseq
      %v8315 = vshrl.u32 %v8314, 7
      %v8316 = vsub.s32 %v8313, %v8315
      %v8317 = vrot.slane %v8309, %v8316
      %v8319 = vunpack.c.l.s4 1934713408
      %v8320 = vunpack.c.0.s8 %v8319
      %v8321 = vlaneseq
      %v8322 = vshrl.u32 %v8321, 7
      %v8323 = vsub.s32 %v8320, %v8322
      %v8324 = vrot.slane %v8310, %v8323
      %v8325 = vcombine.low %v8260, %v8276
      %v8326 = vcombine.high %v8260, %v8276
      %v8328 = vunpack.c.l.s4 1934713408
      %v8329 = vunpack.c.0.s8 %v8328
      %v8330 = vlaneseq
      %v8331 = vshrl.u32 %v8330, 7
      %v8332 = vsub.s32 %v8329, %v8331
      %v8333 = vrot.slane %v8325, %v8332
      %v8335 = vunpack.c.l.s4 1934713408
      %v8336 = vunpack.c.0.s8 %v8335
      %v8337 = vlaneseq
      %v8338 = vshrl.u32 %v8337, 7
      %v8339 = vsub.s32 %v8336, %v8338
      %v8340 = vrot.slane %v8326, %v8339
      %v8341 = vcombine.low %v8285, %v8317
      %v8342 = vcombine.high %v8285, %v8317
      %v8343 = vcombine.low %v8292, %v8324
      %v8344 = vcombine.high %v8292, %v8324
      %v8345 = vcombine.low %v8301, %v8333
      %v8346 = vcombine.high %v8301, %v8333
      %v8347 = vcombine.low %v8308, %v8340
      %v8348 = vcombine.high %v8308, %v8340
      %v8349 = vcombine.low %v7933, %v7935
      %v8350 = vcombine.high %v7933, %v7935
      %v8352 = vunpack.c.l.s4 1983009808
      %v8353 = vunpack.c.0.s8 %v8352
      %v8354 = vlaneseq
      %v8355 = vshrl.u32 %v8354, 7
      %v8356 = vsub.s32 %v8353, %v8355
      %v8357 = vrot.slane %v8349, %v8356
      %v8359 = vunpack.c.l.s4 1983009808
      %v8360 = vunpack.c.0.s8 %v8359
      %v8361 = vlaneseq
      %v8362 = vshrl.u32 %v8361, 7
      %v8363 = vsub.s32 %v8360, %v8362
      %v8364 = vrot.slane %v8350, %v8363
      %v8365 = vcombine.low %v7934, %v7936
      %v8366 = vcombine.high %v7934, %v7936
      %v8368 = vunpack.c.l.s4 1983009808
      %v8369 = vunpack.c.0.s8 %v8368
      %v8370 = vlaneseq
      %v8371 = vshrl.u32 %v8370, 7
      %v8372 = vsub.s32 %v8369, %v8371
      %v8373 = vrot.slane %v8365, %v8372
      %v8375 = vunpack.c.l.s4 1983009808
      %v8376 = vunpack.c.0.s8 %v8375
      %v8377 = vlaneseq
      %v8378 = vshrl.u32 %v8377, 7
      %v8379 = vsub.s32 %v8376, %v8378
      %v8380 = vrot.slane %v8366, %v8379
      %v8381 = vcombine.low %v7937, %v7939
      %v8382 = vcombine.high %v7937, %v7939
      %v8384 = vunpack.c.l.s4 1983009808
      %v8385 = vunpack.c.0.s8 %v8384
      %v8386 = vlaneseq
      %v8387 = vshrl.u32 %v8386, 7
      %v8388 = vsub.s32 %v8385, %v8387
      %v8389 = vrot.slane %v8381, %v8388
      %v8391 = vunpack.c.l.s4 1983009808
      %v8392 = vunpack.c.0.s8 %v8391
      %v8393 = vlaneseq
      %v8394 = vshrl.u32 %v8393, 7
      %v8395 = vsub.s32 %v8392, %v8394
      %v8396 = vrot.slane %v8382, %v8395
      %v8397 = vcombine.low %v7938, %v7940
      %v8398 = vcombine.high %v7938, %v7940
      %v8400 = vunpack.c.l.s4 1983009808
      %v8401 = vunpack.c.0.s8 %v8400
      %v8402 = vlaneseq
      %v8403 = vshrl.u32 %v8402, 7
      %v8404 = vsub.s32 %v8401, %v8403
      %v8405 = vrot.slane %v8397, %v8404
      %v8407 = vunpack.c.l.s4 1983009808
      %v8408 = vunpack.c.0.s8 %v8407
      %v8409 = vlaneseq
      %v8410 = vshrl.u32 %v8409, 7
      %v8411 = vsub.s32 %v8408, %v8410
      %v8412 = vrot.slane %v8398, %v8411
      %v8413 = vcombine.low %v8357, %v8373
      %v8414 = vcombine.high %v8357, %v8373
      %v8416 = vunpack.c.l.s4 1934713408
      %v8417 = vunpack.c.0.s8 %v8416
      %v8418 = vlaneseq
      %v8419 = vshrl.u32 %v8418, 7
      %v8420 = vsub.s32 %v8417, %v8419
      %v8421 = vrot.slane %v8413, %v8420
      %v8423 = vunpack.c.l.s4 1934713408
      %v8424 = vunpack.c.0.s8 %v8423
      %v8425 = vlaneseq
      %v8426 = vshrl.u32 %v8425, 7
      %v8427 = vsub.s32 %v8424, %v8426
      %v8428 = vrot.slane %v8414, %v8427
      %v8429 = vcombine.low %v8364, %v8380
      %v8430 = vcombine.high %v8364, %v8380
      %v8432 = vunpack.c.l.s4 1934713408
      %v8433 = vunpack.c.0.s8 %v8432
      %v8434 = vlaneseq
      %v8435 = vshrl.u32 %v8434, 7
      %v8436 = vsub.s32 %v8433, %v8435
      %v8437 = vrot.slane %v8429, %v8436
      %v8439 = vunpack.c.l.s4 1934713408
      %v8440 = vunpack.c.0.s8 %v8439
      %v8441 = vlaneseq
      %v8442 = vshrl.u32 %v8441, 7
      %v8443 = vsub.s32 %v8440, %v8442
      %v8444 = vrot.slane %v8430, %v8443
      %v8445 = vcombine.low %v8389, %v8405
      %v8446 = vcombine.high %v8389, %v8405
      %v8448 = vunpack.c.l.s4 1934713408
      %v8449 = vunpack.c.0.s8 %v8448
      %v8450 = vlaneseq
      %v8451 = vshrl.u32 %v8450, 7
      %v8452 = vsub.s32 %v8449, %v8451
      %v8453 = vrot.slane %v8445, %v8452
      %v8455 = vunpack.c.l.s4 1934713408
      %v8456 = vunpack.c.0.s8 %v8455
      %v8457 = vlaneseq
      %v8458 = vshrl.u32 %v8457, 7
      %v8459 = vsub.s32 %v8456, %v8458
      %v8460 = vrot.slane %v8446, %v8459
      %v8461 = vcombine.low %v8396, %v8412
      %v8462 = vcombine.high %v8396, %v8412
      %v8464 = vunpack.c.l.s4 1934713408
      %v8465 = vunpack.c.0.s8 %v8464
      %v8466 = vlaneseq
      %v8467 = vshrl.u32 %v8466, 7
      %v8468 = vsub.s32 %v8465, %v8467
      %v8469 = vrot.slane %v8461, %v8468
      %v8471 = vunpack.c.l.s4 1934713408
      %v8472 = vunpack.c.0.s8 %v8471
      %v8473 = vlaneseq
      %v8474 = vshrl.u32 %v8473, 7
      %v8475 = vsub.s32 %v8472, %v8474
      %v8476 = vrot.slane %v8462, %v8475
      %v8477 = vcombine.low %v8421, %v8453
      %v8478 = vcombine.high %v8421, %v8453
      %v8479 = vcombine.low %v8428, %v8460
      %v8480 = vcombine.high %v8428, %v8460
      %v8481 = vcombine.low %v8437, %v8469
      %v8482 = vcombine.high %v8437, %v8469
      %v8483 = vcombine.low %v8444, %v8476
      %v8484 = vcombine.high %v8444, %v8476
      %v8485 = vcombine.low %v8069, %v8071
      %v8486 = vcombine.high %v8069, %v8071
      %v8488 = vunpack.c.l.s4 1983009808
      %v8489 = vunpack.c.0.s8 %v8488
      %v8490 = vlaneseq
      %v8491 = vshrl.u32 %v8490, 7
      %v8492 = vsub.s32 %v8489, %v8491
      %v8493 = vrot.slane %v8485, %v8492
      %v8495 = vunpack.c.l.s4 1983009808
      %v8496 = vunpack.c.0.s8 %v8495
      %v8497 = vlaneseq
      %v8498 = vshrl.u32 %v8497, 7
      %v8499 = vsub.s32 %v8496, %v8498
      %v8500 = vrot.slane %v8486, %v8499
      %v8501 = vcombine.low %v8070, %v8072
      %v8502 = vcombine.high %v8070, %v8072
      %v8504 = vunpack.c.l.s4 1983009808
      %v8505 = vunpack.c.0.s8 %v8504
      %v8506 = vlaneseq
      %v8507 = vshrl.u32 %v8506, 7
      %v8508 = vsub.s32 %v8505, %v8507
      %v8509 = vrot.slane %v8501, %v8508
      %v8511 = vunpack.c.l.s4 1983009808
      %v8512 = vunpack.c.0.s8 %v8511
      %v8513 = vlaneseq
      %v8514 = vshrl.u32 %v8513, 7
      %v8515 = vsub.s32 %v8512, %v8514
      %v8516 = vrot.slane %v8502, %v8515
      %v8517 = vcombine.low %v8073, %v8075
      %v8518 = vcombine.high %v8073, %v8075
      %v8520 = vunpack.c.l.s4 1983009808
      %v8521 = vunpack.c.0.s8 %v8520
      %v8522 = vlaneseq
      %v8523 = vshrl.u32 %v8522, 7
      %v8524 = vsub.s32 %v8521, %v8523
      %v8525 = vrot.slane %v8517, %v8524
      %v8527 = vunpack.c.l.s4 1983009808
      %v8528 = vunpack.c.0.s8 %v8527
      %v8529 = vlaneseq
      %v8530 = vshrl.u32 %v8529, 7
      %v8531 = vsub.s32 %v8528, %v8530
      %v8532 = vrot.slane %v8518, %v8531
      %v8533 = vcombine.low %v8074, %v8076
      %v8534 = vcombine.high %v8074, %v8076
      %v8536 = vunpack.c.l.s4 1983009808
      %v8537 = vunpack.c.0.s8 %v8536
      %v8538 = vlaneseq
      %v8539 = vshrl.u32 %v8538, 7
      %v8540 = vsub.s32 %v8537, %v8539
      %v8541 = vrot.slane %v8533, %v8540
      %v8543 = vunpack.c.l.s4 1983009808
      %v8544 = vunpack.c.0.s8 %v8543
      %v8545 = vlaneseq
      %v8546 = vshrl.u32 %v8545, 7
      %v8547 = vsub.s32 %v8544, %v8546
      %v8548 = vrot.slane %v8534, %v8547
      %v8549 = vcombine.low %v8493, %v8509
      %v8550 = vcombine.high %v8493, %v8509
      %v8552 = vunpack.c.l.s4 1934713408
      %v8553 = vunpack.c.0.s8 %v8552
      %v8554 = vlaneseq
      %v8555 = vshrl.u32 %v8554, 7
      %v8556 = vsub.s32 %v8553, %v8555
      %v8557 = vrot.slane %v8549, %v8556
      %v8559 = vunpack.c.l.s4 1934713408
      %v8560 = vunpack.c.0.s8 %v8559
      %v8561 = vlaneseq
      %v8562 = vshrl.u32 %v8561, 7
      %v8563 = vsub.s32 %v8560, %v8562
      %v8564 = vrot.slane %v8550, %v8563
      %v8565 = vcombine.low %v8500, %v8516
      %v8566 = vcombine.high %v8500, %v8516
      %v8568 = vunpack.c.l.s4 1934713408
      %v8569 = vunpack.c.0.s8 %v8568
      %v8570 = vlaneseq
      %v8571 = vshrl.u32 %v8570, 7
      %v8572 = vsub.s32 %v8569, %v8571
      %v8573 = vrot.slane %v8565, %v8572
      %v8575 = vunpack.c.l.s4 1934713408
      %v8576 = vunpack.c.0.s8 %v8575
      %v8577 = vlaneseq
      %v8578 = vshrl.u32 %v8577, 7
      %v8579 = vsub.s32 %v8576, %v8578
      %v8580 = vrot.slane %v8566, %v8579
      %v8581 = vcombine.low %v8525, %v8541
      %v8582 = vcombine.high %v8525, %v8541
      %v8584 = vunpack.c.l.s4 1934713408
      %v8585 = vunpack.c.0.s8 %v8584
      %v8586 = vlaneseq
      %v8587 = vshrl.u32 %v8586, 7
      %v8588 = vsub.s32 %v8585, %v8587
      %v8589 = vrot.slane %v8581, %v8588
      %v8591 = vunpack.c.l.s4 1934713408
      %v8592 = vunpack.c.0.s8 %v8591
      %v8593 = vlaneseq
      %v8594 = vshrl.u32 %v8593, 7
      %v8595 = vsub.s32 %v8592, %v8594
      %v8596 = vrot.slane %v8582, %v8595
      %v8597 = vcombine.low %v8532, %v8548
      %v8598 = vcombine.high %v8532, %v8548
      %v8600 = vunpack.c.l.s4 1934713408
      %v8601 = vunpack.c.0.s8 %v8600
      %v8602 = vlaneseq
      %v8603 = vshrl.u32 %v8602, 7
      %v8604 = vsub.s32 %v8601, %v8603
      %v8605 = vrot.slane %v8597, %v8604
      %v8607 = vunpack.c.l.s4 1934713408
      %v8608 = vunpack.c.0.s8 %v8607
      %v8609 = vlaneseq
      %v8610 = vshrl.u32 %v8609, 7
      %v8611 = vsub.s32 %v8608, %v8610
      %v8612 = vrot.slane %v8598, %v8611
      %v8613 = vcombine.low %v8557, %v8589
      %v8614 = vcombine.high %v8557, %v8589
      %v8615 = vcombine.low %v8564, %v8596
      %v8616 = vcombine.high %v8564, %v8596
      %v8617 = vcombine.low %v8573, %v8605
      %v8618 = vcombine.high %v8573, %v8605
      %v8619 = vcombine.low %v8580, %v8612
      %v8620 = vcombine.high %v8580, %v8612
      %8625 = vrot.lane.b32.xlu0 %v8206, 4
      %v8626 = vpop.permute.xlu0 %8625
      %8627 = vrot.lane.b32.xlu0 %v8342, 4
      %v8628 = vpop.permute.xlu0 %8627
      %8629 = vrot.lane.b32.xlu0 %v8478, 4
      %v8630 = vpop.permute.xlu0 %8629
      %8631 = vrot.lane.b32.xlu0 %v8614, 4
      %v8632 = vpop.permute.xlu0 %8631
      %8641 = vrot.lane.b32.xlu0 %v8207, 8
      %v8642 = vpop.permute.xlu0 %8641
      %8643 = vrot.lane.b32.xlu0 %v8343, 8
      %v8644 = vpop.permute.xlu0 %8643
      %8645 = vrot.lane.b32.xlu0 %v8479, 8
      %v8646 = vpop.permute.xlu0 %8645
      %8647 = vrot.lane.b32.xlu0 %v8615, 8
      %v8648 = vpop.permute.xlu0 %8647
      %8657 = vrot.lane.b32.xlu0 %v8208, 12
      %v8658 = vpop.permute.xlu0 %8657
      %8659 = vrot.lane.b32.xlu0 %v8344, 12
      %v8660 = vpop.permute.xlu0 %8659
      %8661 = vrot.lane.b32.xlu0 %v8480, 12
      %v8662 = vpop.permute.xlu0 %8661
      %8663 = vrot.lane.b32.xlu0 %v8616, 12
      %v8664 = vpop.permute.xlu0 %8663
      %8673 = vrot.lane.b32.xlu0 %v8209, 16
      %v8674 = vpop.permute.xlu0 %8673
      %8675 = vrot.lane.b32.xlu0 %v8345, 16
      %v8676 = vpop.permute.xlu0 %8675
      %8677 = vrot.lane.b32.xlu0 %v8481, 16
      %v8678 = vpop.permute.xlu0 %8677
      %8679 = vrot.lane.b32.xlu0 %v8617, 16
      %v8680 = vpop.permute.xlu0 %8679
      %8689 = vrot.lane.b32.xlu0 %v8210, 20
      %v8690 = vpop.permute.xlu0 %8689
      %8691 = vrot.lane.b32.xlu0 %v8346, 20
      %v8692 = vpop.permute.xlu0 %8691
      %8693 = vrot.lane.b32.xlu0 %v8482, 20
      %v8694 = vpop.permute.xlu0 %8693
      %8695 = vrot.lane.b32.xlu0 %v8618, 20
      %v8696 = vpop.permute.xlu0 %8695
      %8705 = vrot.lane.b32.xlu0 %v8211, 24
      %v8706 = vpop.permute.xlu0 %8705
      %8707 = vrot.lane.b32.xlu0 %v8347, 24
      %v8708 = vpop.permute.xlu0 %8707
      %8709 = vrot.lane.b32.xlu0 %v8483, 24
      %v8710 = vpop.permute.xlu0 %8709
      %8711 = vrot.lane.b32.xlu0 %v8619, 24
      %v8712 = vpop.permute.xlu0 %8711
      %8721 = vrot.lane.b32.xlu0 %v8212, 28
      %v8722 = vpop.permute.xlu0 %8721
      %8723 = vrot.lane.b32.xlu0 %v8348, 28
      %v8724 = vpop.permute.xlu0 %8723
      %8725 = vrot.lane.b32.xlu0 %v8484, 28
      %v8726 = vpop.permute.xlu0 %8725
      %8727 = vrot.lane.b32.xlu0 %v8620, 28
      %v8728 = vpop.permute.xlu0 %8727
      %v8733 = vsel %vm4138, %v8205, %v8626
      %v8734 = vsel %vm4138, %v8341, %v8628
      %v8735 = vsel %vm4138, %v8477, %v8630
      %v8736 = vsel %vm4138, %v8613, %v8632
      %v8737 = vsel %vm5643, %v8733, %v8642
      %v8738 = vsel %vm5643, %v8734, %v8644
      %v8739 = vsel %vm5643, %v8735, %v8646
      %v8740 = vsel %vm5643, %v8736, %v8648
      %vm8741 = vcmask 97280
      %v8742 = vsel %vm8741, %v8737, %v8658
      %v8743 = vsel %vm8741, %v8738, %v8660
      %v8744 = vsel %vm8741, %v8739, %v8662
      %v8745 = vsel %vm8741, %v8740, %v8664
      %vm8746 = vcmask 130048
      %v8747 = vsel %vm8746, %v8742, %v8674
      %v8748 = vsel %vm8746, %v8743, %v8676
      %v8749 = vsel %vm8746, %v8744, %v8678
      %v8750 = vsel %vm8746, %v8745, %v8680
      %vm8751 = vcmask 162816
      %v8752 = vsel %vm8751, %v8747, %v8690
      %v8753 = vsel %vm8751, %v8748, %v8692
      %v8754 = vsel %vm8751, %v8749, %v8694
      %v8755 = vsel %vm8751, %v8750, %v8696
      %vm8756 = vcmask 195584
      %v8757 = vsel %vm8756, %v8752, %v8706
      %v8758 = vsel %vm8756, %v8753, %v8708
      %v8759 = vsel %vm8756, %v8754, %v8710
      %v8760 = vsel %vm8756, %v8755, %v8712
      %vm8761 = vcmask 228352
      %v8762 = vsel %vm8761, %v8757, %v8722
      %v8763 = vsel %vm8761, %v8758, %v8724
      %v8764 = vsel %vm8761, %v8759, %v8726
      %v8765 = vsel %vm8761, %v8760, %v8728
      %v8766 = vpack.c.bf16 %v8763, %v8762
      %v8767 = vpack.c.bf16 %v8765, %v8764
      %v8768 = vld [vmem:[%s3] sm:$0xf]
      %v8769 = vld [vmem:[%s3 + $0x4] sm:$0xf]
      %v8770 = vld [vmem:[%s3 + $0x8] sm:$0xf]
      %v8771 = vld [vmem:[%s3 + $0xc] sm:$0xf]
      %v8772 = vld [vmem:[%s4] sm:$0x1]
      %v8774 = vlaneseq
      %v8775 = vshrl.u32 %v8774, 7
      %v8776 = vsub.s32 0, %v8775
      %v8777 = vrot.slane %v8772, %v8776
      %v8783 = vunpack.c.l.b16 %v8768
      %v8784 = vunpack.c.l.b16 %v8769
      %v8785 = vunpack.c.l.b16 %v8770
      %v8786 = vunpack.c.l.b16 %v8771
      %v8787 = vpack.c.b16 %v8784, %v8783
      %v8788 = vpack.c.b16 %v8786, %v8785
      %v8792 = vsel %vm474, %v8766, 0
      %v8795 = vsel %vm474, %v8767, 0
      %8797 = vmatprep.subr.bf16.mxu0 0
      %8798 = vmatpush1.bf16.msra.mxu0 0
      %8799 = vmatprep.subr.bf16.mxu0 0
      %8800 = vmatpush1.bf16.msra.mxu0 0
      %8801 = vmatprep.subr.bf16.mxu0 0
      %8802 = vmatpush1.bf16.msra.mxu0 0
      %8803 = vmatprep.subr.bf16.mxu0 0
      %8804 = vmatpush1.bf16.msra.mxu0 0
      %8805 = vmatprep.subr.bf16.mxu0 0
      %8806 = vmatpush1.bf16.msra.mxu0 0
      %8807 = vmatprep.subr.bf16.mxu0 0
      %8808 = vmatpush1.bf16.msra.mxu0 0
      %8809 = vmatprep.subr.bf16.mxu0 0
      %8810 = vmatpush1.bf16.msra.mxu0 %v8788
      %8811 = vmatprep.subr.bf16.mxu0 0
      %8812 = vmatpush1.bf16.msra.mxu0 %v8787
      %8813 = vmatprep.subr.bf16.mxu0 0
      %8814 = vmatpush2.bf16.msra.mxu0 0
      %8815 = vmatprep.subr.bf16.mxu0 0
      %8816 = vmatpush2.bf16.msra.mxu0 0
      %8817 = vmatprep.subr.bf16.mxu0 0
      %8818 = vmatpush2.bf16.msra.mxu0 0
      %8819 = vmatprep.subr.bf16.mxu0 0
      %8820 = vmatpush2.bf16.msra.mxu0 0
      %8821 = vmatprep.subr.bf16.mxu0 0
      %8822 = vmatpush2.bf16.msra.mxu0 0
      %8823 = vmatprep.subr.bf16.mxu0 0
      %8824 = vmatpush2.bf16.msra.mxu0 0
      %8825 = vmatprep.subr.bf16.mxu0 0
      %8826 = vmatpush2.bf16.msra.mxu0 0
      %8827 = vmatprep.subr.bf16.mxu0 0
      %8828 = vmatpush2.bf16.msra.mxu0 0
      %8829 = vmatprep.mubr.bf16.mxu0 0
      %8830 = vmatmul.mubr.bf16.gmra.mxu0 %v8792
      %v8831 = vpop.f32.mrf.mxu0
      %v8832 = vadd.f32 %v8777, %v8831
      %v8833 = vpop.f32.mrf.mxu0
      %v8834 = vpop.f32.mrf.mxu0
      %v8835 = vadd.f32 %v8777, %v8834
      %v8836 = vpop.f32.mrf.mxu0
      %8837 = vmatprep.mubr.bf16.mxu0 0
      %8838 = vmatmul.mubr.bf16.gmra.mxu0 %v8795
      %v8839 = vpop.f32.mrf.mxu0
      %v8840 = vadd.f32 %v8777, %v8839
      %v8841 = vpop.f32.mrf.mxu0
      %v8842 = vpop.f32.mrf.mxu0
      %v8843 = vadd.f32 %v8777, %v8842
      %v8844 = vpop.f32.mrf.mxu0
      %8845 = vdwg.mxu0
      %v8846 = vadd.f32 %v445, %v8832
      %v8847 = vadd.f32 %v446, %v8835
      %v8848 = vadd.f32 %v447, %v8840
      %v8849 = vadd.f32 %v448, %v8843
      %v8850 = vsel %vm474, %v8846, 0.0
      %8851 = vadd.xlane.f32.xlu0 %v8850
      %v8852 = vpop.xlane.xlu0 %8851
      %v8853 = vsel %vm474, %v8847, 0.0
      %8854 = vadd.xlane.f32.xlu0 %v8853
      %v8855 = vpop.xlane.xlu0 %8854
      %v8856 = vsel %vm474, %v8848, 0.0
      %8857 = vadd.xlane.f32.xlu0 %v8856
      %v8858 = vpop.xlane.xlu0 %8857
      %v8859 = vsel %vm474, %v8849, 0.0
      %8860 = vadd.xlane.f32.xlu0 %v8859
      %v8861 = vpop.xlane.xlu0 %8860
      %v8862 = vrcp.pop 32.0
      %v8863 = vmul.f32 %v8852, %v8862
      %v8864 = vmul.f32 %v8855, %v8862
      %v8865 = vmul.f32 %v8858, %v8862
      %v8866 = vmul.f32 %v8861, %v8862
      %v8867 = vsub.f32 %v8846, %v8863
      %v8868 = vsub.f32 %v8847, %v8864
      %v8869 = vsub.f32 %v8848, %v8865
      %v8870 = vsub.f32 %v8849, %v8866
      %v8871 = vmul.f32 %v8867, %v8867
      %v8872 = vmul.f32 %v8868, %v8868
      %v8873 = vmul.f32 %v8869, %v8869
      %v8874 = vmul.f32 %v8870, %v8870
      %v8875 = vsel %vm474, %v8871, 0.0
      %8876 = vadd.xlane.f32.xlu0 %v8875
      %v8877 = vpop.xlane.xlu0 %8876
      %v8878 = vsel %vm474, %v8872, 0.0
      %8879 = vadd.xlane.f32.xlu0 %v8878
      %v8880 = vpop.xlane.xlu0 %8879
      %v8881 = vsel %vm474, %v8873, 0.0
      %8882 = vadd.xlane.f32.xlu0 %v8881
      %v8883 = vpop.xlane.xlu0 %8882
      %v8884 = vsel %vm474, %v8874, 0.0
      %8885 = vadd.xlane.f32.xlu0 %v8884
      %v8886 = vpop.xlane.xlu0 %8885
      %v8887 = vmul.f32 %v8877, %v8862
      %v8888 = vmul.f32 %v8880, %v8862
      %v8889 = vmul.f32 %v8883, %v8862
      %v8890 = vmul.f32 %v8886, %v8862
      %v8891 = vadd.f32 %v8887, 1e-05
      %v8892 = vadd.f32 %v8888, 1e-05
      %v8893 = vadd.f32 %v8889, 1e-05
      %v8894 = vadd.f32 %v8890, 1e-05
      %v8895 = vrsqrt.pop %v8891
      %v8896 = vrsqrt.pop %v8892
      %v8897 = vrsqrt.pop %v8893
      %v8898 = vrsqrt.pop %v8894
      %v8899 = vmul.f32 %v8867, %v8895
      %v8900 = vmul.f32 %v8868, %v8896
      %v8901 = vmul.f32 %v8869, %v8897
      %v8902 = vmul.f32 %v8870, %v8898
      %v8903 = vld [vmem:[%s9] sm:$0x1]
      %v8905 = vlaneseq
      %v8906 = vshrl.u32 %v8905, 7
      %v8907 = vsub.s32 0, %v8906
      %v8908 = vrot.slane %v8903, %v8907
      %v8910 = vmul.f32 %v8899, %v8908
      %v8911 = vmul.f32 %v8900, %v8908
      %v8912 = vmul.f32 %v8901, %v8908
      %v8913 = vmul.f32 %v8902, %v8908
      %v8914 = vld [vmem:[%s10] sm:$0x1]
      %v8916 = vlaneseq
      %v8917 = vshrl.u32 %v8916, 7
      %v8918 = vsub.s32 0, %v8917
      %v8919 = vrot.slane %v8914, %v8918
      %v8921 = vadd.f32 %v8910, %v8919
      %v8922 = vadd.f32 %v8911, %v8919
      %v8923 = vadd.f32 %v8912, %v8919
      %v8924 = vadd.f32 %v8913, %v8919
      %v8925 = vpack.c.bf16 %v8922, %v8921
      %v8926 = vpack.c.bf16 %v8924, %v8923
      %v8927 = vld [vmem:[%s5] sm:$0xf]
      %v8928 = vld [vmem:[%s5 + $0x4] sm:$0xf]
      %v8929 = vld [vmem:[%s5 + $0x8] sm:$0xf]
      %v8930 = vld [vmem:[%s5 + $0xc] sm:$0xf]
      %v8931 = vld [vmem:[%s6] sm:$0x1]
      %v8933 = vlaneseq
      %v8934 = vshrl.u32 %v8933, 7
      %v8935 = vsub.s32 0, %v8934
      %v8936 = vrot.slane %v8931, %v8935
      %v8942 = vunpack.c.l.b16 %v8927
      %v8943 = vunpack.c.l.b16 %v8928
      %v8944 = vunpack.c.l.b16 %v8929
      %v8945 = vunpack.c.l.b16 %v8930
      %v8946 = vpack.c.b16 %v8943, %v8942
      %v8947 = vpack.c.b16 %v8945, %v8944
      %v8951 = vsel %vm474, %v8925, 0
      %v8954 = vsel %vm474, %v8926, 0
      %8956 = vmatprep.subr.bf16.mxu0 0
      %8957 = vmatpush1.bf16.msra.mxu0 0
      %8958 = vmatprep.subr.bf16.mxu0 0
      %8959 = vmatpush1.bf16.msra.mxu0 0
      %8960 = vmatprep.subr.bf16.mxu0 0
      %8961 = vmatpush1.bf16.msra.mxu0 0
      %8962 = vmatprep.subr.bf16.mxu0 0
      %8963 = vmatpush1.bf16.msra.mxu0 0
      %8964 = vmatprep.subr.bf16.mxu0 0
      %8965 = vmatpush1.bf16.msra.mxu0 0
      %8966 = vmatprep.subr.bf16.mxu0 0
      %8967 = vmatpush1.bf16.msra.mxu0 0
      %8968 = vmatprep.subr.bf16.mxu0 0
      %8969 = vmatpush1.bf16.msra.mxu0 %v8947
      %8970 = vmatprep.subr.bf16.mxu0 0
      %8971 = vmatpush1.bf16.msra.mxu0 %v8946
      %8972 = vmatprep.subr.bf16.mxu0 0
      %8973 = vmatpush2.bf16.msra.mxu0 0
      %8974 = vmatprep.subr.bf16.mxu0 0
      %8975 = vmatpush2.bf16.msra.mxu0 0
      %8976 = vmatprep.subr.bf16.mxu0 0
      %8977 = vmatpush2.bf16.msra.mxu0 0
      %8978 = vmatprep.subr.bf16.mxu0 0
      %8979 = vmatpush2.bf16.msra.mxu0 0
      %8980 = vmatprep.subr.bf16.mxu0 0
      %8981 = vmatpush2.bf16.msra.mxu0 0
      %8982 = vmatprep.subr.bf16.mxu0 0
      %8983 = vmatpush2.bf16.msra.mxu0 0
      %8984 = vmatprep.subr.bf16.mxu0 0
      %8985 = vmatpush2.bf16.msra.mxu0 0
      %8986 = vmatprep.subr.bf16.mxu0 0
      %8987 = vmatpush2.bf16.msra.mxu0 0
      %8988 = vmatprep.mubr.bf16.mxu0 0
      %8989 = vmatmul.mubr.bf16.gmra.mxu0 %v8951
      %v8990 = vpop.f32.mrf.mxu0
      %v8991 = vadd.f32 %v8936, %v8990
      %v8992 = vpop.f32.mrf.mxu0
      %v8993 = vpop.f32.mrf.mxu0
      %v8994 = vadd.f32 %v8936, %v8993
      %v8995 = vpop.f32.mrf.mxu0
      %8996 = vmatprep.mubr.bf16.mxu0 0
      %8997 = vmatmul.mubr.bf16.gmra.mxu0 %v8954
      %v8998 = vpop.f32.mrf.mxu0
      %v8999 = vadd.f32 %v8936, %v8998
      %v9000 = vpop.f32.mrf.mxu0
      %v9001 = vpop.f32.mrf.mxu0
      %v9002 = vadd.f32 %v8936, %v9001
      %v9003 = vpop.f32.mrf.mxu0
      %9004 = vdwg.mxu0
      %v9005 = vmul.f32 %v8991, 0.5
      %v9006 = vmul.f32 %v8994, 0.5
      %v9007 = vmul.f32 %v8999, 0.5
      %v9008 = vmul.f32 %v9002, 0.5
      %v9009 = vmul.f32 %v8991, 0.70710677
      %v9010 = vmul.f32 %v8994, 0.70710677
      %v9011 = vmul.f32 %v8999, 0.70710677
      %v9012 = vmul.f32 %v9002, 0.70710677
      %v9013 = verf.f32.pop %v9009
      %v9014 = verf.f32.pop %v9010
      %v9015 = verf.f32.pop %v9011
      %v9016 = verf.f32.pop %v9012
      %v9017 = vadd.f32 %v9013, 1.0
      %v9018 = vadd.f32 %v9014, 1.0
      %v9019 = vadd.f32 %v9015, 1.0
      %v9020 = vadd.f32 %v9016, 1.0
      %v9021 = vmul.f32 %v9005, %v9017
      %v9022 = vmul.f32 %v9006, %v9018
      %v9023 = vmul.f32 %v9007, %v9019
      %v9024 = vmul.f32 %v9008, %v9020
      %v9025 = vpack.c.bf16 %v9022, %v9021
      %v9026 = vpack.c.bf16 %v9024, %v9023
      %v9027 = vld [vmem:[%s7] sm:$0xf]
      %v9028 = vld [vmem:[%s7 + $0x4] sm:$0xf]
      %v9029 = vld [vmem:[%s7 + $0x8] sm:$0xf]
      %v9030 = vld [vmem:[%s7 + $0xc] sm:$0xf]
      %v9031 = vld [vmem:[%s7 + $0x10] sm:$0xf]
      %v9032 = vld [vmem:[%s7 + $0x14] sm:$0xf]
      %v9033 = vld [vmem:[%s7 + $0x18] sm:$0xf]
      %v9034 = vld [vmem:[%s7 + $0x1c] sm:$0xf]
      %v9035 = vld [vmem:[%s7 + $0x20] sm:$0xf]
      %v9036 = vld [vmem:[%s7 + $0x24] sm:$0xf]
      %v9037 = vld [vmem:[%s7 + $0x28] sm:$0xf]
      %v9038 = vld [vmem:[%s7 + $0x2c] sm:$0xf]
      %v9039 = vld [vmem:[%s7 + $0x30] sm:$0xf]
      %v9040 = vld [vmem:[%s7 + $0x34] sm:$0xf]
      %v9041 = vld [vmem:[%s7 + $0x38] sm:$0xf]
      %v9042 = vld [vmem:[%s7 + $0x3c] sm:$0xf]
      %v9043 = vld [vmem:[%s8] sm:$0x1]
      %v9045 = vlaneseq
      %v9046 = vshrl.u32 %v9045, 7
      %v9047 = vsub.s32 0, %v9046
      %v9048 = vrot.slane %v9043, %v9047
      %v9066 = vunpack.c.l.b16 %v9027
      %v9067 = vunpack.c.l.b16 %v9028
      %v9068 = vunpack.c.l.b16 %v9029
      %v9069 = vunpack.c.l.b16 %v9030
      %v9070 = vunpack.c.l.b16 %v9031
      %v9071 = vunpack.c.l.b16 %v9032
      %v9072 = vunpack.c.l.b16 %v9033
      %v9073 = vunpack.c.l.b16 %v9034
      %v9074 = vunpack.c.l.b16 %v9035
      %v9075 = vunpack.c.l.b16 %v9036
      %v9076 = vunpack.c.l.b16 %v9037
      %v9077 = vunpack.c.l.b16 %v9038
      %v9078 = vunpack.c.l.b16 %v9039
      %v9079 = vunpack.c.l.b16 %v9040
      %v9080 = vunpack.c.l.b16 %v9041
      %v9081 = vunpack.c.l.b16 %v9042
      %v9082 = vpack.c.b16 %v9067, %v9066
      %v9083 = vpack.c.b16 %v9069, %v9068
      %v9084 = vpack.c.b16 %v9071, %v9070
      %v9085 = vpack.c.b16 %v9073, %v9072
      %v9086 = vpack.c.b16 %v9075, %v9074
      %v9087 = vpack.c.b16 %v9077, %v9076
      %v9088 = vpack.c.b16 %v9079, %v9078
      %v9089 = vpack.c.b16 %v9081, %v9080
      %9098 = vmatprep.subr.bf16.mxu0 0
      %9099 = vmatpush1.bf16.msra.mxu0 %v9089
      %9100 = vmatprep.subr.bf16.mxu0 0
      %9101 = vmatpush1.bf16.msra.mxu0 %v9088
      %9102 = vmatprep.subr.bf16.mxu0 0
      %9103 = vmatpush1.bf16.msra.mxu0 %v9087
      %9104 = vmatprep.subr.bf16.mxu0 0
      %9105 = vmatpush1.bf16.msra.mxu0 %v9086
      %9106 = vmatprep.subr.bf16.mxu0 0
      %9107 = vmatpush1.bf16.msra.mxu0 %v9085
      %9108 = vmatprep.subr.bf16.mxu0 0
      %9109 = vmatpush1.bf16.msra.mxu0 %v9084
      %9110 = vmatprep.subr.bf16.mxu0 0
      %9111 = vmatpush1.bf16.msra.mxu0 %v9083
      %9112 = vmatprep.subr.bf16.mxu0 0
      %9113 = vmatpush1.bf16.msra.mxu0 %v9082
      %9114 = vmatprep.subr.bf16.mxu0 0
      %9115 = vmatpush2.bf16.msra.mxu0 0
      %9116 = vmatprep.subr.bf16.mxu0 0
      %9117 = vmatpush2.bf16.msra.mxu0 0
      %9118 = vmatprep.subr.bf16.mxu0 0
      %9119 = vmatpush2.bf16.msra.mxu0 0
      %9120 = vmatprep.subr.bf16.mxu0 0
      %9121 = vmatpush2.bf16.msra.mxu0 0
      %9122 = vmatprep.subr.bf16.mxu0 0
      %9123 = vmatpush2.bf16.msra.mxu0 0
      %9124 = vmatprep.subr.bf16.mxu0 0
      %9125 = vmatpush2.bf16.msra.mxu0 0
      %9126 = vmatprep.subr.bf16.mxu0 0
      %9127 = vmatpush2.bf16.msra.mxu0 0
      %9128 = vmatprep.subr.bf16.mxu0 0
      %9129 = vmatpush2.bf16.msra.mxu0 0
      %9130 = vmatprep.mubr.bf16.mxu0 0
      %9131 = vmatmul.mubr.bf16.gmra.mxu0 %v9025
      %v9132 = vpop.f32.mrf.mxu0
      %v9133 = vadd.f32 %v9048, %v9132
      %v9134 = vpop.f32.mrf.mxu0
      %v9135 = vpop.f32.mrf.mxu0
      %v9136 = vadd.f32 %v9048, %v9135
      %v9137 = vpop.f32.mrf.mxu0
      %9138 = vmatprep.mubr.bf16.mxu0 0
      %9139 = vmatmul.mubr.bf16.gmra.mxu0 %v9026
      %v9140 = vpop.f32.mrf.mxu0
      %v9141 = vadd.f32 %v9048, %v9140
      %v9142 = vpop.f32.mrf.mxu0
      %v9143 = vpop.f32.mrf.mxu0
      %v9144 = vadd.f32 %v9048, %v9143
      %v9145 = vpop.f32.mrf.mxu0
      %9146 = vdwg.mxu0
      %v9147 = vadd.f32 %v8921, %v9133
      %v9148 = vadd.f32 %v8922, %v9136
      %v9149 = vadd.f32 %v8923, %v9141
      %v9150 = vadd.f32 %v8924, %v9144
      %v9151 = vsel %vm474, %v9147, 0.0
      %9152 = vadd.xlane.f32.xlu0 %v9151
      %v9153 = vpop.xlane.xlu0 %9152
      %v9154 = vsel %vm474, %v9148, 0.0
      %9155 = vadd.xlane.f32.xlu0 %v9154
      %v9156 = vpop.xlane.xlu0 %9155
      %v9157 = vsel %vm474, %v9149, 0.0
      %9158 = vadd.xlane.f32.xlu0 %v9157
      %v9159 = vpop.xlane.xlu0 %9158
      %v9160 = vsel %vm474, %v9150, 0.0
      %9161 = vadd.xlane.f32.xlu0 %v9160
      %v9162 = vpop.xlane.xlu0 %9161
      %v9163 = vmul.f32 %v9153, %v8862
      %v9164 = vmul.f32 %v9156, %v8862
      %v9165 = vmul.f32 %v9159, %v8862
      %v9166 = vmul.f32 %v9162, %v8862
      %v9167 = vsub.f32 %v9147, %v9163
      %v9168 = vsub.f32 %v9148, %v9164
      %v9169 = vsub.f32 %v9149, %v9165
      %v9170 = vsub.f32 %v9150, %v9166
      %v9171 = vmul.f32 %v9167, %v9167
      %v9172 = vmul.f32 %v9168, %v9168
      %v9173 = vmul.f32 %v9169, %v9169
      %v9174 = vmul.f32 %v9170, %v9170
      %v9175 = vsel %vm474, %v9171, 0.0
      %9176 = vadd.xlane.f32.xlu0 %v9175
      %v9177 = vpop.xlane.xlu0 %9176
      %v9178 = vsel %vm474, %v9172, 0.0
      %9179 = vadd.xlane.f32.xlu0 %v9178
      %v9180 = vpop.xlane.xlu0 %9179
      %v9181 = vsel %vm474, %v9173, 0.0
      %9182 = vadd.xlane.f32.xlu0 %v9181
      %v9183 = vpop.xlane.xlu0 %9182
      %v9184 = vsel %vm474, %v9174, 0.0
      %9185 = vadd.xlane.f32.xlu0 %v9184
      %v9186 = vpop.xlane.xlu0 %9185
      %v9187 = vmul.f32 %v9177, %v8862
      %v9188 = vmul.f32 %v9180, %v8862
      %v9189 = vmul.f32 %v9183, %v8862
      %v9190 = vmul.f32 %v9186, %v8862
      %v9191 = vadd.f32 %v9187, 1e-05
      %v9192 = vadd.f32 %v9188, 1e-05
      %v9193 = vadd.f32 %v9189, 1e-05
      %v9194 = vadd.f32 %v9190, 1e-05
      %v9195 = vrsqrt.pop %v9191
      %v9196 = vrsqrt.pop %v9192
      %v9197 = vrsqrt.pop %v9193
      %v9198 = vrsqrt.pop %v9194
      %v9199 = vmul.f32 %v9167, %v9195
      %v9200 = vmul.f32 %v9168, %v9196
      %v9201 = vmul.f32 %v9169, %v9197
      %v9202 = vmul.f32 %v9170, %v9198
      %v9203 = vld [vmem:[%s11] sm:$0x1]
      %v9205 = vlaneseq
      %v9206 = vshrl.u32 %v9205, 7
      %v9207 = vsub.s32 0, %v9206
      %v9208 = vrot.slane %v9203, %v9207
      %v9210 = vmul.f32 %v9199, %v9208
      %v9211 = vmul.f32 %v9200, %v9208
      %v9212 = vmul.f32 %v9201, %v9208
      %v9213 = vmul.f32 %v9202, %v9208
      %v9214 = vld [vmem:[%s12] sm:$0x1]
      %v9216 = vlaneseq
      %v9217 = vshrl.u32 %v9216, 7
      %v9218 = vsub.s32 0, %v9217
      %v9219 = vrot.slane %v9214, %v9218
      %v9221 = vadd.f32 %v9210, %v9219
      %v9222 = vadd.f32 %v9211, %v9219
      %v9223 = vadd.f32 %v9212, %v9219
      %v9224 = vadd.f32 %v9213, %v9219
      %9225 = vst.msk [vmem:[%s442] sm:$0xff] %vm474, %v9221
      %9226 = vst.msk [vmem:[%s442 + $0x8] sm:$0xff] %vm474, %v9222
      %9227 = vst.msk [vmem:[%s442 + $0x10] sm:$0xff] %vm474, %v9223
      %9228 = vst.msk [vmem:[%s442 + $0x18] sm:$0xff] %vm474, %v9224
      %s9229 = smul.u32 4, %s24
      %p9230 = scmp.lt.s32.totalorder %s9229, 7
      %s9231 = scalar_select %p9230, %s9229, 7
      %s9232 = smul.addr %s9231, 8
      %s9233 = scalar_lea.vmem %s13, %s9232
      // Predicated region
      $region73: #{tpu_custom_call.1} parent=71 // pred_check
        %p9234 = pneg %p320
      $region74: #{tpu_custom_call.1} parent=71 // pred_check_branch
        %9236 = sbr.rel (%p9234) target = $region76
      $region75: #{tpu_custom_call.1} parent=71 // pred_region
        %s9237 = smul.u32 4, %s24
      $region76: #{tpu_custom_call.1} parent=71 // pred_fallthru
        _
    $region72: #{tpu_custom_call.1} parent=5 // pred_fallthru
      _
    %p9238 = scmp.le.s32.totalorder 2, %s19
    // Predicated region
    $region77: #{tpu_custom_call.1} parent=5 // pred_check
      %p9239 = pneg %p9238
    $region78: #{tpu_custom_call.1} parent=5 // pred_check_branch
      %9241 = sbr.rel (%p9239) target = $region80
    $region79: #{tpu_custom_call.1} parent=5 // pred_region
      %s9242 = ssub.s32 %s19, 2
      // Predicated region
      $region81: #{tpu_custom_call.1} parent=79 // pred_check
        %p9243 = pneg %p326
      $region82: #{tpu_custom_call.1} parent=79 // pred_check_branch
        %9245 = sbr.rel (%p9243) target = $region84
      $region83: #{tpu_custom_call.1} parent=79 // pred_region
        %s9246 = smul.u32 4, %s25
        %p9247 = scmp.lt.s32.totalorder %s9246, 7
        %s9248 = scalar_select %p9247, %s9246, 7
        %s9249 = smul.addr %s9248, 8
        %s9250 = scalar_lea.vmem %s13, %s9249
      $region84: #{tpu_custom_call.1} parent=79 // pred_fallthru
        _
    $region80: #{tpu_custom_call.1} parent=5 // pred_fallthru
      _
  $region6: #{tpu_custom_call.1} parent=0 // loop_footer
    %s23 = sadd.s32 1, %s19
  $region7: #{tpu_custom_call.1} parent=0 // loop_footer_branch
    %18 = sbr.rel target = $region3
  $region8: #{tpu_custom_call.1} parent=0 // loop_exit
    _

</llo_original>
